<compile_context>
chip_gen: v7x
topology: tpu7x:2x2x1
jax: 0.10.0
libtpu: 0.0.40
codegen_flags: <defaults>
</compile_context>

<pallas_src>
import functools

import jax
import jax.numpy as jnp
from jax.experimental import pallas as pl
from jax.experimental.pallas import tpu as pltpu


def _const_spec(shape):
    """Full-array block whose block index does not depend on the grid step."""
    nd = len(shape)
    return pl.BlockSpec(shape, lambda *_a, _nd=nd: (0,) * _nd)


# -----------------------------------------------------------------------------
# Extractor: stand-in for `nn.Sequential(*list(model.net.children())[:-1])`
# TODO(synk): the original extractor is an arbitrary pretrained CNN backbone
# (e.g. ResNet minus fc); a deterministic Conv3x3 + bias + ReLU + global-avg-
# pool stand-in with the same output feature_dim is used here.
# -----------------------------------------------------------------------------
def _extractor_kernel(xp_ref, w_ref, b_ref, o_ref):
    # xp_ref: (1, H+2, W+2, C) padded NHWC image block
    # w_ref : (9, C, D) conv taps, b_ref: (1, D), o_ref: (1, 1, D)
    hp2, wp2, c = xp_ref.shape[1], xp_ref.shape[2], xp_ref.shape[3]
    h, w = hp2 - 2, wp2 - 2
    d = w_ref.shape[-1]

    xfull = xp_ref[0]                                     # (H+2, W+2, C)
    acc = jnp.zeros((h * w, d), jnp.float32)
    for dy in range(3):                                   # 9 shifted matmuls
        for dx in range(3):
            xs = xfull[dy:dy + h, dx:dx + w, :].reshape(h * w, c)
            acc = acc + jnp.dot(xs, w_ref[dy * 3 + dx],
                                preferred_element_type=jnp.float32)
    y = jnp.maximum(acc + b_ref[...], 0.0)                # bias + ReLU
    o_ref[0] = jnp.mean(y, axis=0, keepdims=True)         # global avg pool


def extractor_forward(x, conv_w, conv_b):
    # x: (N, C, H, W) NCHW, conv_w: (D, C, 3, 3), conv_b: (D,)
    n, c, h, w = x.shape
    d = conv_w.shape[0]
    xp = jnp.pad(x, ((0, 0), (0, 0), (1, 1), (1, 1)))     # SAME padding
    xp = jnp.transpose(xp, (0, 2, 3, 1))                  # NHWC (1x image bytes)
    w9 = jnp.transpose(conv_w, (2, 3, 1, 0)).reshape(9, c, d)
    b = conv_b.reshape(1, d)

    out = pl.pallas_call(
        _extractor_kernel,
        grid=(n,),
        in_specs=[
            pl.BlockSpec((1, h + 2, w + 2, c), lambda i: (i, 0, 0, 0)),
            _const_spec(w9.shape),
            _const_spec(b.shape),
        ],
        out_specs=pl.BlockSpec((1, 1, d), lambda i: (i, 0, 0)),
        out_shape=jax.ShapeDtypeStruct((n, 1, d), jnp.float32),
        compiler_params=pltpu.CompilerParams(
            dimension_semantics=("parallel",)),
    )(xp, w9, b)
    return out.reshape(n, d)


# -----------------------------------------------------------------------------
# Fused per-sample transformer stack + masked max-pool + classifier.
# One grid step = one sample (all max_num_views views, masked).
# -----------------------------------------------------------------------------
def _transformer_kernel(y_ref, bias_ref, rowvalid_ref,
                        ln1w_ref, ln1b_ref, wqkv_ref, wo_ref, bo_ref,
                        ln2w_ref, ln2b_ref, w1_ref, b1_ref, w2_ref, b2_ref,
                        fcw_ref, fcb_ref,
                        logits_ref, k_ref, *, num_heads):
    eps = 1e-5
    x = y_ref[0]                                          # (V, D)
    key_bias = bias_ref[0]                                # (1, V): 0 / -1e9
    row_valid = rowvalid_ref[0]                           # (V, 1): 1 / 0

    num_layers = wqkv_ref.shape[0]
    d = x.shape[-1]
    head_dim = d // num_heads
    inv_temp = 1.0 / (float(head_dim) ** 0.5)

    for l in range(num_layers):
        # ---- LayerNorm 1 ----
        mu = jnp.mean(x, axis=-1, keepdims=True)
        var = jnp.mean(jnp.square(x - mu), axis=-1, keepdims=True)
        xn = (x - mu) * jax.lax.rsqrt(var + eps) * ln1w_ref[l] + ln1b_ref[l]

        # ---- fused QKV projection (no bias, as in the PyTorch module) ----
        qkv = jnp.dot(xn, wqkv_ref[l], preferred_element_type=jnp.float32)  # (V, 3D)

        # ---- multi-head attention; output projection folded per head ----
        wo_l = wo_ref[l]                                  # (D, D)
        o = bo_ref[l]                                     # (1, D) -> broadcasts
        for hh in range(num_heads):
            lo, hi = hh * head_dim, (hh + 1) * head_dim
            qs = qkv[:, lo:hi]
            ks = qkv[:, d + lo:d + hi]
            vs = qkv[:, 2 * d + lo:2 * d + hi]
            s = jax.lax.dot_general(
                qs, ks, (((1,), (1,)), ((), ())),
                preferred_element_type=jnp.float32) * inv_temp      # (V, V)
            s = s + key_bias                               # mask padded keys
            s = s - jnp.max(s, axis=-1, keepdims=True)
            p = jnp.exp(s)
            p = p * pl.reciprocal(jnp.sum(p, axis=-1, keepdims=True),
                                  approx=True)             # softmax
            head_out = jnp.dot(p, vs, preferred_element_type=jnp.float32)
            # attn @ Wo == sum_h head_out_h @ Wo[rows of head h]
            o = o + jnp.dot(head_out, wo_l[lo:hi, :],
                            preferred_element_type=jnp.float32)
        out1 = o + x                                       # residual 1 (dropout=id)

        # ---- LayerNorm 2 + MLP ----
        mu2 = jnp.mean(out1, axis=-1, keepdims=True)
        var2 = jnp.mean(jnp.square(out1 - mu2), axis=-1, keepdims=True)
        xn2 = (out1 - mu2) * jax.lax.rsqrt(var2 + eps) * ln2w_ref[l] + ln2b_ref[l]
        h1 = jnp.dot(xn2, w1_ref[l], preferred_element_type=jnp.float32) + b1_ref[l]
        # TODO(synk): torch nn.GELU() is exact-erf GELU; tanh approximation is
        # used here (deviation ~1e-3).
        h1 = jax.nn.gelu(h1, approximate=True)
        mlp = jnp.dot(h1, w2_ref[l], preferred_element_type=jnp.float32) + b2_ref[l]
        x = mlp + out1                                     # residual 2

    # ---- masked max over valid views ----
    zmask = jnp.where(row_valid > 0.5, x, -jnp.inf)
    kk = jnp.max(zmask, axis=0, keepdims=True)             # (1, D)
    k_ref[0] = kk

    # ---- classifier ----
    logits_ref[0] = (jnp.dot(kk, fcw_ref[...],
                             preferred_element_type=jnp.float32) + fcb_ref[...])


# -----------------------------------------------------------------------------
# VSFormer forward (use_utilization=False path)
# TODO(synk): the `use_utilization=True` branch (argmax-based view utilization
# histogram) is not implemented.
# -----------------------------------------------------------------------------
def vsformer_forward(params, batch_size, max_num_views, num_views, x,
                     num_layers, num_heads):
    y = extractor_forward(x, params["conv_w"], params["conv_b"])   # (N, D)

    B, V = batch_size, max_num_views
    D = y.shape[-1]
    y3 = y.reshape(B, V, D)

    # View-validity masks (replaces ragged z[:num_views[i]] slicing).
    nv = jnp.asarray(num_views, jnp.int32)                           # (B,)
    valid = (jnp.arange(V, dtype=jnp.int32)[None, :] < nv[:, None]
             ).astype(jnp.float32)                                   # (B, V)
    attn_bias = ((1.0 - valid) * jnp.float32(-1e9))[:, None, :]      # (B, 1, V)
    row_valid = valid[:, :, None]                                    # (B, V, 1)

    # Stack per-layer weights along a leading layer axis; fuse Wq/Wk/Wv.
    layers = params["layers"]
    stack = lambda name: jnp.stack([layers[l][name] for l in range(num_layers)],
                                   axis=0)
    wqkv = jnp.concatenate([stack("wq"), stack("wk"), stack("wv")], axis=-1)
    ln1w, ln1b = stack("ln1_w"), stack("ln1_b")
    wo, bo = stack("wo"), stack("bo")
    ln2w, ln2b = stack("ln2_w"), stack("ln2_b")
    w1, b1 = stack("w1"), stack("b1")
    w2, b2 = stack("w2"), stack("b2")
    fc_w, fc_b = params["fc_w"], params["fc_b"]
    num_classes = fc_w.shape[-1]

    args = (y3, attn_bias, row_valid, ln1w, ln1b, wqkv, wo, bo,
            ln2w, ln2b, w1, b1, w2, b2, fc_w, fc_b)

    in_specs = [
        pl.BlockSpec((1, V, D), lambda b: (b, 0, 0)),
        pl.BlockSpec((1, 1, V), lambda b: (b, 0, 0)),
        pl.BlockSpec((1, V, 1), lambda b: (b, 0, 0)),
    ] + [_const_spec(a.shape) for a in args[3:]]

    out_specs = (
        pl.BlockSpec((1, 1, num_classes), lambda b: (b, 0, 0)),
        pl.BlockSpec((1, 1, D), lambda b: (b, 0, 0)),
    )
    out_shape = (
        jax.ShapeDtypeStruct((B, 1, num_classes), jnp.float32),
        jax.ShapeDtypeStruct((B, 1, D), jnp.float32),
    )

    kernel = functools.partial(_transformer_kernel, num_heads=num_heads)
    logits, k = pl.pallas_call(
        kernel,
        grid=(B,),
        in_specs=in_specs,
        out_specs=out_specs,
        out_shape=out_shape,
        compiler_params=pltpu.CompilerParams(
            dimension_semantics=("parallel",)),
    )(*args)
    return logits.reshape(B, num_classes), k.reshape(B, D)


# -----------------------------------------------------------------------------
# Deterministic parameter init
# -----------------------------------------------------------------------------
def init_params(key, feature_dim, num_layers, widening_factor, num_classes,
                in_channels=3):
    D = feature_dim
    Wd = widening_factor * D
    keys = jax.random.split(key, 3 + num_layers)
    params = {
        "conv_w": jax.random.normal(keys[0], (D, in_channels, 3, 3),
                                    jnp.float32) * 0.1,
        "conv_b": jnp.zeros((D,), jnp.float32),
        "fc_w": jax.random.normal(keys[1], (D, num_classes), jnp.float32) * 0.05,
        "fc_b": jnp.zeros((1, num_classes), jnp.float32),
        "layers": [],
    }
    for l in range(num_layers):
        lk = jax.random.split(keys[3 + l - 1 + 1], 6)  # == keys[3 + l], fixed off-by-one
        params["layers"].append({
            "ln1_w": jnp.ones((1, D), jnp.float32),
            "ln1_b": jnp.zeros((1, D), jnp.float32),
            "wq": jax.random.normal(lk[0], (D, D), jnp.float32) * 0.05,
            "wk": jax.random.normal(lk[1], (D, D), jnp.float32) * 0.05,
            "wv": jax.random.normal(lk[2], (D, D), jnp.float32) * 0.05,
            "wo": jax.random.normal(lk[3], (D, D), jnp.float32) * 0.05,
            "bo": jnp.zeros((1, D), jnp.float32),
            "ln2_w": jnp.ones((1, D), jnp.float32),
            "ln2_b": jnp.zeros((1, D), jnp.float32),
            "w1": jax.random.normal(lk[4], (D, Wd), jnp.float32) * 0.05,
            "b1": jnp.zeros((1, Wd), jnp.float32),
            "w2": jax.random.normal(lk[5], (Wd, D), jnp.float32) * 0.05,
            "b2": jnp.zeros((1, D), jnp.float32),
        })
    return params


if __name__ == "__main__":
    key = jax.random.PRNGKey(0)
    batch_size = 2
    max_num_views = 4
    num_views = [3, 4]          # per-sample number of valid views (static)
    feature_dim = 32
    num_layers = 2
    num_heads = 4
    widening_factor = 2
    num_classes = 10
    H = W = 16

    pkey, xkey = jax.random.split(key)
    params = init_params(pkey, feature_dim, num_layers, widening_factor,
                         num_classes)
    x = jax.random.normal(
        xkey, (batch_size * max_num_views, 3, H, W), jnp.float32)

    fwd = jax.jit(lambda p, xx: vsformer_forward(
        p, batch_size, max_num_views, num_views, xx, num_layers, num_heads))
    logits, k = fwd(params, x)
    jax.block_until_ready((logits, k))
    assert logits.shape == (batch_size, num_classes)
    assert k.shape == (batch_size, feature_dim)
    print("KERNEL_OK")
</pallas_src>

<mosaic_0001>
module attributes {stable_mosaic.version = 11 : i64} {
  func.func @_extractor_kernel(%arg0: i32, %arg1: memref<1x18x18x3xf32, #tpu.memory_space<vmem>>, %arg2: memref<9x3x32xf32, #tpu.memory_space<vmem>>, %arg3: memref<1x32xf32, #tpu.memory_space<vmem>>, %arg4: memref<1x1x32xf32, #tpu.memory_space<vmem>>) attributes {dimension_semantics = [#tpu.dimension_semantics<parallel>], iteration_bounds = array<i64: 8>, scalar_prefetch = 0 : i64, scratch_operands = 0 : i64, tpu.core_type = #tpu.core_type<tc>, window_params = [{transform_indices = @transform_0, window_bounds = array<i64: 1, 18, 18, 3>}, {pipeline_mode = #tpu.pipeline_mode<synchronous>, transform_indices = @transform_1, window_bounds = array<i64: 9, 3, 32>}, {pipeline_mode = #tpu.pipeline_mode<synchronous>, transform_indices = @transform_2, window_bounds = array<i64: 1, 32>}, {transform_indices = @transform_3, window_bounds = array<i64: 1, 1, 32>}]} {
    %c0 = arith.constant 0 : index
    %c0_0 = arith.constant 0 : index
    %c0_1 = arith.constant 0 : index
    %c0_2 = arith.constant 0 : index
    %0 = vector.load %arg1[%c0, %c0_0, %c0_1, %c0_2] : memref<1x18x18x3xf32, #tpu.memory_space<vmem>>, vector<1x18x18x3xf32>
    %1 = vector.shape_cast %0 : vector<1x18x18x3xf32> to vector<18x18x3xf32>
    %cst = arith.constant 0.000000e+00 : f32
    %2 = vector.broadcast %cst : f32 to vector<256x32xf32>
    %3 = vector.extract_strided_slice %1 {offsets = [0, 0, 0], sizes = [16, 16, 3], strides = [1, 1, 1]} : vector<18x18x3xf32> to vector<16x16x3xf32>
    %4 = vector.shape_cast %3 : vector<16x16x3xf32> to vector<256x3xf32>
    %c0_3 = arith.constant 0 : index
    %c0_4 = arith.constant 0 : index
    %c0_5 = arith.constant 0 : index
    %5 = vector.load %arg2[%c0_3, %c0_4, %c0_5] : memref<9x3x32xf32, #tpu.memory_space<vmem>>, vector<1x3x32xf32>
    %6 = vector.shape_cast %5 : vector<1x3x32xf32> to vector<3x32xf32>
    %cst_6 = arith.constant dense<0.000000e+00> : vector<256x32xf32>
    %7 = tpu.matmul %4, %6, %cst_6 {dimension_numbers = #tpu.dot_dimension_numbers<[1], [0], [0], [1], [0, 0, 1, 1], [], []>} : vector<256x3xf32>, vector<3x32xf32>, vector<256x32xf32> -> vector<256x32xf32>
    %8 = arith.addf %2, %7 : vector<256x32xf32>
    %9 = vector.extract_strided_slice %1 {offsets = [0, 1, 0], sizes = [16, 16, 3], strides = [1, 1, 1]} : vector<18x18x3xf32> to vector<16x16x3xf32>
    %10 = vector.shape_cast %9 : vector<16x16x3xf32> to vector<256x3xf32>
    %c1 = arith.constant 1 : index
    %c0_7 = arith.constant 0 : index
    %c0_8 = arith.constant 0 : index
    %11 = vector.load %arg2[%c1, %c0_7, %c0_8] : memref<9x3x32xf32, #tpu.memory_space<vmem>>, vector<1x3x32xf32>
    %12 = vector.shape_cast %11 : vector<1x3x32xf32> to vector<3x32xf32>
    %cst_9 = arith.constant dense<0.000000e+00> : vector<256x32xf32>
    %13 = tpu.matmul %10, %12, %cst_9 {dimension_numbers = #tpu.dot_dimension_numbers<[1], [0], [0], [1], [0, 0, 1, 1], [], []>} : vector<256x3xf32>, vector<3x32xf32>, vector<256x32xf32> -> vector<256x32xf32>
    %14 = arith.addf %8, %13 : vector<256x32xf32>
    %15 = vector.extract_strided_slice %1 {offsets = [0, 2, 0], sizes = [16, 16, 3], strides = [1, 1, 1]} : vector<18x18x3xf32> to vector<16x16x3xf32>
    %16 = vector.shape_cast %15 : vector<16x16x3xf32> to vector<256x3xf32>
    %c2 = arith.constant 2 : index
    %c0_10 = arith.constant 0 : index
    %c0_11 = arith.constant 0 : index
    %17 = vector.load %arg2[%c2, %c0_10, %c0_11] : memref<9x3x32xf32, #tpu.memory_space<vmem>>, vector<1x3x32xf32>
    %18 = vector.shape_cast %17 : vector<1x3x32xf32> to vector<3x32xf32>
    %cst_12 = arith.constant dense<0.000000e+00> : vector<256x32xf32>
    %19 = tpu.matmul %16, %18, %cst_12 {dimension_numbers = #tpu.dot_dimension_numbers<[1], [0], [0], [1], [0, 0, 1, 1], [], []>} : vector<256x3xf32>, vector<3x32xf32>, vector<256x32xf32> -> vector<256x32xf32>
    %20 = arith.addf %14, %19 : vector<256x32xf32>
    %21 = vector.extract_strided_slice %1 {offsets = [1, 0, 0], sizes = [16, 16, 3], strides = [1, 1, 1]} : vector<18x18x3xf32> to vector<16x16x3xf32>
    %22 = vector.shape_cast %21 : vector<16x16x3xf32> to vector<256x3xf32>
    %c3 = arith.constant 3 : index
    %c0_13 = arith.constant 0 : index
    %c0_14 = arith.constant 0 : index
    %23 = vector.load %arg2[%c3, %c0_13, %c0_14] : memref<9x3x32xf32, #tpu.memory_space<vmem>>, vector<1x3x32xf32>
    %24 = vector.shape_cast %23 : vector<1x3x32xf32> to vector<3x32xf32>
    %cst_15 = arith.constant dense<0.000000e+00> : vector<256x32xf32>
    %25 = tpu.matmul %22, %24, %cst_15 {dimension_numbers = #tpu.dot_dimension_numbers<[1], [0], [0], [1], [0, 0, 1, 1], [], []>} : vector<256x3xf32>, vector<3x32xf32>, vector<256x32xf32> -> vector<256x32xf32>
    %26 = arith.addf %20, %25 : vector<256x32xf32>
    %27 = vector.extract_strided_slice %1 {offsets = [1, 1, 0], sizes = [16, 16, 3], strides = [1, 1, 1]} : vector<18x18x3xf32> to vector<16x16x3xf32>
    %28 = vector.shape_cast %27 : vector<16x16x3xf32> to vector<256x3xf32>
    %c4 = arith.constant 4 : index
    %c0_16 = arith.constant 0 : index
    %c0_17 = arith.constant 0 : index
    %29 = vector.load %arg2[%c4, %c0_16, %c0_17] : memref<9x3x32xf32, #tpu.memory_space<vmem>>, vector<1x3x32xf32>
    %30 = vector.shape_cast %29 : vector<1x3x32xf32> to vector<3x32xf32>
    %cst_18 = arith.constant dense<0.000000e+00> : vector<256x32xf32>
    %31 = tpu.matmul %28, %30, %cst_18 {dimension_numbers = #tpu.dot_dimension_numbers<[1], [0], [0], [1], [0, 0, 1, 1], [], []>} : vector<256x3xf32>, vector<3x32xf32>, vector<256x32xf32> -> vector<256x32xf32>
    %32 = arith.addf %26, %31 : vector<256x32xf32>
    %33 = vector.extract_strided_slice %1 {offsets = [1, 2, 0], sizes = [16, 16, 3], strides = [1, 1, 1]} : vector<18x18x3xf32> to vector<16x16x3xf32>
    %34 = vector.shape_cast %33 : vector<16x16x3xf32> to vector<256x3xf32>
    %c5 = arith.constant 5 : index
    %c0_19 = arith.constant 0 : index
    %c0_20 = arith.constant 0 : index
    %35 = vector.load %arg2[%c5, %c0_19, %c0_20] : memref<9x3x32xf32, #tpu.memory_space<vmem>>, vector<1x3x32xf32>
    %36 = vector.shape_cast %35 : vector<1x3x32xf32> to vector<3x32xf32>
    %cst_21 = arith.constant dense<0.000000e+00> : vector<256x32xf32>
    %37 = tpu.matmul %34, %36, %cst_21 {dimension_numbers = #tpu.dot_dimension_numbers<[1], [0], [0], [1], [0, 0, 1, 1], [], []>} : vector<256x3xf32>, vector<3x32xf32>, vector<256x32xf32> -> vector<256x32xf32>
    %38 = arith.addf %32, %37 : vector<256x32xf32>
    %39 = vector.extract_strided_slice %1 {offsets = [2, 0, 0], sizes = [16, 16, 3], strides = [1, 1, 1]} : vector<18x18x3xf32> to vector<16x16x3xf32>
    %40 = vector.shape_cast %39 : vector<16x16x3xf32> to vector<256x3xf32>
    %c6 = arith.constant 6 : index
    %c0_22 = arith.constant 0 : index
    %c0_23 = arith.constant 0 : index
    %41 = vector.load %arg2[%c6, %c0_22, %c0_23] : memref<9x3x32xf32, #tpu.memory_space<vmem>>, vector<1x3x32xf32>
    %42 = vector.shape_cast %41 : vector<1x3x32xf32> to vector<3x32xf32>
    %cst_24 = arith.constant dense<0.000000e+00> : vector<256x32xf32>
    %43 = tpu.matmul %40, %42, %cst_24 {dimension_numbers = #tpu.dot_dimension_numbers<[1], [0], [0], [1], [0, 0, 1, 1], [], []>} : vector<256x3xf32>, vector<3x32xf32>, vector<256x32xf32> -> vector<256x32xf32>
    %44 = arith.addf %38, %43 : vector<256x32xf32>
    %45 = vector.extract_strided_slice %1 {offsets = [2, 1, 0], sizes = [16, 16, 3], strides = [1, 1, 1]} : vector<18x18x3xf32> to vector<16x16x3xf32>
    %46 = vector.shape_cast %45 : vector<16x16x3xf32> to vector<256x3xf32>
    %c7 = arith.constant 7 : index
    %c0_25 = arith.constant 0 : index
    %c0_26 = arith.constant 0 : index
    %47 = vector.load %arg2[%c7, %c0_25, %c0_26] : memref<9x3x32xf32, #tpu.memory_space<vmem>>, vector<1x3x32xf32>
    %48 = vector.shape_cast %47 : vector<1x3x32xf32> to vector<3x32xf32>
    %cst_27 = arith.constant dense<0.000000e+00> : vector<256x32xf32>
    %49 = tpu.matmul %46, %48, %cst_27 {dimension_numbers = #tpu.dot_dimension_numbers<[1], [0], [0], [1], [0, 0, 1, 1], [], []>} : vector<256x3xf32>, vector<3x32xf32>, vector<256x32xf32> -> vector<256x32xf32>
    %50 = arith.addf %44, %49 : vector<256x32xf32>
    %51 = vector.extract_strided_slice %1 {offsets = [2, 2, 0], sizes = [16, 16, 3], strides = [1, 1, 1]} : vector<18x18x3xf32> to vector<16x16x3xf32>
    %52 = vector.shape_cast %51 : vector<16x16x3xf32> to vector<256x3xf32>
    %c8 = arith.constant 8 : index
    %c0_28 = arith.constant 0 : index
    %c0_29 = arith.constant 0 : index
    %53 = vector.load %arg2[%c8, %c0_28, %c0_29] : memref<9x3x32xf32, #tpu.memory_space<vmem>>, vector<1x3x32xf32>
    %54 = vector.shape_cast %53 : vector<1x3x32xf32> to vector<3x32xf32>
    %cst_30 = arith.constant dense<0.000000e+00> : vector<256x32xf32>
    %55 = tpu.matmul %52, %54, %cst_30 {dimension_numbers = #tpu.dot_dimension_numbers<[1], [0], [0], [1], [0, 0, 1, 1], [], []>} : vector<256x3xf32>, vector<3x32xf32>, vector<256x32xf32> -> vector<256x32xf32>
    %56 = arith.addf %50, %55 : vector<256x32xf32>
    %c0_31 = arith.constant 0 : index
    %c0_32 = arith.constant 0 : index
    %57 = vector.load %arg3[%c0_31, %c0_32] : memref<1x32xf32, #tpu.memory_space<vmem>>, vector<1x32xf32>
    %58 = vector.broadcast %57 : vector<1x32xf32> to vector<256x32xf32>
    %59 = arith.addf %56, %58 : vector<256x32xf32>
    %cst_33 = arith.constant 0.000000e+00 : f32
    %60 = vector.broadcast %cst_33 : f32 to vector<256x32xf32>
    %61 = arith.maximumf %59, %60 : vector<256x32xf32>
    %cst_34 = arith.constant dense<0.000000e+00> : vector<32xf32>
    %62 = vector.multi_reduction <add>, %61, %cst_34 [0] : vector<256x32xf32> to vector<32xf32>
    %63 = vector.shape_cast %62 : vector<32xf32> to vector<1x32xf32>
    %cst_35 = arith.constant 2.560000e+02 : f32
    %64 = vector.broadcast %cst_35 : f32 to vector<1x32xf32>
    %65 = arith.divf %63, %64 : vector<1x32xf32>
    %c0_36 = arith.constant 0 : index
    %c0_37 = arith.constant 0 : index
    %c0_38 = arith.constant 0 : index
    %66 = vector.load %arg4[%c0_36, %c0_37, %c0_38] : memref<1x1x32xf32, #tpu.memory_space<vmem>>, vector<1x1x32xf32>
    %67 = vector.shape_cast %66 : vector<1x1x32xf32> to vector<1x32xf32>
    %68 = vector.shape_cast %65 : vector<1x32xf32> to vector<1x1x32xf32>
    tpu.vector_store %arg4[%c0_36, %c0_37, %c0_38], %68 {strides = array<i32>} : memref<1x1x32xf32, #tpu.memory_space<vmem>>, vector<1x1x32xf32>,
    return
  }
  func.func @transform_0(%arg0: i32) -> (i32, i32, i32, i32) {
    %c0_i32 = arith.constant 0 : i32
    %c0_i32_0 = arith.constant 0 : i32
    %c0_i32_1 = arith.constant 0 : i32
    %c0_i32_2 = arith.constant 0 : i32
    return %arg0, %c0_i32, %c0_i32_0, %c0_i32_1 : i32, i32, i32, i32
  }
  func.func @transform_1(%arg0: i32) -> (i32, i32, i32) {
    %c0_i32 = arith.constant 0 : i32
    %c0_i32_0 = arith.constant 0 : i32
    %c0_i32_1 = arith.constant 0 : i32
    %c0_i32_2 = arith.constant 0 : i32
    return %c0_i32, %c0_i32_0, %c0_i32_1 : i32, i32, i32
  }
  func.func @transform_2(%arg0: i32) -> (i32, i32) {
    %c0_i32 = arith.constant 0 : i32
    %c0_i32_0 = arith.constant 0 : i32
    %c0_i32_1 = arith.constant 0 : i32
    return %c0_i32, %c0_i32_0 : i32, i32
  }
  func.func @transform_3(%arg0: i32) -> (i32, i32, i32) {
    %c0_i32 = arith.constant 0 : i32
    %c0_i32_0 = arith.constant 0 : i32
    %c0_i32_1 = arith.constant 0 : i32
    return %arg0, %c0_i32, %c0_i32_0 : i32, i32, i32
  }
}

module attributes {stable_mosaic.version = 11 : i64} {
  func.func @_transformer_kernel(%arg0: i32, %arg1: memref<1x4x32xf32, #tpu.memory_space<vmem>>, %arg2: memref<1x1x4xf32, #tpu.memory_space<vmem>>, %arg3: memref<1x4x1xf32, #tpu.memory_space<vmem>>, %arg4: memref<2x1x32xf32, #tpu.memory_space<vmem>>, %arg5: memref<2x1x32xf32, #tpu.memory_space<vmem>>, %arg6: memref<2x32x96xf32, #tpu.memory_space<vmem>>, %arg7: memref<2x32x32xf32, #tpu.memory_space<vmem>>, %arg8: memref<2x1x32xf32, #tpu.memory_space<vmem>>, %arg9: memref<2x1x32xf32, #tpu.memory_space<vmem>>, %arg10: memref<2x1x32xf32, #tpu.memory_space<vmem>>, %arg11: memref<2x32x64xf32, #tpu.memory_space<vmem>>, %arg12: memref<2x1x64xf32, #tpu.memory_space<vmem>>, %arg13: memref<2x64x32xf32, #tpu.memory_space<vmem>>, %arg14: memref<2x1x32xf32, #tpu.memory_space<vmem>>, %arg15: memref<32x10xf32, #tpu.memory_space<vmem>>, %arg16: memref<1x10xf32, #tpu.memory_space<vmem>>, %arg17: memref<1x1x10xf32, #tpu.memory_space<vmem>>, %arg18: memref<1x1x32xf32, #tpu.memory_space<vmem>>) attributes {dimension_semantics = [#tpu.dimension_semantics<parallel>], iteration_bounds = array<i64: 2>, scalar_prefetch = 0 : i64, scratch_operands = 0 : i64, tpu.core_type = #tpu.core_type<tc>, window_params = [{transform_indices = @transform_0, window_bounds = array<i64: 1, 4, 32>}, {transform_indices = @transform_1, window_bounds = array<i64: 1, 1, 4>}, {transform_indices = @transform_2, window_bounds = array<i64: 1, 4, 1>}, {pipeline_mode = #tpu.pipeline_mode<synchronous>, transform_indices = @transform_3, window_bounds = array<i64: 2, 1, 32>}, {pipeline_mode = #tpu.pipeline_mode<synchronous>, transform_indices = @transform_4, window_bounds = array<i64: 2, 1, 32>}, {pipeline_mode = #tpu.pipeline_mode<synchronous>, transform_indices = @transform_5, window_bounds = array<i64: 2, 32, 96>}, {pipeline_mode = #tpu.pipeline_mode<synchronous>, transform_indices = @transform_6, window_bounds = array<i64: 2, 32, 32>}, {pipeline_mode = #tpu.pipeline_mode<synchronous>, transform_indices = @transform_7, window_bounds = array<i64: 2, 1, 32>}, {pipeline_mode = #tpu.pipeline_mode<synchronous>, transform_indices = @transform_8, window_bounds = array<i64: 2, 1, 32>}, {pipeline_mode = #tpu.pipeline_mode<synchronous>, transform_indices = @transform_9, window_bounds = array<i64: 2, 1, 32>}, {pipeline_mode = #tpu.pipeline_mode<synchronous>, transform_indices = @transform_10, window_bounds = array<i64: 2, 32, 64>}, {pipeline_mode = #tpu.pipeline_mode<synchronous>, transform_indices = @transform_11, window_bounds = array<i64: 2, 1, 64>}, {pipeline_mode = #tpu.pipeline_mode<synchronous>, transform_indices = @transform_12, window_bounds = array<i64: 2, 64, 32>}, {pipeline_mode = #tpu.pipeline_mode<synchronous>, transform_indices = @transform_13, window_bounds = array<i64: 2, 1, 32>}, {pipeline_mode = #tpu.pipeline_mode<synchronous>, transform_indices = @transform_14, window_bounds = array<i64: 32, 10>}, {pipeline_mode = #tpu.pipeline_mode<synchronous>, transform_indices = @transform_15, window_bounds = array<i64: 1, 10>}, {transform_indices = @transform_16, window_bounds = array<i64: 1, 1, 10>}, {transform_indices = @transform_17, window_bounds = array<i64: 1, 1, 32>}]} {
    %c0 = arith.constant 0 : index
    %c0_0 = arith.constant 0 : index
    %c0_1 = arith.constant 0 : index
    %0 = vector.load %arg1[%c0, %c0_0, %c0_1] : memref<1x4x32xf32, #tpu.memory_space<vmem>>, vector<1x4x32xf32>
    %1 = vector.shape_cast %0 : vector<1x4x32xf32> to vector<4x32xf32>
    %c0_2 = arith.constant 0 : index
    %c0_3 = arith.constant 0 : index
    %c0_4 = arith.constant 0 : index
    %2 = vector.load %arg2[%c0_2, %c0_3, %c0_4] : memref<1x1x4xf32, #tpu.memory_space<vmem>>, vector<1x1x4xf32>
    %3 = vector.shape_cast %2 : vector<1x1x4xf32> to vector<1x4xf32>
    %c0_5 = arith.constant 0 : index
    %c0_6 = arith.constant 0 : index
    %c0_7 = arith.constant 0 : index
    %4 = vector.load %arg3[%c0_5, %c0_6, %c0_7] : memref<1x4x1xf32, #tpu.memory_space<vmem>>, vector<1x4x1xf32>
    %5 = vector.shape_cast %4 : vector<1x4x1xf32> to vector<4x1xf32>
    %cst = arith.constant dense<0.000000e+00> : vector<4xf32>
    %6 = vector.multi_reduction <add>, %1, %cst [1] : vector<4x32xf32> to vector<4xf32>
    %7 = vector.shape_cast %6 : vector<4xf32> to vector<4x1xf32>
    %cst_8 = arith.constant 3.200000e+01 : f32
    %8 = vector.broadcast %cst_8 : f32 to vector<4x1xf32>
    %9 = arith.divf %7, %8 : vector<4x1xf32>
    %10 = vector.broadcast %9 : vector<4x1xf32> to vector<4x32xf32>
    %11 = arith.subf %1, %10 : vector<4x32xf32>
    %12 = arith.mulf %11, %11 : vector<4x32xf32>
    %cst_9 = arith.constant dense<0.000000e+00> : vector<4xf32>
    %13 = vector.multi_reduction <add>, %12, %cst_9 [1] : vector<4x32xf32> to vector<4xf32>
    %14 = vector.shape_cast %13 : vector<4xf32> to vector<4x1xf32>
    %cst_10 = arith.constant 3.200000e+01 : f32
    %15 = vector.broadcast %cst_10 : f32 to vector<4x1xf32>
    %16 = arith.divf %14, %15 : vector<4x1xf32>
    %17 = vector.broadcast %9 : vector<4x1xf32> to vector<4x32xf32>
    %18 = arith.subf %1, %17 : vector<4x32xf32>
    %cst_11 = arith.constant 9.99999974E-6 : f32
    %19 = vector.broadcast %cst_11 : f32 to vector<4x1xf32>
    %20 = arith.addf %16, %19 : vector<4x1xf32>
    %21 = math.rsqrt %20 : vector<4x1xf32>
    %22 = vector.broadcast %21 : vector<4x1xf32> to vector<4x32xf32>
    %23 = arith.mulf %18, %22 : vector<4x32xf32>
    %c0_12 = arith.constant 0 : index
    %c0_13 = arith.constant 0 : index
    %c0_14 = arith.constant 0 : index
    %24 = vector.load %arg4[%c0_12, %c0_13, %c0_14] : memref<2x1x32xf32, #tpu.memory_space<vmem>>, vector<1x1x32xf32>
    %25 = vector.shape_cast %24 : vector<1x1x32xf32> to vector<1x32xf32>
    %26 = vector.broadcast %25 : vector<1x32xf32> to vector<4x32xf32>
    %27 = arith.mulf %23, %26 : vector<4x32xf32>
    %c0_15 = arith.constant 0 : index
    %c0_16 = arith.constant 0 : index
    %c0_17 = arith.constant 0 : index
    %28 = vector.load %arg5[%c0_15, %c0_16, %c0_17] : memref<2x1x32xf32, #tpu.memory_space<vmem>>, vector<1x1x32xf32>
    %29 = vector.shape_cast %28 : vector<1x1x32xf32> to vector<1x32xf32>
    %30 = vector.broadcast %29 : vector<1x32xf32> to vector<4x32xf32>
    %31 = arith.addf %27, %30 : vector<4x32xf32>
    %c0_18 = arith.constant 0 : index
    %c0_19 = arith.constant 0 : index
    %c0_20 = arith.constant 0 : index
    %32 = vector.load %arg6[%c0_18, %c0_19, %c0_20] : memref<2x32x96xf32, #tpu.memory_space<vmem>>, vector<1x32x96xf32>
    %33 = vector.shape_cast %32 : vector<1x32x96xf32> to vector<32x96xf32>
    %cst_21 = arith.constant dense<0.000000e+00> : vector<4x96xf32>
    %34 = tpu.matmul %31, %33, %cst_21 {dimension_numbers = #tpu.dot_dimension_numbers<[1], [0], [0], [1], [0, 0, 1, 1], [], []>} : vector<4x32xf32>, vector<32x96xf32>, vector<4x96xf32> -> vector<4x96xf32>
    %c0_22 = arith.constant 0 : index
    %c0_23 = arith.constant 0 : index
    %c0_24 = arith.constant 0 : index
    %35 = vector.load %arg7[%c0_22, %c0_23, %c0_24] : memref<2x32x32xf32, #tpu.memory_space<vmem>>, vector<1x32x32xf32>
    %36 = vector.shape_cast %35 : vector<1x32x32xf32> to vector<32x32xf32>
    %c0_25 = arith.constant 0 : index
    %c0_26 = arith.constant 0 : index
    %c0_27 = arith.constant 0 : index
    %37 = vector.load %arg8[%c0_25, %c0_26, %c0_27] : memref<2x1x32xf32, #tpu.memory_space<vmem>>, vector<1x1x32xf32>
    %38 = vector.shape_cast %37 : vector<1x1x32xf32> to vector<1x32xf32>
    %39 = vector.extract_strided_slice %34 {offsets = [0, 0], sizes = [4, 8], strides = [1, 1]} : vector<4x96xf32> to vector<4x8xf32>
    %40 = vector.extract_strided_slice %34 {offsets = [0, 32], sizes = [4, 8], strides = [1, 1]} : vector<4x96xf32> to vector<4x8xf32>
    %41 = vector.extract_strided_slice %34 {offsets = [0, 64], sizes = [4, 8], strides = [1, 1]} : vector<4x96xf32> to vector<4x8xf32>
    %cst_28 = arith.constant dense<0.000000e+00> : vector<4x4xf32>
    %42 = tpu.matmul %39, %40, %cst_28 {dimension_numbers = #tpu.dot_dimension_numbers<[1], [1], [0], [0], [0, 0, 1, 0], [], []>} : vector<4x8xf32>, vector<4x8xf32>, vector<4x4xf32> -> vector<4x4xf32>
    %cst_29 = arith.constant 0.353553385 : f32
    %43 = vector.broadcast %cst_29 : f32 to vector<4x4xf32>
    %44 = arith.mulf %42, %43 : vector<4x4xf32>
    %45 = vector.broadcast %3 : vector<1x4xf32> to vector<4x4xf32>
    %46 = arith.addf %44, %45 : vector<4x4xf32>
    %cst_30 = arith.constant dense<0xFF800000> : vector<4xf32>
    %47 = vector.multi_reduction <maximumf>, %46, %cst_30 [1] : vector<4x4xf32> to vector<4xf32>
    %48 = vector.shape_cast %47 : vector<4xf32> to vector<4x1xf32>
    %49 = vector.broadcast %48 : vector<4x1xf32> to vector<4x4xf32>
    %50 = arith.subf %46, %49 : vector<4x4xf32>
    %51 = math.exp %50 : vector<4x4xf32>
    %cst_31 = arith.constant dense<0.000000e+00> : vector<4xf32>
    %52 = vector.multi_reduction <add>, %51, %cst_31 [1] : vector<4x4xf32> to vector<4xf32>
    %53 = vector.shape_cast %52 : vector<4xf32> to vector<4x1xf32>
    %54 = tpu.reciprocal %53 {approx = true} : vector<4x1xf32> -> vector<4x1xf32>
    %55 = vector.broadcast %54 : vector<4x1xf32> to vector<4x4xf32>
    %56 = arith.mulf %51, %55 : vector<4x4xf32>
    %cst_32 = arith.constant dense<0.000000e+00> : vector<4x8xf32>
    %57 = tpu.matmul %56, %41, %cst_32 {dimension_numbers = #tpu.dot_dimension_numbers<[1], [0], [0], [1], [0, 0, 1, 1], [], []>} : vector<4x4xf32>, vector<4x8xf32>, vector<4x8xf32> -> vector<4x8xf32>
    %58 = vector.extract_strided_slice %36 {offsets = [0, 0], sizes = [8, 32], strides = [1, 1]} : vector<32x32xf32> to vector<8x32xf32>
    %cst_33 = arith.constant dense<0.000000e+00> : vector<4x32xf32>
    %59 = tpu.matmul %57, %58, %cst_33 {dimension_numbers = #tpu.dot_dimension_numbers<[1], [0], [0], [1], [0, 0, 1, 1], [], []>} : vector<4x8xf32>, vector<8x32xf32>, vector<4x32xf32> -> vector<4x32xf32>
    %60 = vector.broadcast %38 : vector<1x32xf32> to vector<4x32xf32>
    %61 = arith.addf %60, %59 : vector<4x32xf32>
    %62 = vector.extract_strided_slice %34 {offsets = [0, 8], sizes = [4, 8], strides = [1, 1]} : vector<4x96xf32> to vector<4x8xf32>
    %63 = vector.extract_strided_slice %34 {offsets = [0, 40], sizes = [4, 8], strides = [1, 1]} : vector<4x96xf32> to vector<4x8xf32>
    %64 = vector.extract_strided_slice %34 {offsets = [0, 72], sizes = [4, 8], strides = [1, 1]} : vector<4x96xf32> to vector<4x8xf32>
    %cst_34 = arith.constant dense<0.000000e+00> : vector<4x4xf32>
    %65 = tpu.matmul %62, %63, %cst_34 {dimension_numbers = #tpu.dot_dimension_numbers<[1], [1], [0], [0], [0, 0, 1, 0], [], []>} : vector<4x8xf32>, vector<4x8xf32>, vector<4x4xf32> -> vector<4x4xf32>
    %cst_35 = arith.constant 0.353553385 : f32
    %66 = vector.broadcast %cst_35 : f32 to vector<4x4xf32>
    %67 = arith.mulf %65, %66 : vector<4x4xf32>
    %68 = vector.broadcast %3 : vector<1x4xf32> to vector<4x4xf32>
    %69 = arith.addf %67, %68 : vector<4x4xf32>
    %cst_36 = arith.constant dense<0xFF800000> : vector<4xf32>
    %70 = vector.multi_reduction <maximumf>, %69, %cst_36 [1] : vector<4x4xf32> to vector<4xf32>
    %71 = vector.shape_cast %70 : vector<4xf32> to vector<4x1xf32>
    %72 = vector.broadcast %71 : vector<4x1xf32> to vector<4x4xf32>
    %73 = arith.subf %69, %72 : vector<4x4xf32>
    %74 = math.exp %73 : vector<4x4xf32>
    %cst_37 = arith.constant dense<0.000000e+00> : vector<4xf32>
    %75 = vector.multi_reduction <add>, %74, %cst_37 [1] : vector<4x4xf32> to vector<4xf32>
    %76 = vector.shape_cast %75 : vector<4xf32> to vector<4x1xf32>
    %77 = tpu.reciprocal %76 {approx = true} : vector<4x1xf32> -> vector<4x1xf32>
    %78 = vector.broadcast %77 : vector<4x1xf32> to vector<4x4xf32>
    %79 = arith.mulf %74, %78 : vector<4x4xf32>
    %cst_38 = arith.constant dense<0.000000e+00> : vector<4x8xf32>
    %80 = tpu.matmul %79, %64, %cst_38 {dimension_numbers = #tpu.dot_dimension_numbers<[1], [0], [0], [1], [0, 0, 1, 1], [], []>} : vector<4x4xf32>, vector<4x8xf32>, vector<4x8xf32> -> vector<4x8xf32>
    %81 = vector.extract_strided_slice %36 {offsets = [8, 0], sizes = [8, 32], strides = [1, 1]} : vector<32x32xf32> to vector<8x32xf32>
    %cst_39 = arith.constant dense<0.000000e+00> : vector<4x32xf32>
    %82 = tpu.matmul %80, %81, %cst_39 {dimension_numbers = #tpu.dot_dimension_numbers<[1], [0], [0], [1], [0, 0, 1, 1], [], []>} : vector<4x8xf32>, vector<8x32xf32>, vector<4x32xf32> -> vector<4x32xf32>
    %83 = arith.addf %61, %82 : vector<4x32xf32>
    %84 = vector.extract_strided_slice %34 {offsets = [0, 16], sizes = [4, 8], strides = [1, 1]} : vector<4x96xf32> to vector<4x8xf32>
    %85 = vector.extract_strided_slice %34 {offsets = [0, 48], sizes = [4, 8], strides = [1, 1]} : vector<4x96xf32> to vector<4x8xf32>
    %86 = vector.extract_strided_slice %34 {offsets = [0, 80], sizes = [4, 8], strides = [1, 1]} : vector<4x96xf32> to vector<4x8xf32>
    %cst_40 = arith.constant dense<0.000000e+00> : vector<4x4xf32>
    %87 = tpu.matmul %84, %85, %cst_40 {dimension_numbers = #tpu.dot_dimension_numbers<[1], [1], [0], [0], [0, 0, 1, 0], [], []>} : vector<4x8xf32>, vector<4x8xf32>, vector<4x4xf32> -> vector<4x4xf32>
    %cst_41 = arith.constant 0.353553385 : f32
    %88 = vector.broadcast %cst_41 : f32 to vector<4x4xf32>
    %89 = arith.mulf %87, %88 : vector<4x4xf32>
    %90 = vector.broadcast %3 : vector<1x4xf32> to vector<4x4xf32>
    %91 = arith.addf %89, %90 : vector<4x4xf32>
    %cst_42 = arith.constant dense<0xFF800000> : vector<4xf32>
    %92 = vector.multi_reduction <maximumf>, %91, %cst_42 [1] : vector<4x4xf32> to vector<4xf32>
    %93 = vector.shape_cast %92 : vector<4xf32> to vector<4x1xf32>
    %94 = vector.broadcast %93 : vector<4x1xf32> to vector<4x4xf32>
    %95 = arith.subf %91, %94 : vector<4x4xf32>
    %96 = math.exp %95 : vector<4x4xf32>
    %cst_43 = arith.constant dense<0.000000e+00> : vector<4xf32>
    %97 = vector.multi_reduction <add>, %96, %cst_43 [1] : vector<4x4xf32> to vector<4xf32>
    %98 = vector.shape_cast %97 : vector<4xf32> to vector<4x1xf32>
    %99 = tpu.reciprocal %98 {approx = true} : vector<4x1xf32> -> vector<4x1xf32>
    %100 = vector.broadcast %99 : vector<4x1xf32> to vector<4x4xf32>
    %101 = arith.mulf %96, %100 : vector<4x4xf32>
    %cst_44 = arith.constant dense<0.000000e+00> : vector<4x8xf32>
    %102 = tpu.matmul %101, %86, %cst_44 {dimension_numbers = #tpu.dot_dimension_numbers<[1], [0], [0], [1], [0, 0, 1, 1], [], []>} : vector<4x4xf32>, vector<4x8xf32>, vector<4x8xf32> -> vector<4x8xf32>
    %103 = vector.extract_strided_slice %36 {offsets = [16, 0], sizes = [8, 32], strides = [1, 1]} : vector<32x32xf32> to vector<8x32xf32>
    %cst_45 = arith.constant dense<0.000000e+00> : vector<4x32xf32>
    %104 = tpu.matmul %102, %103, %cst_45 {dimension_numbers = #tpu.dot_dimension_numbers<[1], [0], [0], [1], [0, 0, 1, 1], [], []>} : vector<4x8xf32>, vector<8x32xf32>, vector<4x32xf32> -> vector<4x32xf32>
    %105 = arith.addf %83, %104 : vector<4x32xf32>
    %106 = vector.extract_strided_slice %34 {offsets = [0, 24], sizes = [4, 8], strides = [1, 1]} : vector<4x96xf32> to vector<4x8xf32>
    %107 = vector.extract_strided_slice %34 {offsets = [0, 56], sizes = [4, 8], strides = [1, 1]} : vector<4x96xf32> to vector<4x8xf32>
    %108 = vector.extract_strided_slice %34 {offsets = [0, 88], sizes = [4, 8], strides = [1, 1]} : vector<4x96xf32> to vector<4x8xf32>
    %cst_46 = arith.constant dense<0.000000e+00> : vector<4x4xf32>
    %109 = tpu.matmul %106, %107, %cst_46 {dimension_numbers = #tpu.dot_dimension_numbers<[1], [1], [0], [0], [0, 0, 1, 0], [], []>} : vector<4x8xf32>, vector<4x8xf32>, vector<4x4xf32> -> vector<4x4xf32>
    %cst_47 = arith.constant 0.353553385 : f32
    %110 = vector.broadcast %cst_47 : f32 to vector<4x4xf32>
    %111 = arith.mulf %109, %110 : vector<4x4xf32>
    %112 = vector.broadcast %3 : vector<1x4xf32> to vector<4x4xf32>
    %113 = arith.addf %111, %112 : vector<4x4xf32>
    %cst_48 = arith.constant dense<0xFF800000> : vector<4xf32>
    %114 = vector.multi_reduction <maximumf>, %113, %cst_48 [1] : vector<4x4xf32> to vector<4xf32>
    %115 = vector.shape_cast %114 : vector<4xf32> to vector<4x1xf32>
    %116 = vector.broadcast %115 : vector<4x1xf32> to vector<4x4xf32>
    %117 = arith.subf %113, %116 : vector<4x4xf32>
    %118 = math.exp %117 : vector<4x4xf32>
    %cst_49 = arith.constant dense<0.000000e+00> : vector<4xf32>
    %119 = vector.multi_reduction <add>, %118, %cst_49 [1] : vector<4x4xf32> to vector<4xf32>
    %120 = vector.shape_cast %119 : vector<4xf32> to vector<4x1xf32>
    %121 = tpu.reciprocal %120 {approx = true} : vector<4x1xf32> -> vector<4x1xf32>
    %122 = vector.broadcast %121 : vector<4x1xf32> to vector<4x4xf32>
    %123 = arith.mulf %118, %122 : vector<4x4xf32>
    %cst_50 = arith.constant dense<0.000000e+00> : vector<4x8xf32>
    %124 = tpu.matmul %123, %108, %cst_50 {dimension_numbers = #tpu.dot_dimension_numbers<[1], [0], [0], [1], [0, 0, 1, 1], [], []>} : vector<4x4xf32>, vector<4x8xf32>, vector<4x8xf32> -> vector<4x8xf32>
    %125 = vector.extract_strided_slice %36 {offsets = [24, 0], sizes = [8, 32], strides = [1, 1]} : vector<32x32xf32> to vector<8x32xf32>
    %cst_51 = arith.constant dense<0.000000e+00> : vector<4x32xf32>
    %126 = tpu.matmul %124, %125, %cst_51 {dimension_numbers = #tpu.dot_dimension_numbers<[1], [0], [0], [1], [0, 0, 1, 1], [], []>} : vector<4x8xf32>, vector<8x32xf32>, vector<4x32xf32> -> vector<4x32xf32>
    %127 = arith.addf %105, %126 : vector<4x32xf32>
    %128 = arith.addf %127, %1 : vector<4x32xf32>
    %cst_52 = arith.constant dense<0.000000e+00> : vector<4xf32>
    %129 = vector.multi_reduction <add>, %128, %cst_52 [1] : vector<4x32xf32> to vector<4xf32>
    %130 = vector.shape_cast %129 : vector<4xf32> to vector<4x1xf32>
    %cst_53 = arith.constant 3.200000e+01 : f32
    %131 = vector.broadcast %cst_53 : f32 to vector<4x1xf32>
    %132 = arith.divf %130, %131 : vector<4x1xf32>
    %133 = vector.broadcast %132 : vector<4x1xf32> to vector<4x32xf32>
    %134 = arith.subf %128, %133 : vector<4x32xf32>
    %135 = arith.mulf %134, %134 : vector<4x32xf32>
    %cst_54 = arith.constant dense<0.000000e+00> : vector<4xf32>
    %136 = vector.multi_reduction <add>, %135, %cst_54 [1] : vector<4x32xf32> to vector<4xf32>
    %137 = vector.shape_cast %136 : vector<4xf32> to vector<4x1xf32>
    %cst_55 = arith.constant 3.200000e+01 : f32
    %138 = vector.broadcast %cst_55 : f32 to vector<4x1xf32>
    %139 = arith.divf %137, %138 : vector<4x1xf32>
    %140 = vector.broadcast %132 : vector<4x1xf32> to vector<4x32xf32>
    %141 = arith.subf %128, %140 : vector<4x32xf32>
    %cst_56 = arith.constant 9.99999974E-6 : f32
    %142 = vector.broadcast %cst_56 : f32 to vector<4x1xf32>
    %143 = arith.addf %139, %142 : vector<4x1xf32>
    %144 = math.rsqrt %143 : vector<4x1xf32>
    %145 = vector.broadcast %144 : vector<4x1xf32> to vector<4x32xf32>
    %146 = arith.mulf %141, %145 : vector<4x32xf32>
    %c0_57 = arith.constant 0 : index
    %c0_58 = arith.constant 0 : index
    %c0_59 = arith.constant 0 : index
    %147 = vector.load %arg9[%c0_57, %c0_58, %c0_59] : memref<2x1x32xf32, #tpu.memory_space<vmem>>, vector<1x1x32xf32>
    %148 = vector.shape_cast %147 : vector<1x1x32xf32> to vector<1x32xf32>
    %149 = vector.broadcast %148 : vector<1x32xf32> to vector<4x32xf32>
    %150 = arith.mulf %146, %149 : vector<4x32xf32>
    %c0_60 = arith.constant 0 : index
    %c0_61 = arith.constant 0 : index
    %c0_62 = arith.constant 0 : index
    %151 = vector.load %arg10[%c0_60, %c0_61, %c0_62] : memref<2x1x32xf32, #tpu.memory_space<vmem>>, vector<1x1x32xf32>
    %152 = vector.shape_cast %151 : vector<1x1x32xf32> to vector<1x32xf32>
    %153 = vector.broadcast %152 : vector<1x32xf32> to vector<4x32xf32>
    %154 = arith.addf %150, %153 : vector<4x32xf32>
    %c0_63 = arith.constant 0 : index
    %c0_64 = arith.constant 0 : index
    %c0_65 = arith.constant 0 : index
    %155 = vector.load %arg11[%c0_63, %c0_64, %c0_65] : memref<2x32x64xf32, #tpu.memory_space<vmem>>, vector<1x32x64xf32>
    %156 = vector.shape_cast %155 : vector<1x32x64xf32> to vector<32x64xf32>
    %cst_66 = arith.constant dense<0.000000e+00> : vector<4x64xf32>
    %157 = tpu.matmul %154, %156, %cst_66 {dimension_numbers = #tpu.dot_dimension_numbers<[1], [0], [0], [1], [0, 0, 1, 1], [], []>} : vector<4x32xf32>, vector<32x64xf32>, vector<4x64xf32> -> vector<4x64xf32>
    %c0_67 = arith.constant 0 : index
    %c0_68 = arith.constant 0 : index
    %c0_69 = arith.constant 0 : index
    %158 = vector.load %arg12[%c0_67, %c0_68, %c0_69] : memref<2x1x64xf32, #tpu.memory_space<vmem>>, vector<1x1x64xf32>
    %159 = vector.shape_cast %158 : vector<1x1x64xf32> to vector<1x64xf32>
    %160 = vector.broadcast %159 : vector<1x64xf32> to vector<4x64xf32>
    %161 = arith.addf %157, %160 : vector<4x64xf32>
    %162 = arith.mulf %161, %161 : vector<4x64xf32>
    %163 = arith.mulf %161, %162 : vector<4x64xf32>
    %cst_70 = arith.constant 4.471500e-02 : f32
    %164 = vector.broadcast %cst_70 : f32 to vector<4x64xf32>
    %165 = arith.mulf %164, %163 : vector<4x64xf32>
    %166 = arith.addf %161, %165 : vector<4x64xf32>
    %cst_71 = arith.constant 0.797884583 : f32
    %167 = vector.broadcast %cst_71 : f32 to vector<4x64xf32>
    %168 = arith.mulf %167, %166 : vector<4x64xf32>
    %169 = math.tanh %168 : vector<4x64xf32>
    %cst_72 = arith.constant 1.000000e+00 : f32
    %170 = vector.broadcast %cst_72 : f32 to vector<4x64xf32>
    %171 = arith.addf %170, %169 : vector<4x64xf32>
    %cst_73 = arith.constant 5.000000e-01 : f32
    %172 = vector.broadcast %cst_73 : f32 to vector<4x64xf32>
    %173 = arith.mulf %172, %171 : vector<4x64xf32>
    %174 = arith.mulf %161, %173 : vector<4x64xf32>
    %c0_74 = arith.constant 0 : index
    %c0_75 = arith.constant 0 : index
    %c0_76 = arith.constant 0 : index
    %175 = vector.load %arg13[%c0_74, %c0_75, %c0_76] : memref<2x64x32xf32, #tpu.memory_space<vmem>>, vector<1x64x32xf32>
    %176 = vector.shape_cast %175 : vector<1x64x32xf32> to vector<64x32xf32>
    %cst_77 = arith.constant dense<0.000000e+00> : vector<4x32xf32>
    %177 = tpu.matmul %174, %176, %cst_77 {dimension_numbers = #tpu.dot_dimension_numbers<[1], [0], [0], [1], [0, 0, 1, 1], [], []>} : vector<4x64xf32>, vector<64x32xf32>, vector<4x32xf32> -> vector<4x32xf32>
    %c0_78 = arith.constant 0 : index
    %c0_79 = arith.constant 0 : index
    %c0_80 = arith.constant 0 : index
    %178 = vector.load %arg14[%c0_78, %c0_79, %c0_80] : memref<2x1x32xf32, #tpu.memory_space<vmem>>, vector<1x1x32xf32>
    %179 = vector.shape_cast %178 : vector<1x1x32xf32> to vector<1x32xf32>
    %180 = vector.broadcast %179 : vector<1x32xf32> to vector<4x32xf32>
    %181 = arith.addf %177, %180 : vector<4x32xf32>
    %182 = arith.addf %181, %128 : vector<4x32xf32>
    %cst_81 = arith.constant dense<0.000000e+00> : vector<4xf32>
    %183 = vector.multi_reduction <add>, %182, %cst_81 [1] : vector<4x32xf32> to vector<4xf32>
    %184 = vector.shape_cast %183 : vector<4xf32> to vector<4x1xf32>
    %cst_82 = arith.constant 3.200000e+01 : f32
    %185 = vector.broadcast %cst_82 : f32 to vector<4x1xf32>
    %186 = arith.divf %184, %185 : vector<4x1xf32>
    %187 = vector.broadcast %186 : vector<4x1xf32> to vector<4x32xf32>
    %188 = arith.subf %182, %187 : vector<4x32xf32>
    %189 = arith.mulf %188, %188 : vector<4x32xf32>
    %cst_83 = arith.constant dense<0.000000e+00> : vector<4xf32>
    %190 = vector.multi_reduction <add>, %189, %cst_83 [1] : vector<4x32xf32> to vector<4xf32>
    %191 = vector.shape_cast %190 : vector<4xf32> to vector<4x1xf32>
    %cst_84 = arith.constant 3.200000e+01 : f32
    %192 = vector.broadcast %cst_84 : f32 to vector<4x1xf32>
    %193 = arith.divf %191, %192 : vector<4x1xf32>
    %194 = vector.broadcast %186 : vector<4x1xf32> to vector<4x32xf32>
    %195 = arith.subf %182, %194 : vector<4x32xf32>
    %cst_85 = arith.constant 9.99999974E-6 : f32
    %196 = vector.broadcast %cst_85 : f32 to vector<4x1xf32>
    %197 = arith.addf %193, %196 : vector<4x1xf32>
    %198 = math.rsqrt %197 : vector<4x1xf32>
    %199 = vector.broadcast %198 : vector<4x1xf32> to vector<4x32xf32>
    %200 = arith.mulf %195, %199 : vector<4x32xf32>
    %c1 = arith.constant 1 : index
    %c0_86 = arith.constant 0 : index
    %c0_87 = arith.constant 0 : index
    %201 = vector.load %arg4[%c1, %c0_86, %c0_87] : memref<2x1x32xf32, #tpu.memory_space<vmem>>, vector<1x1x32xf32>
    %202 = vector.shape_cast %201 : vector<1x1x32xf32> to vector<1x32xf32>
    %203 = vector.broadcast %202 : vector<1x32xf32> to vector<4x32xf32>
    %204 = arith.mulf %200, %203 : vector<4x32xf32>
    %c1_88 = arith.constant 1 : index
    %c0_89 = arith.constant 0 : index
    %c0_90 = arith.constant 0 : index
    %205 = vector.load %arg5[%c1_88, %c0_89, %c0_90] : memref<2x1x32xf32, #tpu.memory_space<vmem>>, vector<1x1x32xf32>
    %206 = vector.shape_cast %205 : vector<1x1x32xf32> to vector<1x32xf32>
    %207 = vector.broadcast %206 : vector<1x32xf32> to vector<4x32xf32>
    %208 = arith.addf %204, %207 : vector<4x32xf32>
    %c1_91 = arith.constant 1 : index
    %c0_92 = arith.constant 0 : index
    %c0_93 = arith.constant 0 : index
    %209 = vector.load %arg6[%c1_91, %c0_92, %c0_93] : memref<2x32x96xf32, #tpu.memory_space<vmem>>, vector<1x32x96xf32>
    %210 = vector.shape_cast %209 : vector<1x32x96xf32> to vector<32x96xf32>
    %cst_94 = arith.constant dense<0.000000e+00> : vector<4x96xf32>
    %211 = tpu.matmul %208, %210, %cst_94 {dimension_numbers = #tpu.dot_dimension_numbers<[1], [0], [0], [1], [0, 0, 1, 1], [], []>} : vector<4x32xf32>, vector<32x96xf32>, vector<4x96xf32> -> vector<4x96xf32>
    %c1_95 = arith.constant 1 : index
    %c0_96 = arith.constant 0 : index
    %c0_97 = arith.constant 0 : index
    %212 = vector.load %arg7[%c1_95, %c0_96, %c0_97] : memref<2x32x32xf32, #tpu.memory_space<vmem>>, vector<1x32x32xf32>
    %213 = vector.shape_cast %212 : vector<1x32x32xf32> to vector<32x32xf32>
    %c1_98 = arith.constant 1 : index
    %c0_99 = arith.constant 0 : index
    %c0_100 = arith.constant 0 : index
    %214 = vector.load %arg8[%c1_98, %c0_99, %c0_100] : memref<2x1x32xf32, #tpu.memory_space<vmem>>, vector<1x1x32xf32>
    %215 = vector.shape_cast %214 : vector<1x1x32xf32> to vector<1x32xf32>
    %216 = vector.extract_strided_slice %211 {offsets = [0, 0], sizes = [4, 8], strides = [1, 1]} : vector<4x96xf32> to vector<4x8xf32>
    %217 = vector.extract_strided_slice %211 {offsets = [0, 32], sizes = [4, 8], strides = [1, 1]} : vector<4x96xf32> to vector<4x8xf32>
    %218 = vector.extract_strided_slice %211 {offsets = [0, 64], sizes = [4, 8], strides = [1, 1]} : vector<4x96xf32> to vector<4x8xf32>
    %cst_101 = arith.constant dense<0.000000e+00> : vector<4x4xf32>
    %219 = tpu.matmul %216, %217, %cst_101 {dimension_numbers = #tpu.dot_dimension_numbers<[1], [1], [0], [0], [0, 0, 1, 0], [], []>} : vector<4x8xf32>, vector<4x8xf32>, vector<4x4xf32> -> vector<4x4xf32>
    %cst_102 = arith.constant 0.353553385 : f32
    %220 = vector.broadcast %cst_102 : f32 to vector<4x4xf32>
    %221 = arith.mulf %219, %220 : vector<4x4xf32>
    %222 = vector.broadcast %3 : vector<1x4xf32> to vector<4x4xf32>
    %223 = arith.addf %221, %222 : vector<4x4xf32>
    %cst_103 = arith.constant dense<0xFF800000> : vector<4xf32>
    %224 = vector.multi_reduction <maximumf>, %223, %cst_103 [1] : vector<4x4xf32> to vector<4xf32>
    %225 = vector.shape_cast %224 : vector<4xf32> to vector<4x1xf32>
    %226 = vector.broadcast %225 : vector<4x1xf32> to vector<4x4xf32>
    %227 = arith.subf %223, %226 : vector<4x4xf32>
    %228 = math.exp %227 : vector<4x4xf32>
    %cst_104 = arith.constant dense<0.000000e+00> : vector<4xf32>
    %229 = vector.multi_reduction <add>, %228, %cst_104 [1] : vector<4x4xf32> to vector<4xf32>
    %230 = vector.shape_cast %229 : vector<4xf32> to vector<4x1xf32>
    %231 = tpu.reciprocal %230 {approx = true} : vector<4x1xf32> -> vector<4x1xf32>
    %232 = vector.broadcast %231 : vector<4x1xf32> to vector<4x4xf32>
    %233 = arith.mulf %228, %232 : vector<4x4xf32>
    %cst_105 = arith.constant dense<0.000000e+00> : vector<4x8xf32>
    %234 = tpu.matmul %233, %218, %cst_105 {dimension_numbers = #tpu.dot_dimension_numbers<[1], [0], [0], [1], [0, 0, 1, 1], [], []>} : vector<4x4xf32>, vector<4x8xf32>, vector<4x8xf32> -> vector<4x8xf32>
    %235 = vector.extract_strided_slice %213 {offsets = [0, 0], sizes = [8, 32], strides = [1, 1]} : vector<32x32xf32> to vector<8x32xf32>
    %cst_106 = arith.constant dense<0.000000e+00> : vector<4x32xf32>
    %236 = tpu.matmul %234, %235, %cst_106 {dimension_numbers = #tpu.dot_dimension_numbers<[1], [0], [0], [1], [0, 0, 1, 1], [], []>} : vector<4x8xf32>, vector<8x32xf32>, vector<4x32xf32> -> vector<4x32xf32>
    %237 = vector.broadcast %215 : vector<1x32xf32> to vector<4x32xf32>
    %238 = arith.addf %237, %236 : vector<4x32xf32>
    %239 = vector.extract_strided_slice %211 {offsets = [0, 8], sizes = [4, 8], strides = [1, 1]} : vector<4x96xf32> to vector<4x8xf32>
    %240 = vector.extract_strided_slice %211 {offsets = [0, 40], sizes = [4, 8], strides = [1, 1]} : vector<4x96xf32> to vector<4x8xf32>
    %241 = vector.extract_strided_slice %211 {offsets = [0, 72], sizes = [4, 8], strides = [1, 1]} : vector<4x96xf32> to vector<4x8xf32>
    %cst_107 = arith.constant dense<0.000000e+00> : vector<4x4xf32>
    %242 = tpu.matmul %239, %240, %cst_107 {dimension_numbers = #tpu.dot_dimension_numbers<[1], [1], [0], [0], [0, 0, 1, 0], [], []>} : vector<4x8xf32>, vector<4x8xf32>, vector<4x4xf32> -> vector<4x4xf32>
    %cst_108 = arith.constant 0.353553385 : f32
    %243 = vector.broadcast %cst_108 : f32 to vector<4x4xf32>
    %244 = arith.mulf %242, %243 : vector<4x4xf32>
    %245 = vector.broadcast %3 : vector<1x4xf32> to vector<4x4xf32>
    %246 = arith.addf %244, %245 : vector<4x4xf32>
    %cst_109 = arith.constant dense<0xFF800000> : vector<4xf32>
    %247 = vector.multi_reduction <maximumf>, %246, %cst_109 [1] : vector<4x4xf32> to vector<4xf32>
    %248 = vector.shape_cast %247 : vector<4xf32> to vector<4x1xf32>
    %249 = vector.broadcast %248 : vector<4x1xf32> to vector<4x4xf32>
    %250 = arith.subf %246, %249 : vector<4x4xf32>
    %251 = math.exp %250 : vector<4x4xf32>
    %cst_110 = arith.constant dense<0.000000e+00> : vector<4xf32>
    %252 = vector.multi_reduction <add>, %251, %cst_110 [1] : vector<4x4xf32> to vector<4xf32>
    %253 = vector.shape_cast %252 : vector<4xf32> to vector<4x1xf32>
    %254 = tpu.reciprocal %253 {approx = true} : vector<4x1xf32> -> vector<4x1xf32>
    %255 = vector.broadcast %254 : vector<4x1xf32> to vector<4x4xf32>
    %256 = arith.mulf %251, %255 : vector<4x4xf32>
    %cst_111 = arith.constant dense<0.000000e+00> : vector<4x8xf32>
    %257 = tpu.matmul %256, %241, %cst_111 {dimension_numbers = #tpu.dot_dimension_numbers<[1], [0], [0], [1], [0, 0, 1, 1], [], []>} : vector<4x4xf32>, vector<4x8xf32>, vector<4x8xf32> -> vector<4x8xf32>
    %258 = vector.extract_strided_slice %213 {offsets = [8, 0], sizes = [8, 32], strides = [1, 1]} : vector<32x32xf32> to vector<8x32xf32>
    %cst_112 = arith.constant dense<0.000000e+00> : vector<4x32xf32>
    %259 = tpu.matmul %257, %258, %cst_112 {dimension_numbers = #tpu.dot_dimension_numbers<[1], [0], [0], [1], [0, 0, 1, 1], [], []>} : vector<4x8xf32>, vector<8x32xf32>, vector<4x32xf32> -> vector<4x32xf32>
    %260 = arith.addf %238, %259 : vector<4x32xf32>
    %261 = vector.extract_strided_slice %211 {offsets = [0, 16], sizes = [4, 8], strides = [1, 1]} : vector<4x96xf32> to vector<4x8xf32>
    %262 = vector.extract_strided_slice %211 {offsets = [0, 48], sizes = [4, 8], strides = [1, 1]} : vector<4x96xf32> to vector<4x8xf32>
    %263 = vector.extract_strided_slice %211 {offsets = [0, 80], sizes = [4, 8], strides = [1, 1]} : vector<4x96xf32> to vector<4x8xf32>
    %cst_113 = arith.constant dense<0.000000e+00> : vector<4x4xf32>
    %264 = tpu.matmul %261, %262, %cst_113 {dimension_numbers = #tpu.dot_dimension_numbers<[1], [1], [0], [0], [0, 0, 1, 0], [], []>} : vector<4x8xf32>, vector<4x8xf32>, vector<4x4xf32> -> vector<4x4xf32>
    %cst_114 = arith.constant 0.353553385 : f32
    %265 = vector.broadcast %cst_114 : f32 to vector<4x4xf32>
    %266 = arith.mulf %264, %265 : vector<4x4xf32>
    %267 = vector.broadcast %3 : vector<1x4xf32> to vector<4x4xf32>
    %268 = arith.addf %266, %267 : vector<4x4xf32>
    %cst_115 = arith.constant dense<0xFF800000> : vector<4xf32>
    %269 = vector.multi_reduction <maximumf>, %268, %cst_115 [1] : vector<4x4xf32> to vector<4xf32>
    %270 = vector.shape_cast %269 : vector<4xf32> to vector<4x1xf32>
    %271 = vector.broadcast %270 : vector<4x1xf32> to vector<4x4xf32>
    %272 = arith.subf %268, %271 : vector<4x4xf32>
    %273 = math.exp %272 : vector<4x4xf32>
    %cst_116 = arith.constant dense<0.000000e+00> : vector<4xf32>
    %274 = vector.multi_reduction <add>, %273, %cst_116 [1] : vector<4x4xf32> to vector<4xf32>
    %275 = vector.shape_cast %274 : vector<4xf32> to vector<4x1xf32>
    %276 = tpu.reciprocal %275 {approx = true} : vector<4x1xf32> -> vector<4x1xf32>
    %277 = vector.broadcast %276 : vector<4x1xf32> to vector<4x4xf32>
    %278 = arith.mulf %273, %277 : vector<4x4xf32>
    %cst_117 = arith.constant dense<0.000000e+00> : vector<4x8xf32>
    %279 = tpu.matmul %278, %263, %cst_117 {dimension_numbers = #tpu.dot_dimension_numbers<[1], [0], [0], [1], [0, 0, 1, 1], [], []>} : vector<4x4xf32>, vector<4x8xf32>, vector<4x8xf32> -> vector<4x8xf32>
    %280 = vector.extract_strided_slice %213 {offsets = [16, 0], sizes = [8, 32], strides = [1, 1]} : vector<32x32xf32> to vector<8x32xf32>
    %cst_118 = arith.constant dense<0.000000e+00> : vector<4x32xf32>
    %281 = tpu.matmul %279, %280, %cst_118 {dimension_numbers = #tpu.dot_dimension_numbers<[1], [0], [0], [1], [0, 0, 1, 1], [], []>} : vector<4x8xf32>, vector<8x32xf32>, vector<4x32xf32> -> vector<4x32xf32>
    %282 = arith.addf %260, %281 : vector<4x32xf32>
    %283 = vector.extract_strided_slice %211 {offsets = [0, 24], sizes = [4, 8], strides = [1, 1]} : vector<4x96xf32> to vector<4x8xf32>
    %284 = vector.extract_strided_slice %211 {offsets = [0, 56], sizes = [4, 8], strides = [1, 1]} : vector<4x96xf32> to vector<4x8xf32>
    %285 = vector.extract_strided_slice %211 {offsets = [0, 88], sizes = [4, 8], strides = [1, 1]} : vector<4x96xf32> to vector<4x8xf32>
    %cst_119 = arith.constant dense<0.000000e+00> : vector<4x4xf32>
    %286 = tpu.matmul %283, %284, %cst_119 {dimension_numbers = #tpu.dot_dimension_numbers<[1], [1], [0], [0], [0, 0, 1, 0], [], []>} : vector<4x8xf32>, vector<4x8xf32>, vector<4x4xf32> -> vector<4x4xf32>
    %cst_120 = arith.constant 0.353553385 : f32
    %287 = vector.broadcast %cst_120 : f32 to vector<4x4xf32>
    %288 = arith.mulf %286, %287 : vector<4x4xf32>
    %289 = vector.broadcast %3 : vector<1x4xf32> to vector<4x4xf32>
    %290 = arith.addf %288, %289 : vector<4x4xf32>
    %cst_121 = arith.constant dense<0xFF800000> : vector<4xf32>
    %291 = vector.multi_reduction <maximumf>, %290, %cst_121 [1] : vector<4x4xf32> to vector<4xf32>
    %292 = vector.shape_cast %291 : vector<4xf32> to vector<4x1xf32>
    %293 = vector.broadcast %292 : vector<4x1xf32> to vector<4x4xf32>
    %294 = arith.subf %290, %293 : vector<4x4xf32>
    %295 = math.exp %294 : vector<4x4xf32>
    %cst_122 = arith.constant dense<0.000000e+00> : vector<4xf32>
    %296 = vector.multi_reduction <add>, %295, %cst_122 [1] : vector<4x4xf32> to vector<4xf32>
    %297 = vector.shape_cast %296 : vector<4xf32> to vector<4x1xf32>
    %298 = tpu.reciprocal %297 {approx = true} : vector<4x1xf32> -> vector<4x1xf32>
    %299 = vector.broadcast %298 : vector<4x1xf32> to vector<4x4xf32>
    %300 = arith.mulf %295, %299 : vector<4x4xf32>
    %cst_123 = arith.constant dense<0.000000e+00> : vector<4x8xf32>
    %301 = tpu.matmul %300, %285, %cst_123 {dimension_numbers = #tpu.dot_dimension_numbers<[1], [0], [0], [1], [0, 0, 1, 1], [], []>} : vector<4x4xf32>, vector<4x8xf32>, vector<4x8xf32> -> vector<4x8xf32>
    %302 = vector.extract_strided_slice %213 {offsets = [24, 0], sizes = [8, 32], strides = [1, 1]} : vector<32x32xf32> to vector<8x32xf32>
    %cst_124 = arith.constant dense<0.000000e+00> : vector<4x32xf32>
    %303 = tpu.matmul %301, %302, %cst_124 {dimension_numbers = #tpu.dot_dimension_numbers<[1], [0], [0], [1], [0, 0, 1, 1], [], []>} : vector<4x8xf32>, vector<8x32xf32>, vector<4x32xf32> -> vector<4x32xf32>
    %304 = arith.addf %282, %303 : vector<4x32xf32>
    %305 = arith.addf %304, %182 : vector<4x32xf32>
    %cst_125 = arith.constant dense<0.000000e+00> : vector<4xf32>
    %306 = vector.multi_reduction <add>, %305, %cst_125 [1] : vector<4x32xf32> to vector<4xf32>
    %307 = vector.shape_cast %306 : vector<4xf32> to vector<4x1xf32>
    %cst_126 = arith.constant 3.200000e+01 : f32
    %308 = vector.broadcast %cst_126 : f32 to vector<4x1xf32>
    %309 = arith.divf %307, %308 : vector<4x1xf32>
    %310 = vector.broadcast %309 : vector<4x1xf32> to vector<4x32xf32>
    %311 = arith.subf %305, %310 : vector<4x32xf32>
    %312 = arith.mulf %311, %311 : vector<4x32xf32>
    %cst_127 = arith.constant dense<0.000000e+00> : vector<4xf32>
    %313 = vector.multi_reduction <add>, %312, %cst_127 [1] : vector<4x32xf32> to vector<4xf32>
    %314 = vector.shape_cast %313 : vector<4xf32> to vector<4x1xf32>
    %cst_128 = arith.constant 3.200000e+01 : f32
    %315 = vector.broadcast %cst_128 : f32 to vector<4x1xf32>
    %316 = arith.divf %314, %315 : vector<4x1xf32>
    %317 = vector.broadcast %309 : vector<4x1xf32> to vector<4x32xf32>
    %318 = arith.subf %305, %317 : vector<4x32xf32>
    %cst_129 = arith.constant 9.99999974E-6 : f32
    %319 = vector.broadcast %cst_129 : f32 to vector<4x1xf32>
    %320 = arith.addf %316, %319 : vector<4x1xf32>
    %321 = math.rsqrt %320 : vector<4x1xf32>
    %322 = vector.broadcast %321 : vector<4x1xf32> to vector<4x32xf32>
    %323 = arith.mulf %318, %322 : vector<4x32xf32>
    %c1_130 = arith.constant 1 : index
    %c0_131 = arith.constant 0 : index
    %c0_132 = arith.constant 0 : index
    %324 = vector.load %arg9[%c1_130, %c0_131, %c0_132] : memref<2x1x32xf32, #tpu.memory_space<vmem>>, vector<1x1x32xf32>
    %325 = vector.shape_cast %324 : vector<1x1x32xf32> to vector<1x32xf32>
    %326 = vector.broadcast %325 : vector<1x32xf32> to vector<4x32xf32>
    %327 = arith.mulf %323, %326 : vector<4x32xf32>
    %c1_133 = arith.constant 1 : index
    %c0_134 = arith.constant 0 : index
    %c0_135 = arith.constant 0 : index
    %328 = vector.load %arg10[%c1_133, %c0_134, %c0_135] : memref<2x1x32xf32, #tpu.memory_space<vmem>>, vector<1x1x32xf32>
    %329 = vector.shape_cast %328 : vector<1x1x32xf32> to vector<1x32xf32>
    %330 = vector.broadcast %329 : vector<1x32xf32> to vector<4x32xf32>
    %331 = arith.addf %327, %330 : vector<4x32xf32>
    %c1_136 = arith.constant 1 : index
    %c0_137 = arith.constant 0 : index
    %c0_138 = arith.constant 0 : index
    %332 = vector.load %arg11[%c1_136, %c0_137, %c0_138] : memref<2x32x64xf32, #tpu.memory_space<vmem>>, vector<1x32x64xf32>
    %333 = vector.shape_cast %332 : vector<1x32x64xf32> to vector<32x64xf32>
    %cst_139 = arith.constant dense<0.000000e+00> : vector<4x64xf32>
    %334 = tpu.matmul %331, %333, %cst_139 {dimension_numbers = #tpu.dot_dimension_numbers<[1], [0], [0], [1], [0, 0, 1, 1], [], []>} : vector<4x32xf32>, vector<32x64xf32>, vector<4x64xf32> -> vector<4x64xf32>
    %c1_140 = arith.constant 1 : index
    %c0_141 = arith.constant 0 : index
    %c0_142 = arith.constant 0 : index
    %335 = vector.load %arg12[%c1_140, %c0_141, %c0_142] : memref<2x1x64xf32, #tpu.memory_space<vmem>>, vector<1x1x64xf32>
    %336 = vector.shape_cast %335 : vector<1x1x64xf32> to vector<1x64xf32>
    %337 = vector.broadcast %336 : vector<1x64xf32> to vector<4x64xf32>
    %338 = arith.addf %334, %337 : vector<4x64xf32>
    %339 = arith.mulf %338, %338 : vector<4x64xf32>
    %340 = arith.mulf %338, %339 : vector<4x64xf32>
    %cst_143 = arith.constant 4.471500e-02 : f32
    %341 = vector.broadcast %cst_143 : f32 to vector<4x64xf32>
    %342 = arith.mulf %341, %340 : vector<4x64xf32>
    %343 = arith.addf %338, %342 : vector<4x64xf32>
    %cst_144 = arith.constant 0.797884583 : f32
    %344 = vector.broadcast %cst_144 : f32 to vector<4x64xf32>
    %345 = arith.mulf %344, %343 : vector<4x64xf32>
    %346 = math.tanh %345 : vector<4x64xf32>
    %cst_145 = arith.constant 1.000000e+00 : f32
    %347 = vector.broadcast %cst_145 : f32 to vector<4x64xf32>
    %348 = arith.addf %347, %346 : vector<4x64xf32>
    %cst_146 = arith.constant 5.000000e-01 : f32
    %349 = vector.broadcast %cst_146 : f32 to vector<4x64xf32>
    %350 = arith.mulf %349, %348 : vector<4x64xf32>
    %351 = arith.mulf %338, %350 : vector<4x64xf32>
    %c1_147 = arith.constant 1 : index
    %c0_148 = arith.constant 0 : index
    %c0_149 = arith.constant 0 : index
    %352 = vector.load %arg13[%c1_147, %c0_148, %c0_149] : memref<2x64x32xf32, #tpu.memory_space<vmem>>, vector<1x64x32xf32>
    %353 = vector.shape_cast %352 : vector<1x64x32xf32> to vector<64x32xf32>
    %cst_150 = arith.constant dense<0.000000e+00> : vector<4x32xf32>
    %354 = tpu.matmul %351, %353, %cst_150 {dimension_numbers = #tpu.dot_dimension_numbers<[1], [0], [0], [1], [0, 0, 1, 1], [], []>} : vector<4x64xf32>, vector<64x32xf32>, vector<4x32xf32> -> vector<4x32xf32>
    %c1_151 = arith.constant 1 : index
    %c0_152 = arith.constant 0 : index
    %c0_153 = arith.constant 0 : index
    %355 = vector.load %arg14[%c1_151, %c0_152, %c0_153] : memref<2x1x32xf32, #tpu.memory_space<vmem>>, vector<1x1x32xf32>
    %356 = vector.shape_cast %355 : vector<1x1x32xf32> to vector<1x32xf32>
    %357 = vector.broadcast %356 : vector<1x32xf32> to vector<4x32xf32>
    %358 = arith.addf %354, %357 : vector<4x32xf32>
    %359 = arith.addf %358, %305 : vector<4x32xf32>
    %cst_154 = arith.constant 5.000000e-01 : f32
    %360 = vector.broadcast %cst_154 : f32 to vector<4x1xf32>
    %361 = arith.cmpf ogt, %5, %360 : vector<4x1xf32>
    %cst_155 = arith.constant 0xFF800000 : f32
    %362 = vector.shape_cast %361 : vector<4x1xi1> to vector<4x1xi1>
    %363 = vector.broadcast %362 : vector<4x1xi1> to vector<4x32xi1>
    %364 = vector.broadcast %cst_155 : f32 to vector<4x32xf32>
    %365 = arith.select %363, %359, %364 : vector<4x32xi1>, vector<4x32xf32>
    %cst_156 = arith.constant dense<0xFF800000> : vector<32xf32>
    %366 = vector.multi_reduction <maximumf>, %365, %cst_156 [0] : vector<4x32xf32> to vector<32xf32>
    %367 = vector.shape_cast %366 : vector<32xf32> to vector<1x32xf32>
    %c0_157 = arith.constant 0 : index
    %c0_158 = arith.constant 0 : index
    %c0_159 = arith.constant 0 : index
    %368 = vector.load %arg18[%c0_157, %c0_158, %c0_159] : memref<1x1x32xf32, #tpu.memory_space<vmem>>, vector<1x1x32xf32>
    %369 = vector.shape_cast %368 : vector<1x1x32xf32> to vector<1x32xf32>
    %370 = vector.shape_cast %367 : vector<1x32xf32> to vector<1x1x32xf32>
    tpu.vector_store %arg18[%c0_157, %c0_158, %c0_159], %370 {strides = array<i32>} : memref<1x1x32xf32, #tpu.memory_space<vmem>>, vector<1x1x32xf32>,
    %c0_160 = arith.constant 0 : index
    %c0_161 = arith.constant 0 : index
    %371 = vector.load %arg15[%c0_160, %c0_161] : memref<32x10xf32, #tpu.memory_space<vmem>>, vector<32x10xf32>
    %cst_162 = arith.constant dense<0.000000e+00> : vector<1x10xf32>
    %372 = tpu.matmul %367, %371, %cst_162 {dimension_numbers = #tpu.dot_dimension_numbers<[1], [0], [0], [1], [0, 0, 1, 1], [], []>} : vector<1x32xf32>, vector<32x10xf32>, vector<1x10xf32> -> vector<1x10xf32>
    %c0_163 = arith.constant 0 : index
    %c0_164 = arith.constant 0 : index
    %373 = vector.load %arg16[%c0_163, %c0_164] : memref<1x10xf32, #tpu.memory_space<vmem>>, vector<1x10xf32>
    %374 = arith.addf %372, %373 : vector<1x10xf32>
    %c0_165 = arith.constant 0 : index
    %c0_166 = arith.constant 0 : index
    %c0_167 = arith.constant 0 : index
    %375 = vector.load %arg17[%c0_165, %c0_166, %c0_167] : memref<1x1x10xf32, #tpu.memory_space<vmem>>, vector<1x1x10xf32>
    %376 = vector.shape_cast %375 : vector<1x1x10xf32> to vector<1x10xf32>
    %377 = vector.shape_cast %374 : vector<1x10xf32> to vector<1x1x10xf32>
    tpu.vector_store %arg17[%c0_165, %c0_166, %c0_167], %377 {strides = array<i32>} : memref<1x1x10xf32, #tpu.memory_space<vmem>>, vector<1x1x10xf32>,
    return
  }
  func.func @transform_0(%arg0: i32) -> (i32, i32, i32) {
    %c0_i32 = arith.constant 0 : i32
    %c0_i32_0 = arith.constant 0 : i32
    %c0_i32_1 = arith.constant 0 : i32
    return %arg0, %c0_i32, %c0_i32_0 : i32, i32, i32
  }
  func.func @transform_1(%arg0: i32) -> (i32, i32, i32) {
    %c0_i32 = arith.constant 0 : i32
    %c0_i32_0 = arith.constant 0 : i32
    %c0_i32_1 = arith.constant 0 : i32
    return %arg0, %c0_i32, %c0_i32_0 : i32, i32, i32
  }
  func.func @transform_2(%arg0: i32) -> (i32, i32, i32) {
    %c0_i32 = arith.constant 0 : i32
    %c0_i32_0 = arith.constant 0 : i32
    %c0_i32_1 = arith.constant 0 : i32
    return %arg0, %c0_i32, %c0_i32_0 : i32, i32, i32
  }
  func.func @transform_3(%arg0: i32) -> (i32, i32, i32) {
    %c0_i32 = arith.constant 0 : i32
    %c0_i32_0 = arith.constant 0 : i32
    %c0_i32_1 = arith.constant 0 : i32
    %c0_i32_2 = arith.constant 0 : i32
    return %c0_i32, %c0_i32_0, %c0_i32_1 : i32, i32, i32
  }
  func.func @transform_4(%arg0: i32) -> (i32, i32, i32) {
    %c0_i32 = arith.constant 0 : i32
    %c0_i32_0 = arith.constant 0 : i32
    %c0_i32_1 = arith.constant 0 : i32
    %c0_i32_2 = arith.constant 0 : i32
    return %c0_i32, %c0_i32_0, %c0_i32_1 : i32, i32, i32
  }
  func.func @transform_5(%arg0: i32) -> (i32, i32, i32) {
    %c0_i32 = arith.constant 0 : i32
    %c0_i32_0 = arith.constant 0 : i32
    %c0_i32_1 = arith.constant 0 : i32
    %c0_i32_2 = arith.constant 0 : i32
    return %c0_i32, %c0_i32_0, %c0_i32_1 : i32, i32, i32
  }
  func.func @transform_6(%arg0: i32) -> (i32, i32, i32) {
    %c0_i32 = arith.constant 0 : i32
    %c0_i32_0 = arith.constant 0 : i32
    %c0_i32_1 = arith.constant 0 : i32
    %c0_i32_2 = arith.constant 0 : i32
    return %c0_i32, %c0_i32_0, %c0_i32_1 : i32, i32, i32
  }
  func.func @transform_7(%arg0: i32) -> (i32, i32, i32) {
    %c0_i32 = arith.constant 0 : i32
    %c0_i32_0 = arith.constant 0 : i32
    %c0_i32_1 = arith.constant 0 : i32
    %c0_i32_2 = arith.constant 0 : i32
    return %c0_i32, %c0_i32_0, %c0_i32_1 : i32, i32, i32
  }
  func.func @transform_8(%arg0: i32) -> (i32, i32, i32) {
    %c0_i32 = arith.constant 0 : i32
    %c0_i32_0 = arith.constant 0 : i32
    %c0_i32_1 = arith.constant 0 : i32
    %c0_i32_2 = arith.constant 0 : i32
    return %c0_i32, %c0_i32_0, %c0_i32_1 : i32, i32, i32
  }
  func.func @transform_9(%arg0: i32) -> (i32, i32, i32) {
    %c0_i32 = arith.constant 0 : i32
    %c0_i32_0 = arith.constant 0 : i32
    %c0_i32_1 = arith.constant 0 : i32
    %c0_i32_2 = arith.constant 0 : i32
    return %c0_i32, %c0_i32_0, %c0_i32_1 : i32, i32, i32
  }
  func.func @transform_10(%arg0: i32) -> (i32, i32, i32) {
    %c0_i32 = arith.constant 0 : i32
    %c0_i32_0 = arith.constant 0 : i32
    %c0_i32_1 = arith.constant 0 : i32
    %c0_i32_2 = arith.constant 0 : i32
    return %c0_i32, %c0_i32_0, %c0_i32_1 : i32, i32, i32
  }
  func.func @transform_11(%arg0: i32) -> (i32, i32, i32) {
    %c0_i32 = arith.constant 0 : i32
    %c0_i32_0 = arith.constant 0 : i32
    %c0_i32_1 = arith.constant 0 : i32
    %c0_i32_2 = arith.constant 0 : i32
    return %c0_i32, %c0_i32_0, %c0_i32_1 : i32, i32, i32
  }
  func.func @transform_12(%arg0: i32) -> (i32, i32, i32) {
    %c0_i32 = arith.constant 0 : i32
    %c0_i32_0 = arith.constant 0 : i32
    %c0_i32_1 = arith.constant 0 : i32
    %c0_i32_2 = arith.constant 0 : i32
    return %c0_i32, %c0_i32_0, %c0_i32_1 : i32, i32, i32
  }
  func.func @transform_13(%arg0: i32) -> (i32, i32, i32) {
    %c0_i32 = arith.constant 0 : i32
    %c0_i32_0 = arith.constant 0 : i32
    %c0_i32_1 = arith.constant 0 : i32
    %c0_i32_2 = arith.constant 0 : i32
    return %c0_i32, %c0_i32_0, %c0_i32_1 : i32, i32, i32
  }
  func.func @transform_14(%arg0: i32) -> (i32, i32) {
    %c0_i32 = arith.constant 0 : i32
    %c0_i32_0 = arith.constant 0 : i32
    %c0_i32_1 = arith.constant 0 : i32
    return %c0_i32, %c0_i32_0 : i32, i32
  }
  func.func @transform_15(%arg0: i32) -> (i32, i32) {
    %c0_i32 = arith.constant 0 : i32
    %c0_i32_0 = arith.constant 0 : i32
    %c0_i32_1 = arith.constant 0 : i32
    return %c0_i32, %c0_i32_0 : i32, i32
  }
  func.func @transform_16(%arg0: i32) -> (i32, i32, i32) {
    %c0_i32 = arith.constant 0 : i32
    %c0_i32_0 = arith.constant 0 : i32
    %c0_i32_1 = arith.constant 0 : i32
    return %arg0, %c0_i32, %c0_i32_0 : i32, i32, i32
  }
  func.func @transform_17(%arg0: i32) -> (i32, i32, i32) {
    %c0_i32 = arith.constant 0 : i32
    %c0_i32_0 = arith.constant 0 : i32
    %c0_i32_1 = arith.constant 0 : i32
    return %arg0, %c0_i32, %c0_i32_0 : i32, i32, i32
  }
}

</mosaic_0001>

<llo_original>
// kernel: _lambda_.2
$region0: #{_lambda_.2}
  #allocation0 [shape = 'u32[]', space=smem, size = 0x4, offset = 0x4, fixed_abs, tag = 'smem constant byte address 0x4 - core index']
  #allocation1 [shape = 'u32[144,128]{1,0:T(1,128)}', space=vmem, size = 0x12000, scoped, tag = 'internal scratch']
  %s0 = inlined_call_operand.vmem [shape: f32[8,18,18,3], index: 0, kind: input, shape index: {}]
  %s1 = inlined_call_operand.vmem [shape: f32[9,3,32], index: 1, kind: input, shape index: {}]
  %s2 = inlined_call_operand.vmem [shape: f32[1,32], index: 2, kind: input, shape index: {}]
  %s3 = inlined_call_operand.vmem [shape: f32[8,1,32], index: 3, kind: output, shape index: {}]
  %s4 = sld [smem:[#allocation0]]
  $region45: #{_lambda_.2} parent=0
    _
  %s6 = ssub.s32 1, %s4
  %s7 = scalar_select 0, %s6, %s4
  loop: start=0, step=1, limit=10
  $region2: #{_lambda_.2} parent=0 // loop_pre_header
    _
  $region3: #{_lambda_.2} parent=0 // loop_header
    %s9 = sphi 0, %s13
    %p10 = scmp.ge.s32.totalorder %s9, 10
    %s19 = sphi 0, %s21
    %s22 = sphi 0, %s19
    %s23 = sphi 0, %s22
    %s39 = sphi 0, %s23
    %s43 = sphi 0, %s43
    %s45 = sphi 0, %s43
    %s46 = sphi 0, %s45
    %s60 = sphi 0, %s46
    %s64 = sphi 0, %s64
    %s66 = sphi 0, %s64
    %s67 = sphi 0, %s66
    %s81 = sphi 0, %s67
    %s87 = sphi 0, %s89
    %s90 = sphi 0, %s87
    %s91 = sphi 0, %s90
    %s107 = sphi 0, %s91
  $region4: #{_lambda_.2} parent=0 // loop_header_branch
    %12 = sbr.rel (%p10) target = $region8
  $region5: #{_lambda_.2} parent=0 // loop_body
    %s14 = ssub.s32 %s9, 1
    %s15 = ssub.s32 %s9, 2
    %s16 = sadd.s32 %s9, 1
    %s17 = ssub.s32 %s9, %s16
    %p18 = scmp.eq.s32.totalorder %s17, 0
    %s20 = sadd.s32 %s19, 1
    %s21 = scalar_select %p18, %s19, %s20
    %p24 = pneg %p18
    %p25 = scmp.eq.s32.totalorder %s9, 7
    %p26 = por %p24, %p25
    %p27 = scmp.ne.s32.totalorder %s19, %s22
    %p28 = scmp.eq.s32.totalorder %s9, 0
    %p29 = por %p27, %p28
    %p30 = scmp.ne.s32.totalorder %s19, %s22
    %p31 = scmp.eq.s32.totalorder %s14, 7
    %p32 = por %p30, %p31
    %p33 = scmp.ne.s32.totalorder %s22, %s23
    %p34 = scmp.eq.s32.totalorder %s14, 0
    %p35 = por %p33, %p34
    %p36 = scmp.ne.s32.totalorder %s22, %s23
    %p37 = scmp.eq.s32.totalorder %s15, 7
    %p38 = por %p36, %p37
    %p40 = scmp.ne.s32.totalorder %s23, %s39
    %p41 = scmp.eq.s32.totalorder %s15, 0
    %p42 = por %p40, %p41
    %s44 = sadd.s32 %s43, 1
    %p47 = scmp.eq.s32.totalorder %s9, 7
    %p48 = scmp.ne.s32.totalorder %s43, %s45
    %p49 = scmp.eq.s32.totalorder %s9, 0
    %p50 = por %p48, %p49
    %p51 = scmp.ne.s32.totalorder %s43, %s45
    %p52 = scmp.eq.s32.totalorder %s14, 7
    %p53 = por %p51, %p52
    %p54 = scmp.ne.s32.totalorder %s45, %s46
    %p55 = scmp.eq.s32.totalorder %s14, 0
    %p56 = por %p54, %p55
    %p57 = scmp.ne.s32.totalorder %s45, %s46
    %p58 = scmp.eq.s32.totalorder %s15, 7
    %p59 = por %p57, %p58
    %p61 = scmp.ne.s32.totalorder %s46, %s60
    %p62 = scmp.eq.s32.totalorder %s15, 0
    %p63 = por %p61, %p62
    %s65 = sadd.s32 %s64, 1
    %p68 = scmp.eq.s32.totalorder %s9, 7
    %p69 = scmp.ne.s32.totalorder %s64, %s66
    %p70 = scmp.eq.s32.totalorder %s9, 0
    %p71 = por %p69, %p70
    %p72 = scmp.ne.s32.totalorder %s64, %s66
    %p73 = scmp.eq.s32.totalorder %s14, 7
    %p74 = por %p72, %p73
    %p75 = scmp.ne.s32.totalorder %s66, %s67
    %p76 = scmp.eq.s32.totalorder %s14, 0
    %p77 = por %p75, %p76
    %p78 = scmp.ne.s32.totalorder %s66, %s67
    %p79 = scmp.eq.s32.totalorder %s15, 7
    %p80 = por %p78, %p79
    %p82 = scmp.ne.s32.totalorder %s67, %s81
    %p83 = scmp.eq.s32.totalorder %s15, 0
    %p84 = por %p82, %p83
    %s85 = ssub.s32 %s9, %s16
    %p86 = scmp.eq.s32.totalorder %s85, 0
    %s88 = sadd.s32 %s87, 1
    %s89 = scalar_select %p86, %s87, %s88
    %p92 = pneg %p86
    %p93 = scmp.eq.s32.totalorder %s9, 7
    %p94 = por %p92, %p93
    %p95 = scmp.ne.s32.totalorder %s87, %s90
    %p96 = scmp.eq.s32.totalorder %s9, 0
    %p97 = por %p95, %p96
    %p98 = scmp.ne.s32.totalorder %s87, %s90
    %p99 = scmp.eq.s32.totalorder %s14, 7
    %p100 = por %p98, %p99
    %p101 = scmp.ne.s32.totalorder %s90, %s91
    %p102 = scmp.eq.s32.totalorder %s14, 0
    %p103 = por %p101, %p102
    %p104 = scmp.ne.s32.totalorder %s90, %s91
    %p105 = scmp.eq.s32.totalorder %s15, 7
    %p106 = por %p104, %p105
    %p108 = scmp.ne.s32.totalorder %s91, %s107
    %p109 = scmp.eq.s32.totalorder %s15, 0
    %p110 = por %p108, %p109
    %p111 = scmp.le.s32.totalorder 1, %s9
    %p112 = scmp.lt.s32.totalorder %s9, 9
    %p113 = pnand %p111, %p112
    %p114 = pneg %p113
    // Predicated region
    $region9: #{_lambda_.2} parent=5 // pred_check
      _
    $region10: #{_lambda_.2} parent=5 // pred_check_branch
      %116 = sbr.rel (%p113) target = $region12
    $region11: #{_lambda_.2} parent=5 // pred_region
      %s117 = ssub.s32 %s9, 1
      // Predicated region
      $region13: #{_lambda_.2} parent=11 // pred_check
        %p118 = pneg %p56
      $region14: #{_lambda_.2} parent=11 // pred_check_branch
        %120 = sbr.rel (%p118) target = $region16
      $region15: #{_lambda_.2} parent=11 // pred_region
        _
      $region16: #{_lambda_.2} parent=11 // pred_fallthru
        _
      // Predicated region
      $region17: #{_lambda_.2} parent=11 // pred_check
        %p121 = pneg %p77
      $region18: #{_lambda_.2} parent=11 // pred_check_branch
        %123 = sbr.rel (%p121) target = $region20
      $region19: #{_lambda_.2} parent=11 // pred_region
        _
      $region20: #{_lambda_.2} parent=11 // pred_fallthru
        _
    $region12: #{_lambda_.2} parent=5 // pred_fallthru
      _
    %p124 = scmp.lt.s32.totalorder %s9, 8
    // Predicated region
    $region21: #{_lambda_.2} parent=5 // pred_check
      %p125 = pneg %p124
    $region22: #{_lambda_.2} parent=5 // pred_check_branch
      %127 = sbr.rel (%p125) target = $region24
    $region23: #{_lambda_.2} parent=5 // pred_region
      // Predicated region
      $region25: #{_lambda_.2} parent=23 // pred_check
        %p128 = pneg %p29
      $region26: #{_lambda_.2} parent=23 // pred_check_branch
        %130 = sbr.rel (%p128) target = $region28
      $region27: #{_lambda_.2} parent=23 // pred_region
        %p131 = scmp.lt.s32.totalorder %s9, 7
        %s132 = scalar_select %p131, %s9, 7
        %s133 = smul.addr %s132, 54
        %s134 = smul.addr %s133, 8
        %s135 = scalar_lea.vmem %s0, %s134
      $region28: #{_lambda_.2} parent=23 // pred_fallthru
        _
    $region24: #{_lambda_.2} parent=5 // pred_fallthru
      _
    %p136 = scmp.le.s32.totalorder 1, %s9
    %p137 = scmp.lt.s32.totalorder %s9, 9
    %p138 = pnand %p136, %p137
    %p139 = pneg %p138
    // Predicated region
    $region29: #{_lambda_.2} parent=5 // pred_check
      _
    $region30: #{_lambda_.2} parent=5 // pred_check_branch
      %141 = sbr.rel (%p138) target = $region32
    $region31: #{_lambda_.2} parent=5 // pred_region
      %s142 = ssub.s32 %s9, 1
      %p143 = scmp.lt.s32.totalorder %s14, 7
      %s144 = scalar_select %p143, %s14, 7
      %s145 = smul.addr %s144, 54
      %s146 = smul.addr %s145, 8
      %s147 = scalar_lea.vmem %s0, %s146
      %p148 = pneg %p35
      %p149 = pneg %p32
      %p150 = pneg %p56
      %p151 = pneg %p53
      %p152 = pneg %p77
      %p153 = pneg %p74
      %p154 = pneg %p103
      %p155 = pneg %p100
      %p156 = scmp.lt.s32.totalorder %s14, 7
      %s157 = scalar_select %p156, %s14, 7
      %s158 = scalar_lea.vmem %s3, %s157
      %p159 = scmp.lt.s32.totalorder %s14, 7
      %s160 = scalar_select %p159, %s14, 7
      %s161 = smul.addr %s160, 54
      %s162 = smul.addr %s161, 8
      %s163 = scalar_lea.vmem %s0, %s162
      %p164 = scmp.lt.s32.totalorder %s14, 7
      %s165 = scalar_select %p164, %s14, 7
      %s166 = scalar_lea.vmem %s3, %s165
      %v167 = vld [vmem:[%s163] sm:$0xff]
      %v168 = vld [vmem:[%s163 + $0x8] sm:$0xff]
      %v169 = vld [vmem:[%s163 + $0x10] sm:$0x3]
      %v170 = vld [vmem:[%s163 + $0x18] sm:$0xff]
      %v171 = vld [vmem:[%s163 + $0x20] sm:$0xff]
      %v172 = vld [vmem:[%s163 + $0x28] sm:$0x3]
      %v173 = vld [vmem:[%s163 + $0x30] sm:$0xff]
      %v174 = vld [vmem:[%s163 + $0x38] sm:$0xff]
      %v175 = vld [vmem:[%s163 + $0x40] sm:$0x3]
      %v176 = vld [vmem:[%s163 + $0x48] sm:$0xff]
      %v177 = vld [vmem:[%s163 + $0x50] sm:$0xff]
      %v178 = vld [vmem:[%s163 + $0x58] sm:$0x3]
      %v179 = vld [vmem:[%s163 + $0x60] sm:$0xff]
      %v180 = vld [vmem:[%s163 + $0x68] sm:$0xff]
      %v181 = vld [vmem:[%s163 + $0x70] sm:$0x3]
      %v182 = vld [vmem:[%s163 + $0x78] sm:$0xff]
      %v183 = vld [vmem:[%s163 + $0x80] sm:$0xff]
      %v184 = vld [vmem:[%s163 + $0x88] sm:$0x3]
      %v185 = vld [vmem:[%s163 + $0x90] sm:$0xff]
      %v186 = vld [vmem:[%s163 + $0x98] sm:$0xff]
      %v187 = vld [vmem:[%s163 + $0xa0] sm:$0x3]
      %v188 = vld [vmem:[%s163 + $0xa8] sm:$0xff]
      %v189 = vld [vmem:[%s163 + $0xb0] sm:$0xff]
      %v190 = vld [vmem:[%s163 + $0xb8] sm:$0x3]
      %v191 = vld [vmem:[%s163 + $0xc0] sm:$0xff]
      %v192 = vld [vmem:[%s163 + $0xc8] sm:$0xff]
      %v193 = vld [vmem:[%s163 + $0xd0] sm:$0x3]
      %v194 = vld [vmem:[%s163 + $0xd8] sm:$0xff]
      %v195 = vld [vmem:[%s163 + $0xe0] sm:$0xff]
      %v196 = vld [vmem:[%s163 + $0xe8] sm:$0x3]
      %v197 = vld [vmem:[%s163 + $0xf0] sm:$0xff]
      %v198 = vld [vmem:[%s163 + $0xf8] sm:$0xff]
      %v199 = vld [vmem:[%s163 + $0x100] sm:$0x3]
      %v200 = vld [vmem:[%s163 + $0x108] sm:$0xff]
      %v201 = vld [vmem:[%s163 + $0x110] sm:$0xff]
      %v202 = vld [vmem:[%s163 + $0x118] sm:$0x3]
      %v203 = vld [vmem:[%s163 + $0x120] sm:$0xff]
      %v204 = vld [vmem:[%s163 + $0x128] sm:$0xff]
      %v205 = vld [vmem:[%s163 + $0x130] sm:$0x3]
      %v206 = vld [vmem:[%s163 + $0x138] sm:$0xff]
      %v207 = vld [vmem:[%s163 + $0x140] sm:$0xff]
      %v208 = vld [vmem:[%s163 + $0x148] sm:$0x3]
      %v209 = vld [vmem:[%s163 + $0x150] sm:$0xff]
      %v210 = vld [vmem:[%s163 + $0x158] sm:$0xff]
      %v211 = vld [vmem:[%s163 + $0x160] sm:$0x3]
      %v212 = vld [vmem:[%s163 + $0x168] sm:$0xff]
      %v213 = vld [vmem:[%s163 + $0x170] sm:$0xff]
      %v214 = vld [vmem:[%s163 + $0x178] sm:$0x3]
      %v215 = vld [vmem:[%s163 + $0x180] sm:$0xff]
      %v216 = vld [vmem:[%s163 + $0x188] sm:$0xff]
      %v217 = vld [vmem:[%s163 + $0x190] sm:$0x3]
      %v218 = vld [vmem:[%s163 + $0x198] sm:$0xff]
      %v219 = vld [vmem:[%s163 + $0x1a0] sm:$0xff]
      %v220 = vld [vmem:[%s163 + $0x1a8] sm:$0x3]
      %v221 = vld [vmem:[%s1] sm:$0x7]
      %vm270 = vcmask 1046528
      %v271 = vrot.slane %v167, 1
      %v272 = vrot.slane %v168, 1
      %v273 = vsel %vm270, %v271, %v272
      %v274 = vrot.slane %v169, 1
      %v275 = vsel %vm270, %v272, %v274
      %v276 = vrot.slane %v170, 1
      %v277 = vrot.slane %v171, 1
      %v278 = vsel %vm270, %v276, %v277
      %v279 = vrot.slane %v172, 1
      %v280 = vsel %vm270, %v277, %v279
      %v281 = vrot.slane %v173, 1
      %v282 = vrot.slane %v174, 1
      %v283 = vsel %vm270, %v281, %v282
      %v284 = vrot.slane %v175, 1
      %v285 = vsel %vm270, %v282, %v284
      %v286 = vrot.slane %v176, 1
      %v287 = vrot.slane %v177, 1
      %v288 = vsel %vm270, %v286, %v287
      %v289 = vrot.slane %v178, 1
      %v290 = vsel %vm270, %v287, %v289
      %v291 = vrot.slane %v179, 1
      %v292 = vrot.slane %v180, 1
      %v293 = vsel %vm270, %v291, %v292
      %v294 = vrot.slane %v181, 1
      %v295 = vsel %vm270, %v292, %v294
      %v296 = vrot.slane %v182, 1
      %v297 = vrot.slane %v183, 1
      %v298 = vsel %vm270, %v296, %v297
      %v299 = vrot.slane %v184, 1
      %v300 = vsel %vm270, %v297, %v299
      %v301 = vrot.slane %v185, 1
      %v302 = vrot.slane %v186, 1
      %v303 = vsel %vm270, %v301, %v302
      %v304 = vrot.slane %v187, 1
      %v305 = vsel %vm270, %v302, %v304
      %v306 = vrot.slane %v188, 1
      %v307 = vrot.slane %v189, 1
      %v308 = vsel %vm270, %v306, %v307
      %v309 = vrot.slane %v190, 1
      %v310 = vsel %vm270, %v307, %v309
      %v311 = vrot.slane %v191, 1
      %v312 = vrot.slane %v192, 1
      %v313 = vsel %vm270, %v311, %v312
      %v314 = vrot.slane %v193, 1
      %v315 = vsel %vm270, %v312, %v314
      %v316 = vrot.slane %v194, 1
      %v317 = vrot.slane %v195, 1
      %v318 = vsel %vm270, %v316, %v317
      %v319 = vrot.slane %v196, 1
      %v320 = vsel %vm270, %v317, %v319
      %v321 = vrot.slane %v197, 1
      %v322 = vrot.slane %v198, 1
      %v323 = vsel %vm270, %v321, %v322
      %v324 = vrot.slane %v199, 1
      %v325 = vsel %vm270, %v322, %v324
      %v326 = vrot.slane %v200, 1
      %v327 = vrot.slane %v201, 1
      %v328 = vsel %vm270, %v326, %v327
      %v329 = vrot.slane %v202, 1
      %v330 = vsel %vm270, %v327, %v329
      %v331 = vrot.slane %v203, 1
      %v332 = vrot.slane %v204, 1
      %v333 = vsel %vm270, %v331, %v332
      %v334 = vrot.slane %v205, 1
      %v335 = vsel %vm270, %v332, %v334
      %v336 = vrot.slane %v206, 1
      %v337 = vrot.slane %v207, 1
      %v338 = vsel %vm270, %v336, %v337
      %v339 = vrot.slane %v208, 1
      %v340 = vsel %vm270, %v337, %v339
      %v341 = vrot.slane %v209, 1
      %v342 = vrot.slane %v210, 1
      %v343 = vsel %vm270, %v341, %v342
      %v344 = vrot.slane %v211, 1
      %v345 = vsel %vm270, %v342, %v344
      %v346 = vrot.slane %v212, 1
      %v347 = vrot.slane %v213, 1
      %v348 = vsel %vm270, %v346, %v347
      %v349 = vrot.slane %v214, 1
      %v350 = vsel %vm270, %v347, %v349
      %s351 = scalar_lea.vmem %s1, 4
      %v352 = vld [vmem:[%s351] sm:$0x7]
      %vm353 = vcmask 23552
      %v354 = vsel %vm353, %v273, 0
      %v356 = vsel %vm353, %v275, 0
      %v358 = vsel %vm353, %v278, 0
      %v360 = vsel %vm353, %v280, 0
      %v362 = vsel %vm353, %v283, 0
      %v364 = vsel %vm353, %v285, 0
      %v366 = vsel %vm353, %v288, 0
      %v368 = vsel %vm353, %v290, 0
      %v370 = vsel %vm353, %v293, 0
      %v372 = vsel %vm353, %v295, 0
      %v374 = vsel %vm353, %v298, 0
      %v376 = vsel %vm353, %v300, 0
      %v378 = vsel %vm353, %v303, 0
      %v380 = vsel %vm353, %v305, 0
      %v382 = vsel %vm353, %v308, 0
      %v384 = vsel %vm353, %v310, 0
      %v386 = vsel %vm353, %v313, 0
      %v388 = vsel %vm353, %v315, 0
      %v390 = vsel %vm353, %v318, 0
      %v392 = vsel %vm353, %v320, 0
      %v394 = vsel %vm353, %v323, 0
      %v396 = vsel %vm353, %v325, 0
      %v398 = vsel %vm353, %v328, 0
      %v400 = vsel %vm353, %v330, 0
      %v402 = vsel %vm353, %v333, 0
      %v404 = vsel %vm353, %v335, 0
      %v406 = vsel %vm353, %v338, 0
      %v408 = vsel %vm353, %v340, 0
      %v410 = vsel %vm353, %v343, 0
      %v412 = vsel %vm353, %v345, 0
      %v414 = vsel %vm353, %v348, 0
      %v416 = vsel %vm353, %v350, 0
      %vm418 = vcmask 1042432
      %v420 = vsel %vm418, %v352, 0
      %422 = vmatprep.subr.mxu0 0.0
      %423 = vmatpush1.msra.mxu0 %v420
      %424 = vmatprep.subr.mxu0 0.0
      %425 = vmatpush1.msra.mxu0 0.0
      %426 = vmatprep.subr.mxu0 0.0
      %427 = vmatpush1.msra.mxu0 0.0
      %428 = vmatprep.subr.mxu0 0.0
      %429 = vmatpush1.msra.mxu0 0.0
      %430 = vmatprep.subr.mxu0 0.0
      %431 = vmatpush1.msra.mxu0 0.0
      %432 = vmatprep.subr.mxu0 0.0
      %433 = vmatpush1.msra.mxu0 0.0
      %434 = vmatprep.subr.mxu0 0.0
      %435 = vmatpush1.msra.mxu0 0.0
      %436 = vmatprep.subr.mxu0 0.0
      %437 = vmatpush1.msra.mxu0 0.0
      %438 = vmatprep.subr.mxu0 0.0
      %439 = vmatpush1.msra.mxu0 0.0
      %440 = vmatprep.subr.mxu0 0.0
      %441 = vmatpush1.msra.mxu0 0.0
      %442 = vmatprep.subr.mxu0 0.0
      %443 = vmatpush1.msra.mxu0 0.0
      %444 = vmatprep.subr.mxu0 0.0
      %445 = vmatpush1.msra.mxu0 0.0
      %446 = vmatprep.subr.mxu0 0.0
      %447 = vmatpush1.msra.mxu0 0.0
      %448 = vmatprep.subr.mxu0 0.0
      %449 = vmatpush1.msra.mxu0 0.0
      %450 = vmatprep.subr.mxu0 0.0
      %451 = vmatpush1.msra.mxu0 0.0
      %452 = vmatprep.subr.mxu0 0.0
      %453 = vmatpush1.msra.mxu0 0.0
      %454 = vmatprep.subr.mxu0 0.0
      %455 = vmatpush1.msra.mxu0 0.0
      %456 = vmatprep.subr.mxu0 0.0
      %457 = vmatpush1.msra.mxu0 0.0
      %458 = vmatprep.subr.mxu0 0.0
      %459 = vmatpush1.msra.mxu0 0.0
      %460 = vmatprep.subr.mxu0 0.0
      %461 = vmatpush1.msra.mxu0 0.0
      %462 = vmatprep.subr.mxu0 0.0
      %463 = vmatpush1.msra.mxu0 0.0
      %464 = vmatprep.subr.mxu0 0.0
      %465 = vmatpush1.msra.mxu0 0.0
      %466 = vmatprep.subr.mxu0 0.0
      %467 = vmatpush1.msra.mxu0 0.0
      %468 = vmatprep.subr.mxu0 0.0
      %469 = vmatpush1.msra.mxu0 0.0
      %470 = vmatprep.subr.mxu0 0.0
      %471 = vmatpush1.msra.mxu0 0.0
      %472 = vmatprep.subr.mxu0 0.0
      %473 = vmatpush1.msra.mxu0 0.0
      %474 = vmatprep.subr.mxu0 0.0
      %475 = vmatpush1.msra.mxu0 0.0
      %476 = vmatprep.subr.mxu0 0.0
      %477 = vmatpush1.msra.mxu0 0.0
      %478 = vmatprep.subr.mxu0 0.0
      %479 = vmatpush1.msra.mxu0 0.0
      %480 = vmatprep.subr.mxu0 0.0
      %481 = vmatpush1.msra.mxu0 0.0
      %482 = vmatprep.subr.mxu0 0.0
      %483 = vmatpush1.msra.mxu0 0.0
      %484 = vmatprep.subr.mxu0 0.0
      %485 = vmatpush1.msra.mxu0 0.0
      %486 = vmatprep.mubr.f32.mxu0 0.0
      %487 = vmatmul.mubr.f32.gmra.mrb[0].mxu0 %v354
      %v488 = vpop.f32.mrb[0].mxu0
      %v489 = vadd.f32 0.0, %v488
      %v490 = vpop.f32.mrb[0].mxu0
      %491 = vmatprep.mubr.f32.mxu0 0.0
      %492 = vmatmul.mubr.f32.gmra.mrb[0].mxu0 %v356
      %v493 = vpop.f32.mrb[0].mxu0
      %v494 = vadd.f32 0.0, %v493
      %v495 = vpop.f32.mrb[0].mxu0
      %496 = vmatprep.mubr.f32.mxu0 0.0
      %497 = vmatmul.mubr.f32.gmra.mrb[0].mxu0 %v358
      %v498 = vpop.f32.mrb[0].mxu0
      %v499 = vadd.f32 0.0, %v498
      %v500 = vpop.f32.mrb[0].mxu0
      %501 = vmatprep.mubr.f32.mxu0 0.0
      %502 = vmatmul.mubr.f32.gmra.mrb[0].mxu0 %v360
      %v503 = vpop.f32.mrb[0].mxu0
      %v504 = vadd.f32 0.0, %v503
      %v505 = vpop.f32.mrb[0].mxu0
      %506 = vmatprep.mubr.f32.mxu0 0.0
      %507 = vmatmul.mubr.f32.gmra.mrb[0].mxu0 %v362
      %v508 = vpop.f32.mrb[0].mxu0
      %v509 = vadd.f32 0.0, %v508
      %v510 = vpop.f32.mrb[0].mxu0
      %511 = vmatprep.mubr.f32.mxu0 0.0
      %512 = vmatmul.mubr.f32.gmra.mrb[0].mxu0 %v364
      %v513 = vpop.f32.mrb[0].mxu0
      %v514 = vadd.f32 0.0, %v513
      %v515 = vpop.f32.mrb[0].mxu0
      %516 = vmatprep.mubr.f32.mxu0 0.0
      %517 = vmatmul.mubr.f32.gmra.mrb[0].mxu0 %v366
      %v518 = vpop.f32.mrb[0].mxu0
      %v519 = vadd.f32 0.0, %v518
      %v520 = vpop.f32.mrb[0].mxu0
      %521 = vmatprep.mubr.f32.mxu0 0.0
      %522 = vmatmul.mubr.f32.gmra.mrb[0].mxu0 %v368
      %v523 = vpop.f32.mrb[0].mxu0
      %v524 = vadd.f32 0.0, %v523
      %v525 = vpop.f32.mrb[0].mxu0
      %526 = vmatprep.mubr.f32.mxu0 0.0
      %527 = vmatmul.mubr.f32.gmra.mrb[0].mxu0 %v370
      %v528 = vpop.f32.mrb[0].mxu0
      %v529 = vadd.f32 0.0, %v528
      %v530 = vpop.f32.mrb[0].mxu0
      %531 = vmatprep.mubr.f32.mxu0 0.0
      %532 = vmatmul.mubr.f32.gmra.mrb[0].mxu0 %v372
      %v533 = vpop.f32.mrb[0].mxu0
      %v534 = vadd.f32 0.0, %v533
      %v535 = vpop.f32.mrb[0].mxu0
      %536 = vmatprep.mubr.f32.mxu0 0.0
      %537 = vmatmul.mubr.f32.gmra.mrb[0].mxu0 %v374
      %v538 = vpop.f32.mrb[0].mxu0
      %v539 = vadd.f32 0.0, %v538
      %v540 = vpop.f32.mrb[0].mxu0
      %541 = vmatprep.mubr.f32.mxu0 0.0
      %542 = vmatmul.mubr.f32.gmra.mrb[0].mxu0 %v376
      %v543 = vpop.f32.mrb[0].mxu0
      %v544 = vadd.f32 0.0, %v543
      %v545 = vpop.f32.mrb[0].mxu0
      %546 = vmatprep.mubr.f32.mxu0 0.0
      %547 = vmatmul.mubr.f32.gmra.mrb[0].mxu0 %v378
      %v548 = vpop.f32.mrb[0].mxu0
      %v549 = vadd.f32 0.0, %v548
      %v550 = vpop.f32.mrb[0].mxu0
      %551 = vmatprep.mubr.f32.mxu0 0.0
      %552 = vmatmul.mubr.f32.gmra.mrb[0].mxu0 %v380
      %v553 = vpop.f32.mrb[0].mxu0
      %v554 = vadd.f32 0.0, %v553
      %v555 = vpop.f32.mrb[0].mxu0
      %556 = vmatprep.mubr.f32.mxu0 0.0
      %557 = vmatmul.mubr.f32.gmra.mrb[0].mxu0 %v382
      %v558 = vpop.f32.mrb[0].mxu0
      %v559 = vadd.f32 0.0, %v558
      %v560 = vpop.f32.mrb[0].mxu0
      %561 = vmatprep.mubr.f32.mxu0 0.0
      %562 = vmatmul.mubr.f32.gmra.mrb[0].mxu0 %v384
      %v563 = vpop.f32.mrb[0].mxu0
      %v564 = vadd.f32 0.0, %v563
      %v565 = vpop.f32.mrb[0].mxu0
      %566 = vmatprep.mubr.f32.mxu0 0.0
      %567 = vmatmul.mubr.f32.gmra.mrb[0].mxu0 %v386
      %v568 = vpop.f32.mrb[0].mxu0
      %v569 = vadd.f32 0.0, %v568
      %v570 = vpop.f32.mrb[0].mxu0
      %571 = vmatprep.mubr.f32.mxu0 0.0
      %572 = vmatmul.mubr.f32.gmra.mrb[0].mxu0 %v388
      %v573 = vpop.f32.mrb[0].mxu0
      %v574 = vadd.f32 0.0, %v573
      %v575 = vpop.f32.mrb[0].mxu0
      %576 = vmatprep.mubr.f32.mxu0 0.0
      %577 = vmatmul.mubr.f32.gmra.mrb[0].mxu0 %v390
      %v578 = vpop.f32.mrb[0].mxu0
      %v579 = vadd.f32 0.0, %v578
      %v580 = vpop.f32.mrb[0].mxu0
      %581 = vmatprep.mubr.f32.mxu0 0.0
      %582 = vmatmul.mubr.f32.gmra.mrb[0].mxu0 %v392
      %v583 = vpop.f32.mrb[0].mxu0
      %v584 = vadd.f32 0.0, %v583
      %v585 = vpop.f32.mrb[0].mxu0
      %586 = vmatprep.mubr.f32.mxu0 0.0
      %587 = vmatmul.mubr.f32.gmra.mrb[0].mxu0 %v394
      %v588 = vpop.f32.mrb[0].mxu0
      %v589 = vadd.f32 0.0, %v588
      %v590 = vpop.f32.mrb[0].mxu0
      %591 = vmatprep.mubr.f32.mxu0 0.0
      %592 = vmatmul.mubr.f32.gmra.mrb[0].mxu0 %v396
      %v593 = vpop.f32.mrb[0].mxu0
      %v594 = vadd.f32 0.0, %v593
      %v595 = vpop.f32.mrb[0].mxu0
      %596 = vmatprep.mubr.f32.mxu0 0.0
      %597 = vmatmul.mubr.f32.gmra.mrb[0].mxu0 %v398
      %v598 = vpop.f32.mrb[0].mxu0
      %v599 = vadd.f32 0.0, %v598
      %v600 = vpop.f32.mrb[0].mxu0
      %601 = vmatprep.mubr.f32.mxu0 0.0
      %602 = vmatmul.mubr.f32.gmra.mrb[0].mxu0 %v400
      %v603 = vpop.f32.mrb[0].mxu0
      %v604 = vadd.f32 0.0, %v603
      %v605 = vpop.f32.mrb[0].mxu0
      %606 = vmatprep.mubr.f32.mxu0 0.0
      %607 = vmatmul.mubr.f32.gmra.mrb[0].mxu0 %v402
      %v608 = vpop.f32.mrb[0].mxu0
      %v609 = vadd.f32 0.0, %v608
      %v610 = vpop.f32.mrb[0].mxu0
      %611 = vmatprep.mubr.f32.mxu0 0.0
      %612 = vmatmul.mubr.f32.gmra.mrb[0].mxu0 %v404
      %v613 = vpop.f32.mrb[0].mxu0
      %v614 = vadd.f32 0.0, %v613
      %v615 = vpop.f32.mrb[0].mxu0
      %616 = vmatprep.mubr.f32.mxu0 0.0
      %617 = vmatmul.mubr.f32.gmra.mrb[0].mxu0 %v406
      %v618 = vpop.f32.mrb[0].mxu0
      %v619 = vadd.f32 0.0, %v618
      %v620 = vpop.f32.mrb[0].mxu0
      %621 = vmatprep.mubr.f32.mxu0 0.0
      %622 = vmatmul.mubr.f32.gmra.mrb[0].mxu0 %v408
      %v623 = vpop.f32.mrb[0].mxu0
      %v624 = vadd.f32 0.0, %v623
      %v625 = vpop.f32.mrb[0].mxu0
      %626 = vmatprep.mubr.f32.mxu0 0.0
      %627 = vmatmul.mubr.f32.gmra.mrb[0].mxu0 %v410
      %v628 = vpop.f32.mrb[0].mxu0
      %v629 = vadd.f32 0.0, %v628
      %v630 = vpop.f32.mrb[0].mxu0
      %631 = vmatprep.mubr.f32.mxu0 0.0
      %632 = vmatmul.mubr.f32.gmra.mrb[0].mxu0 %v412
      %v633 = vpop.f32.mrb[0].mxu0
      %v634 = vadd.f32 0.0, %v633
      %v635 = vpop.f32.mrb[0].mxu0
      %636 = vmatprep.mubr.f32.mxu0 0.0
      %637 = vmatmul.mubr.f32.gmra.mrb[0].mxu0 %v414
      %v638 = vpop.f32.mrb[0].mxu0
      %v639 = vadd.f32 0.0, %v638
      %v640 = vpop.f32.mrb[0].mxu0
      %641 = vmatprep.mubr.f32.mxu0 0.0
      %642 = vmatmul.mubr.f32.gmra.mrb[0].mxu0 %v416
      %v643 = vpop.f32.mrb[0].mxu0
      %v644 = vadd.f32 0.0, %v643
      %v645 = vpop.f32.mrb[0].mxu0
      %646 = vdwg.mxu0
      %v647 = vsel %vm353, %v167, 0
      %v649 = vsel %vm353, %v168, 0
      %v651 = vsel %vm353, %v170, 0
      %v653 = vsel %vm353, %v171, 0
      %v655 = vsel %vm353, %v173, 0
      %v657 = vsel %vm353, %v174, 0
      %v659 = vsel %vm353, %v176, 0
      %v661 = vsel %vm353, %v177, 0
      %v663 = vsel %vm353, %v179, 0
      %v665 = vsel %vm353, %v180, 0
      %v667 = vsel %vm353, %v182, 0
      %v669 = vsel %vm353, %v183, 0
      %v671 = vsel %vm353, %v185, 0
      %v673 = vsel %vm353, %v186, 0
      %v675 = vsel %vm353, %v188, 0
      %v677 = vsel %vm353, %v189, 0
      %v679 = vsel %vm353, %v191, 0
      %v681 = vsel %vm353, %v192, 0
      %v683 = vsel %vm353, %v194, 0
      %v685 = vsel %vm353, %v195, 0
      %v687 = vsel %vm353, %v197, 0
      %v689 = vsel %vm353, %v198, 0
      %v691 = vsel %vm353, %v200, 0
      %v693 = vsel %vm353, %v201, 0
      %v695 = vsel %vm353, %v203, 0
      %v697 = vsel %vm353, %v204, 0
      %v699 = vsel %vm353, %v206, 0
      %v701 = vsel %vm353, %v207, 0
      %v703 = vsel %vm353, %v209, 0
      %v705 = vsel %vm353, %v210, 0
      %v707 = vsel %vm353, %v212, 0
      %v709 = vsel %vm353, %v213, 0
      %v712 = vsel %vm418, %v221, 0
      %714 = vmatprep.subr.mxu0 0.0
      %715 = vmatpush1.msra.mxu0 %v712
      %716 = vmatprep.subr.mxu0 0.0
      %717 = vmatpush1.msra.mxu0 0.0
      %718 = vmatprep.subr.mxu0 0.0
      %719 = vmatpush1.msra.mxu0 0.0
      %720 = vmatprep.subr.mxu0 0.0
      %721 = vmatpush1.msra.mxu0 0.0
      %722 = vmatprep.subr.mxu0 0.0
      %723 = vmatpush1.msra.mxu0 0.0
      %724 = vmatprep.subr.mxu0 0.0
      %725 = vmatpush1.msra.mxu0 0.0
      %726 = vmatprep.subr.mxu0 0.0
      %727 = vmatpush1.msra.mxu0 0.0
      %728 = vmatprep.subr.mxu0 0.0
      %729 = vmatpush1.msra.mxu0 0.0
      %730 = vmatprep.subr.mxu0 0.0
      %731 = vmatpush1.msra.mxu0 0.0
      %732 = vmatprep.subr.mxu0 0.0
      %733 = vmatpush1.msra.mxu0 0.0
      %734 = vmatprep.subr.mxu0 0.0
      %735 = vmatpush1.msra.mxu0 0.0
      %736 = vmatprep.subr.mxu0 0.0
      %737 = vmatpush1.msra.mxu0 0.0
      %738 = vmatprep.subr.mxu0 0.0
      %739 = vmatpush1.msra.mxu0 0.0
      %740 = vmatprep.subr.mxu0 0.0
      %741 = vmatpush1.msra.mxu0 0.0
      %742 = vmatprep.subr.mxu0 0.0
      %743 = vmatpush1.msra.mxu0 0.0
      %744 = vmatprep.subr.mxu0 0.0
      %745 = vmatpush1.msra.mxu0 0.0
      %746 = vmatprep.subr.mxu0 0.0
      %747 = vmatpush1.msra.mxu0 0.0
      %748 = vmatprep.subr.mxu0 0.0
      %749 = vmatpush1.msra.mxu0 0.0
      %750 = vmatprep.subr.mxu0 0.0
      %751 = vmatpush1.msra.mxu0 0.0
      %752 = vmatprep.subr.mxu0 0.0
      %753 = vmatpush1.msra.mxu0 0.0
      %754 = vmatprep.subr.mxu0 0.0
      %755 = vmatpush1.msra.mxu0 0.0
      %756 = vmatprep.subr.mxu0 0.0
      %757 = vmatpush1.msra.mxu0 0.0
      %758 = vmatprep.subr.mxu0 0.0
      %759 = vmatpush1.msra.mxu0 0.0
      %760 = vmatprep.subr.mxu0 0.0
      %761 = vmatpush1.msra.mxu0 0.0
      %762 = vmatprep.subr.mxu0 0.0
      %763 = vmatpush1.msra.mxu0 0.0
      %764 = vmatprep.subr.mxu0 0.0
      %765 = vmatpush1.msra.mxu0 0.0
      %766 = vmatprep.subr.mxu0 0.0
      %767 = vmatpush1.msra.mxu0 0.0
      %768 = vmatprep.subr.mxu0 0.0
      %769 = vmatpush1.msra.mxu0 0.0
      %770 = vmatprep.subr.mxu0 0.0
      %771 = vmatpush1.msra.mxu0 0.0
      %772 = vmatprep.subr.mxu0 0.0
      %773 = vmatpush1.msra.mxu0 0.0
      %774 = vmatprep.subr.mxu0 0.0
      %775 = vmatpush1.msra.mxu0 0.0
      %776 = vmatprep.subr.mxu0 0.0
      %777 = vmatpush1.msra.mxu0 0.0
      %778 = vmatprep.mubr.f32.mxu0 0.0
      %779 = vmatmul.mubr.f32.gmra.mrb[0].mxu0 %v647
      %v780 = vpop.f32.mrb[0].mxu0
      %v781 = vadd.f32 %v489, %v780
      %v782 = vpop.f32.mrb[0].mxu0
      %783 = vmatprep.mubr.f32.mxu0 0.0
      %784 = vmatmul.mubr.f32.gmra.mrb[0].mxu0 %v649
      %v785 = vpop.f32.mrb[0].mxu0
      %v786 = vadd.f32 %v494, %v785
      %v787 = vpop.f32.mrb[0].mxu0
      %788 = vmatprep.mubr.f32.mxu0 0.0
      %789 = vmatmul.mubr.f32.gmra.mrb[0].mxu0 %v651
      %v790 = vpop.f32.mrb[0].mxu0
      %v791 = vadd.f32 %v499, %v790
      %v792 = vpop.f32.mrb[0].mxu0
      %793 = vmatprep.mubr.f32.mxu0 0.0
      %794 = vmatmul.mubr.f32.gmra.mrb[0].mxu0 %v653
      %v795 = vpop.f32.mrb[0].mxu0
      %v796 = vadd.f32 %v504, %v795
      %v797 = vpop.f32.mrb[0].mxu0
      %798 = vmatprep.mubr.f32.mxu0 0.0
      %799 = vmatmul.mubr.f32.gmra.mrb[0].mxu0 %v655
      %v800 = vpop.f32.mrb[0].mxu0
      %v801 = vadd.f32 %v509, %v800
      %v802 = vpop.f32.mrb[0].mxu0
      %803 = vmatprep.mubr.f32.mxu0 0.0
      %804 = vmatmul.mubr.f32.gmra.mrb[0].mxu0 %v657
      %v805 = vpop.f32.mrb[0].mxu0
      %v806 = vadd.f32 %v514, %v805
      %v807 = vpop.f32.mrb[0].mxu0
      %808 = vmatprep.mubr.f32.mxu0 0.0
      %809 = vmatmul.mubr.f32.gmra.mrb[0].mxu0 %v659
      %v810 = vpop.f32.mrb[0].mxu0
      %v811 = vadd.f32 %v519, %v810
      %v812 = vpop.f32.mrb[0].mxu0
      %813 = vmatprep.mubr.f32.mxu0 0.0
      %814 = vmatmul.mubr.f32.gmra.mrb[0].mxu0 %v661
      %v815 = vpop.f32.mrb[0].mxu0
      %v816 = vadd.f32 %v524, %v815
      %v817 = vpop.f32.mrb[0].mxu0
      %818 = vmatprep.mubr.f32.mxu0 0.0
      %819 = vmatmul.mubr.f32.gmra.mrb[0].mxu0 %v663
      %v820 = vpop.f32.mrb[0].mxu0
      %v821 = vadd.f32 %v529, %v820
      %v822 = vpop.f32.mrb[0].mxu0
      %823 = vmatprep.mubr.f32.mxu0 0.0
      %824 = vmatmul.mubr.f32.gmra.mrb[0].mxu0 %v665
      %v825 = vpop.f32.mrb[0].mxu0
      %v826 = vadd.f32 %v534, %v825
      %v827 = vpop.f32.mrb[0].mxu0
      %828 = vmatprep.mubr.f32.mxu0 0.0
      %829 = vmatmul.mubr.f32.gmra.mrb[0].mxu0 %v667
      %v830 = vpop.f32.mrb[0].mxu0
      %v831 = vadd.f32 %v539, %v830
      %v832 = vpop.f32.mrb[0].mxu0
      %833 = vmatprep.mubr.f32.mxu0 0.0
      %834 = vmatmul.mubr.f32.gmra.mrb[0].mxu0 %v669
      %v835 = vpop.f32.mrb[0].mxu0
      %v836 = vadd.f32 %v544, %v835
      %v837 = vpop.f32.mrb[0].mxu0
      %838 = vmatprep.mubr.f32.mxu0 0.0
      %839 = vmatmul.mubr.f32.gmra.mrb[0].mxu0 %v671
      %v840 = vpop.f32.mrb[0].mxu0
      %v841 = vadd.f32 %v549, %v840
      %v842 = vpop.f32.mrb[0].mxu0
      %843 = vmatprep.mubr.f32.mxu0 0.0
      %844 = vmatmul.mubr.f32.gmra.mrb[0].mxu0 %v673
      %v845 = vpop.f32.mrb[0].mxu0
      %v846 = vadd.f32 %v554, %v845
      %v847 = vpop.f32.mrb[0].mxu0
      %848 = vmatprep.mubr.f32.mxu0 0.0
      %849 = vmatmul.mubr.f32.gmra.mrb[0].mxu0 %v675
      %v850 = vpop.f32.mrb[0].mxu0
      %v851 = vadd.f32 %v559, %v850
      %v852 = vpop.f32.mrb[0].mxu0
      %853 = vmatprep.mubr.f32.mxu0 0.0
      %854 = vmatmul.mubr.f32.gmra.mrb[0].mxu0 %v677
      %v855 = vpop.f32.mrb[0].mxu0
      %v856 = vadd.f32 %v564, %v855
      %v857 = vpop.f32.mrb[0].mxu0
      %858 = vmatprep.mubr.f32.mxu0 0.0
      %859 = vmatmul.mubr.f32.gmra.mrb[0].mxu0 %v679
      %v860 = vpop.f32.mrb[0].mxu0
      %v861 = vadd.f32 %v569, %v860
      %v862 = vpop.f32.mrb[0].mxu0
      %863 = vmatprep.mubr.f32.mxu0 0.0
      %864 = vmatmul.mubr.f32.gmra.mrb[0].mxu0 %v681
      %v865 = vpop.f32.mrb[0].mxu0
      %v866 = vadd.f32 %v574, %v865
      %v867 = vpop.f32.mrb[0].mxu0
      %868 = vmatprep.mubr.f32.mxu0 0.0
      %869 = vmatmul.mubr.f32.gmra.mrb[0].mxu0 %v683
      %v870 = vpop.f32.mrb[0].mxu0
      %v871 = vadd.f32 %v579, %v870
      %v872 = vpop.f32.mrb[0].mxu0
      %873 = vmatprep.mubr.f32.mxu0 0.0
      %874 = vmatmul.mubr.f32.gmra.mrb[0].mxu0 %v685
      %v875 = vpop.f32.mrb[0].mxu0
      %v876 = vadd.f32 %v584, %v875
      %v877 = vpop.f32.mrb[0].mxu0
      %878 = vmatprep.mubr.f32.mxu0 0.0
      %879 = vmatmul.mubr.f32.gmra.mrb[0].mxu0 %v687
      %v880 = vpop.f32.mrb[0].mxu0
      %v881 = vadd.f32 %v589, %v880
      %v882 = vpop.f32.mrb[0].mxu0
      %883 = vmatprep.mubr.f32.mxu0 0.0
      %884 = vmatmul.mubr.f32.gmra.mrb[0].mxu0 %v689
      %v885 = vpop.f32.mrb[0].mxu0
      %v886 = vadd.f32 %v594, %v885
      %v887 = vpop.f32.mrb[0].mxu0
      %888 = vmatprep.mubr.f32.mxu0 0.0
      %889 = vmatmul.mubr.f32.gmra.mrb[0].mxu0 %v691
      %v890 = vpop.f32.mrb[0].mxu0
      %v891 = vadd.f32 %v599, %v890
      %v892 = vpop.f32.mrb[0].mxu0
      %893 = vmatprep.mubr.f32.mxu0 0.0
      %894 = vmatmul.mubr.f32.gmra.mrb[0].mxu0 %v693
      %v895 = vpop.f32.mrb[0].mxu0
      %v896 = vadd.f32 %v604, %v895
      %v897 = vpop.f32.mrb[0].mxu0
      %898 = vmatprep.mubr.f32.mxu0 0.0
      %899 = vmatmul.mubr.f32.gmra.mrb[0].mxu0 %v695
      %v900 = vpop.f32.mrb[0].mxu0
      %v901 = vadd.f32 %v609, %v900
      %v902 = vpop.f32.mrb[0].mxu0
      %903 = vmatprep.mubr.f32.mxu0 0.0
      %904 = vmatmul.mubr.f32.gmra.mrb[0].mxu0 %v697
      %v905 = vpop.f32.mrb[0].mxu0
      %v906 = vadd.f32 %v614, %v905
      %v907 = vpop.f32.mrb[0].mxu0
      %908 = vmatprep.mubr.f32.mxu0 0.0
      %909 = vmatmul.mubr.f32.gmra.mrb[0].mxu0 %v699
      %v910 = vpop.f32.mrb[0].mxu0
      %v911 = vadd.f32 %v619, %v910
      %v912 = vpop.f32.mrb[0].mxu0
      %913 = vmatprep.mubr.f32.mxu0 0.0
      %914 = vmatmul.mubr.f32.gmra.mrb[0].mxu0 %v701
      %v915 = vpop.f32.mrb[0].mxu0
      %v916 = vadd.f32 %v624, %v915
      %v917 = vpop.f32.mrb[0].mxu0
      %918 = vmatprep.mubr.f32.mxu0 0.0
      %919 = vmatmul.mubr.f32.gmra.mrb[0].mxu0 %v703
      %v920 = vpop.f32.mrb[0].mxu0
      %v921 = vadd.f32 %v629, %v920
      %v922 = vpop.f32.mrb[0].mxu0
      %923 = vmatprep.mubr.f32.mxu0 0.0
      %924 = vmatmul.mubr.f32.gmra.mrb[0].mxu0 %v705
      %v925 = vpop.f32.mrb[0].mxu0
      %v926 = vadd.f32 %v634, %v925
      %v927 = vpop.f32.mrb[0].mxu0
      %928 = vmatprep.mubr.f32.mxu0 0.0
      %929 = vmatmul.mubr.f32.gmra.mrb[0].mxu0 %v707
      %v930 = vpop.f32.mrb[0].mxu0
      %v931 = vadd.f32 %v639, %v930
      %v932 = vpop.f32.mrb[0].mxu0
      %933 = vmatprep.mubr.f32.mxu0 0.0
      %934 = vmatmul.mubr.f32.gmra.mrb[0].mxu0 %v709
      %v935 = vpop.f32.mrb[0].mxu0
      %v936 = vadd.f32 %v644, %v935
      %v937 = vpop.f32.mrb[0].mxu0
      %938 = vdwg.mxu0
      %vm939 = vcmask 1045504
      %v940 = vrot.slane %v167, 2
      %v941 = vrot.slane %v168, 2
      %v942 = vsel %vm939, %v940, %v941
      %v943 = vrot.slane %v169, 2
      %v944 = vsel %vm939, %v941, %v943
      %v945 = vrot.slane %v170, 2
      %v946 = vrot.slane %v171, 2
      %v947 = vsel %vm939, %v945, %v946
      %v948 = vrot.slane %v172, 2
      %v949 = vsel %vm939, %v946, %v948
      %v950 = vrot.slane %v173, 2
      %v951 = vrot.slane %v174, 2
      %v952 = vsel %vm939, %v950, %v951
      %v953 = vrot.slane %v175, 2
      %v954 = vsel %vm939, %v951, %v953
      %v955 = vrot.slane %v176, 2
      %v956 = vrot.slane %v177, 2
      %v957 = vsel %vm939, %v955, %v956
      %v958 = vrot.slane %v178, 2
      %v959 = vsel %vm939, %v956, %v958
      %v960 = vrot.slane %v179, 2
      %v961 = vrot.slane %v180, 2
      %v962 = vsel %vm939, %v960, %v961
      %v963 = vrot.slane %v181, 2
      %v964 = vsel %vm939, %v961, %v963
      %v965 = vrot.slane %v182, 2
      %v966 = vrot.slane %v183, 2
      %v967 = vsel %vm939, %v965, %v966
      %v968 = vrot.slane %v184, 2
      %v969 = vsel %vm939, %v966, %v968
      %v970 = vrot.slane %v185, 2
      %v971 = vrot.slane %v186, 2
      %v972 = vsel %vm939, %v970, %v971
      %v973 = vrot.slane %v187, 2
      %v974 = vsel %vm939, %v971, %v973
      %v975 = vrot.slane %v188, 2
      %v976 = vrot.slane %v189, 2
      %v977 = vsel %vm939, %v975, %v976
      %v978 = vrot.slane %v190, 2
      %v979 = vsel %vm939, %v976, %v978
      %v980 = vrot.slane %v191, 2
      %v981 = vrot.slane %v192, 2
      %v982 = vsel %vm939, %v980, %v981
      %v983 = vrot.slane %v193, 2
      %v984 = vsel %vm939, %v981, %v983
      %v985 = vrot.slane %v194, 2
      %v986 = vrot.slane %v195, 2
      %v987 = vsel %vm939, %v985, %v986
      %v988 = vrot.slane %v196, 2
      %v989 = vsel %vm939, %v986, %v988
      %v990 = vrot.slane %v197, 2
      %v991 = vrot.slane %v198, 2
      %v992 = vsel %vm939, %v990, %v991
      %v993 = vrot.slane %v199, 2
      %v994 = vsel %vm939, %v991, %v993
      %v995 = vrot.slane %v200, 2
      %v996 = vrot.slane %v201, 2
      %v997 = vsel %vm939, %v995, %v996
      %v998 = vrot.slane %v202, 2
      %v999 = vsel %vm939, %v996, %v998
      %v1000 = vrot.slane %v203, 2
      %v1001 = vrot.slane %v204, 2
      %v1002 = vsel %vm939, %v1000, %v1001
      %v1003 = vrot.slane %v205, 2
      %v1004 = vsel %vm939, %v1001, %v1003
      %v1005 = vrot.slane %v206, 2
      %v1006 = vrot.slane %v207, 2
      %v1007 = vsel %vm939, %v1005, %v1006
      %v1008 = vrot.slane %v208, 2
      %v1009 = vsel %vm939, %v1006, %v1008
      %v1010 = vrot.slane %v209, 2
      %v1011 = vrot.slane %v210, 2
      %v1012 = vsel %vm939, %v1010, %v1011
      %v1013 = vrot.slane %v211, 2
      %v1014 = vsel %vm939, %v1011, %v1013
      %v1015 = vrot.slane %v212, 2
      %v1016 = vrot.slane %v213, 2
      %v1017 = vsel %vm939, %v1015, %v1016
      %v1018 = vrot.slane %v214, 2
      %v1019 = vsel %vm939, %v1016, %v1018
      %s1020 = scalar_lea.vmem %s1, 8
      %v1021 = vld [vmem:[%s1020] sm:$0x7]
      %v1022 = vsel %vm353, %v942, 0
      %v1024 = vsel %vm353, %v944, 0
      %v1026 = vsel %vm353, %v947, 0
      %v1028 = vsel %vm353, %v949, 0
      %v1030 = vsel %vm353, %v952, 0
      %v1032 = vsel %vm353, %v954, 0
      %v1034 = vsel %vm353, %v957, 0
      %v1036 = vsel %vm353, %v959, 0
      %v1038 = vsel %vm353, %v962, 0
      %v1040 = vsel %vm353, %v964, 0
      %v1042 = vsel %vm353, %v967, 0
      %v1044 = vsel %vm353, %v969, 0
      %v1046 = vsel %vm353, %v972, 0
      %v1048 = vsel %vm353, %v974, 0
      %v1050 = vsel %vm353, %v977, 0
      %v1052 = vsel %vm353, %v979, 0
      %v1054 = vsel %vm353, %v982, 0
      %v1056 = vsel %vm353, %v984, 0
      %v1058 = vsel %vm353, %v987, 0
      %v1060 = vsel %vm353, %v989, 0
      %v1062 = vsel %vm353, %v992, 0
      %v1064 = vsel %vm353, %v994, 0
      %v1066 = vsel %vm353, %v997, 0
      %v1068 = vsel %vm353, %v999, 0
      %v1070 = vsel %vm353, %v1002, 0
      %v1072 = vsel %vm353, %v1004, 0
      %v1074 = vsel %vm353, %v1007, 0
      %v1076 = vsel %vm353, %v1009, 0
      %v1078 = vsel %vm353, %v1012, 0
      %v1080 = vsel %vm353, %v1014, 0
      %v1082 = vsel %vm353, %v1017, 0
      %v1084 = vsel %vm353, %v1019, 0
      %v1087 = vsel %vm418, %v1021, 0
      %1089 = vmatprep.subr.mxu0 0.0
      %1090 = vmatpush1.msra.mxu0 %v1087
      %1091 = vmatprep.subr.mxu0 0.0
      %1092 = vmatpush1.msra.mxu0 0.0
      %1093 = vmatprep.subr.mxu0 0.0
      %1094 = vmatpush1.msra.mxu0 0.0
      %1095 = vmatprep.subr.mxu0 0.0
      %1096 = vmatpush1.msra.mxu0 0.0
      %1097 = vmatprep.subr.mxu0 0.0
      %1098 = vmatpush1.msra.mxu0 0.0
      %1099 = vmatprep.subr.mxu0 0.0
      %1100 = vmatpush1.msra.mxu0 0.0
      %1101 = vmatprep.subr.mxu0 0.0
      %1102 = vmatpush1.msra.mxu0 0.0
      %1103 = vmatprep.subr.mxu0 0.0
      %1104 = vmatpush1.msra.mxu0 0.0
      %1105 = vmatprep.subr.mxu0 0.0
      %1106 = vmatpush1.msra.mxu0 0.0
      %1107 = vmatprep.subr.mxu0 0.0
      %1108 = vmatpush1.msra.mxu0 0.0
      %1109 = vmatprep.subr.mxu0 0.0
      %1110 = vmatpush1.msra.mxu0 0.0
      %1111 = vmatprep.subr.mxu0 0.0
      %1112 = vmatpush1.msra.mxu0 0.0
      %1113 = vmatprep.subr.mxu0 0.0
      %1114 = vmatpush1.msra.mxu0 0.0
      %1115 = vmatprep.subr.mxu0 0.0
      %1116 = vmatpush1.msra.mxu0 0.0
      %1117 = vmatprep.subr.mxu0 0.0
      %1118 = vmatpush1.msra.mxu0 0.0
      %1119 = vmatprep.subr.mxu0 0.0
      %1120 = vmatpush1.msra.mxu0 0.0
      %1121 = vmatprep.subr.mxu0 0.0
      %1122 = vmatpush1.msra.mxu0 0.0
      %1123 = vmatprep.subr.mxu0 0.0
      %1124 = vmatpush1.msra.mxu0 0.0
      %1125 = vmatprep.subr.mxu0 0.0
      %1126 = vmatpush1.msra.mxu0 0.0
      %1127 = vmatprep.subr.mxu0 0.0
      %1128 = vmatpush1.msra.mxu0 0.0
      %1129 = vmatprep.subr.mxu0 0.0
      %1130 = vmatpush1.msra.mxu0 0.0
      %1131 = vmatprep.subr.mxu0 0.0
      %1132 = vmatpush1.msra.mxu0 0.0
      %1133 = vmatprep.subr.mxu0 0.0
      %1134 = vmatpush1.msra.mxu0 0.0
      %1135 = vmatprep.subr.mxu0 0.0
      %1136 = vmatpush1.msra.mxu0 0.0
      %1137 = vmatprep.subr.mxu0 0.0
      %1138 = vmatpush1.msra.mxu0 0.0
      %1139 = vmatprep.subr.mxu0 0.0
      %1140 = vmatpush1.msra.mxu0 0.0
      %1141 = vmatprep.subr.mxu0 0.0
      %1142 = vmatpush1.msra.mxu0 0.0
      %1143 = vmatprep.subr.mxu0 0.0
      %1144 = vmatpush1.msra.mxu0 0.0
      %1145 = vmatprep.subr.mxu0 0.0
      %1146 = vmatpush1.msra.mxu0 0.0
      %1147 = vmatprep.subr.mxu0 0.0
      %1148 = vmatpush1.msra.mxu0 0.0
      %1149 = vmatprep.subr.mxu0 0.0
      %1150 = vmatpush1.msra.mxu0 0.0
      %1151 = vmatprep.subr.mxu0 0.0
      %1152 = vmatpush1.msra.mxu0 0.0
      %1153 = vmatprep.mubr.f32.mxu0 0.0
      %1154 = vmatmul.mubr.f32.gmra.mrb[0].mxu0 %v1022
      %v1155 = vpop.f32.mrb[0].mxu0
      %v1156 = vadd.f32 0.0, %v1155
      %v1157 = vpop.f32.mrb[0].mxu0
      %1158 = vmatprep.mubr.f32.mxu0 0.0
      %1159 = vmatmul.mubr.f32.gmra.mrb[0].mxu0 %v1024
      %v1160 = vpop.f32.mrb[0].mxu0
      %v1161 = vadd.f32 0.0, %v1160
      %v1162 = vpop.f32.mrb[0].mxu0
      %1163 = vmatprep.mubr.f32.mxu0 0.0
      %1164 = vmatmul.mubr.f32.gmra.mrb[0].mxu0 %v1026
      %v1165 = vpop.f32.mrb[0].mxu0
      %v1166 = vadd.f32 0.0, %v1165
      %v1167 = vpop.f32.mrb[0].mxu0
      %1168 = vmatprep.mubr.f32.mxu0 0.0
      %1169 = vmatmul.mubr.f32.gmra.mrb[0].mxu0 %v1028
      %v1170 = vpop.f32.mrb[0].mxu0
      %v1171 = vadd.f32 0.0, %v1170
      %v1172 = vpop.f32.mrb[0].mxu0
      %1173 = vmatprep.mubr.f32.mxu0 0.0
      %1174 = vmatmul.mubr.f32.gmra.mrb[0].mxu0 %v1030
      %v1175 = vpop.f32.mrb[0].mxu0
      %v1176 = vadd.f32 0.0, %v1175
      %v1177 = vpop.f32.mrb[0].mxu0
      %1178 = vmatprep.mubr.f32.mxu0 0.0
      %1179 = vmatmul.mubr.f32.gmra.mrb[0].mxu0 %v1032
      %v1180 = vpop.f32.mrb[0].mxu0
      %v1181 = vadd.f32 0.0, %v1180
      %v1182 = vpop.f32.mrb[0].mxu0
      %1183 = vmatprep.mubr.f32.mxu0 0.0
      %1184 = vmatmul.mubr.f32.gmra.mrb[0].mxu0 %v1034
      %v1185 = vpop.f32.mrb[0].mxu0
      %v1186 = vadd.f32 0.0, %v1185
      %v1187 = vpop.f32.mrb[0].mxu0
      %1188 = vmatprep.mubr.f32.mxu0 0.0
      %1189 = vmatmul.mubr.f32.gmra.mrb[0].mxu0 %v1036
      %v1190 = vpop.f32.mrb[0].mxu0
      %v1191 = vadd.f32 0.0, %v1190
      %v1192 = vpop.f32.mrb[0].mxu0
      %1193 = vmatprep.mubr.f32.mxu0 0.0
      %1194 = vmatmul.mubr.f32.gmra.mrb[0].mxu0 %v1038
      %v1195 = vpop.f32.mrb[0].mxu0
      %v1196 = vadd.f32 0.0, %v1195
      %v1197 = vpop.f32.mrb[0].mxu0
      %1198 = vmatprep.mubr.f32.mxu0 0.0
      %1199 = vmatmul.mubr.f32.gmra.mrb[0].mxu0 %v1040
      %v1200 = vpop.f32.mrb[0].mxu0
      %v1201 = vadd.f32 0.0, %v1200
      %v1202 = vpop.f32.mrb[0].mxu0
      %1203 = vmatprep.mubr.f32.mxu0 0.0
      %1204 = vmatmul.mubr.f32.gmra.mrb[0].mxu0 %v1042
      %v1205 = vpop.f32.mrb[0].mxu0
      %v1206 = vadd.f32 0.0, %v1205
      %v1207 = vpop.f32.mrb[0].mxu0
      %1208 = vmatprep.mubr.f32.mxu0 0.0
      %1209 = vmatmul.mubr.f32.gmra.mrb[0].mxu0 %v1044
      %v1210 = vpop.f32.mrb[0].mxu0
      %v1211 = vadd.f32 0.0, %v1210
      %v1212 = vpop.f32.mrb[0].mxu0
      %1213 = vmatprep.mubr.f32.mxu0 0.0
      %1214 = vmatmul.mubr.f32.gmra.mrb[0].mxu0 %v1046
      %v1215 = vpop.f32.mrb[0].mxu0
      %v1216 = vadd.f32 0.0, %v1215
      %v1217 = vpop.f32.mrb[0].mxu0
      %1218 = vmatprep.mubr.f32.mxu0 0.0
      %1219 = vmatmul.mubr.f32.gmra.mrb[0].mxu0 %v1048
      %v1220 = vpop.f32.mrb[0].mxu0
      %v1221 = vadd.f32 0.0, %v1220
      %v1222 = vpop.f32.mrb[0].mxu0
      %1223 = vmatprep.mubr.f32.mxu0 0.0
      %1224 = vmatmul.mubr.f32.gmra.mrb[0].mxu0 %v1050
      %v1225 = vpop.f32.mrb[0].mxu0
      %v1226 = vadd.f32 0.0, %v1225
      %v1227 = vpop.f32.mrb[0].mxu0
      %1228 = vmatprep.mubr.f32.mxu0 0.0
      %1229 = vmatmul.mubr.f32.gmra.mrb[0].mxu0 %v1052
      %v1230 = vpop.f32.mrb[0].mxu0
      %v1231 = vadd.f32 0.0, %v1230
      %v1232 = vpop.f32.mrb[0].mxu0
      %1233 = vmatprep.mubr.f32.mxu0 0.0
      %1234 = vmatmul.mubr.f32.gmra.mrb[0].mxu0 %v1054
      %v1235 = vpop.f32.mrb[0].mxu0
      %v1236 = vadd.f32 0.0, %v1235
      %v1237 = vpop.f32.mrb[0].mxu0
      %1238 = vmatprep.mubr.f32.mxu0 0.0
      %1239 = vmatmul.mubr.f32.gmra.mrb[0].mxu0 %v1056
      %v1240 = vpop.f32.mrb[0].mxu0
      %v1241 = vadd.f32 0.0, %v1240
      %v1242 = vpop.f32.mrb[0].mxu0
      %1243 = vmatprep.mubr.f32.mxu0 0.0
      %1244 = vmatmul.mubr.f32.gmra.mrb[0].mxu0 %v1058
      %v1245 = vpop.f32.mrb[0].mxu0
      %v1246 = vadd.f32 0.0, %v1245
      %v1247 = vpop.f32.mrb[0].mxu0
      %1248 = vmatprep.mubr.f32.mxu0 0.0
      %1249 = vmatmul.mubr.f32.gmra.mrb[0].mxu0 %v1060
      %v1250 = vpop.f32.mrb[0].mxu0
      %v1251 = vadd.f32 0.0, %v1250
      %v1252 = vpop.f32.mrb[0].mxu0
      %1253 = vmatprep.mubr.f32.mxu0 0.0
      %1254 = vmatmul.mubr.f32.gmra.mrb[0].mxu0 %v1062
      %v1255 = vpop.f32.mrb[0].mxu0
      %v1256 = vadd.f32 0.0, %v1255
      %v1257 = vpop.f32.mrb[0].mxu0
      %1258 = vmatprep.mubr.f32.mxu0 0.0
      %1259 = vmatmul.mubr.f32.gmra.mrb[0].mxu0 %v1064
      %v1260 = vpop.f32.mrb[0].mxu0
      %v1261 = vadd.f32 0.0, %v1260
      %v1262 = vpop.f32.mrb[0].mxu0
      %1263 = vmatprep.mubr.f32.mxu0 0.0
      %1264 = vmatmul.mubr.f32.gmra.mrb[0].mxu0 %v1066
      %v1265 = vpop.f32.mrb[0].mxu0
      %v1266 = vadd.f32 0.0, %v1265
      %v1267 = vpop.f32.mrb[0].mxu0
      %1268 = vmatprep.mubr.f32.mxu0 0.0
      %1269 = vmatmul.mubr.f32.gmra.mrb[0].mxu0 %v1068
      %v1270 = vpop.f32.mrb[0].mxu0
      %v1271 = vadd.f32 0.0, %v1270
      %v1272 = vpop.f32.mrb[0].mxu0
      %1273 = vmatprep.mubr.f32.mxu0 0.0
      %1274 = vmatmul.mubr.f32.gmra.mrb[0].mxu0 %v1070
      %v1275 = vpop.f32.mrb[0].mxu0
      %v1276 = vadd.f32 0.0, %v1275
      %v1277 = vpop.f32.mrb[0].mxu0
      %1278 = vmatprep.mubr.f32.mxu0 0.0
      %1279 = vmatmul.mubr.f32.gmra.mrb[0].mxu0 %v1072
      %v1280 = vpop.f32.mrb[0].mxu0
      %v1281 = vadd.f32 0.0, %v1280
      %v1282 = vpop.f32.mrb[0].mxu0
      %1283 = vmatprep.mubr.f32.mxu0 0.0
      %1284 = vmatmul.mubr.f32.gmra.mrb[0].mxu0 %v1074
      %v1285 = vpop.f32.mrb[0].mxu0
      %v1286 = vadd.f32 0.0, %v1285
      %v1287 = vpop.f32.mrb[0].mxu0
      %1288 = vmatprep.mubr.f32.mxu0 0.0
      %1289 = vmatmul.mubr.f32.gmra.mrb[0].mxu0 %v1076
      %v1290 = vpop.f32.mrb[0].mxu0
      %v1291 = vadd.f32 0.0, %v1290
      %v1292 = vpop.f32.mrb[0].mxu0
      %1293 = vmatprep.mubr.f32.mxu0 0.0
      %1294 = vmatmul.mubr.f32.gmra.mrb[0].mxu0 %v1078
      %v1295 = vpop.f32.mrb[0].mxu0
      %v1296 = vadd.f32 0.0, %v1295
      %v1297 = vpop.f32.mrb[0].mxu0
      %1298 = vmatprep.mubr.f32.mxu0 0.0
      %1299 = vmatmul.mubr.f32.gmra.mrb[0].mxu0 %v1080
      %v1300 = vpop.f32.mrb[0].mxu0
      %v1301 = vadd.f32 0.0, %v1300
      %v1302 = vpop.f32.mrb[0].mxu0
      %1303 = vmatprep.mubr.f32.mxu0 0.0
      %1304 = vmatmul.mubr.f32.gmra.mrb[0].mxu0 %v1082
      %v1305 = vpop.f32.mrb[0].mxu0
      %v1306 = vadd.f32 0.0, %v1305
      %v1307 = vpop.f32.mrb[0].mxu0
      %1308 = vmatprep.mubr.f32.mxu0 0.0
      %1309 = vmatmul.mubr.f32.gmra.mrb[0].mxu0 %v1084
      %v1310 = vpop.f32.mrb[0].mxu0
      %v1311 = vadd.f32 0.0, %v1310
      %v1312 = vpop.f32.mrb[0].mxu0
      %1313 = vdwg.mxu0
      %v1314 = vadd.f32 %v781, %v1156
      %v1315 = vadd.f32 %v786, %v1161
      %v1316 = vadd.f32 %v791, %v1166
      %v1317 = vadd.f32 %v796, %v1171
      %v1318 = vadd.f32 %v801, %v1176
      %v1319 = vadd.f32 %v806, %v1181
      %v1320 = vadd.f32 %v811, %v1186
      %v1321 = vadd.f32 %v816, %v1191
      %v1322 = vadd.f32 %v821, %v1196
      %v1323 = vadd.f32 %v826, %v1201
      %v1324 = vadd.f32 %v831, %v1206
      %v1325 = vadd.f32 %v836, %v1211
      %v1326 = vadd.f32 %v841, %v1216
      %v1327 = vadd.f32 %v846, %v1221
      %v1328 = vadd.f32 %v851, %v1226
      %v1329 = vadd.f32 %v856, %v1231
      %v1330 = vadd.f32 %v861, %v1236
      %v1331 = vadd.f32 %v866, %v1241
      %v1332 = vadd.f32 %v871, %v1246
      %v1333 = vadd.f32 %v876, %v1251
      %v1334 = vadd.f32 %v881, %v1256
      %v1335 = vadd.f32 %v886, %v1261
      %v1336 = vadd.f32 %v891, %v1266
      %v1337 = vadd.f32 %v896, %v1271
      %v1338 = vadd.f32 %v901, %v1276
      %v1339 = vadd.f32 %v906, %v1281
      %v1340 = vadd.f32 %v911, %v1286
      %v1341 = vadd.f32 %v916, %v1291
      %v1342 = vadd.f32 %v921, %v1296
      %v1343 = vadd.f32 %v926, %v1301
      %v1344 = vadd.f32 %v931, %v1306
      %v1345 = vadd.f32 %v936, %v1311
      %s1346 = scalar_lea.vmem %s1, 12
      %v1347 = vld [vmem:[%s1346] sm:$0x7]
      %v1349 = vsel %vm353, %v215, 0
      %v1352 = vsel %vm353, %v216, 0
      %v1355 = vsel %vm418, %v1347, 0
      %1357 = vmatprep.subr.mxu0 0.0
      %1358 = vmatpush1.msra.mxu0 %v1355
      %1359 = vmatprep.subr.mxu0 0.0
      %1360 = vmatpush1.msra.mxu0 0.0
      %1361 = vmatprep.subr.mxu0 0.0
      %1362 = vmatpush1.msra.mxu0 0.0
      %1363 = vmatprep.subr.mxu0 0.0
      %1364 = vmatpush1.msra.mxu0 0.0
      %1365 = vmatprep.subr.mxu0 0.0
      %1366 = vmatpush1.msra.mxu0 0.0
      %1367 = vmatprep.subr.mxu0 0.0
      %1368 = vmatpush1.msra.mxu0 0.0
      %1369 = vmatprep.subr.mxu0 0.0
      %1370 = vmatpush1.msra.mxu0 0.0
      %1371 = vmatprep.subr.mxu0 0.0
      %1372 = vmatpush1.msra.mxu0 0.0
      %1373 = vmatprep.subr.mxu0 0.0
      %1374 = vmatpush1.msra.mxu0 0.0
      %1375 = vmatprep.subr.mxu0 0.0
      %1376 = vmatpush1.msra.mxu0 0.0
      %1377 = vmatprep.subr.mxu0 0.0
      %1378 = vmatpush1.msra.mxu0 0.0
      %1379 = vmatprep.subr.mxu0 0.0
      %1380 = vmatpush1.msra.mxu0 0.0
      %1381 = vmatprep.subr.mxu0 0.0
      %1382 = vmatpush1.msra.mxu0 0.0
      %1383 = vmatprep.subr.mxu0 0.0
      %1384 = vmatpush1.msra.mxu0 0.0
      %1385 = vmatprep.subr.mxu0 0.0
      %1386 = vmatpush1.msra.mxu0 0.0
      %1387 = vmatprep.subr.mxu0 0.0
      %1388 = vmatpush1.msra.mxu0 0.0
      %1389 = vmatprep.subr.mxu0 0.0
      %1390 = vmatpush1.msra.mxu0 0.0
      %1391 = vmatprep.subr.mxu0 0.0
      %1392 = vmatpush1.msra.mxu0 0.0
      %1393 = vmatprep.subr.mxu0 0.0
      %1394 = vmatpush1.msra.mxu0 0.0
      %1395 = vmatprep.subr.mxu0 0.0
      %1396 = vmatpush1.msra.mxu0 0.0
      %1397 = vmatprep.subr.mxu0 0.0
      %1398 = vmatpush1.msra.mxu0 0.0
      %1399 = vmatprep.subr.mxu0 0.0
      %1400 = vmatpush1.msra.mxu0 0.0
      %1401 = vmatprep.subr.mxu0 0.0
      %1402 = vmatpush1.msra.mxu0 0.0
      %1403 = vmatprep.subr.mxu0 0.0
      %1404 = vmatpush1.msra.mxu0 0.0
      %1405 = vmatprep.subr.mxu0 0.0
      %1406 = vmatpush1.msra.mxu0 0.0
      %1407 = vmatprep.subr.mxu0 0.0
      %1408 = vmatpush1.msra.mxu0 0.0
      %1409 = vmatprep.subr.mxu0 0.0
      %1410 = vmatpush1.msra.mxu0 0.0
      %1411 = vmatprep.subr.mxu0 0.0
      %1412 = vmatpush1.msra.mxu0 0.0
      %1413 = vmatprep.subr.mxu0 0.0
      %1414 = vmatpush1.msra.mxu0 0.0
      %1415 = vmatprep.subr.mxu0 0.0
      %1416 = vmatpush1.msra.mxu0 0.0
      %1417 = vmatprep.subr.mxu0 0.0
      %1418 = vmatpush1.msra.mxu0 0.0
      %1419 = vmatprep.subr.mxu0 0.0
      %1420 = vmatpush1.msra.mxu0 0.0
      %1421 = vmatprep.mubr.f32.mxu0 0.0
      %1422 = vmatmul.mubr.f32.gmra.mrb[0].mxu0 %v651
      %v1423 = vpop.f32.mrb[0].mxu0
      %v1424 = vadd.f32 0.0, %v1423
      %v1425 = vpop.f32.mrb[0].mxu0
      %1426 = vmatprep.mubr.f32.mxu0 0.0
      %1427 = vmatmul.mubr.f32.gmra.mrb[0].mxu0 %v653
      %v1428 = vpop.f32.mrb[0].mxu0
      %v1429 = vadd.f32 0.0, %v1428
      %v1430 = vpop.f32.mrb[0].mxu0
      %1431 = vmatprep.mubr.f32.mxu0 0.0
      %1432 = vmatmul.mubr.f32.gmra.mrb[0].mxu0 %v655
      %v1433 = vpop.f32.mrb[0].mxu0
      %v1434 = vadd.f32 0.0, %v1433
      %v1435 = vpop.f32.mrb[0].mxu0
      %1436 = vmatprep.mubr.f32.mxu0 0.0
      %1437 = vmatmul.mubr.f32.gmra.mrb[0].mxu0 %v657
      %v1438 = vpop.f32.mrb[0].mxu0
      %v1439 = vadd.f32 0.0, %v1438
      %v1440 = vpop.f32.mrb[0].mxu0
      %1441 = vmatprep.mubr.f32.mxu0 0.0
      %1442 = vmatmul.mubr.f32.gmra.mrb[0].mxu0 %v659
      %v1443 = vpop.f32.mrb[0].mxu0
      %v1444 = vadd.f32 0.0, %v1443
      %v1445 = vpop.f32.mrb[0].mxu0
      %1446 = vmatprep.mubr.f32.mxu0 0.0
      %1447 = vmatmul.mubr.f32.gmra.mrb[0].mxu0 %v661
      %v1448 = vpop.f32.mrb[0].mxu0
      %v1449 = vadd.f32 0.0, %v1448
      %v1450 = vpop.f32.mrb[0].mxu0
      %1451 = vmatprep.mubr.f32.mxu0 0.0
      %1452 = vmatmul.mubr.f32.gmra.mrb[0].mxu0 %v663
      %v1453 = vpop.f32.mrb[0].mxu0
      %v1454 = vadd.f32 0.0, %v1453
      %v1455 = vpop.f32.mrb[0].mxu0
      %1456 = vmatprep.mubr.f32.mxu0 0.0
      %1457 = vmatmul.mubr.f32.gmra.mrb[0].mxu0 %v665
      %v1458 = vpop.f32.mrb[0].mxu0
      %v1459 = vadd.f32 0.0, %v1458
      %v1460 = vpop.f32.mrb[0].mxu0
      %1461 = vmatprep.mubr.f32.mxu0 0.0
      %1462 = vmatmul.mubr.f32.gmra.mrb[0].mxu0 %v667
      %v1463 = vpop.f32.mrb[0].mxu0
      %v1464 = vadd.f32 0.0, %v1463
      %v1465 = vpop.f32.mrb[0].mxu0
      %1466 = vmatprep.mubr.f32.mxu0 0.0
      %1467 = vmatmul.mubr.f32.gmra.mrb[0].mxu0 %v669
      %v1468 = vpop.f32.mrb[0].mxu0
      %v1469 = vadd.f32 0.0, %v1468
      %v1470 = vpop.f32.mrb[0].mxu0
      %1471 = vmatprep.mubr.f32.mxu0 0.0
      %1472 = vmatmul.mubr.f32.gmra.mrb[0].mxu0 %v671
      %v1473 = vpop.f32.mrb[0].mxu0
      %v1474 = vadd.f32 0.0, %v1473
      %v1475 = vpop.f32.mrb[0].mxu0
      %1476 = vmatprep.mubr.f32.mxu0 0.0
      %1477 = vmatmul.mubr.f32.gmra.mrb[0].mxu0 %v673
      %v1478 = vpop.f32.mrb[0].mxu0
      %v1479 = vadd.f32 0.0, %v1478
      %v1480 = vpop.f32.mrb[0].mxu0
      %1481 = vmatprep.mubr.f32.mxu0 0.0
      %1482 = vmatmul.mubr.f32.gmra.mrb[0].mxu0 %v675
      %v1483 = vpop.f32.mrb[0].mxu0
      %v1484 = vadd.f32 0.0, %v1483
      %v1485 = vpop.f32.mrb[0].mxu0
      %1486 = vmatprep.mubr.f32.mxu0 0.0
      %1487 = vmatmul.mubr.f32.gmra.mrb[0].mxu0 %v677
      %v1488 = vpop.f32.mrb[0].mxu0
      %v1489 = vadd.f32 0.0, %v1488
      %v1490 = vpop.f32.mrb[0].mxu0
      %1491 = vmatprep.mubr.f32.mxu0 0.0
      %1492 = vmatmul.mubr.f32.gmra.mrb[0].mxu0 %v679
      %v1493 = vpop.f32.mrb[0].mxu0
      %v1494 = vadd.f32 0.0, %v1493
      %v1495 = vpop.f32.mrb[0].mxu0
      %1496 = vmatprep.mubr.f32.mxu0 0.0
      %1497 = vmatmul.mubr.f32.gmra.mrb[0].mxu0 %v681
      %v1498 = vpop.f32.mrb[0].mxu0
      %v1499 = vadd.f32 0.0, %v1498
      %v1500 = vpop.f32.mrb[0].mxu0
      %1501 = vmatprep.mubr.f32.mxu0 0.0
      %1502 = vmatmul.mubr.f32.gmra.mrb[0].mxu0 %v683
      %v1503 = vpop.f32.mrb[0].mxu0
      %v1504 = vadd.f32 0.0, %v1503
      %v1505 = vpop.f32.mrb[0].mxu0
      %1506 = vmatprep.mubr.f32.mxu0 0.0
      %1507 = vmatmul.mubr.f32.gmra.mrb[0].mxu0 %v685
      %v1508 = vpop.f32.mrb[0].mxu0
      %v1509 = vadd.f32 0.0, %v1508
      %v1510 = vpop.f32.mrb[0].mxu0
      %1511 = vmatprep.mubr.f32.mxu0 0.0
      %1512 = vmatmul.mubr.f32.gmra.mrb[0].mxu0 %v687
      %v1513 = vpop.f32.mrb[0].mxu0
      %v1514 = vadd.f32 0.0, %v1513
      %v1515 = vpop.f32.mrb[0].mxu0
      %1516 = vmatprep.mubr.f32.mxu0 0.0
      %1517 = vmatmul.mubr.f32.gmra.mrb[0].mxu0 %v689
      %v1518 = vpop.f32.mrb[0].mxu0
      %v1519 = vadd.f32 0.0, %v1518
      %v1520 = vpop.f32.mrb[0].mxu0
      %1521 = vmatprep.mubr.f32.mxu0 0.0
      %1522 = vmatmul.mubr.f32.gmra.mrb[0].mxu0 %v691
      %v1523 = vpop.f32.mrb[0].mxu0
      %v1524 = vadd.f32 0.0, %v1523
      %v1525 = vpop.f32.mrb[0].mxu0
      %1526 = vmatprep.mubr.f32.mxu0 0.0
      %1527 = vmatmul.mubr.f32.gmra.mrb[0].mxu0 %v693
      %v1528 = vpop.f32.mrb[0].mxu0
      %v1529 = vadd.f32 0.0, %v1528
      %v1530 = vpop.f32.mrb[0].mxu0
      %1531 = vmatprep.mubr.f32.mxu0 0.0
      %1532 = vmatmul.mubr.f32.gmra.mrb[0].mxu0 %v695
      %v1533 = vpop.f32.mrb[0].mxu0
      %v1534 = vadd.f32 0.0, %v1533
      %v1535 = vpop.f32.mrb[0].mxu0
      %1536 = vmatprep.mubr.f32.mxu0 0.0
      %1537 = vmatmul.mubr.f32.gmra.mrb[0].mxu0 %v697
      %v1538 = vpop.f32.mrb[0].mxu0
      %v1539 = vadd.f32 0.0, %v1538
      %v1540 = vpop.f32.mrb[0].mxu0
      %1541 = vmatprep.mubr.f32.mxu0 0.0
      %1542 = vmatmul.mubr.f32.gmra.mrb[0].mxu0 %v699
      %v1543 = vpop.f32.mrb[0].mxu0
      %v1544 = vadd.f32 0.0, %v1543
      %v1545 = vpop.f32.mrb[0].mxu0
      %1546 = vmatprep.mubr.f32.mxu0 0.0
      %1547 = vmatmul.mubr.f32.gmra.mrb[0].mxu0 %v701
      %v1548 = vpop.f32.mrb[0].mxu0
      %v1549 = vadd.f32 0.0, %v1548
      %v1550 = vpop.f32.mrb[0].mxu0
      %1551 = vmatprep.mubr.f32.mxu0 0.0
      %1552 = vmatmul.mubr.f32.gmra.mrb[0].mxu0 %v703
      %v1553 = vpop.f32.mrb[0].mxu0
      %v1554 = vadd.f32 0.0, %v1553
      %v1555 = vpop.f32.mrb[0].mxu0
      %1556 = vmatprep.mubr.f32.mxu0 0.0
      %1557 = vmatmul.mubr.f32.gmra.mrb[0].mxu0 %v705
      %v1558 = vpop.f32.mrb[0].mxu0
      %v1559 = vadd.f32 0.0, %v1558
      %v1560 = vpop.f32.mrb[0].mxu0
      %1561 = vmatprep.mubr.f32.mxu0 0.0
      %1562 = vmatmul.mubr.f32.gmra.mrb[0].mxu0 %v707
      %v1563 = vpop.f32.mrb[0].mxu0
      %v1564 = vadd.f32 0.0, %v1563
      %v1565 = vpop.f32.mrb[0].mxu0
      %1566 = vmatprep.mubr.f32.mxu0 0.0
      %1567 = vmatmul.mubr.f32.gmra.mrb[0].mxu0 %v709
      %v1568 = vpop.f32.mrb[0].mxu0
      %v1569 = vadd.f32 0.0, %v1568
      %v1570 = vpop.f32.mrb[0].mxu0
      %1571 = vmatprep.mubr.f32.mxu0 0.0
      %1572 = vmatmul.mubr.f32.gmra.mrb[0].mxu0 %v1349
      %v1573 = vpop.f32.mrb[0].mxu0
      %v1574 = vadd.f32 0.0, %v1573
      %v1575 = vpop.f32.mrb[0].mxu0
      %1576 = vmatprep.mubr.f32.mxu0 0.0
      %1577 = vmatmul.mubr.f32.gmra.mrb[0].mxu0 %v1352
      %v1578 = vpop.f32.mrb[0].mxu0
      %v1579 = vadd.f32 0.0, %v1578
      %v1580 = vpop.f32.mrb[0].mxu0
      %1581 = vdwg.mxu0
      %v1582 = vadd.f32 %v1314, %v1424
      %v1583 = vadd.f32 %v1315, %v1429
      %v1584 = vadd.f32 %v1316, %v1434
      %v1585 = vadd.f32 %v1317, %v1439
      %v1586 = vadd.f32 %v1318, %v1444
      %v1587 = vadd.f32 %v1319, %v1449
      %v1588 = vadd.f32 %v1320, %v1454
      %v1589 = vadd.f32 %v1321, %v1459
      %v1590 = vadd.f32 %v1322, %v1464
      %v1591 = vadd.f32 %v1323, %v1469
      %v1592 = vadd.f32 %v1324, %v1474
      %v1593 = vadd.f32 %v1325, %v1479
      %v1594 = vadd.f32 %v1326, %v1484
      %v1595 = vadd.f32 %v1327, %v1489
      %v1596 = vadd.f32 %v1328, %v1494
      %v1597 = vadd.f32 %v1329, %v1499
      %v1598 = vadd.f32 %v1330, %v1504
      %v1599 = vadd.f32 %v1331, %v1509
      %v1600 = vadd.f32 %v1332, %v1514
      %v1601 = vadd.f32 %v1333, %v1519
      %v1602 = vadd.f32 %v1334, %v1524
      %v1603 = vadd.f32 %v1335, %v1529
      %v1604 = vadd.f32 %v1336, %v1534
      %v1605 = vadd.f32 %v1337, %v1539
      %v1606 = vadd.f32 %v1338, %v1544
      %v1607 = vadd.f32 %v1339, %v1549
      %v1608 = vadd.f32 %v1340, %v1554
      %v1609 = vadd.f32 %v1341, %v1559
      %v1610 = vadd.f32 %v1342, %v1564
      %v1611 = vadd.f32 %v1343, %v1569
      %v1612 = vadd.f32 %v1344, %v1574
      %v1613 = vadd.f32 %v1345, %v1579
      %v1615 = vrot.slane %v215, 1
      %v1616 = vrot.slane %v216, 1
      %v1617 = vsel %vm270, %v1615, %v1616
      %v1618 = vrot.slane %v217, 1
      %v1619 = vsel %vm270, %v1616, %v1618
      %s1620 = scalar_lea.vmem %s1, 16
      %v1621 = vld [vmem:[%s1620] sm:$0x7]
      %v1622 = vsel %vm353, %v1617, 0
      %v1624 = vsel %vm353, %v1619, 0
      %v1627 = vsel %vm418, %v1621, 0
      %1629 = vmatprep.subr.mxu0 0.0
      %1630 = vmatpush1.msra.mxu0 %v1627
      %1631 = vmatprep.subr.mxu0 0.0
      %1632 = vmatpush1.msra.mxu0 0.0
      %1633 = vmatprep.subr.mxu0 0.0
      %1634 = vmatpush1.msra.mxu0 0.0
      %1635 = vmatprep.subr.mxu0 0.0
      %1636 = vmatpush1.msra.mxu0 0.0
      %1637 = vmatprep.subr.mxu0 0.0
      %1638 = vmatpush1.msra.mxu0 0.0
      %1639 = vmatprep.subr.mxu0 0.0
      %1640 = vmatpush1.msra.mxu0 0.0
      %1641 = vmatprep.subr.mxu0 0.0
      %1642 = vmatpush1.msra.mxu0 0.0
      %1643 = vmatprep.subr.mxu0 0.0
      %1644 = vmatpush1.msra.mxu0 0.0
      %1645 = vmatprep.subr.mxu0 0.0
      %1646 = vmatpush1.msra.mxu0 0.0
      %1647 = vmatprep.subr.mxu0 0.0
      %1648 = vmatpush1.msra.mxu0 0.0
      %1649 = vmatprep.subr.mxu0 0.0
      %1650 = vmatpush1.msra.mxu0 0.0
      %1651 = vmatprep.subr.mxu0 0.0
      %1652 = vmatpush1.msra.mxu0 0.0
      %1653 = vmatprep.subr.mxu0 0.0
      %1654 = vmatpush1.msra.mxu0 0.0
      %1655 = vmatprep.subr.mxu0 0.0
      %1656 = vmatpush1.msra.mxu0 0.0
      %1657 = vmatprep.subr.mxu0 0.0
      %1658 = vmatpush1.msra.mxu0 0.0
      %1659 = vmatprep.subr.mxu0 0.0
      %1660 = vmatpush1.msra.mxu0 0.0
      %1661 = vmatprep.subr.mxu0 0.0
      %1662 = vmatpush1.msra.mxu0 0.0
      %1663 = vmatprep.subr.mxu0 0.0
      %1664 = vmatpush1.msra.mxu0 0.0
      %1665 = vmatprep.subr.mxu0 0.0
      %1666 = vmatpush1.msra.mxu0 0.0
      %1667 = vmatprep.subr.mxu0 0.0
      %1668 = vmatpush1.msra.mxu0 0.0
      %1669 = vmatprep.subr.mxu0 0.0
      %1670 = vmatpush1.msra.mxu0 0.0
      %1671 = vmatprep.subr.mxu0 0.0
      %1672 = vmatpush1.msra.mxu0 0.0
      %1673 = vmatprep.subr.mxu0 0.0
      %1674 = vmatpush1.msra.mxu0 0.0
      %1675 = vmatprep.subr.mxu0 0.0
      %1676 = vmatpush1.msra.mxu0 0.0
      %1677 = vmatprep.subr.mxu0 0.0
      %1678 = vmatpush1.msra.mxu0 0.0
      %1679 = vmatprep.subr.mxu0 0.0
      %1680 = vmatpush1.msra.mxu0 0.0
      %1681 = vmatprep.subr.mxu0 0.0
      %1682 = vmatpush1.msra.mxu0 0.0
      %1683 = vmatprep.subr.mxu0 0.0
      %1684 = vmatpush1.msra.mxu0 0.0
      %1685 = vmatprep.subr.mxu0 0.0
      %1686 = vmatpush1.msra.mxu0 0.0
      %1687 = vmatprep.subr.mxu0 0.0
      %1688 = vmatpush1.msra.mxu0 0.0
      %1689 = vmatprep.subr.mxu0 0.0
      %1690 = vmatpush1.msra.mxu0 0.0
      %1691 = vmatprep.subr.mxu0 0.0
      %1692 = vmatpush1.msra.mxu0 0.0
      %1693 = vmatprep.mubr.f32.mxu0 0.0
      %1694 = vmatmul.mubr.f32.gmra.mrb[0].mxu0 %v358
      %v1695 = vpop.f32.mrb[0].mxu0
      %v1696 = vadd.f32 0.0, %v1695
      %v1697 = vpop.f32.mrb[0].mxu0
      %1698 = vmatprep.mubr.f32.mxu0 0.0
      %1699 = vmatmul.mubr.f32.gmra.mrb[0].mxu0 %v360
      %v1700 = vpop.f32.mrb[0].mxu0
      %v1701 = vadd.f32 0.0, %v1700
      %v1702 = vpop.f32.mrb[0].mxu0
      %1703 = vmatprep.mubr.f32.mxu0 0.0
      %1704 = vmatmul.mubr.f32.gmra.mrb[0].mxu0 %v362
      %v1705 = vpop.f32.mrb[0].mxu0
      %v1706 = vadd.f32 0.0, %v1705
      %v1707 = vpop.f32.mrb[0].mxu0
      %1708 = vmatprep.mubr.f32.mxu0 0.0
      %1709 = vmatmul.mubr.f32.gmra.mrb[0].mxu0 %v364
      %v1710 = vpop.f32.mrb[0].mxu0
      %v1711 = vadd.f32 0.0, %v1710
      %v1712 = vpop.f32.mrb[0].mxu0
      %1713 = vmatprep.mubr.f32.mxu0 0.0
      %1714 = vmatmul.mubr.f32.gmra.mrb[0].mxu0 %v366
      %v1715 = vpop.f32.mrb[0].mxu0
      %v1716 = vadd.f32 0.0, %v1715
      %v1717 = vpop.f32.mrb[0].mxu0
      %1718 = vmatprep.mubr.f32.mxu0 0.0
      %1719 = vmatmul.mubr.f32.gmra.mrb[0].mxu0 %v368
      %v1720 = vpop.f32.mrb[0].mxu0
      %v1721 = vadd.f32 0.0, %v1720
      %v1722 = vpop.f32.mrb[0].mxu0
      %1723 = vmatprep.mubr.f32.mxu0 0.0
      %1724 = vmatmul.mubr.f32.gmra.mrb[0].mxu0 %v370
      %v1725 = vpop.f32.mrb[0].mxu0
      %v1726 = vadd.f32 0.0, %v1725
      %v1727 = vpop.f32.mrb[0].mxu0
      %1728 = vmatprep.mubr.f32.mxu0 0.0
      %1729 = vmatmul.mubr.f32.gmra.mrb[0].mxu0 %v372
      %v1730 = vpop.f32.mrb[0].mxu0
      %v1731 = vadd.f32 0.0, %v1730
      %v1732 = vpop.f32.mrb[0].mxu0
      %1733 = vmatprep.mubr.f32.mxu0 0.0
      %1734 = vmatmul.mubr.f32.gmra.mrb[0].mxu0 %v374
      %v1735 = vpop.f32.mrb[0].mxu0
      %v1736 = vadd.f32 0.0, %v1735
      %v1737 = vpop.f32.mrb[0].mxu0
      %1738 = vmatprep.mubr.f32.mxu0 0.0
      %1739 = vmatmul.mubr.f32.gmra.mrb[0].mxu0 %v376
      %v1740 = vpop.f32.mrb[0].mxu0
      %v1741 = vadd.f32 0.0, %v1740
      %v1742 = vpop.f32.mrb[0].mxu0
      %1743 = vmatprep.mubr.f32.mxu0 0.0
      %1744 = vmatmul.mubr.f32.gmra.mrb[0].mxu0 %v378
      %v1745 = vpop.f32.mrb[0].mxu0
      %v1746 = vadd.f32 0.0, %v1745
      %v1747 = vpop.f32.mrb[0].mxu0
      %1748 = vmatprep.mubr.f32.mxu0 0.0
      %1749 = vmatmul.mubr.f32.gmra.mrb[0].mxu0 %v380
      %v1750 = vpop.f32.mrb[0].mxu0
      %v1751 = vadd.f32 0.0, %v1750
      %v1752 = vpop.f32.mrb[0].mxu0
      %1753 = vmatprep.mubr.f32.mxu0 0.0
      %1754 = vmatmul.mubr.f32.gmra.mrb[0].mxu0 %v382
      %v1755 = vpop.f32.mrb[0].mxu0
      %v1756 = vadd.f32 0.0, %v1755
      %v1757 = vpop.f32.mrb[0].mxu0
      %1758 = vmatprep.mubr.f32.mxu0 0.0
      %1759 = vmatmul.mubr.f32.gmra.mrb[0].mxu0 %v384
      %v1760 = vpop.f32.mrb[0].mxu0
      %v1761 = vadd.f32 0.0, %v1760
      %v1762 = vpop.f32.mrb[0].mxu0
      %1763 = vmatprep.mubr.f32.mxu0 0.0
      %1764 = vmatmul.mubr.f32.gmra.mrb[0].mxu0 %v386
      %v1765 = vpop.f32.mrb[0].mxu0
      %v1766 = vadd.f32 0.0, %v1765
      %v1767 = vpop.f32.mrb[0].mxu0
      %1768 = vmatprep.mubr.f32.mxu0 0.0
      %1769 = vmatmul.mubr.f32.gmra.mrb[0].mxu0 %v388
      %v1770 = vpop.f32.mrb[0].mxu0
      %v1771 = vadd.f32 0.0, %v1770
      %v1772 = vpop.f32.mrb[0].mxu0
      %1773 = vmatprep.mubr.f32.mxu0 0.0
      %1774 = vmatmul.mubr.f32.gmra.mrb[0].mxu0 %v390
      %v1775 = vpop.f32.mrb[0].mxu0
      %v1776 = vadd.f32 0.0, %v1775
      %v1777 = vpop.f32.mrb[0].mxu0
      %1778 = vmatprep.mubr.f32.mxu0 0.0
      %1779 = vmatmul.mubr.f32.gmra.mrb[0].mxu0 %v392
      %v1780 = vpop.f32.mrb[0].mxu0
      %v1781 = vadd.f32 0.0, %v1780
      %v1782 = vpop.f32.mrb[0].mxu0
      %1783 = vmatprep.mubr.f32.mxu0 0.0
      %1784 = vmatmul.mubr.f32.gmra.mrb[0].mxu0 %v394
      %v1785 = vpop.f32.mrb[0].mxu0
      %v1786 = vadd.f32 0.0, %v1785
      %v1787 = vpop.f32.mrb[0].mxu0
      %1788 = vmatprep.mubr.f32.mxu0 0.0
      %1789 = vmatmul.mubr.f32.gmra.mrb[0].mxu0 %v396
      %v1790 = vpop.f32.mrb[0].mxu0
      %v1791 = vadd.f32 0.0, %v1790
      %v1792 = vpop.f32.mrb[0].mxu0
      %1793 = vmatprep.mubr.f32.mxu0 0.0
      %1794 = vmatmul.mubr.f32.gmra.mrb[0].mxu0 %v398
      %v1795 = vpop.f32.mrb[0].mxu0
      %v1796 = vadd.f32 0.0, %v1795
      %v1797 = vpop.f32.mrb[0].mxu0
      %1798 = vmatprep.mubr.f32.mxu0 0.0
      %1799 = vmatmul.mubr.f32.gmra.mrb[0].mxu0 %v400
      %v1800 = vpop.f32.mrb[0].mxu0
      %v1801 = vadd.f32 0.0, %v1800
      %v1802 = vpop.f32.mrb[0].mxu0
      %1803 = vmatprep.mubr.f32.mxu0 0.0
      %1804 = vmatmul.mubr.f32.gmra.mrb[0].mxu0 %v402
      %v1805 = vpop.f32.mrb[0].mxu0
      %v1806 = vadd.f32 0.0, %v1805
      %v1807 = vpop.f32.mrb[0].mxu0
      %1808 = vmatprep.mubr.f32.mxu0 0.0
      %1809 = vmatmul.mubr.f32.gmra.mrb[0].mxu0 %v404
      %v1810 = vpop.f32.mrb[0].mxu0
      %v1811 = vadd.f32 0.0, %v1810
      %v1812 = vpop.f32.mrb[0].mxu0
      %1813 = vmatprep.mubr.f32.mxu0 0.0
      %1814 = vmatmul.mubr.f32.gmra.mrb[0].mxu0 %v406
      %v1815 = vpop.f32.mrb[0].mxu0
      %v1816 = vadd.f32 0.0, %v1815
      %v1817 = vpop.f32.mrb[0].mxu0
      %1818 = vmatprep.mubr.f32.mxu0 0.0
      %1819 = vmatmul.mubr.f32.gmra.mrb[0].mxu0 %v408
      %v1820 = vpop.f32.mrb[0].mxu0
      %v1821 = vadd.f32 0.0, %v1820
      %v1822 = vpop.f32.mrb[0].mxu0
      %1823 = vmatprep.mubr.f32.mxu0 0.0
      %1824 = vmatmul.mubr.f32.gmra.mrb[0].mxu0 %v410
      %v1825 = vpop.f32.mrb[0].mxu0
      %v1826 = vadd.f32 0.0, %v1825
      %v1827 = vpop.f32.mrb[0].mxu0
      %1828 = vmatprep.mubr.f32.mxu0 0.0
      %1829 = vmatmul.mubr.f32.gmra.mrb[0].mxu0 %v412
      %v1830 = vpop.f32.mrb[0].mxu0
      %v1831 = vadd.f32 0.0, %v1830
      %v1832 = vpop.f32.mrb[0].mxu0
      %1833 = vmatprep.mubr.f32.mxu0 0.0
      %1834 = vmatmul.mubr.f32.gmra.mrb[0].mxu0 %v414
      %v1835 = vpop.f32.mrb[0].mxu0
      %v1836 = vadd.f32 0.0, %v1835
      %v1837 = vpop.f32.mrb[0].mxu0
      %1838 = vmatprep.mubr.f32.mxu0 0.0
      %1839 = vmatmul.mubr.f32.gmra.mrb[0].mxu0 %v416
      %v1840 = vpop.f32.mrb[0].mxu0
      %v1841 = vadd.f32 0.0, %v1840
      %v1842 = vpop.f32.mrb[0].mxu0
      %1843 = vmatprep.mubr.f32.mxu0 0.0
      %1844 = vmatmul.mubr.f32.gmra.mrb[0].mxu0 %v1622
      %v1845 = vpop.f32.mrb[0].mxu0
      %v1846 = vadd.f32 0.0, %v1845
      %v1847 = vpop.f32.mrb[0].mxu0
      %1848 = vmatprep.mubr.f32.mxu0 0.0
      %1849 = vmatmul.mubr.f32.gmra.mrb[0].mxu0 %v1624
      %v1850 = vpop.f32.mrb[0].mxu0
      %v1851 = vadd.f32 0.0, %v1850
      %v1852 = vpop.f32.mrb[0].mxu0
      %1853 = vdwg.mxu0
      %v1854 = vadd.f32 %v1582, %v1696
      %v1855 = vadd.f32 %v1583, %v1701
      %v1856 = vadd.f32 %v1584, %v1706
      %v1857 = vadd.f32 %v1585, %v1711
      %v1858 = vadd.f32 %v1586, %v1716
      %v1859 = vadd.f32 %v1587, %v1721
      %v1860 = vadd.f32 %v1588, %v1726
      %v1861 = vadd.f32 %v1589, %v1731
      %v1862 = vadd.f32 %v1590, %v1736
      %v1863 = vadd.f32 %v1591, %v1741
      %v1864 = vadd.f32 %v1592, %v1746
      %v1865 = vadd.f32 %v1593, %v1751
      %v1866 = vadd.f32 %v1594, %v1756
      %v1867 = vadd.f32 %v1595, %v1761
      %v1868 = vadd.f32 %v1596, %v1766
      %v1869 = vadd.f32 %v1597, %v1771
      %v1870 = vadd.f32 %v1598, %v1776
      %v1871 = vadd.f32 %v1599, %v1781
      %v1872 = vadd.f32 %v1600, %v1786
      %v1873 = vadd.f32 %v1601, %v1791
      %v1874 = vadd.f32 %v1602, %v1796
      %v1875 = vadd.f32 %v1603, %v1801
      %v1876 = vadd.f32 %v1604, %v1806
      %v1877 = vadd.f32 %v1605, %v1811
      %v1878 = vadd.f32 %v1606, %v1816
      %v1879 = vadd.f32 %v1607, %v1821
      %v1880 = vadd.f32 %v1608, %v1826
      %v1881 = vadd.f32 %v1609, %v1831
      %v1882 = vadd.f32 %v1610, %v1836
      %v1883 = vadd.f32 %v1611, %v1841
      %v1884 = vadd.f32 %v1612, %v1846
      %v1885 = vadd.f32 %v1613, %v1851
      %v1886 = vrot.slane %v215, 2
      %v1887 = vrot.slane %v216, 2
      %v1888 = vsel %vm939, %v1886, %v1887
      %v1889 = vrot.slane %v217, 2
      %v1890 = vsel %vm939, %v1887, %v1889
      %s1891 = scalar_lea.vmem %s1, 20
      %v1892 = vld [vmem:[%s1891] sm:$0x7]
      %v1893 = vsel %vm353, %v1888, 0
      %v1895 = vsel %vm353, %v1890, 0
      %v1898 = vsel %vm418, %v1892, 0
      %1900 = vmatprep.subr.mxu0 0.0
      %1901 = vmatpush1.msra.mxu0 %v1898
      %1902 = vmatprep.subr.mxu0 0.0
      %1903 = vmatpush1.msra.mxu0 0.0
      %1904 = vmatprep.subr.mxu0 0.0
      %1905 = vmatpush1.msra.mxu0 0.0
      %1906 = vmatprep.subr.mxu0 0.0
      %1907 = vmatpush1.msra.mxu0 0.0
      %1908 = vmatprep.subr.mxu0 0.0
      %1909 = vmatpush1.msra.mxu0 0.0
      %1910 = vmatprep.subr.mxu0 0.0
      %1911 = vmatpush1.msra.mxu0 0.0
      %1912 = vmatprep.subr.mxu0 0.0
      %1913 = vmatpush1.msra.mxu0 0.0
      %1914 = vmatprep.subr.mxu0 0.0
      %1915 = vmatpush1.msra.mxu0 0.0
      %1916 = vmatprep.subr.mxu0 0.0
      %1917 = vmatpush1.msra.mxu0 0.0
      %1918 = vmatprep.subr.mxu0 0.0
      %1919 = vmatpush1.msra.mxu0 0.0
      %1920 = vmatprep.subr.mxu0 0.0
      %1921 = vmatpush1.msra.mxu0 0.0
      %1922 = vmatprep.subr.mxu0 0.0
      %1923 = vmatpush1.msra.mxu0 0.0
      %1924 = vmatprep.subr.mxu0 0.0
      %1925 = vmatpush1.msra.mxu0 0.0
      %1926 = vmatprep.subr.mxu0 0.0
      %1927 = vmatpush1.msra.mxu0 0.0
      %1928 = vmatprep.subr.mxu0 0.0
      %1929 = vmatpush1.msra.mxu0 0.0
      %1930 = vmatprep.subr.mxu0 0.0
      %1931 = vmatpush1.msra.mxu0 0.0
      %1932 = vmatprep.subr.mxu0 0.0
      %1933 = vmatpush1.msra.mxu0 0.0
      %1934 = vmatprep.subr.mxu0 0.0
      %1935 = vmatpush1.msra.mxu0 0.0
      %1936 = vmatprep.subr.mxu0 0.0
      %1937 = vmatpush1.msra.mxu0 0.0
      %1938 = vmatprep.subr.mxu0 0.0
      %1939 = vmatpush1.msra.mxu0 0.0
      %1940 = vmatprep.subr.mxu0 0.0
      %1941 = vmatpush1.msra.mxu0 0.0
      %1942 = vmatprep.subr.mxu0 0.0
      %1943 = vmatpush1.msra.mxu0 0.0
      %1944 = vmatprep.subr.mxu0 0.0
      %1945 = vmatpush1.msra.mxu0 0.0
      %1946 = vmatprep.subr.mxu0 0.0
      %1947 = vmatpush1.msra.mxu0 0.0
      %1948 = vmatprep.subr.mxu0 0.0
      %1949 = vmatpush1.msra.mxu0 0.0
      %1950 = vmatprep.subr.mxu0 0.0
      %1951 = vmatpush1.msra.mxu0 0.0
      %1952 = vmatprep.subr.mxu0 0.0
      %1953 = vmatpush1.msra.mxu0 0.0
      %1954 = vmatprep.subr.mxu0 0.0
      %1955 = vmatpush1.msra.mxu0 0.0
      %1956 = vmatprep.subr.mxu0 0.0
      %1957 = vmatpush1.msra.mxu0 0.0
      %1958 = vmatprep.subr.mxu0 0.0
      %1959 = vmatpush1.msra.mxu0 0.0
      %1960 = vmatprep.subr.mxu0 0.0
      %1961 = vmatpush1.msra.mxu0 0.0
      %1962 = vmatprep.subr.mxu0 0.0
      %1963 = vmatpush1.msra.mxu0 0.0
      %1964 = vmatprep.mubr.f32.mxu0 0.0
      %1965 = vmatmul.mubr.f32.gmra.mrb[0].mxu0 %v1026
      %v1966 = vpop.f32.mrb[0].mxu0
      %v1967 = vadd.f32 0.0, %v1966
      %v1968 = vpop.f32.mrb[0].mxu0
      %1969 = vmatprep.mubr.f32.mxu0 0.0
      %1970 = vmatmul.mubr.f32.gmra.mrb[0].mxu0 %v1028
      %v1971 = vpop.f32.mrb[0].mxu0
      %v1972 = vadd.f32 0.0, %v1971
      %v1973 = vpop.f32.mrb[0].mxu0
      %1974 = vmatprep.mubr.f32.mxu0 0.0
      %1975 = vmatmul.mubr.f32.gmra.mrb[0].mxu0 %v1030
      %v1976 = vpop.f32.mrb[0].mxu0
      %v1977 = vadd.f32 0.0, %v1976
      %v1978 = vpop.f32.mrb[0].mxu0
      %1979 = vmatprep.mubr.f32.mxu0 0.0
      %1980 = vmatmul.mubr.f32.gmra.mrb[0].mxu0 %v1032
      %v1981 = vpop.f32.mrb[0].mxu0
      %v1982 = vadd.f32 0.0, %v1981
      %v1983 = vpop.f32.mrb[0].mxu0
      %1984 = vmatprep.mubr.f32.mxu0 0.0
      %1985 = vmatmul.mubr.f32.gmra.mrb[0].mxu0 %v1034
      %v1986 = vpop.f32.mrb[0].mxu0
      %v1987 = vadd.f32 0.0, %v1986
      %v1988 = vpop.f32.mrb[0].mxu0
      %1989 = vmatprep.mubr.f32.mxu0 0.0
      %1990 = vmatmul.mubr.f32.gmra.mrb[0].mxu0 %v1036
      %v1991 = vpop.f32.mrb[0].mxu0
      %v1992 = vadd.f32 0.0, %v1991
      %v1993 = vpop.f32.mrb[0].mxu0
      %1994 = vmatprep.mubr.f32.mxu0 0.0
      %1995 = vmatmul.mubr.f32.gmra.mrb[0].mxu0 %v1038
      %v1996 = vpop.f32.mrb[0].mxu0
      %v1997 = vadd.f32 0.0, %v1996
      %v1998 = vpop.f32.mrb[0].mxu0
      %1999 = vmatprep.mubr.f32.mxu0 0.0
      %2000 = vmatmul.mubr.f32.gmra.mrb[0].mxu0 %v1040
      %v2001 = vpop.f32.mrb[0].mxu0
      %v2002 = vadd.f32 0.0, %v2001
      %v2003 = vpop.f32.mrb[0].mxu0
      %2004 = vmatprep.mubr.f32.mxu0 0.0
      %2005 = vmatmul.mubr.f32.gmra.mrb[0].mxu0 %v1042
      %v2006 = vpop.f32.mrb[0].mxu0
      %v2007 = vadd.f32 0.0, %v2006
      %v2008 = vpop.f32.mrb[0].mxu0
      %2009 = vmatprep.mubr.f32.mxu0 0.0
      %2010 = vmatmul.mubr.f32.gmra.mrb[0].mxu0 %v1044
      %v2011 = vpop.f32.mrb[0].mxu0
      %v2012 = vadd.f32 0.0, %v2011
      %v2013 = vpop.f32.mrb[0].mxu0
      %2014 = vmatprep.mubr.f32.mxu0 0.0
      %2015 = vmatmul.mubr.f32.gmra.mrb[0].mxu0 %v1046
      %v2016 = vpop.f32.mrb[0].mxu0
      %v2017 = vadd.f32 0.0, %v2016
      %v2018 = vpop.f32.mrb[0].mxu0
      %2019 = vmatprep.mubr.f32.mxu0 0.0
      %2020 = vmatmul.mubr.f32.gmra.mrb[0].mxu0 %v1048
      %v2021 = vpop.f32.mrb[0].mxu0
      %v2022 = vadd.f32 0.0, %v2021
      %v2023 = vpop.f32.mrb[0].mxu0
      %2024 = vmatprep.mubr.f32.mxu0 0.0
      %2025 = vmatmul.mubr.f32.gmra.mrb[0].mxu0 %v1050
      %v2026 = vpop.f32.mrb[0].mxu0
      %v2027 = vadd.f32 0.0, %v2026
      %v2028 = vpop.f32.mrb[0].mxu0
      %2029 = vmatprep.mubr.f32.mxu0 0.0
      %2030 = vmatmul.mubr.f32.gmra.mrb[0].mxu0 %v1052
      %v2031 = vpop.f32.mrb[0].mxu0
      %v2032 = vadd.f32 0.0, %v2031
      %v2033 = vpop.f32.mrb[0].mxu0
      %2034 = vmatprep.mubr.f32.mxu0 0.0
      %2035 = vmatmul.mubr.f32.gmra.mrb[0].mxu0 %v1054
      %v2036 = vpop.f32.mrb[0].mxu0
      %v2037 = vadd.f32 0.0, %v2036
      %v2038 = vpop.f32.mrb[0].mxu0
      %2039 = vmatprep.mubr.f32.mxu0 0.0
      %2040 = vmatmul.mubr.f32.gmra.mrb[0].mxu0 %v1056
      %v2041 = vpop.f32.mrb[0].mxu0
      %v2042 = vadd.f32 0.0, %v2041
      %v2043 = vpop.f32.mrb[0].mxu0
      %2044 = vmatprep.mubr.f32.mxu0 0.0
      %2045 = vmatmul.mubr.f32.gmra.mrb[0].mxu0 %v1058
      %v2046 = vpop.f32.mrb[0].mxu0
      %v2047 = vadd.f32 0.0, %v2046
      %v2048 = vpop.f32.mrb[0].mxu0
      %2049 = vmatprep.mubr.f32.mxu0 0.0
      %2050 = vmatmul.mubr.f32.gmra.mrb[0].mxu0 %v1060
      %v2051 = vpop.f32.mrb[0].mxu0
      %v2052 = vadd.f32 0.0, %v2051
      %v2053 = vpop.f32.mrb[0].mxu0
      %2054 = vmatprep.mubr.f32.mxu0 0.0
      %2055 = vmatmul.mubr.f32.gmra.mrb[0].mxu0 %v1062
      %v2056 = vpop.f32.mrb[0].mxu0
      %v2057 = vadd.f32 0.0, %v2056
      %v2058 = vpop.f32.mrb[0].mxu0
      %2059 = vmatprep.mubr.f32.mxu0 0.0
      %2060 = vmatmul.mubr.f32.gmra.mrb[0].mxu0 %v1064
      %v2061 = vpop.f32.mrb[0].mxu0
      %v2062 = vadd.f32 0.0, %v2061
      %v2063 = vpop.f32.mrb[0].mxu0
      %2064 = vmatprep.mubr.f32.mxu0 0.0
      %2065 = vmatmul.mubr.f32.gmra.mrb[0].mxu0 %v1066
      %v2066 = vpop.f32.mrb[0].mxu0
      %v2067 = vadd.f32 0.0, %v2066
      %v2068 = vpop.f32.mrb[0].mxu0
      %2069 = vmatprep.mubr.f32.mxu0 0.0
      %2070 = vmatmul.mubr.f32.gmra.mrb[0].mxu0 %v1068
      %v2071 = vpop.f32.mrb[0].mxu0
      %v2072 = vadd.f32 0.0, %v2071
      %v2073 = vpop.f32.mrb[0].mxu0
      %2074 = vmatprep.mubr.f32.mxu0 0.0
      %2075 = vmatmul.mubr.f32.gmra.mrb[0].mxu0 %v1070
      %v2076 = vpop.f32.mrb[0].mxu0
      %v2077 = vadd.f32 0.0, %v2076
      %v2078 = vpop.f32.mrb[0].mxu0
      %2079 = vmatprep.mubr.f32.mxu0 0.0
      %2080 = vmatmul.mubr.f32.gmra.mrb[0].mxu0 %v1072
      %v2081 = vpop.f32.mrb[0].mxu0
      %v2082 = vadd.f32 0.0, %v2081
      %v2083 = vpop.f32.mrb[0].mxu0
      %2084 = vmatprep.mubr.f32.mxu0 0.0
      %2085 = vmatmul.mubr.f32.gmra.mrb[0].mxu0 %v1074
      %v2086 = vpop.f32.mrb[0].mxu0
      %v2087 = vadd.f32 0.0, %v2086
      %v2088 = vpop.f32.mrb[0].mxu0
      %2089 = vmatprep.mubr.f32.mxu0 0.0
      %2090 = vmatmul.mubr.f32.gmra.mrb[0].mxu0 %v1076
      %v2091 = vpop.f32.mrb[0].mxu0
      %v2092 = vadd.f32 0.0, %v2091
      %v2093 = vpop.f32.mrb[0].mxu0
      %2094 = vmatprep.mubr.f32.mxu0 0.0
      %2095 = vmatmul.mubr.f32.gmra.mrb[0].mxu0 %v1078
      %v2096 = vpop.f32.mrb[0].mxu0
      %v2097 = vadd.f32 0.0, %v2096
      %v2098 = vpop.f32.mrb[0].mxu0
      %2099 = vmatprep.mubr.f32.mxu0 0.0
      %2100 = vmatmul.mubr.f32.gmra.mrb[0].mxu0 %v1080
      %v2101 = vpop.f32.mrb[0].mxu0
      %v2102 = vadd.f32 0.0, %v2101
      %v2103 = vpop.f32.mrb[0].mxu0
      %2104 = vmatprep.mubr.f32.mxu0 0.0
      %2105 = vmatmul.mubr.f32.gmra.mrb[0].mxu0 %v1082
      %v2106 = vpop.f32.mrb[0].mxu0
      %v2107 = vadd.f32 0.0, %v2106
      %v2108 = vpop.f32.mrb[0].mxu0
      %2109 = vmatprep.mubr.f32.mxu0 0.0
      %2110 = vmatmul.mubr.f32.gmra.mrb[0].mxu0 %v1084
      %v2111 = vpop.f32.mrb[0].mxu0
      %v2112 = vadd.f32 0.0, %v2111
      %v2113 = vpop.f32.mrb[0].mxu0
      %2114 = vmatprep.mubr.f32.mxu0 0.0
      %2115 = vmatmul.mubr.f32.gmra.mrb[0].mxu0 %v1893
      %v2116 = vpop.f32.mrb[0].mxu0
      %v2117 = vadd.f32 0.0, %v2116
      %v2118 = vpop.f32.mrb[0].mxu0
      %2119 = vmatprep.mubr.f32.mxu0 0.0
      %2120 = vmatmul.mubr.f32.gmra.mrb[0].mxu0 %v1895
      %v2121 = vpop.f32.mrb[0].mxu0
      %v2122 = vadd.f32 0.0, %v2121
      %v2123 = vpop.f32.mrb[0].mxu0
      %2124 = vdwg.mxu0
      %v2125 = vadd.f32 %v1854, %v1967
      %v2126 = vadd.f32 %v1855, %v1972
      %v2127 = vadd.f32 %v1856, %v1977
      %v2128 = vadd.f32 %v1857, %v1982
      %v2129 = vadd.f32 %v1858, %v1987
      %v2130 = vadd.f32 %v1859, %v1992
      %v2131 = vadd.f32 %v1860, %v1997
      %v2132 = vadd.f32 %v1861, %v2002
      %v2133 = vadd.f32 %v1862, %v2007
      %v2134 = vadd.f32 %v1863, %v2012
      %v2135 = vadd.f32 %v1864, %v2017
      %v2136 = vadd.f32 %v1865, %v2022
      %v2137 = vadd.f32 %v1866, %v2027
      %v2138 = vadd.f32 %v1867, %v2032
      %v2139 = vadd.f32 %v1868, %v2037
      %v2140 = vadd.f32 %v1869, %v2042
      %v2141 = vadd.f32 %v1870, %v2047
      %v2142 = vadd.f32 %v1871, %v2052
      %v2143 = vadd.f32 %v1872, %v2057
      %v2144 = vadd.f32 %v1873, %v2062
      %v2145 = vadd.f32 %v1874, %v2067
      %v2146 = vadd.f32 %v1875, %v2072
      %v2147 = vadd.f32 %v1876, %v2077
      %v2148 = vadd.f32 %v1877, %v2082
      %v2149 = vadd.f32 %v1878, %v2087
      %v2150 = vadd.f32 %v1879, %v2092
      %v2151 = vadd.f32 %v1880, %v2097
      %v2152 = vadd.f32 %v1881, %v2102
      %v2153 = vadd.f32 %v1882, %v2107
      %v2154 = vadd.f32 %v1883, %v2112
      %v2155 = vadd.f32 %v1884, %v2117
      %v2156 = vadd.f32 %v1885, %v2122
      %s2157 = scalar_lea.vmem %s1, 24
      %v2158 = vld [vmem:[%s2157] sm:$0x7]
      %v2160 = vsel %vm353, %v218, 0
      %v2163 = vsel %vm353, %v219, 0
      %v2166 = vsel %vm418, %v2158, 0
      %2168 = vmatprep.subr.mxu0 0.0
      %2169 = vmatpush1.msra.mxu0 %v2166
      %2170 = vmatprep.subr.mxu0 0.0
      %2171 = vmatpush1.msra.mxu0 0.0
      %2172 = vmatprep.subr.mxu0 0.0
      %2173 = vmatpush1.msra.mxu0 0.0
      %2174 = vmatprep.subr.mxu0 0.0
      %2175 = vmatpush1.msra.mxu0 0.0
      %2176 = vmatprep.subr.mxu0 0.0
      %2177 = vmatpush1.msra.mxu0 0.0
      %2178 = vmatprep.subr.mxu0 0.0
      %2179 = vmatpush1.msra.mxu0 0.0
      %2180 = vmatprep.subr.mxu0 0.0
      %2181 = vmatpush1.msra.mxu0 0.0
      %2182 = vmatprep.subr.mxu0 0.0
      %2183 = vmatpush1.msra.mxu0 0.0
      %2184 = vmatprep.subr.mxu0 0.0
      %2185 = vmatpush1.msra.mxu0 0.0
      %2186 = vmatprep.subr.mxu0 0.0
      %2187 = vmatpush1.msra.mxu0 0.0
      %2188 = vmatprep.subr.mxu0 0.0
      %2189 = vmatpush1.msra.mxu0 0.0
      %2190 = vmatprep.subr.mxu0 0.0
      %2191 = vmatpush1.msra.mxu0 0.0
      %2192 = vmatprep.subr.mxu0 0.0
      %2193 = vmatpush1.msra.mxu0 0.0
      %2194 = vmatprep.subr.mxu0 0.0
      %2195 = vmatpush1.msra.mxu0 0.0
      %2196 = vmatprep.subr.mxu0 0.0
      %2197 = vmatpush1.msra.mxu0 0.0
      %2198 = vmatprep.subr.mxu0 0.0
      %2199 = vmatpush1.msra.mxu0 0.0
      %2200 = vmatprep.subr.mxu0 0.0
      %2201 = vmatpush1.msra.mxu0 0.0
      %2202 = vmatprep.subr.mxu0 0.0
      %2203 = vmatpush1.msra.mxu0 0.0
      %2204 = vmatprep.subr.mxu0 0.0
      %2205 = vmatpush1.msra.mxu0 0.0
      %2206 = vmatprep.subr.mxu0 0.0
      %2207 = vmatpush1.msra.mxu0 0.0
      %2208 = vmatprep.subr.mxu0 0.0
      %2209 = vmatpush1.msra.mxu0 0.0
      %2210 = vmatprep.subr.mxu0 0.0
      %2211 = vmatpush1.msra.mxu0 0.0
      %2212 = vmatprep.subr.mxu0 0.0
      %2213 = vmatpush1.msra.mxu0 0.0
      %2214 = vmatprep.subr.mxu0 0.0
      %2215 = vmatpush1.msra.mxu0 0.0
      %2216 = vmatprep.subr.mxu0 0.0
      %2217 = vmatpush1.msra.mxu0 0.0
      %2218 = vmatprep.subr.mxu0 0.0
      %2219 = vmatpush1.msra.mxu0 0.0
      %2220 = vmatprep.subr.mxu0 0.0
      %2221 = vmatpush1.msra.mxu0 0.0
      %2222 = vmatprep.subr.mxu0 0.0
      %2223 = vmatpush1.msra.mxu0 0.0
      %2224 = vmatprep.subr.mxu0 0.0
      %2225 = vmatpush1.msra.mxu0 0.0
      %2226 = vmatprep.subr.mxu0 0.0
      %2227 = vmatpush1.msra.mxu0 0.0
      %2228 = vmatprep.subr.mxu0 0.0
      %2229 = vmatpush1.msra.mxu0 0.0
      %2230 = vmatprep.subr.mxu0 0.0
      %2231 = vmatpush1.msra.mxu0 0.0
      %2232 = vmatprep.mubr.f32.mxu0 0.0
      %2233 = vmatmul.mubr.f32.gmra.mrb[0].mxu0 %v655
      %v2234 = vpop.f32.mrb[0].mxu0
      %v2235 = vadd.f32 0.0, %v2234
      %v2236 = vpop.f32.mrb[0].mxu0
      %2237 = vmatprep.mubr.f32.mxu0 0.0
      %2238 = vmatmul.mubr.f32.gmra.mrb[0].mxu0 %v657
      %v2239 = vpop.f32.mrb[0].mxu0
      %v2240 = vadd.f32 0.0, %v2239
      %v2241 = vpop.f32.mrb[0].mxu0
      %2242 = vmatprep.mubr.f32.mxu0 0.0
      %2243 = vmatmul.mubr.f32.gmra.mrb[0].mxu0 %v659
      %v2244 = vpop.f32.mrb[0].mxu0
      %v2245 = vadd.f32 0.0, %v2244
      %v2246 = vpop.f32.mrb[0].mxu0
      %2247 = vmatprep.mubr.f32.mxu0 0.0
      %2248 = vmatmul.mubr.f32.gmra.mrb[0].mxu0 %v661
      %v2249 = vpop.f32.mrb[0].mxu0
      %v2250 = vadd.f32 0.0, %v2249
      %v2251 = vpop.f32.mrb[0].mxu0
      %2252 = vmatprep.mubr.f32.mxu0 0.0
      %2253 = vmatmul.mubr.f32.gmra.mrb[0].mxu0 %v663
      %v2254 = vpop.f32.mrb[0].mxu0
      %v2255 = vadd.f32 0.0, %v2254
      %v2256 = vpop.f32.mrb[0].mxu0
      %2257 = vmatprep.mubr.f32.mxu0 0.0
      %2258 = vmatmul.mubr.f32.gmra.mrb[0].mxu0 %v665
      %v2259 = vpop.f32.mrb[0].mxu0
      %v2260 = vadd.f32 0.0, %v2259
      %v2261 = vpop.f32.mrb[0].mxu0
      %2262 = vmatprep.mubr.f32.mxu0 0.0
      %2263 = vmatmul.mubr.f32.gmra.mrb[0].mxu0 %v667
      %v2264 = vpop.f32.mrb[0].mxu0
      %v2265 = vadd.f32 0.0, %v2264
      %v2266 = vpop.f32.mrb[0].mxu0
      %2267 = vmatprep.mubr.f32.mxu0 0.0
      %2268 = vmatmul.mubr.f32.gmra.mrb[0].mxu0 %v669
      %v2269 = vpop.f32.mrb[0].mxu0
      %v2270 = vadd.f32 0.0, %v2269
      %v2271 = vpop.f32.mrb[0].mxu0
      %2272 = vmatprep.mubr.f32.mxu0 0.0
      %2273 = vmatmul.mubr.f32.gmra.mrb[0].mxu0 %v671
      %v2274 = vpop.f32.mrb[0].mxu0
      %v2275 = vadd.f32 0.0, %v2274
      %v2276 = vpop.f32.mrb[0].mxu0
      %2277 = vmatprep.mubr.f32.mxu0 0.0
      %2278 = vmatmul.mubr.f32.gmra.mrb[0].mxu0 %v673
      %v2279 = vpop.f32.mrb[0].mxu0
      %v2280 = vadd.f32 0.0, %v2279
      %v2281 = vpop.f32.mrb[0].mxu0
      %2282 = vmatprep.mubr.f32.mxu0 0.0
      %2283 = vmatmul.mubr.f32.gmra.mrb[0].mxu0 %v675
      %v2284 = vpop.f32.mrb[0].mxu0
      %v2285 = vadd.f32 0.0, %v2284
      %v2286 = vpop.f32.mrb[0].mxu0
      %2287 = vmatprep.mubr.f32.mxu0 0.0
      %2288 = vmatmul.mubr.f32.gmra.mrb[0].mxu0 %v677
      %v2289 = vpop.f32.mrb[0].mxu0
      %v2290 = vadd.f32 0.0, %v2289
      %v2291 = vpop.f32.mrb[0].mxu0
      %2292 = vmatprep.mubr.f32.mxu0 0.0
      %2293 = vmatmul.mubr.f32.gmra.mrb[0].mxu0 %v679
      %v2294 = vpop.f32.mrb[0].mxu0
      %v2295 = vadd.f32 0.0, %v2294
      %v2296 = vpop.f32.mrb[0].mxu0
      %2297 = vmatprep.mubr.f32.mxu0 0.0
      %2298 = vmatmul.mubr.f32.gmra.mrb[0].mxu0 %v681
      %v2299 = vpop.f32.mrb[0].mxu0
      %v2300 = vadd.f32 0.0, %v2299
      %v2301 = vpop.f32.mrb[0].mxu0
      %2302 = vmatprep.mubr.f32.mxu0 0.0
      %2303 = vmatmul.mubr.f32.gmra.mrb[0].mxu0 %v683
      %v2304 = vpop.f32.mrb[0].mxu0
      %v2305 = vadd.f32 0.0, %v2304
      %v2306 = vpop.f32.mrb[0].mxu0
      %2307 = vmatprep.mubr.f32.mxu0 0.0
      %2308 = vmatmul.mubr.f32.gmra.mrb[0].mxu0 %v685
      %v2309 = vpop.f32.mrb[0].mxu0
      %v2310 = vadd.f32 0.0, %v2309
      %v2311 = vpop.f32.mrb[0].mxu0
      %2312 = vmatprep.mubr.f32.mxu0 0.0
      %2313 = vmatmul.mubr.f32.gmra.mrb[0].mxu0 %v687
      %v2314 = vpop.f32.mrb[0].mxu0
      %v2315 = vadd.f32 0.0, %v2314
      %v2316 = vpop.f32.mrb[0].mxu0
      %2317 = vmatprep.mubr.f32.mxu0 0.0
      %2318 = vmatmul.mubr.f32.gmra.mrb[0].mxu0 %v689
      %v2319 = vpop.f32.mrb[0].mxu0
      %v2320 = vadd.f32 0.0, %v2319
      %v2321 = vpop.f32.mrb[0].mxu0
      %2322 = vmatprep.mubr.f32.mxu0 0.0
      %2323 = vmatmul.mubr.f32.gmra.mrb[0].mxu0 %v691
      %v2324 = vpop.f32.mrb[0].mxu0
      %v2325 = vadd.f32 0.0, %v2324
      %v2326 = vpop.f32.mrb[0].mxu0
      %2327 = vmatprep.mubr.f32.mxu0 0.0
      %2328 = vmatmul.mubr.f32.gmra.mrb[0].mxu0 %v693
      %v2329 = vpop.f32.mrb[0].mxu0
      %v2330 = vadd.f32 0.0, %v2329
      %v2331 = vpop.f32.mrb[0].mxu0
      %2332 = vmatprep.mubr.f32.mxu0 0.0
      %2333 = vmatmul.mubr.f32.gmra.mrb[0].mxu0 %v695
      %v2334 = vpop.f32.mrb[0].mxu0
      %v2335 = vadd.f32 0.0, %v2334
      %v2336 = vpop.f32.mrb[0].mxu0
      %2337 = vmatprep.mubr.f32.mxu0 0.0
      %2338 = vmatmul.mubr.f32.gmra.mrb[0].mxu0 %v697
      %v2339 = vpop.f32.mrb[0].mxu0
      %v2340 = vadd.f32 0.0, %v2339
      %v2341 = vpop.f32.mrb[0].mxu0
      %2342 = vmatprep.mubr.f32.mxu0 0.0
      %2343 = vmatmul.mubr.f32.gmra.mrb[0].mxu0 %v699
      %v2344 = vpop.f32.mrb[0].mxu0
      %v2345 = vadd.f32 0.0, %v2344
      %v2346 = vpop.f32.mrb[0].mxu0
      %2347 = vmatprep.mubr.f32.mxu0 0.0
      %2348 = vmatmul.mubr.f32.gmra.mrb[0].mxu0 %v701
      %v2349 = vpop.f32.mrb[0].mxu0
      %v2350 = vadd.f32 0.0, %v2349
      %v2351 = vpop.f32.mrb[0].mxu0
      %2352 = vmatprep.mubr.f32.mxu0 0.0
      %2353 = vmatmul.mubr.f32.gmra.mrb[0].mxu0 %v703
      %v2354 = vpop.f32.mrb[0].mxu0
      %v2355 = vadd.f32 0.0, %v2354
      %v2356 = vpop.f32.mrb[0].mxu0
      %2357 = vmatprep.mubr.f32.mxu0 0.0
      %2358 = vmatmul.mubr.f32.gmra.mrb[0].mxu0 %v705
      %v2359 = vpop.f32.mrb[0].mxu0
      %v2360 = vadd.f32 0.0, %v2359
      %v2361 = vpop.f32.mrb[0].mxu0
      %2362 = vmatprep.mubr.f32.mxu0 0.0
      %2363 = vmatmul.mubr.f32.gmra.mrb[0].mxu0 %v707
      %v2364 = vpop.f32.mrb[0].mxu0
      %v2365 = vadd.f32 0.0, %v2364
      %v2366 = vpop.f32.mrb[0].mxu0
      %2367 = vmatprep.mubr.f32.mxu0 0.0
      %2368 = vmatmul.mubr.f32.gmra.mrb[0].mxu0 %v709
      %v2369 = vpop.f32.mrb[0].mxu0
      %v2370 = vadd.f32 0.0, %v2369
      %v2371 = vpop.f32.mrb[0].mxu0
      %2372 = vmatprep.mubr.f32.mxu0 0.0
      %2373 = vmatmul.mubr.f32.gmra.mrb[0].mxu0 %v1349
      %v2374 = vpop.f32.mrb[0].mxu0
      %v2375 = vadd.f32 0.0, %v2374
      %v2376 = vpop.f32.mrb[0].mxu0
      %2377 = vmatprep.mubr.f32.mxu0 0.0
      %2378 = vmatmul.mubr.f32.gmra.mrb[0].mxu0 %v1352
      %v2379 = vpop.f32.mrb[0].mxu0
      %v2380 = vadd.f32 0.0, %v2379
      %v2381 = vpop.f32.mrb[0].mxu0
      %2382 = vmatprep.mubr.f32.mxu0 0.0
      %2383 = vmatmul.mubr.f32.gmra.mrb[0].mxu0 %v2160
      %v2384 = vpop.f32.mrb[0].mxu0
      %v2385 = vadd.f32 0.0, %v2384
      %v2386 = vpop.f32.mrb[0].mxu0
      %2387 = vmatprep.mubr.f32.mxu0 0.0
      %2388 = vmatmul.mubr.f32.gmra.mrb[0].mxu0 %v2163
      %v2389 = vpop.f32.mrb[0].mxu0
      %v2390 = vadd.f32 0.0, %v2389
      %v2391 = vpop.f32.mrb[0].mxu0
      %2392 = vdwg.mxu0
      %v2393 = vadd.f32 %v2125, %v2235
      %v2394 = vadd.f32 %v2126, %v2240
      %v2395 = vadd.f32 %v2127, %v2245
      %v2396 = vadd.f32 %v2128, %v2250
      %v2397 = vadd.f32 %v2129, %v2255
      %v2398 = vadd.f32 %v2130, %v2260
      %v2399 = vadd.f32 %v2131, %v2265
      %v2400 = vadd.f32 %v2132, %v2270
      %v2401 = vadd.f32 %v2133, %v2275
      %v2402 = vadd.f32 %v2134, %v2280
      %v2403 = vadd.f32 %v2135, %v2285
      %v2404 = vadd.f32 %v2136, %v2290
      %v2405 = vadd.f32 %v2137, %v2295
      %v2406 = vadd.f32 %v2138, %v2300
      %v2407 = vadd.f32 %v2139, %v2305
      %v2408 = vadd.f32 %v2140, %v2310
      %v2409 = vadd.f32 %v2141, %v2315
      %v2410 = vadd.f32 %v2142, %v2320
      %v2411 = vadd.f32 %v2143, %v2325
      %v2412 = vadd.f32 %v2144, %v2330
      %v2413 = vadd.f32 %v2145, %v2335
      %v2414 = vadd.f32 %v2146, %v2340
      %v2415 = vadd.f32 %v2147, %v2345
      %v2416 = vadd.f32 %v2148, %v2350
      %v2417 = vadd.f32 %v2149, %v2355
      %v2418 = vadd.f32 %v2150, %v2360
      %v2419 = vadd.f32 %v2151, %v2365
      %v2420 = vadd.f32 %v2152, %v2370
      %v2421 = vadd.f32 %v2153, %v2375
      %v2422 = vadd.f32 %v2154, %v2380
      %v2423 = vadd.f32 %v2155, %v2385
      %v2424 = vadd.f32 %v2156, %v2390
      %v2426 = vrot.slane %v218, 1
      %v2427 = vrot.slane %v219, 1
      %v2428 = vsel %vm270, %v2426, %v2427
      %v2429 = vrot.slane %v220, 1
      %v2430 = vsel %vm270, %v2427, %v2429
      %s2431 = scalar_lea.vmem %s1, 28
      %v2432 = vld [vmem:[%s2431] sm:$0x7]
      %v2433 = vsel %vm353, %v2428, 0
      %v2435 = vsel %vm353, %v2430, 0
      %v2438 = vsel %vm418, %v2432, 0
      %2440 = vmatprep.subr.mxu0 0.0
      %2441 = vmatpush1.msra.mxu0 %v2438
      %2442 = vmatprep.subr.mxu0 0.0
      %2443 = vmatpush1.msra.mxu0 0.0
      %2444 = vmatprep.subr.mxu0 0.0
      %2445 = vmatpush1.msra.mxu0 0.0
      %2446 = vmatprep.subr.mxu0 0.0
      %2447 = vmatpush1.msra.mxu0 0.0
      %2448 = vmatprep.subr.mxu0 0.0
      %2449 = vmatpush1.msra.mxu0 0.0
      %2450 = vmatprep.subr.mxu0 0.0
      %2451 = vmatpush1.msra.mxu0 0.0
      %2452 = vmatprep.subr.mxu0 0.0
      %2453 = vmatpush1.msra.mxu0 0.0
      %2454 = vmatprep.subr.mxu0 0.0
      %2455 = vmatpush1.msra.mxu0 0.0
      %2456 = vmatprep.subr.mxu0 0.0
      %2457 = vmatpush1.msra.mxu0 0.0
      %2458 = vmatprep.subr.mxu0 0.0
      %2459 = vmatpush1.msra.mxu0 0.0
      %2460 = vmatprep.subr.mxu0 0.0
      %2461 = vmatpush1.msra.mxu0 0.0
      %2462 = vmatprep.subr.mxu0 0.0
      %2463 = vmatpush1.msra.mxu0 0.0
      %2464 = vmatprep.subr.mxu0 0.0
      %2465 = vmatpush1.msra.mxu0 0.0
      %2466 = vmatprep.subr.mxu0 0.0
      %2467 = vmatpush1.msra.mxu0 0.0
      %2468 = vmatprep.subr.mxu0 0.0
      %2469 = vmatpush1.msra.mxu0 0.0
      %2470 = vmatprep.subr.mxu0 0.0
      %2471 = vmatpush1.msra.mxu0 0.0
      %2472 = vmatprep.subr.mxu0 0.0
      %2473 = vmatpush1.msra.mxu0 0.0
      %2474 = vmatprep.subr.mxu0 0.0
      %2475 = vmatpush1.msra.mxu0 0.0
      %2476 = vmatprep.subr.mxu0 0.0
      %2477 = vmatpush1.msra.mxu0 0.0
      %2478 = vmatprep.subr.mxu0 0.0
      %2479 = vmatpush1.msra.mxu0 0.0
      %2480 = vmatprep.subr.mxu0 0.0
      %2481 = vmatpush1.msra.mxu0 0.0
      %2482 = vmatprep.subr.mxu0 0.0
      %2483 = vmatpush1.msra.mxu0 0.0
      %2484 = vmatprep.subr.mxu0 0.0
      %2485 = vmatpush1.msra.mxu0 0.0
      %2486 = vmatprep.subr.mxu0 0.0
      %2487 = vmatpush1.msra.mxu0 0.0
      %2488 = vmatprep.subr.mxu0 0.0
      %2489 = vmatpush1.msra.mxu0 0.0
      %2490 = vmatprep.subr.mxu0 0.0
      %2491 = vmatpush1.msra.mxu0 0.0
      %2492 = vmatprep.subr.mxu0 0.0
      %2493 = vmatpush1.msra.mxu0 0.0
      %2494 = vmatprep.subr.mxu0 0.0
      %2495 = vmatpush1.msra.mxu0 0.0
      %2496 = vmatprep.subr.mxu0 0.0
      %2497 = vmatpush1.msra.mxu0 0.0
      %2498 = vmatprep.subr.mxu0 0.0
      %2499 = vmatpush1.msra.mxu0 0.0
      %2500 = vmatprep.subr.mxu0 0.0
      %2501 = vmatpush1.msra.mxu0 0.0
      %2502 = vmatprep.subr.mxu0 0.0
      %2503 = vmatpush1.msra.mxu0 0.0
      %2504 = vmatprep.mubr.f32.mxu0 0.0
      %2505 = vmatmul.mubr.f32.gmra.mrb[0].mxu0 %v362
      %v2506 = vpop.f32.mrb[0].mxu0
      %v2507 = vadd.f32 0.0, %v2506
      %v2508 = vpop.f32.mrb[0].mxu0
      %2509 = vmatprep.mubr.f32.mxu0 0.0
      %2510 = vmatmul.mubr.f32.gmra.mrb[0].mxu0 %v364
      %v2511 = vpop.f32.mrb[0].mxu0
      %v2512 = vadd.f32 0.0, %v2511
      %v2513 = vpop.f32.mrb[0].mxu0
      %2514 = vmatprep.mubr.f32.mxu0 0.0
      %2515 = vmatmul.mubr.f32.gmra.mrb[0].mxu0 %v366
      %v2516 = vpop.f32.mrb[0].mxu0
      %v2517 = vadd.f32 0.0, %v2516
      %v2518 = vpop.f32.mrb[0].mxu0
      %2519 = vmatprep.mubr.f32.mxu0 0.0
      %2520 = vmatmul.mubr.f32.gmra.mrb[0].mxu0 %v368
      %v2521 = vpop.f32.mrb[0].mxu0
      %v2522 = vadd.f32 0.0, %v2521
      %v2523 = vpop.f32.mrb[0].mxu0
      %2524 = vmatprep.mubr.f32.mxu0 0.0
      %2525 = vmatmul.mubr.f32.gmra.mrb[0].mxu0 %v370
      %v2526 = vpop.f32.mrb[0].mxu0
      %v2527 = vadd.f32 0.0, %v2526
      %v2528 = vpop.f32.mrb[0].mxu0
      %2529 = vmatprep.mubr.f32.mxu0 0.0
      %2530 = vmatmul.mubr.f32.gmra.mrb[0].mxu0 %v372
      %v2531 = vpop.f32.mrb[0].mxu0
      %v2532 = vadd.f32 0.0, %v2531
      %v2533 = vpop.f32.mrb[0].mxu0
      %2534 = vmatprep.mubr.f32.mxu0 0.0
      %2535 = vmatmul.mubr.f32.gmra.mrb[0].mxu0 %v374
      %v2536 = vpop.f32.mrb[0].mxu0
      %v2537 = vadd.f32 0.0, %v2536
      %v2538 = vpop.f32.mrb[0].mxu0
      %2539 = vmatprep.mubr.f32.mxu0 0.0
      %2540 = vmatmul.mubr.f32.gmra.mrb[0].mxu0 %v376
      %v2541 = vpop.f32.mrb[0].mxu0
      %v2542 = vadd.f32 0.0, %v2541
      %v2543 = vpop.f32.mrb[0].mxu0
      %2544 = vmatprep.mubr.f32.mxu0 0.0
      %2545 = vmatmul.mubr.f32.gmra.mrb[0].mxu0 %v378
      %v2546 = vpop.f32.mrb[0].mxu0
      %v2547 = vadd.f32 0.0, %v2546
      %v2548 = vpop.f32.mrb[0].mxu0
      %2549 = vmatprep.mubr.f32.mxu0 0.0
      %2550 = vmatmul.mubr.f32.gmra.mrb[0].mxu0 %v380
      %v2551 = vpop.f32.mrb[0].mxu0
      %v2552 = vadd.f32 0.0, %v2551
      %v2553 = vpop.f32.mrb[0].mxu0
      %2554 = vmatprep.mubr.f32.mxu0 0.0
      %2555 = vmatmul.mubr.f32.gmra.mrb[0].mxu0 %v382
      %v2556 = vpop.f32.mrb[0].mxu0
      %v2557 = vadd.f32 0.0, %v2556
      %v2558 = vpop.f32.mrb[0].mxu0
      %2559 = vmatprep.mubr.f32.mxu0 0.0
      %2560 = vmatmul.mubr.f32.gmra.mrb[0].mxu0 %v384
      %v2561 = vpop.f32.mrb[0].mxu0
      %v2562 = vadd.f32 0.0, %v2561
      %v2563 = vpop.f32.mrb[0].mxu0
      %2564 = vmatprep.mubr.f32.mxu0 0.0
      %2565 = vmatmul.mubr.f32.gmra.mrb[0].mxu0 %v386
      %v2566 = vpop.f32.mrb[0].mxu0
      %v2567 = vadd.f32 0.0, %v2566
      %v2568 = vpop.f32.mrb[0].mxu0
      %2569 = vmatprep.mubr.f32.mxu0 0.0
      %2570 = vmatmul.mubr.f32.gmra.mrb[0].mxu0 %v388
      %v2571 = vpop.f32.mrb[0].mxu0
      %v2572 = vadd.f32 0.0, %v2571
      %v2573 = vpop.f32.mrb[0].mxu0
      %2574 = vmatprep.mubr.f32.mxu0 0.0
      %2575 = vmatmul.mubr.f32.gmra.mrb[0].mxu0 %v390
      %v2576 = vpop.f32.mrb[0].mxu0
      %v2577 = vadd.f32 0.0, %v2576
      %v2578 = vpop.f32.mrb[0].mxu0
      %2579 = vmatprep.mubr.f32.mxu0 0.0
      %2580 = vmatmul.mubr.f32.gmra.mrb[0].mxu0 %v392
      %v2581 = vpop.f32.mrb[0].mxu0
      %v2582 = vadd.f32 0.0, %v2581
      %v2583 = vpop.f32.mrb[0].mxu0
      %2584 = vmatprep.mubr.f32.mxu0 0.0
      %2585 = vmatmul.mubr.f32.gmra.mrb[0].mxu0 %v394
      %v2586 = vpop.f32.mrb[0].mxu0
      %v2587 = vadd.f32 0.0, %v2586
      %v2588 = vpop.f32.mrb[0].mxu0
      %2589 = vmatprep.mubr.f32.mxu0 0.0
      %2590 = vmatmul.mubr.f32.gmra.mrb[0].mxu0 %v396
      %v2591 = vpop.f32.mrb[0].mxu0
      %v2592 = vadd.f32 0.0, %v2591
      %v2593 = vpop.f32.mrb[0].mxu0
      %2594 = vmatprep.mubr.f32.mxu0 0.0
      %2595 = vmatmul.mubr.f32.gmra.mrb[0].mxu0 %v398
      %v2596 = vpop.f32.mrb[0].mxu0
      %v2597 = vadd.f32 0.0, %v2596
      %v2598 = vpop.f32.mrb[0].mxu0
      %2599 = vmatprep.mubr.f32.mxu0 0.0
      %2600 = vmatmul.mubr.f32.gmra.mrb[0].mxu0 %v400
      %v2601 = vpop.f32.mrb[0].mxu0
      %v2602 = vadd.f32 0.0, %v2601
      %v2603 = vpop.f32.mrb[0].mxu0
      %2604 = vmatprep.mubr.f32.mxu0 0.0
      %2605 = vmatmul.mubr.f32.gmra.mrb[0].mxu0 %v402
      %v2606 = vpop.f32.mrb[0].mxu0
      %v2607 = vadd.f32 0.0, %v2606
      %v2608 = vpop.f32.mrb[0].mxu0
      %2609 = vmatprep.mubr.f32.mxu0 0.0
      %2610 = vmatmul.mubr.f32.gmra.mrb[0].mxu0 %v404
      %v2611 = vpop.f32.mrb[0].mxu0
      %v2612 = vadd.f32 0.0, %v2611
      %v2613 = vpop.f32.mrb[0].mxu0
      %2614 = vmatprep.mubr.f32.mxu0 0.0
      %2615 = vmatmul.mubr.f32.gmra.mrb[0].mxu0 %v406
      %v2616 = vpop.f32.mrb[0].mxu0
      %v2617 = vadd.f32 0.0, %v2616
      %v2618 = vpop.f32.mrb[0].mxu0
      %2619 = vmatprep.mubr.f32.mxu0 0.0
      %2620 = vmatmul.mubr.f32.gmra.mrb[0].mxu0 %v408
      %v2621 = vpop.f32.mrb[0].mxu0
      %v2622 = vadd.f32 0.0, %v2621
      %v2623 = vpop.f32.mrb[0].mxu0
      %2624 = vmatprep.mubr.f32.mxu0 0.0
      %2625 = vmatmul.mubr.f32.gmra.mrb[0].mxu0 %v410
      %v2626 = vpop.f32.mrb[0].mxu0
      %v2627 = vadd.f32 0.0, %v2626
      %v2628 = vpop.f32.mrb[0].mxu0
      %2629 = vmatprep.mubr.f32.mxu0 0.0
      %2630 = vmatmul.mubr.f32.gmra.mrb[0].mxu0 %v412
      %v2631 = vpop.f32.mrb[0].mxu0
      %v2632 = vadd.f32 0.0, %v2631
      %v2633 = vpop.f32.mrb[0].mxu0
      %2634 = vmatprep.mubr.f32.mxu0 0.0
      %2635 = vmatmul.mubr.f32.gmra.mrb[0].mxu0 %v414
      %v2636 = vpop.f32.mrb[0].mxu0
      %v2637 = vadd.f32 0.0, %v2636
      %v2638 = vpop.f32.mrb[0].mxu0
      %2639 = vmatprep.mubr.f32.mxu0 0.0
      %2640 = vmatmul.mubr.f32.gmra.mrb[0].mxu0 %v416
      %v2641 = vpop.f32.mrb[0].mxu0
      %v2642 = vadd.f32 0.0, %v2641
      %v2643 = vpop.f32.mrb[0].mxu0
      %2644 = vmatprep.mubr.f32.mxu0 0.0
      %2645 = vmatmul.mubr.f32.gmra.mrb[0].mxu0 %v1622
      %v2646 = vpop.f32.mrb[0].mxu0
      %v2647 = vadd.f32 0.0, %v2646
      %v2648 = vpop.f32.mrb[0].mxu0
      %2649 = vmatprep.mubr.f32.mxu0 0.0
      %2650 = vmatmul.mubr.f32.gmra.mrb[0].mxu0 %v1624
      %v2651 = vpop.f32.mrb[0].mxu0
      %v2652 = vadd.f32 0.0, %v2651
      %v2653 = vpop.f32.mrb[0].mxu0
      %2654 = vmatprep.mubr.f32.mxu0 0.0
      %2655 = vmatmul.mubr.f32.gmra.mrb[0].mxu0 %v2433
      %v2656 = vpop.f32.mrb[0].mxu0
      %v2657 = vadd.f32 0.0, %v2656
      %v2658 = vpop.f32.mrb[0].mxu0
      %2659 = vmatprep.mubr.f32.mxu0 0.0
      %2660 = vmatmul.mubr.f32.gmra.mrb[0].mxu0 %v2435
      %v2661 = vpop.f32.mrb[0].mxu0
      %v2662 = vadd.f32 0.0, %v2661
      %v2663 = vpop.f32.mrb[0].mxu0
      %2664 = vdwg.mxu0
      %v2665 = vadd.f32 %v2393, %v2507
      %v2666 = vadd.f32 %v2394, %v2512
      %v2667 = vadd.f32 %v2395, %v2517
      %v2668 = vadd.f32 %v2396, %v2522
      %v2669 = vadd.f32 %v2397, %v2527
      %v2670 = vadd.f32 %v2398, %v2532
      %v2671 = vadd.f32 %v2399, %v2537
      %v2672 = vadd.f32 %v2400, %v2542
      %v2673 = vadd.f32 %v2401, %v2547
      %v2674 = vadd.f32 %v2402, %v2552
      %v2675 = vadd.f32 %v2403, %v2557
      %v2676 = vadd.f32 %v2404, %v2562
      %v2677 = vadd.f32 %v2405, %v2567
      %v2678 = vadd.f32 %v2406, %v2572
      %v2679 = vadd.f32 %v2407, %v2577
      %v2680 = vadd.f32 %v2408, %v2582
      %v2681 = vadd.f32 %v2409, %v2587
      %v2682 = vadd.f32 %v2410, %v2592
      %v2683 = vadd.f32 %v2411, %v2597
      %v2684 = vadd.f32 %v2412, %v2602
      %v2685 = vadd.f32 %v2413, %v2607
      %v2686 = vadd.f32 %v2414, %v2612
      %v2687 = vadd.f32 %v2415, %v2617
      %v2688 = vadd.f32 %v2416, %v2622
      %v2689 = vadd.f32 %v2417, %v2627
      %v2690 = vadd.f32 %v2418, %v2632
      %v2691 = vadd.f32 %v2419, %v2637
      %v2692 = vadd.f32 %v2420, %v2642
      %v2693 = vadd.f32 %v2421, %v2647
      %v2694 = vadd.f32 %v2422, %v2652
      %v2695 = vadd.f32 %v2423, %v2657
      %v2696 = vadd.f32 %v2424, %v2662
      %v2697 = vrot.slane %v218, 2
      %v2698 = vrot.slane %v219, 2
      %v2699 = vsel %vm939, %v2697, %v2698
      %v2700 = vrot.slane %v220, 2
      %v2701 = vsel %vm939, %v2698, %v2700
      %s2702 = scalar_lea.vmem %s1, 32
      %v2703 = vld [vmem:[%s2702] sm:$0x7]
      %v2704 = vsel %vm353, %v2699, 0
      %v2706 = vsel %vm353, %v2701, 0
      %v2709 = vsel %vm418, %v2703, 0
      %2711 = vmatprep.subr.mxu0 0.0
      %2712 = vmatpush1.msra.mxu0 %v2709
      %2713 = vmatprep.subr.mxu0 0.0
      %2714 = vmatpush1.msra.mxu0 0.0
      %2715 = vmatprep.subr.mxu0 0.0
      %2716 = vmatpush1.msra.mxu0 0.0
      %2717 = vmatprep.subr.mxu0 0.0
      %2718 = vmatpush1.msra.mxu0 0.0
      %2719 = vmatprep.subr.mxu0 0.0
      %2720 = vmatpush1.msra.mxu0 0.0
      %2721 = vmatprep.subr.mxu0 0.0
      %2722 = vmatpush1.msra.mxu0 0.0
      %2723 = vmatprep.subr.mxu0 0.0
      %2724 = vmatpush1.msra.mxu0 0.0
      %2725 = vmatprep.subr.mxu0 0.0
      %2726 = vmatpush1.msra.mxu0 0.0
      %2727 = vmatprep.subr.mxu0 0.0
      %2728 = vmatpush1.msra.mxu0 0.0
      %2729 = vmatprep.subr.mxu0 0.0
      %2730 = vmatpush1.msra.mxu0 0.0
      %2731 = vmatprep.subr.mxu0 0.0
      %2732 = vmatpush1.msra.mxu0 0.0
      %2733 = vmatprep.subr.mxu0 0.0
      %2734 = vmatpush1.msra.mxu0 0.0
      %2735 = vmatprep.subr.mxu0 0.0
      %2736 = vmatpush1.msra.mxu0 0.0
      %2737 = vmatprep.subr.mxu0 0.0
      %2738 = vmatpush1.msra.mxu0 0.0
      %2739 = vmatprep.subr.mxu0 0.0
      %2740 = vmatpush1.msra.mxu0 0.0
      %2741 = vmatprep.subr.mxu0 0.0
      %2742 = vmatpush1.msra.mxu0 0.0
      %2743 = vmatprep.subr.mxu0 0.0
      %2744 = vmatpush1.msra.mxu0 0.0
      %2745 = vmatprep.subr.mxu0 0.0
      %2746 = vmatpush1.msra.mxu0 0.0
      %2747 = vmatprep.subr.mxu0 0.0
      %2748 = vmatpush1.msra.mxu0 0.0
      %2749 = vmatprep.subr.mxu0 0.0
      %2750 = vmatpush1.msra.mxu0 0.0
      %2751 = vmatprep.subr.mxu0 0.0
      %2752 = vmatpush1.msra.mxu0 0.0
      %2753 = vmatprep.subr.mxu0 0.0
      %2754 = vmatpush1.msra.mxu0 0.0
      %2755 = vmatprep.subr.mxu0 0.0
      %2756 = vmatpush1.msra.mxu0 0.0
      %2757 = vmatprep.subr.mxu0 0.0
      %2758 = vmatpush1.msra.mxu0 0.0
      %2759 = vmatprep.subr.mxu0 0.0
      %2760 = vmatpush1.msra.mxu0 0.0
      %2761 = vmatprep.subr.mxu0 0.0
      %2762 = vmatpush1.msra.mxu0 0.0
      %2763 = vmatprep.subr.mxu0 0.0
      %2764 = vmatpush1.msra.mxu0 0.0
      %2765 = vmatprep.subr.mxu0 0.0
      %2766 = vmatpush1.msra.mxu0 0.0
      %2767 = vmatprep.subr.mxu0 0.0
      %2768 = vmatpush1.msra.mxu0 0.0
      %2769 = vmatprep.subr.mxu0 0.0
      %2770 = vmatpush1.msra.mxu0 0.0
      %2771 = vmatprep.subr.mxu0 0.0
      %2772 = vmatpush1.msra.mxu0 0.0
      %2773 = vmatprep.subr.mxu0 0.0
      %2774 = vmatpush1.msra.mxu0 0.0
      %2775 = vmatprep.mubr.f32.mxu0 0.0
      %2776 = vmatmul.mubr.f32.gmra.mrb[0].mxu0 %v1030
      %v2777 = vpop.f32.mrb[0].mxu0
      %v2778 = vadd.f32 0.0, %v2777
      %v2779 = vpop.f32.mrb[0].mxu0
      %2780 = vmatprep.mubr.f32.mxu0 0.0
      %2781 = vmatmul.mubr.f32.gmra.mrb[0].mxu0 %v1032
      %v2782 = vpop.f32.mrb[0].mxu0
      %v2783 = vadd.f32 0.0, %v2782
      %v2784 = vpop.f32.mrb[0].mxu0
      %2785 = vmatprep.mubr.f32.mxu0 0.0
      %2786 = vmatmul.mubr.f32.gmra.mrb[0].mxu0 %v1034
      %v2787 = vpop.f32.mrb[0].mxu0
      %v2788 = vadd.f32 0.0, %v2787
      %v2789 = vpop.f32.mrb[0].mxu0
      %2790 = vmatprep.mubr.f32.mxu0 0.0
      %2791 = vmatmul.mubr.f32.gmra.mrb[0].mxu0 %v1036
      %v2792 = vpop.f32.mrb[0].mxu0
      %v2793 = vadd.f32 0.0, %v2792
      %v2794 = vpop.f32.mrb[0].mxu0
      %2795 = vmatprep.mubr.f32.mxu0 0.0
      %2796 = vmatmul.mubr.f32.gmra.mrb[0].mxu0 %v1038
      %v2797 = vpop.f32.mrb[0].mxu0
      %v2798 = vadd.f32 0.0, %v2797
      %v2799 = vpop.f32.mrb[0].mxu0
      %2800 = vmatprep.mubr.f32.mxu0 0.0
      %2801 = vmatmul.mubr.f32.gmra.mrb[0].mxu0 %v1040
      %v2802 = vpop.f32.mrb[0].mxu0
      %v2803 = vadd.f32 0.0, %v2802
      %v2804 = vpop.f32.mrb[0].mxu0
      %2805 = vmatprep.mubr.f32.mxu0 0.0
      %2806 = vmatmul.mubr.f32.gmra.mrb[0].mxu0 %v1042
      %v2807 = vpop.f32.mrb[0].mxu0
      %v2808 = vadd.f32 0.0, %v2807
      %v2809 = vpop.f32.mrb[0].mxu0
      %2810 = vmatprep.mubr.f32.mxu0 0.0
      %2811 = vmatmul.mubr.f32.gmra.mrb[0].mxu0 %v1044
      %v2812 = vpop.f32.mrb[0].mxu0
      %v2813 = vadd.f32 0.0, %v2812
      %v2814 = vpop.f32.mrb[0].mxu0
      %2815 = vmatprep.mubr.f32.mxu0 0.0
      %2816 = vmatmul.mubr.f32.gmra.mrb[0].mxu0 %v1046
      %v2817 = vpop.f32.mrb[0].mxu0
      %v2818 = vadd.f32 0.0, %v2817
      %v2819 = vpop.f32.mrb[0].mxu0
      %2820 = vmatprep.mubr.f32.mxu0 0.0
      %2821 = vmatmul.mubr.f32.gmra.mrb[0].mxu0 %v1048
      %v2822 = vpop.f32.mrb[0].mxu0
      %v2823 = vadd.f32 0.0, %v2822
      %v2824 = vpop.f32.mrb[0].mxu0
      %2825 = vmatprep.mubr.f32.mxu0 0.0
      %2826 = vmatmul.mubr.f32.gmra.mrb[0].mxu0 %v1050
      %v2827 = vpop.f32.mrb[0].mxu0
      %v2828 = vadd.f32 0.0, %v2827
      %v2829 = vpop.f32.mrb[0].mxu0
      %2830 = vmatprep.mubr.f32.mxu0 0.0
      %2831 = vmatmul.mubr.f32.gmra.mrb[0].mxu0 %v1052
      %v2832 = vpop.f32.mrb[0].mxu0
      %v2833 = vadd.f32 0.0, %v2832
      %v2834 = vpop.f32.mrb[0].mxu0
      %2835 = vmatprep.mubr.f32.mxu0 0.0
      %2836 = vmatmul.mubr.f32.gmra.mrb[0].mxu0 %v1054
      %v2837 = vpop.f32.mrb[0].mxu0
      %v2838 = vadd.f32 0.0, %v2837
      %v2839 = vpop.f32.mrb[0].mxu0
      %2840 = vmatprep.mubr.f32.mxu0 0.0
      %2841 = vmatmul.mubr.f32.gmra.mrb[0].mxu0 %v1056
      %v2842 = vpop.f32.mrb[0].mxu0
      %v2843 = vadd.f32 0.0, %v2842
      %v2844 = vpop.f32.mrb[0].mxu0
      %2845 = vmatprep.mubr.f32.mxu0 0.0
      %2846 = vmatmul.mubr.f32.gmra.mrb[0].mxu0 %v1058
      %v2847 = vpop.f32.mrb[0].mxu0
      %v2848 = vadd.f32 0.0, %v2847
      %v2849 = vpop.f32.mrb[0].mxu0
      %2850 = vmatprep.mubr.f32.mxu0 0.0
      %2851 = vmatmul.mubr.f32.gmra.mrb[0].mxu0 %v1060
      %v2852 = vpop.f32.mrb[0].mxu0
      %v2853 = vadd.f32 0.0, %v2852
      %v2854 = vpop.f32.mrb[0].mxu0
      %2855 = vmatprep.mubr.f32.mxu0 0.0
      %2856 = vmatmul.mubr.f32.gmra.mrb[0].mxu0 %v1062
      %v2857 = vpop.f32.mrb[0].mxu0
      %v2858 = vadd.f32 0.0, %v2857
      %v2859 = vpop.f32.mrb[0].mxu0
      %2860 = vmatprep.mubr.f32.mxu0 0.0
      %2861 = vmatmul.mubr.f32.gmra.mrb[0].mxu0 %v1064
      %v2862 = vpop.f32.mrb[0].mxu0
      %v2863 = vadd.f32 0.0, %v2862
      %v2864 = vpop.f32.mrb[0].mxu0
      %2865 = vmatprep.mubr.f32.mxu0 0.0
      %2866 = vmatmul.mubr.f32.gmra.mrb[0].mxu0 %v1066
      %v2867 = vpop.f32.mrb[0].mxu0
      %v2868 = vadd.f32 0.0, %v2867
      %v2869 = vpop.f32.mrb[0].mxu0
      %2870 = vmatprep.mubr.f32.mxu0 0.0
      %2871 = vmatmul.mubr.f32.gmra.mrb[0].mxu0 %v1068
      %v2872 = vpop.f32.mrb[0].mxu0
      %v2873 = vadd.f32 0.0, %v2872
      %v2874 = vpop.f32.mrb[0].mxu0
      %2875 = vmatprep.mubr.f32.mxu0 0.0
      %2876 = vmatmul.mubr.f32.gmra.mrb[0].mxu0 %v1070
      %v2877 = vpop.f32.mrb[0].mxu0
      %v2878 = vadd.f32 0.0, %v2877
      %v2879 = vpop.f32.mrb[0].mxu0
      %2880 = vmatprep.mubr.f32.mxu0 0.0
      %2881 = vmatmul.mubr.f32.gmra.mrb[0].mxu0 %v1072
      %v2882 = vpop.f32.mrb[0].mxu0
      %v2883 = vadd.f32 0.0, %v2882
      %v2884 = vpop.f32.mrb[0].mxu0
      %2885 = vmatprep.mubr.f32.mxu0 0.0
      %2886 = vmatmul.mubr.f32.gmra.mrb[0].mxu0 %v1074
      %v2887 = vpop.f32.mrb[0].mxu0
      %v2888 = vadd.f32 0.0, %v2887
      %v2889 = vpop.f32.mrb[0].mxu0
      %2890 = vmatprep.mubr.f32.mxu0 0.0
      %2891 = vmatmul.mubr.f32.gmra.mrb[0].mxu0 %v1076
      %v2892 = vpop.f32.mrb[0].mxu0
      %v2893 = vadd.f32 0.0, %v2892
      %v2894 = vpop.f32.mrb[0].mxu0
      %2895 = vmatprep.mubr.f32.mxu0 0.0
      %2896 = vmatmul.mubr.f32.gmra.mrb[0].mxu0 %v1078
      %v2897 = vpop.f32.mrb[0].mxu0
      %v2898 = vadd.f32 0.0, %v2897
      %v2899 = vpop.f32.mrb[0].mxu0
      %2900 = vmatprep.mubr.f32.mxu0 0.0
      %2901 = vmatmul.mubr.f32.gmra.mrb[0].mxu0 %v1080
      %v2902 = vpop.f32.mrb[0].mxu0
      %v2903 = vadd.f32 0.0, %v2902
      %v2904 = vpop.f32.mrb[0].mxu0
      %2905 = vmatprep.mubr.f32.mxu0 0.0
      %2906 = vmatmul.mubr.f32.gmra.mrb[0].mxu0 %v1082
      %v2907 = vpop.f32.mrb[0].mxu0
      %v2908 = vadd.f32 0.0, %v2907
      %v2909 = vpop.f32.mrb[0].mxu0
      %2910 = vmatprep.mubr.f32.mxu0 0.0
      %2911 = vmatmul.mubr.f32.gmra.mrb[0].mxu0 %v1084
      %v2912 = vpop.f32.mrb[0].mxu0
      %v2913 = vadd.f32 0.0, %v2912
      %v2914 = vpop.f32.mrb[0].mxu0
      %2915 = vmatprep.mubr.f32.mxu0 0.0
      %2916 = vmatmul.mubr.f32.gmra.mrb[0].mxu0 %v1893
      %v2917 = vpop.f32.mrb[0].mxu0
      %v2918 = vadd.f32 0.0, %v2917
      %v2919 = vpop.f32.mrb[0].mxu0
      %2920 = vmatprep.mubr.f32.mxu0 0.0
      %2921 = vmatmul.mubr.f32.gmra.mrb[0].mxu0 %v1895
      %v2922 = vpop.f32.mrb[0].mxu0
      %v2923 = vadd.f32 0.0, %v2922
      %v2924 = vpop.f32.mrb[0].mxu0
      %2925 = vmatprep.mubr.f32.mxu0 0.0
      %2926 = vmatmul.mubr.f32.gmra.mrb[0].mxu0 %v2704
      %v2927 = vpop.f32.mrb[0].mxu0
      %v2928 = vadd.f32 0.0, %v2927
      %v2929 = vpop.f32.mrb[0].mxu0
      %2930 = vmatprep.mubr.f32.mxu0 0.0
      %2931 = vmatmul.mubr.f32.gmra.mrb[0].mxu0 %v2706
      %v2932 = vpop.f32.mrb[0].mxu0
      %v2933 = vadd.f32 0.0, %v2932
      %v2934 = vpop.f32.mrb[0].mxu0
      %2935 = vdwg.mxu0
      %v2936 = vadd.f32 %v2665, %v2778
      %v2937 = vadd.f32 %v2666, %v2783
      %v2938 = vadd.f32 %v2667, %v2788
      %v2939 = vadd.f32 %v2668, %v2793
      %v2940 = vadd.f32 %v2669, %v2798
      %v2941 = vadd.f32 %v2670, %v2803
      %v2942 = vadd.f32 %v2671, %v2808
      %v2943 = vadd.f32 %v2672, %v2813
      %v2944 = vadd.f32 %v2673, %v2818
      %v2945 = vadd.f32 %v2674, %v2823
      %v2946 = vadd.f32 %v2675, %v2828
      %v2947 = vadd.f32 %v2676, %v2833
      %v2948 = vadd.f32 %v2677, %v2838
      %v2949 = vadd.f32 %v2678, %v2843
      %v2950 = vadd.f32 %v2679, %v2848
      %v2951 = vadd.f32 %v2680, %v2853
      %v2952 = vadd.f32 %v2681, %v2858
      %v2953 = vadd.f32 %v2682, %v2863
      %v2954 = vadd.f32 %v2683, %v2868
      %v2955 = vadd.f32 %v2684, %v2873
      %v2956 = vadd.f32 %v2685, %v2878
      %v2957 = vadd.f32 %v2686, %v2883
      %v2958 = vadd.f32 %v2687, %v2888
      %v2959 = vadd.f32 %v2688, %v2893
      %v2960 = vadd.f32 %v2689, %v2898
      %v2961 = vadd.f32 %v2690, %v2903
      %v2962 = vadd.f32 %v2691, %v2908
      %v2963 = vadd.f32 %v2692, %v2913
      %v2964 = vadd.f32 %v2693, %v2918
      %v2965 = vadd.f32 %v2694, %v2923
      %v2966 = vadd.f32 %v2695, %v2928
      %v2967 = vadd.f32 %v2696, %v2933
      %v2968 = vld [vmem:[%s2] sm:$0x1]
      %v2970 = vlaneseq
      %v2971 = vshrl.u32 %v2970, 7
      %v2972 = vsub.s32 0, %v2971
      %v2973 = vrot.slane %v2968, %v2972
      %v2975 = vadd.f32 %v2936, %v2973
      %v2976 = vadd.f32 %v2937, %v2973
      %v2977 = vadd.f32 %v2938, %v2973
      %v2978 = vadd.f32 %v2939, %v2973
      %v2979 = vadd.f32 %v2940, %v2973
      %v2980 = vadd.f32 %v2941, %v2973
      %v2981 = vadd.f32 %v2942, %v2973
      %v2982 = vadd.f32 %v2943, %v2973
      %v2983 = vadd.f32 %v2944, %v2973
      %v2984 = vadd.f32 %v2945, %v2973
      %v2985 = vadd.f32 %v2946, %v2973
      %v2986 = vadd.f32 %v2947, %v2973
      %v2987 = vadd.f32 %v2948, %v2973
      %v2988 = vadd.f32 %v2949, %v2973
      %v2989 = vadd.f32 %v2950, %v2973
      %v2990 = vadd.f32 %v2951, %v2973
      %v2991 = vadd.f32 %v2952, %v2973
      %v2992 = vadd.f32 %v2953, %v2973
      %v2993 = vadd.f32 %v2954, %v2973
      %v2994 = vadd.f32 %v2955, %v2973
      %v2995 = vadd.f32 %v2956, %v2973
      %v2996 = vadd.f32 %v2957, %v2973
      %v2997 = vadd.f32 %v2958, %v2973
      %v2998 = vadd.f32 %v2959, %v2973
      %v2999 = vadd.f32 %v2960, %v2973
      %v3000 = vadd.f32 %v2961, %v2973
      %v3001 = vadd.f32 %v2962, %v2973
      %v3002 = vadd.f32 %v2963, %v2973
      %v3003 = vadd.f32 %v2964, %v2973
      %v3004 = vadd.f32 %v2965, %v2973
      %v3005 = vadd.f32 %v2966, %v2973
      %v3006 = vadd.f32 %v2967, %v2973
      %v3007 = vmax.f32 %v2975, 0.0
      %v3008 = vmax.f32 %v2976, 0.0
      %v3009 = vmax.f32 %v2977, 0.0
      %v3010 = vmax.f32 %v2978, 0.0
      %v3011 = vmax.f32 %v2979, 0.0
      %v3012 = vmax.f32 %v2980, 0.0
      %v3013 = vmax.f32 %v2981, 0.0
      %v3014 = vmax.f32 %v2982, 0.0
      %v3015 = vmax.f32 %v2983, 0.0
      %v3016 = vmax.f32 %v2984, 0.0
      %v3017 = vmax.f32 %v2985, 0.0
      %v3018 = vmax.f32 %v2986, 0.0
      %v3019 = vmax.f32 %v2987, 0.0
      %v3020 = vmax.f32 %v2988, 0.0
      %v3021 = vmax.f32 %v2989, 0.0
      %v3022 = vmax.f32 %v2990, 0.0
      %v3023 = vmax.f32 %v2991, 0.0
      %v3024 = vmax.f32 %v2992, 0.0
      %v3025 = vmax.f32 %v2993, 0.0
      %v3026 = vmax.f32 %v2994, 0.0
      %v3027 = vmax.f32 %v2995, 0.0
      %v3028 = vmax.f32 %v2996, 0.0
      %v3029 = vmax.f32 %v2997, 0.0
      %v3030 = vmax.f32 %v2998, 0.0
      %v3031 = vmax.f32 %v2999, 0.0
      %v3032 = vmax.f32 %v3000, 0.0
      %v3033 = vmax.f32 %v3001, 0.0
      %v3034 = vmax.f32 %v3002, 0.0
      %v3035 = vmax.f32 %v3003, 0.0
      %v3036 = vmax.f32 %v3004, 0.0
      %v3037 = vmax.f32 %v3005, 0.0
      %v3038 = vmax.f32 %v3006, 0.0
      %vm3039 = vcmask 261120
      %v3040 = vsel %vm3039, %v3007, 0.0
      %v3041 = vsel %vm3039, %v3008, 0.0
      %v3042 = vadd.f32 %v3040, %v3041
      %v3043 = vsel %vm3039, %v3009, 0.0
      %v3044 = vadd.f32 %v3042, %v3043
      %v3045 = vsel %vm3039, %v3010, 0.0
      %v3046 = vadd.f32 %v3044, %v3045
      %v3047 = vsel %vm3039, %v3011, 0.0
      %v3048 = vadd.f32 %v3046, %v3047
      %v3049 = vsel %vm3039, %v3012, 0.0
      %v3050 = vadd.f32 %v3048, %v3049
      %v3051 = vsel %vm3039, %v3013, 0.0
      %v3052 = vadd.f32 %v3050, %v3051
      %v3053 = vsel %vm3039, %v3014, 0.0
      %v3054 = vadd.f32 %v3052, %v3053
      %v3055 = vsel %vm3039, %v3015, 0.0
      %v3056 = vadd.f32 %v3054, %v3055
      %v3057 = vsel %vm3039, %v3016, 0.0
      %v3058 = vadd.f32 %v3056, %v3057
      %v3059 = vsel %vm3039, %v3017, 0.0
      %v3060 = vadd.f32 %v3058, %v3059
      %v3061 = vsel %vm3039, %v3018, 0.0
      %v3062 = vadd.f32 %v3060, %v3061
      %v3063 = vsel %vm3039, %v3019, 0.0
      %v3064 = vadd.f32 %v3062, %v3063
      %v3065 = vsel %vm3039, %v3020, 0.0
      %v3066 = vadd.f32 %v3064, %v3065
      %v3067 = vsel %vm3039, %v3021, 0.0
      %v3068 = vadd.f32 %v3066, %v3067
      %v3069 = vsel %vm3039, %v3022, 0.0
      %v3070 = vadd.f32 %v3068, %v3069
      %v3071 = vsel %vm3039, %v3023, 0.0
      %v3072 = vadd.f32 %v3070, %v3071
      %v3073 = vsel %vm3039, %v3024, 0.0
      %v3074 = vadd.f32 %v3072, %v3073
      %v3075 = vsel %vm3039, %v3025, 0.0
      %v3076 = vadd.f32 %v3074, %v3075
      %v3077 = vsel %vm3039, %v3026, 0.0
      %v3078 = vadd.f32 %v3076, %v3077
      %v3079 = vsel %vm3039, %v3027, 0.0
      %v3080 = vadd.f32 %v3078, %v3079
      %v3081 = vsel %vm3039, %v3028, 0.0
      %v3082 = vadd.f32 %v3080, %v3081
      %v3083 = vsel %vm3039, %v3029, 0.0
      %v3084 = vadd.f32 %v3082, %v3083
      %v3085 = vsel %vm3039, %v3030, 0.0
      %v3086 = vadd.f32 %v3084, %v3085
      %v3087 = vsel %vm3039, %v3031, 0.0
      %v3088 = vadd.f32 %v3086, %v3087
      %v3089 = vsel %vm3039, %v3032, 0.0
      %v3090 = vadd.f32 %v3088, %v3089
      %v3091 = vsel %vm3039, %v3033, 0.0
      %v3092 = vadd.f32 %v3090, %v3091
      %v3093 = vsel %vm3039, %v3034, 0.0
      %v3094 = vadd.f32 %v3092, %v3093
      %v3095 = vsel %vm3039, %v3035, 0.0
      %v3096 = vadd.f32 %v3094, %v3095
      %v3097 = vsel %vm3039, %v3036, 0.0
      %v3098 = vadd.f32 %v3096, %v3097
      %v3099 = vsel %vm3039, %v3037, 0.0
      %v3100 = vadd.f32 %v3098, %v3099
      %v3101 = vsel %vm3039, %v3038, 0.0
      %v3102 = vadd.f32 %v3100, %v3101
      %v3103 = vrot.slane %v3102, 4
      %v3104 = vadd.f32 %v3102, %v3103
      %v3105 = vrot.slane %v3104, 2
      %v3106 = vadd.f32 %v3104, %v3105
      %v3107 = vrot.slane %v3106, 1
      %v3108 = vadd.f32 %v3106, %v3107
      %v3109 = vrcp.pop 256.0
      %v3110 = vmul.f32 %v3108, %v3109
      %vm3111 = vcmask 253952
      %3112 = vst.msk [vmem:[%s166] sm:$0x1] %vm3111, %v3110
      %p3113 = scmp.lt.s32.totalorder %s14, 7
      %s3114 = scalar_select %p3113, %s14, 7
      %s3115 = scalar_lea.vmem %s3, %s3114
      // Predicated region
      $region33: #{_lambda_.2} parent=31 // pred_check
        %p3116 = pneg %p100
      $region34: #{_lambda_.2} parent=31 // pred_check_branch
        %3118 = sbr.rel (%p3116) target = $region36
      $region35: #{_lambda_.2} parent=31 // pred_region
        _
      $region36: #{_lambda_.2} parent=31 // pred_fallthru
        _
    $region32: #{_lambda_.2} parent=5 // pred_fallthru
      _
    %p3119 = scmp.le.s32.totalorder 2, %s9
    // Predicated region
    $region37: #{_lambda_.2} parent=5 // pred_check
      %p3120 = pneg %p3119
    $region38: #{_lambda_.2} parent=5 // pred_check_branch
      %3122 = sbr.rel (%p3120) target = $region40
    $region39: #{_lambda_.2} parent=5 // pred_region
      %s3123 = ssub.s32 %s9, 2
      // Predicated region
      $region41: #{_lambda_.2} parent=39 // pred_check
        %p3124 = pneg %p106
      $region42: #{_lambda_.2} parent=39 // pred_check_branch
        %3126 = sbr.rel (%p3124) target = $region44
      $region43: #{_lambda_.2} parent=39 // pred_region
        %p3127 = scmp.lt.s32.totalorder %s15, 7
        %s3128 = scalar_select %p3127, %s15, 7
        %s3129 = scalar_lea.vmem %s3, %s3128
      $region44: #{_lambda_.2} parent=39 // pred_fallthru
        _
    $region40: #{_lambda_.2} parent=5 // pred_fallthru
      _
  $region6: #{_lambda_.2} parent=0 // loop_footer
    %s13 = sadd.s32 1, %s9
  $region7: #{_lambda_.2} parent=0 // loop_footer_branch
    %8 = sbr.rel target = $region3
  $region8: #{_lambda_.2} parent=0 // loop_exit
    _

// kernel: _lambda_.3
$region0: #{_lambda_.3}
  #allocation0 [shape = 'u32[]', space=smem, size = 0x4, offset = 0x4, fixed_abs, tag = 'smem constant byte address 0x4 - core index']
  #allocation1 [shape = 'u32[144,128]{1,0:T(1,128)}', space=vmem, size = 0x12000, scoped, tag = 'internal scratch']
  %s0 = inlined_call_operand.vmem [shape: f32[2,4,32], index: 0, kind: input, shape index: {}]
  %s1 = inlined_call_operand.vmem [shape: f32[2,1,4], index: 1, kind: input, shape index: {}]
  %s2 = inlined_call_operand.vmem [shape: f32[2,4,1], index: 2, kind: input, shape index: {}]
  %s3 = inlined_call_operand.vmem [shape: f32[2,1,32], index: 3, kind: input, shape index: {}]
  %s4 = inlined_call_operand.vmem [shape: f32[2,1,32], index: 4, kind: input, shape index: {}]
  %s5 = inlined_call_operand.vmem [shape: f32[2,32,96], index: 5, kind: input, shape index: {}]
  %s6 = inlined_call_operand.vmem [shape: f32[2,32,32], index: 6, kind: input, shape index: {}]
  %s7 = inlined_call_operand.vmem [shape: f32[2,1,32], index: 7, kind: input, shape index: {}]
  %s8 = inlined_call_operand.vmem [shape: f32[2,1,32], index: 8, kind: input, shape index: {}]
  %s9 = inlined_call_operand.vmem [shape: f32[2,1,32], index: 9, kind: input, shape index: {}]
  %s10 = inlined_call_operand.vmem [shape: f32[2,32,64], index: 10, kind: input, shape index: {}]
  %s11 = inlined_call_operand.vmem [shape: f32[2,1,64], index: 11, kind: input, shape index: {}]
  %s12 = inlined_call_operand.vmem [shape: f32[2,64,32], index: 12, kind: input, shape index: {}]
  %s13 = inlined_call_operand.vmem [shape: f32[2,1,32], index: 13, kind: input, shape index: {}]
  %s14 = inlined_call_operand.vmem [shape: f32[32,10], index: 14, kind: input, shape index: {}]
  %s15 = inlined_call_operand.vmem [shape: f32[1,10], index: 15, kind: input, shape index: {}]
  %s16 = inlined_call_operand.hbm [shape: f32[2,1,10], index: 16, kind: output, shape index: {0}]
  %s17 = inlined_call_operand.hbm [shape: f32[2,1,32], index: 17, kind: output, shape index: {1}]
  %18 = xla_tuple %s16, %s17
  %s19 = sld [smem:[#allocation0]]
  $region105: #{_lambda_.3} parent=0
    _
  %s21 = ssub.s32 1, %s19
  %s22 = scalar_select 0, %s21, %s19
  $region1: #{_lambda_.3} parent=0
    #allocation2 [shape = 'u8[1024]{0}', space=vmem, size = 0x400, scoped, tag = 'output window, operand 0']
    #allocation3 [shape = 's32[2]{0}', space=sflag, size = 0x8, scoped, tag = 'scoped memory for _lambda_.3']
    #allocation4 [shape = 'u8[1024]{0}', space=vmem, size = 0x400, scoped, tag = 'output window, operand 1']
    #allocation5 [shape = 's32[2]{0}', space=sflag, size = 0x8, scoped, tag = 'scoped memory for _lambda_.3']
    %23 = vsyncpa [#allocation3], 0
    %s24 = scalar_lea.sflag [#allocation3], 1
    %25 = vsyncpa %s24, 0
    %26 = vsyncpa [#allocation5], 0
    %s27 = scalar_lea.sflag [#allocation5], 1
    %28 = vsyncpa %s27, 0
    loop: start=0, step=1, limit=4
    $region2: #{_lambda_.3} parent=1 // loop_pre_header
      _
    $region3: #{_lambda_.3} parent=1 // loop_header
      %s30 = sphi 0, %s34
      %p31 = scmp.ge.s32.totalorder %s30, 4
      %s40 = sphi 0, %s42
      %s43 = sphi 0, %s40
      %s44 = sphi 0, %s43
      %s60 = sphi 0, %s44
      %s66 = sphi 0, %s68
      %s69 = sphi 0, %s66
      %s70 = sphi 0, %s69
      %s86 = sphi 0, %s70
      %s92 = sphi 0, %s94
      %s95 = sphi 0, %s92
      %s96 = sphi 0, %s95
      %s112 = sphi 0, %s96
      %s116 = sphi 0, %s116
      %s118 = sphi 0, %s116
      %s119 = sphi 0, %s118
      %s133 = sphi 0, %s119
      %s137 = sphi 0, %s137
      %s139 = sphi 0, %s137
      %s140 = sphi 0, %s139
      %s154 = sphi 0, %s140
      %s158 = sphi 0, %s158
      %s160 = sphi 0, %s158
      %s161 = sphi 0, %s160
      %s175 = sphi 0, %s161
      %s179 = sphi 0, %s179
      %s181 = sphi 0, %s179
      %s182 = sphi 0, %s181
      %s196 = sphi 0, %s182
      %s200 = sphi 0, %s200
      %s202 = sphi 0, %s200
      %s203 = sphi 0, %s202
      %s217 = sphi 0, %s203
      %s221 = sphi 0, %s221
      %s223 = sphi 0, %s221
      %s224 = sphi 0, %s223
      %s238 = sphi 0, %s224
      %s242 = sphi 0, %s242
      %s244 = sphi 0, %s242
      %s245 = sphi 0, %s244
      %s259 = sphi 0, %s245
      %s263 = sphi 0, %s263
      %s265 = sphi 0, %s263
      %s266 = sphi 0, %s265
      %s280 = sphi 0, %s266
      %s284 = sphi 0, %s284
      %s286 = sphi 0, %s284
      %s287 = sphi 0, %s286
      %s301 = sphi 0, %s287
      %s305 = sphi 0, %s305
      %s307 = sphi 0, %s305
      %s308 = sphi 0, %s307
      %s322 = sphi 0, %s308
      %s326 = sphi 0, %s326
      %s328 = sphi 0, %s326
      %s329 = sphi 0, %s328
      %s343 = sphi 0, %s329
      %s347 = sphi 0, %s347
      %s349 = sphi 0, %s347
      %s350 = sphi 0, %s349
      %s364 = sphi 0, %s350
      %s368 = sphi 0, %s368
      %s370 = sphi 0, %s368
      %s371 = sphi 0, %s370
      %s385 = sphi 0, %s371
      %s391 = sphi 0, %s393
      %s394 = sphi 0, %s391
      %s395 = sphi 0, %s394
      %s411 = sphi 0, %s395
      %s417 = sphi 0, %s419
      %s420 = sphi 0, %s417
      %s421 = sphi 0, %s420
      %s437 = sphi 0, %s421
    $region4: #{_lambda_.3} parent=1 // loop_header_branch
      %33 = sbr.rel (%p31) target = $region8
    $region5: #{_lambda_.3} parent=1 // loop_body
      %s35 = ssub.s32 %s30, 1
      %s36 = ssub.s32 %s30, 2
      %s37 = sadd.s32 %s30, 1
      %s38 = ssub.s32 %s30, %s37
      %p39 = scmp.eq.s32.totalorder %s38, 0
      %s41 = sadd.s32 %s40, 1
      %s42 = scalar_select %p39, %s40, %s41
      %p45 = pneg %p39
      %p46 = scmp.eq.s32.totalorder %s30, 1
      %p47 = por %p45, %p46
      %p48 = scmp.ne.s32.totalorder %s40, %s43
      %p49 = scmp.eq.s32.totalorder %s30, 0
      %p50 = por %p48, %p49
      %p51 = scmp.ne.s32.totalorder %s40, %s43
      %p52 = scmp.eq.s32.totalorder %s35, 1
      %p53 = por %p51, %p52
      %p54 = scmp.ne.s32.totalorder %s43, %s44
      %p55 = scmp.eq.s32.totalorder %s35, 0
      %p56 = por %p54, %p55
      %p57 = scmp.ne.s32.totalorder %s43, %s44
      %p58 = scmp.eq.s32.totalorder %s36, 1
      %p59 = por %p57, %p58
      %p61 = scmp.ne.s32.totalorder %s44, %s60
      %p62 = scmp.eq.s32.totalorder %s36, 0
      %p63 = por %p61, %p62
      %s64 = ssub.s32 %s30, %s37
      %p65 = scmp.eq.s32.totalorder %s64, 0
      %s67 = sadd.s32 %s66, 1
      %s68 = scalar_select %p65, %s66, %s67
      %p71 = pneg %p65
      %p72 = scmp.eq.s32.totalorder %s30, 1
      %p73 = por %p71, %p72
      %p74 = scmp.ne.s32.totalorder %s66, %s69
      %p75 = scmp.eq.s32.totalorder %s30, 0
      %p76 = por %p74, %p75
      %p77 = scmp.ne.s32.totalorder %s66, %s69
      %p78 = scmp.eq.s32.totalorder %s35, 1
      %p79 = por %p77, %p78
      %p80 = scmp.ne.s32.totalorder %s69, %s70
      %p81 = scmp.eq.s32.totalorder %s35, 0
      %p82 = por %p80, %p81
      %p83 = scmp.ne.s32.totalorder %s69, %s70
      %p84 = scmp.eq.s32.totalorder %s36, 1
      %p85 = por %p83, %p84
      %p87 = scmp.ne.s32.totalorder %s70, %s86
      %p88 = scmp.eq.s32.totalorder %s36, 0
      %p89 = por %p87, %p88
      %s90 = ssub.s32 %s30, %s37
      %p91 = scmp.eq.s32.totalorder %s90, 0
      %s93 = sadd.s32 %s92, 1
      %s94 = scalar_select %p91, %s92, %s93
      %p97 = pneg %p91
      %p98 = scmp.eq.s32.totalorder %s30, 1
      %p99 = por %p97, %p98
      %p100 = scmp.ne.s32.totalorder %s92, %s95
      %p101 = scmp.eq.s32.totalorder %s30, 0
      %p102 = por %p100, %p101
      %p103 = scmp.ne.s32.totalorder %s92, %s95
      %p104 = scmp.eq.s32.totalorder %s35, 1
      %p105 = por %p103, %p104
      %p106 = scmp.ne.s32.totalorder %s95, %s96
      %p107 = scmp.eq.s32.totalorder %s35, 0
      %p108 = por %p106, %p107
      %p109 = scmp.ne.s32.totalorder %s95, %s96
      %p110 = scmp.eq.s32.totalorder %s36, 1
      %p111 = por %p109, %p110
      %p113 = scmp.ne.s32.totalorder %s96, %s112
      %p114 = scmp.eq.s32.totalorder %s36, 0
      %p115 = por %p113, %p114
      %s117 = sadd.s32 %s116, 1
      %p120 = scmp.eq.s32.totalorder %s30, 1
      %p121 = scmp.ne.s32.totalorder %s116, %s118
      %p122 = scmp.eq.s32.totalorder %s30, 0
      %p123 = por %p121, %p122
      %p124 = scmp.ne.s32.totalorder %s116, %s118
      %p125 = scmp.eq.s32.totalorder %s35, 1
      %p126 = por %p124, %p125
      %p127 = scmp.ne.s32.totalorder %s118, %s119
      %p128 = scmp.eq.s32.totalorder %s35, 0
      %p129 = por %p127, %p128
      %p130 = scmp.ne.s32.totalorder %s118, %s119
      %p131 = scmp.eq.s32.totalorder %s36, 1
      %p132 = por %p130, %p131
      %p134 = scmp.ne.s32.totalorder %s119, %s133
      %p135 = scmp.eq.s32.totalorder %s36, 0
      %p136 = por %p134, %p135
      %s138 = sadd.s32 %s137, 1
      %p141 = scmp.eq.s32.totalorder %s30, 1
      %p142 = scmp.ne.s32.totalorder %s137, %s139
      %p143 = scmp.eq.s32.totalorder %s30, 0
      %p144 = por %p142, %p143
      %p145 = scmp.ne.s32.totalorder %s137, %s139
      %p146 = scmp.eq.s32.totalorder %s35, 1
      %p147 = por %p145, %p146
      %p148 = scmp.ne.s32.totalorder %s139, %s140
      %p149 = scmp.eq.s32.totalorder %s35, 0
      %p150 = por %p148, %p149
      %p151 = scmp.ne.s32.totalorder %s139, %s140
      %p152 = scmp.eq.s32.totalorder %s36, 1
      %p153 = por %p151, %p152
      %p155 = scmp.ne.s32.totalorder %s140, %s154
      %p156 = scmp.eq.s32.totalorder %s36, 0
      %p157 = por %p155, %p156
      %s159 = sadd.s32 %s158, 1
      %p162 = scmp.eq.s32.totalorder %s30, 1
      %p163 = scmp.ne.s32.totalorder %s158, %s160
      %p164 = scmp.eq.s32.totalorder %s30, 0
      %p165 = por %p163, %p164
      %p166 = scmp.ne.s32.totalorder %s158, %s160
      %p167 = scmp.eq.s32.totalorder %s35, 1
      %p168 = por %p166, %p167
      %p169 = scmp.ne.s32.totalorder %s160, %s161
      %p170 = scmp.eq.s32.totalorder %s35, 0
      %p171 = por %p169, %p170
      %p172 = scmp.ne.s32.totalorder %s160, %s161
      %p173 = scmp.eq.s32.totalorder %s36, 1
      %p174 = por %p172, %p173
      %p176 = scmp.ne.s32.totalorder %s161, %s175
      %p177 = scmp.eq.s32.totalorder %s36, 0
      %p178 = por %p176, %p177
      %s180 = sadd.s32 %s179, 1
      %p183 = scmp.eq.s32.totalorder %s30, 1
      %p184 = scmp.ne.s32.totalorder %s179, %s181
      %p185 = scmp.eq.s32.totalorder %s30, 0
      %p186 = por %p184, %p185
      %p187 = scmp.ne.s32.totalorder %s179, %s181
      %p188 = scmp.eq.s32.totalorder %s35, 1
      %p189 = por %p187, %p188
      %p190 = scmp.ne.s32.totalorder %s181, %s182
      %p191 = scmp.eq.s32.totalorder %s35, 0
      %p192 = por %p190, %p191
      %p193 = scmp.ne.s32.totalorder %s181, %s182
      %p194 = scmp.eq.s32.totalorder %s36, 1
      %p195 = por %p193, %p194
      %p197 = scmp.ne.s32.totalorder %s182, %s196
      %p198 = scmp.eq.s32.totalorder %s36, 0
      %p199 = por %p197, %p198
      %s201 = sadd.s32 %s200, 1
      %p204 = scmp.eq.s32.totalorder %s30, 1
      %p205 = scmp.ne.s32.totalorder %s200, %s202
      %p206 = scmp.eq.s32.totalorder %s30, 0
      %p207 = por %p205, %p206
      %p208 = scmp.ne.s32.totalorder %s200, %s202
      %p209 = scmp.eq.s32.totalorder %s35, 1
      %p210 = por %p208, %p209
      %p211 = scmp.ne.s32.totalorder %s202, %s203
      %p212 = scmp.eq.s32.totalorder %s35, 0
      %p213 = por %p211, %p212
      %p214 = scmp.ne.s32.totalorder %s202, %s203
      %p215 = scmp.eq.s32.totalorder %s36, 1
      %p216 = por %p214, %p215
      %p218 = scmp.ne.s32.totalorder %s203, %s217
      %p219 = scmp.eq.s32.totalorder %s36, 0
      %p220 = por %p218, %p219
      %s222 = sadd.s32 %s221, 1
      %p225 = scmp.eq.s32.totalorder %s30, 1
      %p226 = scmp.ne.s32.totalorder %s221, %s223
      %p227 = scmp.eq.s32.totalorder %s30, 0
      %p228 = por %p226, %p227
      %p229 = scmp.ne.s32.totalorder %s221, %s223
      %p230 = scmp.eq.s32.totalorder %s35, 1
      %p231 = por %p229, %p230
      %p232 = scmp.ne.s32.totalorder %s223, %s224
      %p233 = scmp.eq.s32.totalorder %s35, 0
      %p234 = por %p232, %p233
      %p235 = scmp.ne.s32.totalorder %s223, %s224
      %p236 = scmp.eq.s32.totalorder %s36, 1
      %p237 = por %p235, %p236
      %p239 = scmp.ne.s32.totalorder %s224, %s238
      %p240 = scmp.eq.s32.totalorder %s36, 0
      %p241 = por %p239, %p240
      %s243 = sadd.s32 %s242, 1
      %p246 = scmp.eq.s32.totalorder %s30, 1
      %p247 = scmp.ne.s32.totalorder %s242, %s244
      %p248 = scmp.eq.s32.totalorder %s30, 0
      %p249 = por %p247, %p248
      %p250 = scmp.ne.s32.totalorder %s242, %s244
      %p251 = scmp.eq.s32.totalorder %s35, 1
      %p252 = por %p250, %p251
      %p253 = scmp.ne.s32.totalorder %s244, %s245
      %p254 = scmp.eq.s32.totalorder %s35, 0
      %p255 = por %p253, %p254
      %p256 = scmp.ne.s32.totalorder %s244, %s245
      %p257 = scmp.eq.s32.totalorder %s36, 1
      %p258 = por %p256, %p257
      %p260 = scmp.ne.s32.totalorder %s245, %s259
      %p261 = scmp.eq.s32.totalorder %s36, 0
      %p262 = por %p260, %p261
      %s264 = sadd.s32 %s263, 1
      %p267 = scmp.eq.s32.totalorder %s30, 1
      %p268 = scmp.ne.s32.totalorder %s263, %s265
      %p269 = scmp.eq.s32.totalorder %s30, 0
      %p270 = por %p268, %p269
      %p271 = scmp.ne.s32.totalorder %s263, %s265
      %p272 = scmp.eq.s32.totalorder %s35, 1
      %p273 = por %p271, %p272
      %p274 = scmp.ne.s32.totalorder %s265, %s266
      %p275 = scmp.eq.s32.totalorder %s35, 0
      %p276 = por %p274, %p275
      %p277 = scmp.ne.s32.totalorder %s265, %s266
      %p278 = scmp.eq.s32.totalorder %s36, 1
      %p279 = por %p277, %p278
      %p281 = scmp.ne.s32.totalorder %s266, %s280
      %p282 = scmp.eq.s32.totalorder %s36, 0
      %p283 = por %p281, %p282
      %s285 = sadd.s32 %s284, 1
      %p288 = scmp.eq.s32.totalorder %s30, 1
      %p289 = scmp.ne.s32.totalorder %s284, %s286
      %p290 = scmp.eq.s32.totalorder %s30, 0
      %p291 = por %p289, %p290
      %p292 = scmp.ne.s32.totalorder %s284, %s286
      %p293 = scmp.eq.s32.totalorder %s35, 1
      %p294 = por %p292, %p293
      %p295 = scmp.ne.s32.totalorder %s286, %s287
      %p296 = scmp.eq.s32.totalorder %s35, 0
      %p297 = por %p295, %p296
      %p298 = scmp.ne.s32.totalorder %s286, %s287
      %p299 = scmp.eq.s32.totalorder %s36, 1
      %p300 = por %p298, %p299
      %p302 = scmp.ne.s32.totalorder %s287, %s301
      %p303 = scmp.eq.s32.totalorder %s36, 0
      %p304 = por %p302, %p303
      %s306 = sadd.s32 %s305, 1
      %p309 = scmp.eq.s32.totalorder %s30, 1
      %p310 = scmp.ne.s32.totalorder %s305, %s307
      %p311 = scmp.eq.s32.totalorder %s30, 0
      %p312 = por %p310, %p311
      %p313 = scmp.ne.s32.totalorder %s305, %s307
      %p314 = scmp.eq.s32.totalorder %s35, 1
      %p315 = por %p313, %p314
      %p316 = scmp.ne.s32.totalorder %s307, %s308
      %p317 = scmp.eq.s32.totalorder %s35, 0
      %p318 = por %p316, %p317
      %p319 = scmp.ne.s32.totalorder %s307, %s308
      %p320 = scmp.eq.s32.totalorder %s36, 1
      %p321 = por %p319, %p320
      %p323 = scmp.ne.s32.totalorder %s308, %s322
      %p324 = scmp.eq.s32.totalorder %s36, 0
      %p325 = por %p323, %p324
      %s327 = sadd.s32 %s326, 1
      %p330 = scmp.eq.s32.totalorder %s30, 1
      %p331 = scmp.ne.s32.totalorder %s326, %s328
      %p332 = scmp.eq.s32.totalorder %s30, 0
      %p333 = por %p331, %p332
      %p334 = scmp.ne.s32.totalorder %s326, %s328
      %p335 = scmp.eq.s32.totalorder %s35, 1
      %p336 = por %p334, %p335
      %p337 = scmp.ne.s32.totalorder %s328, %s329
      %p338 = scmp.eq.s32.totalorder %s35, 0
      %p339 = por %p337, %p338
      %p340 = scmp.ne.s32.totalorder %s328, %s329
      %p341 = scmp.eq.s32.totalorder %s36, 1
      %p342 = por %p340, %p341
      %p344 = scmp.ne.s32.totalorder %s329, %s343
      %p345 = scmp.eq.s32.totalorder %s36, 0
      %p346 = por %p344, %p345
      %s348 = sadd.s32 %s347, 1
      %p351 = scmp.eq.s32.totalorder %s30, 1
      %p352 = scmp.ne.s32.totalorder %s347, %s349
      %p353 = scmp.eq.s32.totalorder %s30, 0
      %p354 = por %p352, %p353
      %p355 = scmp.ne.s32.totalorder %s347, %s349
      %p356 = scmp.eq.s32.totalorder %s35, 1
      %p357 = por %p355, %p356
      %p358 = scmp.ne.s32.totalorder %s349, %s350
      %p359 = scmp.eq.s32.totalorder %s35, 0
      %p360 = por %p358, %p359
      %p361 = scmp.ne.s32.totalorder %s349, %s350
      %p362 = scmp.eq.s32.totalorder %s36, 1
      %p363 = por %p361, %p362
      %p365 = scmp.ne.s32.totalorder %s350, %s364
      %p366 = scmp.eq.s32.totalorder %s36, 0
      %p367 = por %p365, %p366
      %s369 = sadd.s32 %s368, 1
      %p372 = scmp.eq.s32.totalorder %s30, 1
      %p373 = scmp.ne.s32.totalorder %s368, %s370
      %p374 = scmp.eq.s32.totalorder %s30, 0
      %p375 = por %p373, %p374
      %p376 = scmp.ne.s32.totalorder %s368, %s370
      %p377 = scmp.eq.s32.totalorder %s35, 1
      %p378 = por %p376, %p377
      %p379 = scmp.ne.s32.totalorder %s370, %s371
      %p380 = scmp.eq.s32.totalorder %s35, 0
      %p381 = por %p379, %p380
      %p382 = scmp.ne.s32.totalorder %s370, %s371
      %p383 = scmp.eq.s32.totalorder %s36, 1
      %p384 = por %p382, %p383
      %p386 = scmp.ne.s32.totalorder %s371, %s385
      %p387 = scmp.eq.s32.totalorder %s36, 0
      %p388 = por %p386, %p387
      %s389 = ssub.s32 %s30, %s37
      %p390 = scmp.eq.s32.totalorder %s389, 0
      %s392 = sadd.s32 %s391, 1
      %s393 = scalar_select %p390, %s391, %s392
      %p396 = pneg %p390
      %p397 = scmp.eq.s32.totalorder %s30, 1
      %p398 = por %p396, %p397
      %p399 = scmp.ne.s32.totalorder %s391, %s394
      %p400 = scmp.eq.s32.totalorder %s30, 0
      %p401 = por %p399, %p400
      %p402 = scmp.ne.s32.totalorder %s391, %s394
      %p403 = scmp.eq.s32.totalorder %s35, 1
      %p404 = por %p402, %p403
      %p405 = scmp.ne.s32.totalorder %s394, %s395
      %p406 = scmp.eq.s32.totalorder %s35, 0
      %p407 = por %p405, %p406
      %p408 = scmp.ne.s32.totalorder %s394, %s395
      %p409 = scmp.eq.s32.totalorder %s36, 1
      %p410 = por %p408, %p409
      %p412 = scmp.ne.s32.totalorder %s395, %s411
      %p413 = scmp.eq.s32.totalorder %s36, 0
      %p414 = por %p412, %p413
      %s415 = ssub.s32 %s30, %s37
      %p416 = scmp.eq.s32.totalorder %s415, 0
      %s418 = sadd.s32 %s417, 1
      %s419 = scalar_select %p416, %s417, %s418
      %p422 = pneg %p416
      %p423 = scmp.eq.s32.totalorder %s30, 1
      %p424 = por %p422, %p423
      %p425 = scmp.ne.s32.totalorder %s417, %s420
      %p426 = scmp.eq.s32.totalorder %s30, 0
      %p427 = por %p425, %p426
      %p428 = scmp.ne.s32.totalorder %s417, %s420
      %p429 = scmp.eq.s32.totalorder %s35, 1
      %p430 = por %p428, %p429
      %p431 = scmp.ne.s32.totalorder %s420, %s421
      %p432 = scmp.eq.s32.totalorder %s35, 0
      %p433 = por %p431, %p432
      %p434 = scmp.ne.s32.totalorder %s420, %s421
      %p435 = scmp.eq.s32.totalorder %s36, 1
      %p436 = por %p434, %p435
      %p438 = scmp.ne.s32.totalorder %s421, %s437
      %p439 = scmp.eq.s32.totalorder %s36, 0
      %p440 = por %p438, %p439
      %p441 = scmp.le.s32.totalorder 1, %s30
      %p442 = scmp.lt.s32.totalorder %s30, 3
      %p443 = pnand %p441, %p442
      %p444 = pneg %p443
      // Predicated region
      $region9: #{_lambda_.3} parent=5 // pred_check
        _
      $region10: #{_lambda_.3} parent=5 // pred_check_branch
        %446 = sbr.rel (%p443) target = $region12
      $region11: #{_lambda_.3} parent=5 // pred_region
        %s447 = ssub.s32 %s30, 1
        // Predicated region
        $region13: #{_lambda_.3} parent=11 // pred_check
          %p448 = pneg %p129
        $region14: #{_lambda_.3} parent=11 // pred_check_branch
          %450 = sbr.rel (%p448) target = $region16
        $region15: #{_lambda_.3} parent=11 // pred_region
          _
        $region16: #{_lambda_.3} parent=11 // pred_fallthru
          _
        // Predicated region
        $region17: #{_lambda_.3} parent=11 // pred_check
          %p451 = pneg %p150
        $region18: #{_lambda_.3} parent=11 // pred_check_branch
          %453 = sbr.rel (%p451) target = $region20
        $region19: #{_lambda_.3} parent=11 // pred_region
          _
        $region20: #{_lambda_.3} parent=11 // pred_fallthru
          _
        // Predicated region
        $region21: #{_lambda_.3} parent=11 // pred_check
          %p454 = pneg %p171
        $region22: #{_lambda_.3} parent=11 // pred_check_branch
          %456 = sbr.rel (%p454) target = $region24
        $region23: #{_lambda_.3} parent=11 // pred_region
          _
        $region24: #{_lambda_.3} parent=11 // pred_fallthru
          _
        // Predicated region
        $region25: #{_lambda_.3} parent=11 // pred_check
          %p457 = pneg %p192
        $region26: #{_lambda_.3} parent=11 // pred_check_branch
          %459 = sbr.rel (%p457) target = $region28
        $region27: #{_lambda_.3} parent=11 // pred_region
          _
        $region28: #{_lambda_.3} parent=11 // pred_fallthru
          _
        // Predicated region
        $region29: #{_lambda_.3} parent=11 // pred_check
          %p460 = pneg %p213
        $region30: #{_lambda_.3} parent=11 // pred_check_branch
          %462 = sbr.rel (%p460) target = $region32
        $region31: #{_lambda_.3} parent=11 // pred_region
          _
        $region32: #{_lambda_.3} parent=11 // pred_fallthru
          _
        // Predicated region
        $region33: #{_lambda_.3} parent=11 // pred_check
          %p463 = pneg %p234
        $region34: #{_lambda_.3} parent=11 // pred_check_branch
          %465 = sbr.rel (%p463) target = $region36
        $region35: #{_lambda_.3} parent=11 // pred_region
          _
        $region36: #{_lambda_.3} parent=11 // pred_fallthru
          _
        // Predicated region
        $region37: #{_lambda_.3} parent=11 // pred_check
          %p466 = pneg %p255
        $region38: #{_lambda_.3} parent=11 // pred_check_branch
          %468 = sbr.rel (%p466) target = $region40
        $region39: #{_lambda_.3} parent=11 // pred_region
          _
        $region40: #{_lambda_.3} parent=11 // pred_fallthru
          _
        // Predicated region
        $region41: #{_lambda_.3} parent=11 // pred_check
          %p469 = pneg %p276
        $region42: #{_lambda_.3} parent=11 // pred_check_branch
          %471 = sbr.rel (%p469) target = $region44
        $region43: #{_lambda_.3} parent=11 // pred_region
          _
        $region44: #{_lambda_.3} parent=11 // pred_fallthru
          _
        // Predicated region
        $region45: #{_lambda_.3} parent=11 // pred_check
          %p472 = pneg %p297
        $region46: #{_lambda_.3} parent=11 // pred_check_branch
          %474 = sbr.rel (%p472) target = $region48
        $region47: #{_lambda_.3} parent=11 // pred_region
          _
        $region48: #{_lambda_.3} parent=11 // pred_fallthru
          _
        // Predicated region
        $region49: #{_lambda_.3} parent=11 // pred_check
          %p475 = pneg %p318
        $region50: #{_lambda_.3} parent=11 // pred_check_branch
          %477 = sbr.rel (%p475) target = $region52
        $region51: #{_lambda_.3} parent=11 // pred_region
          _
        $region52: #{_lambda_.3} parent=11 // pred_fallthru
          _
        // Predicated region
        $region53: #{_lambda_.3} parent=11 // pred_check
          %p478 = pneg %p339
        $region54: #{_lambda_.3} parent=11 // pred_check_branch
          %480 = sbr.rel (%p478) target = $region56
        $region55: #{_lambda_.3} parent=11 // pred_region
          _
        $region56: #{_lambda_.3} parent=11 // pred_fallthru
          _
        // Predicated region
        $region57: #{_lambda_.3} parent=11 // pred_check
          %p481 = pneg %p360
        $region58: #{_lambda_.3} parent=11 // pred_check_branch
          %483 = sbr.rel (%p481) target = $region60
        $region59: #{_lambda_.3} parent=11 // pred_region
          _
        $region60: #{_lambda_.3} parent=11 // pred_fallthru
          _
        // Predicated region
        $region61: #{_lambda_.3} parent=11 // pred_check
          %p484 = pneg %p381
        $region62: #{_lambda_.3} parent=11 // pred_check_branch
          %486 = sbr.rel (%p484) target = $region64
        $region63: #{_lambda_.3} parent=11 // pred_region
          _
        $region64: #{_lambda_.3} parent=11 // pred_fallthru
          _
      $region12: #{_lambda_.3} parent=5 // pred_fallthru
        _
      %p487 = scmp.lt.s32.totalorder %s30, 2
      // Predicated region
      $region65: #{_lambda_.3} parent=5 // pred_check
        %p488 = pneg %p487
      $region66: #{_lambda_.3} parent=5 // pred_check_branch
        %490 = sbr.rel (%p488) target = $region68
      $region67: #{_lambda_.3} parent=5 // pred_region
        // Predicated region
        $region69: #{_lambda_.3} parent=67 // pred_check
          %p491 = pneg %p50
        $region70: #{_lambda_.3} parent=67 // pred_check_branch
          %493 = sbr.rel (%p491) target = $region72
        $region71: #{_lambda_.3} parent=67 // pred_region
          %p494 = scmp.lt.s32.totalorder %s30, 1
          %s495 = scalar_select %p494, %s30, 1
          %s496 = smul.addr %s495, 4
          %s497 = scalar_lea.vmem %s0, %s496
        $region72: #{_lambda_.3} parent=67 // pred_fallthru
          _
        // Predicated region
        $region73: #{_lambda_.3} parent=67 // pred_check
          %p498 = pneg %p76
        $region74: #{_lambda_.3} parent=67 // pred_check_branch
          %500 = sbr.rel (%p498) target = $region76
        $region75: #{_lambda_.3} parent=67 // pred_region
          %p501 = scmp.lt.s32.totalorder %s30, 1
          %s502 = scalar_select %p501, %s30, 1
          %s503 = scalar_lea.vmem %s1, %s502
        $region76: #{_lambda_.3} parent=67 // pred_fallthru
          _
        // Predicated region
        $region77: #{_lambda_.3} parent=67 // pred_check
          %p504 = pneg %p102
        $region78: #{_lambda_.3} parent=67 // pred_check_branch
          %506 = sbr.rel (%p504) target = $region80
        $region79: #{_lambda_.3} parent=67 // pred_region
          %p507 = scmp.lt.s32.totalorder %s30, 1
          %s508 = scalar_select %p507, %s30, 1
          %s509 = smul.addr %s508, 4
          %s510 = scalar_lea.vmem %s2, %s509
        $region80: #{_lambda_.3} parent=67 // pred_fallthru
          _
      $region68: #{_lambda_.3} parent=5 // pred_fallthru
        _
      %p511 = scmp.le.s32.totalorder 1, %s30
      %p512 = scmp.lt.s32.totalorder %s30, 3
      %p513 = pnand %p511, %p512
      %p514 = pneg %p513
      // Predicated region
      $region81: #{_lambda_.3} parent=5 // pred_check
        _
      $region82: #{_lambda_.3} parent=5 // pred_check_branch
        %516 = sbr.rel (%p513) target = $region84
      $region83: #{_lambda_.3} parent=5 // pred_region
        %s517 = ssub.s32 %s30, 1
        %p518 = scmp.lt.s32.totalorder %s35, 1
        %s519 = scalar_select %p518, %s35, 1
        %s520 = smul.addr %s519, 4
        %s521 = scalar_lea.vmem %s0, %s520
        %p522 = pneg %p56
        %p523 = pneg %p53
        %p524 = scmp.lt.s32.totalorder %s35, 1
        %s525 = scalar_select %p524, %s35, 1
        %s526 = scalar_lea.vmem %s1, %s525
        %p527 = pneg %p82
        %p528 = pneg %p79
        %p529 = scmp.lt.s32.totalorder %s35, 1
        %s530 = scalar_select %p529, %s35, 1
        %s531 = smul.addr %s530, 4
        %s532 = scalar_lea.vmem %s2, %s531
        %p533 = pneg %p108
        %p534 = pneg %p105
        %p535 = pneg %p129
        %p536 = pneg %p126
        %p537 = pneg %p150
        %p538 = pneg %p147
        %p539 = pneg %p171
        %p540 = pneg %p168
        %p541 = pneg %p192
        %p542 = pneg %p189
        %p543 = pneg %p213
        %p544 = pneg %p210
        %p545 = pneg %p234
        %p546 = pneg %p231
        %p547 = pneg %p255
        %p548 = pneg %p252
        %p549 = pneg %p276
        %p550 = pneg %p273
        %p551 = pneg %p297
        %p552 = pneg %p294
        %p553 = pneg %p318
        %p554 = pneg %p315
        %p555 = pneg %p339
        %p556 = pneg %p336
        %p557 = pneg %p360
        %p558 = pneg %p357
        %p559 = pneg %p381
        %p560 = pneg %p378
        %p561 = pneg %p407
        %p562 = pneg %p404
        %s563 = sand.u32 %s394, 1
        %s564 = scalar_lea.sflag [#allocation3], %s563
        %s565 = sand.u32 %s394, 1
        %s566 = scalar_lea.vmem [#allocation2], %s565
        %p567 = pneg %p433
        %p568 = pneg %p430
        %s569 = sand.u32 %s420, 1
        %s570 = scalar_lea.sflag [#allocation5], %s569
        %s571 = sand.u32 %s420, 1
        %s572 = scalar_lea.vmem [#allocation4], %s571
        %p573 = scmp.lt.s32.totalorder %s35, 1
        %s574 = scalar_select %p573, %s35, 1
        %s575 = smul.addr %s574, 4
        %s576 = scalar_lea.vmem %s0, %s575
        %p577 = scmp.lt.s32.totalorder %s35, 1
        %s578 = scalar_select %p577, %s35, 1
        %s579 = scalar_lea.vmem %s1, %s578
        %p580 = scmp.lt.s32.totalorder %s35, 1
        %s581 = scalar_select %p580, %s35, 1
        %s582 = smul.addr %s581, 4
        %s583 = scalar_lea.vmem %s2, %s582
        %v584 = vld [vmem:[%s576] sm:$0xf]
        %v585 = vld [vmem:[%s579] sm:$0x1]
        %v586 = vld [vmem:[%s583] sm:$0xf]
        %vm587 = vcmask 257024
        %v588 = vsel %vm587, %v584, 0.0
        %589 = vadd.xlane.f32.xlu0 %v588
        %v590 = vpop.xlane.xlu0 %589
        %v591 = vrcp.pop 32.0
        %v592 = vmul.f32 %v590, %v591
        %v593 = vsub.f32 %v584, %v592
        %v594 = vmul.f32 %v593, %v593
        %v595 = vsel %vm587, %v594, 0.0
        %596 = vadd.xlane.f32.xlu0 %v595
        %v597 = vpop.xlane.xlu0 %596
        %v598 = vmul.f32 %v597, %v591
        %v599 = vadd.f32 %v598, 1e-05
        %v600 = vrsqrt.pop %v599
        %v601 = vmul.f32 %v593, %v600
        %v602 = vld [vmem:[%s3] sm:$0x1]
        %v604 = vlaneseq
        %v605 = vshrl.u32 %v604, 7
        %v606 = vsub.s32 0, %v605
        %v607 = vrot.slane %v602, %v606
        %v609 = vmul.f32 %v601, %v607
        %v610 = vld [vmem:[%s4] sm:$0x1]
        %v612 = vlaneseq
        %v613 = vshrl.u32 %v612, 7
        %v614 = vsub.s32 0, %v613
        %v615 = vrot.slane %v610, %v614
        %v617 = vadd.f32 %v609, %v615
        %v618 = vld [vmem:[%s5] sm:$0xff]
        %v619 = vld [vmem:[%s5 + $0x8] sm:$0xff]
        %v620 = vld [vmem:[%s5 + $0x10] sm:$0xff]
        %v621 = vld [vmem:[%s5 + $0x18] sm:$0xff]
        %vm622 = vcmask 261120
        %v624 = vsel %vm622, %v617, 0
        %626 = vmatprep.subr.mxu0 0.0
        %627 = vmatpush1.msra.mxu0 %v618
        %628 = vmatprep.subr.mxu0 0.0
        %629 = vmatpush1.msra.mxu0 %v619
        %630 = vmatprep.subr.mxu0 0.0
        %631 = vmatpush1.msra.mxu0 %v620
        %632 = vmatprep.subr.mxu0 0.0
        %633 = vmatpush1.msra.mxu0 %v621
        %634 = vmatprep.subr.mxu0 0.0
        %635 = vmatpush1.msra.mxu0 0.0
        %636 = vmatprep.subr.mxu0 0.0
        %637 = vmatpush1.msra.mxu0 0.0
        %638 = vmatprep.subr.mxu0 0.0
        %639 = vmatpush1.msra.mxu0 0.0
        %640 = vmatprep.subr.mxu0 0.0
        %641 = vmatpush1.msra.mxu0 0.0
        %642 = vmatprep.subr.mxu0 0.0
        %643 = vmatpush1.msra.mxu0 0.0
        %644 = vmatprep.subr.mxu0 0.0
        %645 = vmatpush1.msra.mxu0 0.0
        %646 = vmatprep.subr.mxu0 0.0
        %647 = vmatpush1.msra.mxu0 0.0
        %648 = vmatprep.subr.mxu0 0.0
        %649 = vmatpush1.msra.mxu0 0.0
        %650 = vmatprep.subr.mxu0 0.0
        %651 = vmatpush1.msra.mxu0 0.0
        %652 = vmatprep.subr.mxu0 0.0
        %653 = vmatpush1.msra.mxu0 0.0
        %654 = vmatprep.subr.mxu0 0.0
        %655 = vmatpush1.msra.mxu0 0.0
        %656 = vmatprep.subr.mxu0 0.0
        %657 = vmatpush1.msra.mxu0 0.0
        %658 = vmatprep.subr.mxu0 0.0
        %659 = vmatpush1.msra.mxu0 0.0
        %660 = vmatprep.subr.mxu0 0.0
        %661 = vmatpush1.msra.mxu0 0.0
        %662 = vmatprep.subr.mxu0 0.0
        %663 = vmatpush1.msra.mxu0 0.0
        %664 = vmatprep.subr.mxu0 0.0
        %665 = vmatpush1.msra.mxu0 0.0
        %666 = vmatprep.subr.mxu0 0.0
        %667 = vmatpush1.msra.mxu0 0.0
        %668 = vmatprep.subr.mxu0 0.0
        %669 = vmatpush1.msra.mxu0 0.0
        %670 = vmatprep.subr.mxu0 0.0
        %671 = vmatpush1.msra.mxu0 0.0
        %672 = vmatprep.subr.mxu0 0.0
        %673 = vmatpush1.msra.mxu0 0.0
        %674 = vmatprep.subr.mxu0 0.0
        %675 = vmatpush1.msra.mxu0 0.0
        %676 = vmatprep.subr.mxu0 0.0
        %677 = vmatpush1.msra.mxu0 0.0
        %678 = vmatprep.subr.mxu0 0.0
        %679 = vmatpush1.msra.mxu0 0.0
        %680 = vmatprep.subr.mxu0 0.0
        %681 = vmatpush1.msra.mxu0 0.0
        %682 = vmatprep.subr.mxu0 0.0
        %683 = vmatpush1.msra.mxu0 0.0
        %684 = vmatprep.subr.mxu0 0.0
        %685 = vmatpush1.msra.mxu0 0.0
        %686 = vmatprep.subr.mxu0 0.0
        %687 = vmatpush1.msra.mxu0 0.0
        %688 = vmatprep.subr.mxu0 0.0
        %689 = vmatpush1.msra.mxu0 0.0
        %690 = vmatprep.mubr.f32.mxu0 0.0
        %691 = vmatmul.mubr.f32.gmra.mrb[0].mxu0 %v624
        %v692 = vpop.f32.mrb[0].mxu0
        %v693 = vadd.f32 0.0, %v692
        %v694 = vpop.f32.mrb[0].mxu0
        %695 = vdwg.mxu0
        %v696 = vld [vmem:[%s6] sm:$0xff]
        %v697 = vld [vmem:[%s6 + $0x8] sm:$0xff]
        %v698 = vld [vmem:[%s6 + $0x10] sm:$0xff]
        %v699 = vld [vmem:[%s6 + $0x18] sm:$0xff]
        %v700 = vld [vmem:[%s7] sm:$0x1]
        %702 = vrot.lane.b32.xlu0 %v693, 96
        %v703 = vpop.permute.xlu0 %702
        %vm704 = vcmask 64512
        %v705 = vsel %vm704, %v693, 0
        %v707 = vsel %vm704, %v703, 0
        %709 = vmatprep.subr.mxu0 0.0
        %710 = vmatpush1.xpose.msra.mxu0 %v707
        %711 = vmatprep.subr.mxu0 0.0
        %712 = vmatpush1.xpose.msra.mxu0 0.0
        %713 = vmatprep.subr.mxu0 0.0
        %714 = vmatpush1.xpose.msra.mxu0 0.0
        %715 = vmatprep.subr.mxu0 0.0
        %716 = vmatpush1.xpose.msra.mxu0 0.0
        %717 = vmatprep.subr.mxu0 0.0
        %718 = vmatpush1.xpose.msra.mxu0 0.0
        %719 = vmatprep.subr.mxu0 0.0
        %720 = vmatpush1.xpose.msra.mxu0 0.0
        %721 = vmatprep.subr.mxu0 0.0
        %722 = vmatpush1.xpose.msra.mxu0 0.0
        %723 = vmatprep.subr.mxu0 0.0
        %724 = vmatpush1.xpose.msra.mxu0 0.0
        %725 = vmatprep.subr.mxu0 0.0
        %726 = vmatpush1.xpose.msra.mxu0 0.0
        %727 = vmatprep.subr.mxu0 0.0
        %728 = vmatpush1.xpose.msra.mxu0 0.0
        %729 = vmatprep.subr.mxu0 0.0
        %730 = vmatpush1.xpose.msra.mxu0 0.0
        %731 = vmatprep.subr.mxu0 0.0
        %732 = vmatpush1.xpose.msra.mxu0 0.0
        %733 = vmatprep.subr.mxu0 0.0
        %734 = vmatpush1.xpose.msra.mxu0 0.0
        %735 = vmatprep.subr.mxu0 0.0
        %736 = vmatpush1.xpose.msra.mxu0 0.0
        %737 = vmatprep.subr.mxu0 0.0
        %738 = vmatpush1.xpose.msra.mxu0 0.0
        %739 = vmatprep.subr.mxu0 0.0
        %740 = vmatpush1.xpose.msra.mxu0 0.0
        %741 = vmatprep.subr.mxu0 0.0
        %742 = vmatpush1.xpose.msra.mxu0 0.0
        %743 = vmatprep.subr.mxu0 0.0
        %744 = vmatpush1.xpose.msra.mxu0 0.0
        %745 = vmatprep.subr.mxu0 0.0
        %746 = vmatpush1.xpose.msra.mxu0 0.0
        %747 = vmatprep.subr.mxu0 0.0
        %748 = vmatpush1.xpose.msra.mxu0 0.0
        %749 = vmatprep.subr.mxu0 0.0
        %750 = vmatpush1.xpose.msra.mxu0 0.0
        %751 = vmatprep.subr.mxu0 0.0
        %752 = vmatpush1.xpose.msra.mxu0 0.0
        %753 = vmatprep.subr.mxu0 0.0
        %754 = vmatpush1.xpose.msra.mxu0 0.0
        %755 = vmatprep.subr.mxu0 0.0
        %756 = vmatpush1.xpose.msra.mxu0 0.0
        %757 = vmatprep.subr.mxu0 0.0
        %758 = vmatpush1.xpose.msra.mxu0 0.0
        %759 = vmatprep.subr.mxu0 0.0
        %760 = vmatpush1.xpose.msra.mxu0 0.0
        %761 = vmatprep.subr.mxu0 0.0
        %762 = vmatpush1.xpose.msra.mxu0 0.0
        %763 = vmatprep.subr.mxu0 0.0
        %764 = vmatpush1.xpose.msra.mxu0 0.0
        %765 = vmatprep.subr.mxu0 0.0
        %766 = vmatpush1.xpose.msra.mxu0 0.0
        %767 = vmatprep.subr.mxu0 0.0
        %768 = vmatpush1.xpose.msra.mxu0 0.0
        %769 = vmatprep.subr.mxu0 0.0
        %770 = vmatpush1.xpose.msra.mxu0 0.0
        %771 = vmatprep.subr.mxu0 0.0
        %772 = vmatpush1.xpose.msra.mxu0 0.0
        %773 = vmatprep.mubr.f32.mxu0 0.0
        %774 = vmatmul.mubr.f32.gmra.mrb[0].mxu0 %v705
        %v775 = vpop.f32.mrb[0].mxu0
        %v776 = vadd.f32 0.0, %v775
        %v777 = vpop.f32.mrb[0].mxu0
        %778 = vdwg.mxu0
        %v779 = vmul.f32 %v776, 0.35355338
        %v781 = vlaneseq
        %v782 = vshrl.u32 %v781, 7
        %v783 = vsub.s32 0, %v782
        %v784 = vrot.slane %v585, %v783
        %v786 = vadd.f32 %v779, %v784
        %vm787 = vcmask 27648
        %v788 = vsel %vm787, %v786, -inf
        %789 = vmax.xlane.f32.xlu0 %v788
        %v790 = vpop.xlane.xlu0 %789
        %v791 = vsub.f32 %v786, %v790
        %v792 = vmul.f32 %v791, 1.442695
        %v793 = vpow.pop %v792
        %v794 = vsel %vm787, %v793, 0.0
        %795 = vadd.xlane.f32.xlu0 %v794
        %v796 = vpop.xlane.xlu0 %795
        %v797 = vrcp.pop %v796
        %v798 = vmul.f32 %v793, %v797
        %799 = vrot.lane.b32.xlu0 %v693, 64
        %v800 = vpop.permute.xlu0 %799
        %vm801 = vcmask 31744
        %v803 = vsel %vm801, %v798, 0
        %vm805 = vcmask 1043456
        %v806 = vsel %vm805, %v800, 0
        %808 = vmatprep.subr.mxu0 0.0
        %809 = vmatpush1.msra.mxu0 %v806
        %810 = vmatprep.subr.mxu0 0.0
        %811 = vmatpush1.msra.mxu0 0.0
        %812 = vmatprep.subr.mxu0 0.0
        %813 = vmatpush1.msra.mxu0 0.0
        %814 = vmatprep.subr.mxu0 0.0
        %815 = vmatpush1.msra.mxu0 0.0
        %816 = vmatprep.subr.mxu0 0.0
        %817 = vmatpush1.msra.mxu0 0.0
        %818 = vmatprep.subr.mxu0 0.0
        %819 = vmatpush1.msra.mxu0 0.0
        %820 = vmatprep.subr.mxu0 0.0
        %821 = vmatpush1.msra.mxu0 0.0
        %822 = vmatprep.subr.mxu0 0.0
        %823 = vmatpush1.msra.mxu0 0.0
        %824 = vmatprep.subr.mxu0 0.0
        %825 = vmatpush1.msra.mxu0 0.0
        %826 = vmatprep.subr.mxu0 0.0
        %827 = vmatpush1.msra.mxu0 0.0
        %828 = vmatprep.subr.mxu0 0.0
        %829 = vmatpush1.msra.mxu0 0.0
        %830 = vmatprep.subr.mxu0 0.0
        %831 = vmatpush1.msra.mxu0 0.0
        %832 = vmatprep.subr.mxu0 0.0
        %833 = vmatpush1.msra.mxu0 0.0
        %834 = vmatprep.subr.mxu0 0.0
        %835 = vmatpush1.msra.mxu0 0.0
        %836 = vmatprep.subr.mxu0 0.0
        %837 = vmatpush1.msra.mxu0 0.0
        %838 = vmatprep.subr.mxu0 0.0
        %839 = vmatpush1.msra.mxu0 0.0
        %840 = vmatprep.subr.mxu0 0.0
        %841 = vmatpush1.msra.mxu0 0.0
        %842 = vmatprep.subr.mxu0 0.0
        %843 = vmatpush1.msra.mxu0 0.0
        %844 = vmatprep.subr.mxu0 0.0
        %845 = vmatpush1.msra.mxu0 0.0
        %846 = vmatprep.subr.mxu0 0.0
        %847 = vmatpush1.msra.mxu0 0.0
        %848 = vmatprep.subr.mxu0 0.0
        %849 = vmatpush1.msra.mxu0 0.0
        %850 = vmatprep.subr.mxu0 0.0
        %851 = vmatpush1.msra.mxu0 0.0
        %852 = vmatprep.subr.mxu0 0.0
        %853 = vmatpush1.msra.mxu0 0.0
        %854 = vmatprep.subr.mxu0 0.0
        %855 = vmatpush1.msra.mxu0 0.0
        %856 = vmatprep.subr.mxu0 0.0
        %857 = vmatpush1.msra.mxu0 0.0
        %858 = vmatprep.subr.mxu0 0.0
        %859 = vmatpush1.msra.mxu0 0.0
        %860 = vmatprep.subr.mxu0 0.0
        %861 = vmatpush1.msra.mxu0 0.0
        %862 = vmatprep.subr.mxu0 0.0
        %863 = vmatpush1.msra.mxu0 0.0
        %864 = vmatprep.subr.mxu0 0.0
        %865 = vmatpush1.msra.mxu0 0.0
        %866 = vmatprep.subr.mxu0 0.0
        %867 = vmatpush1.msra.mxu0 0.0
        %868 = vmatprep.subr.mxu0 0.0
        %869 = vmatpush1.msra.mxu0 0.0
        %870 = vmatprep.subr.mxu0 0.0
        %871 = vmatpush1.msra.mxu0 0.0
        %872 = vmatprep.mubr.f32.mxu0 0.0
        %873 = vmatmul.mubr.f32.gmra.mrb[0].mxu0 %v803
        %v874 = vpop.f32.mrb[0].mxu0
        %v875 = vadd.f32 0.0, %v874
        %v876 = vpop.f32.mrb[0].mxu0
        %877 = vdwg.mxu0
        %v879 = vsel %vm704, %v875, 0
        %881 = vmatprep.subr.mxu0 0.0
        %882 = vmatpush1.msra.mxu0 %v696
        %883 = vmatprep.subr.mxu0 0.0
        %884 = vmatpush1.msra.mxu0 0.0
        %885 = vmatprep.subr.mxu0 0.0
        %886 = vmatpush1.msra.mxu0 0.0
        %887 = vmatprep.subr.mxu0 0.0
        %888 = vmatpush1.msra.mxu0 0.0
        %889 = vmatprep.subr.mxu0 0.0
        %890 = vmatpush1.msra.mxu0 0.0
        %891 = vmatprep.subr.mxu0 0.0
        %892 = vmatpush1.msra.mxu0 0.0
        %893 = vmatprep.subr.mxu0 0.0
        %894 = vmatpush1.msra.mxu0 0.0
        %895 = vmatprep.subr.mxu0 0.0
        %896 = vmatpush1.msra.mxu0 0.0
        %897 = vmatprep.subr.mxu0 0.0
        %898 = vmatpush1.msra.mxu0 0.0
        %899 = vmatprep.subr.mxu0 0.0
        %900 = vmatpush1.msra.mxu0 0.0
        %901 = vmatprep.subr.mxu0 0.0
        %902 = vmatpush1.msra.mxu0 0.0
        %903 = vmatprep.subr.mxu0 0.0
        %904 = vmatpush1.msra.mxu0 0.0
        %905 = vmatprep.subr.mxu0 0.0
        %906 = vmatpush1.msra.mxu0 0.0
        %907 = vmatprep.subr.mxu0 0.0
        %908 = vmatpush1.msra.mxu0 0.0
        %909 = vmatprep.subr.mxu0 0.0
        %910 = vmatpush1.msra.mxu0 0.0
        %911 = vmatprep.subr.mxu0 0.0
        %912 = vmatpush1.msra.mxu0 0.0
        %913 = vmatprep.subr.mxu0 0.0
        %914 = vmatpush1.msra.mxu0 0.0
        %915 = vmatprep.subr.mxu0 0.0
        %916 = vmatpush1.msra.mxu0 0.0
        %917 = vmatprep.subr.mxu0 0.0
        %918 = vmatpush1.msra.mxu0 0.0
        %919 = vmatprep.subr.mxu0 0.0
        %920 = vmatpush1.msra.mxu0 0.0
        %921 = vmatprep.subr.mxu0 0.0
        %922 = vmatpush1.msra.mxu0 0.0
        %923 = vmatprep.subr.mxu0 0.0
        %924 = vmatpush1.msra.mxu0 0.0
        %925 = vmatprep.subr.mxu0 0.0
        %926 = vmatpush1.msra.mxu0 0.0
        %927 = vmatprep.subr.mxu0 0.0
        %928 = vmatpush1.msra.mxu0 0.0
        %929 = vmatprep.subr.mxu0 0.0
        %930 = vmatpush1.msra.mxu0 0.0
        %931 = vmatprep.subr.mxu0 0.0
        %932 = vmatpush1.msra.mxu0 0.0
        %933 = vmatprep.subr.mxu0 0.0
        %934 = vmatpush1.msra.mxu0 0.0
        %935 = vmatprep.subr.mxu0 0.0
        %936 = vmatpush1.msra.mxu0 0.0
        %937 = vmatprep.subr.mxu0 0.0
        %938 = vmatpush1.msra.mxu0 0.0
        %939 = vmatprep.subr.mxu0 0.0
        %940 = vmatpush1.msra.mxu0 0.0
        %941 = vmatprep.subr.mxu0 0.0
        %942 = vmatpush1.msra.mxu0 0.0
        %943 = vmatprep.subr.mxu0 0.0
        %944 = vmatpush1.msra.mxu0 0.0
        %945 = vmatprep.mubr.f32.mxu0 0.0
        %946 = vmatmul.mubr.f32.gmra.mrb[0].mxu0 %v879
        %v947 = vpop.f32.mrb[0].mxu0
        %v948 = vadd.f32 0.0, %v947
        %v949 = vpop.f32.mrb[0].mxu0
        %950 = vdwg.mxu0
        %v952 = vlaneseq
        %v953 = vshrl.u32 %v952, 7
        %v954 = vsub.s32 0, %v953
        %v955 = vrot.slane %v700, %v954
        %v957 = vadd.f32 %v955, %v948
        %958 = vrot.lane.b32.xlu0 %v693, 120
        %v959 = vpop.permute.xlu0 %958
        %960 = vrot.lane.b32.xlu0 %v693, 88
        %v961 = vpop.permute.xlu0 %960
        %v962 = vsel %vm704, %v959, 0
        %v964 = vsel %vm704, %v961, 0
        %966 = vmatprep.subr.mxu0 0.0
        %967 = vmatpush1.xpose.msra.mxu0 %v964
        %968 = vmatprep.subr.mxu0 0.0
        %969 = vmatpush1.xpose.msra.mxu0 0.0
        %970 = vmatprep.subr.mxu0 0.0
        %971 = vmatpush1.xpose.msra.mxu0 0.0
        %972 = vmatprep.subr.mxu0 0.0
        %973 = vmatpush1.xpose.msra.mxu0 0.0
        %974 = vmatprep.subr.mxu0 0.0
        %975 = vmatpush1.xpose.msra.mxu0 0.0
        %976 = vmatprep.subr.mxu0 0.0
        %977 = vmatpush1.xpose.msra.mxu0 0.0
        %978 = vmatprep.subr.mxu0 0.0
        %979 = vmatpush1.xpose.msra.mxu0 0.0
        %980 = vmatprep.subr.mxu0 0.0
        %981 = vmatpush1.xpose.msra.mxu0 0.0
        %982 = vmatprep.subr.mxu0 0.0
        %983 = vmatpush1.xpose.msra.mxu0 0.0
        %984 = vmatprep.subr.mxu0 0.0
        %985 = vmatpush1.xpose.msra.mxu0 0.0
        %986 = vmatprep.subr.mxu0 0.0
        %987 = vmatpush1.xpose.msra.mxu0 0.0
        %988 = vmatprep.subr.mxu0 0.0
        %989 = vmatpush1.xpose.msra.mxu0 0.0
        %990 = vmatprep.subr.mxu0 0.0
        %991 = vmatpush1.xpose.msra.mxu0 0.0
        %992 = vmatprep.subr.mxu0 0.0
        %993 = vmatpush1.xpose.msra.mxu0 0.0
        %994 = vmatprep.subr.mxu0 0.0
        %995 = vmatpush1.xpose.msra.mxu0 0.0
        %996 = vmatprep.subr.mxu0 0.0
        %997 = vmatpush1.xpose.msra.mxu0 0.0
        %998 = vmatprep.subr.mxu0 0.0
        %999 = vmatpush1.xpose.msra.mxu0 0.0
        %1000 = vmatprep.subr.mxu0 0.0
        %1001 = vmatpush1.xpose.msra.mxu0 0.0
        %1002 = vmatprep.subr.mxu0 0.0
        %1003 = vmatpush1.xpose.msra.mxu0 0.0
        %1004 = vmatprep.subr.mxu0 0.0
        %1005 = vmatpush1.xpose.msra.mxu0 0.0
        %1006 = vmatprep.subr.mxu0 0.0
        %1007 = vmatpush1.xpose.msra.mxu0 0.0
        %1008 = vmatprep.subr.mxu0 0.0
        %1009 = vmatpush1.xpose.msra.mxu0 0.0
        %1010 = vmatprep.subr.mxu0 0.0
        %1011 = vmatpush1.xpose.msra.mxu0 0.0
        %1012 = vmatprep.subr.mxu0 0.0
        %1013 = vmatpush1.xpose.msra.mxu0 0.0
        %1014 = vmatprep.subr.mxu0 0.0
        %1015 = vmatpush1.xpose.msra.mxu0 0.0
        %1016 = vmatprep.subr.mxu0 0.0
        %1017 = vmatpush1.xpose.msra.mxu0 0.0
        %1018 = vmatprep.subr.mxu0 0.0
        %1019 = vmatpush1.xpose.msra.mxu0 0.0
        %1020 = vmatprep.subr.mxu0 0.0
        %1021 = vmatpush1.xpose.msra.mxu0 0.0
        %1022 = vmatprep.subr.mxu0 0.0
        %1023 = vmatpush1.xpose.msra.mxu0 0.0
        %1024 = vmatprep.subr.mxu0 0.0
        %1025 = vmatpush1.xpose.msra.mxu0 0.0
        %1026 = vmatprep.subr.mxu0 0.0
        %1027 = vmatpush1.xpose.msra.mxu0 0.0
        %1028 = vmatprep.subr.mxu0 0.0
        %1029 = vmatpush1.xpose.msra.mxu0 0.0
        %1030 = vmatprep.mubr.f32.mxu0 0.0
        %1031 = vmatmul.mubr.f32.gmra.mrb[0].mxu0 %v962
        %v1032 = vpop.f32.mrb[0].mxu0
        %v1033 = vadd.f32 0.0, %v1032
        %v1034 = vpop.f32.mrb[0].mxu0
        %1035 = vdwg.mxu0
        %v1036 = vmul.f32 %v1033, 0.35355338
        %v1037 = vadd.f32 %v1036, %v784
        %v1038 = vsel %vm787, %v1037, -inf
        %1039 = vmax.xlane.f32.xlu0 %v1038
        %v1040 = vpop.xlane.xlu0 %1039
        %v1041 = vsub.f32 %v1037, %v1040
        %v1042 = vmul.f32 %v1041, 1.442695
        %v1043 = vpow.pop %v1042
        %v1044 = vsel %vm787, %v1043, 0.0
        %1045 = vadd.xlane.f32.xlu0 %v1044
        %v1046 = vpop.xlane.xlu0 %1045
        %v1047 = vrcp.pop %v1046
        %v1048 = vmul.f32 %v1043, %v1047
        %1049 = vrot.lane.b32.xlu0 %v693, 56
        %v1050 = vpop.permute.xlu0 %1049
        %v1052 = vsel %vm801, %v1048, 0
        %v1054 = vsel %vm805, %v1050, 0
        %1056 = vmatprep.subr.mxu0 0.0
        %1057 = vmatpush1.msra.mxu0 %v1054
        %1058 = vmatprep.subr.mxu0 0.0
        %1059 = vmatpush1.msra.mxu0 0.0
        %1060 = vmatprep.subr.mxu0 0.0
        %1061 = vmatpush1.msra.mxu0 0.0
        %1062 = vmatprep.subr.mxu0 0.0
        %1063 = vmatpush1.msra.mxu0 0.0
        %1064 = vmatprep.subr.mxu0 0.0
        %1065 = vmatpush1.msra.mxu0 0.0
        %1066 = vmatprep.subr.mxu0 0.0
        %1067 = vmatpush1.msra.mxu0 0.0
        %1068 = vmatprep.subr.mxu0 0.0
        %1069 = vmatpush1.msra.mxu0 0.0
        %1070 = vmatprep.subr.mxu0 0.0
        %1071 = vmatpush1.msra.mxu0 0.0
        %1072 = vmatprep.subr.mxu0 0.0
        %1073 = vmatpush1.msra.mxu0 0.0
        %1074 = vmatprep.subr.mxu0 0.0
        %1075 = vmatpush1.msra.mxu0 0.0
        %1076 = vmatprep.subr.mxu0 0.0
        %1077 = vmatpush1.msra.mxu0 0.0
        %1078 = vmatprep.subr.mxu0 0.0
        %1079 = vmatpush1.msra.mxu0 0.0
        %1080 = vmatprep.subr.mxu0 0.0
        %1081 = vmatpush1.msra.mxu0 0.0
        %1082 = vmatprep.subr.mxu0 0.0
        %1083 = vmatpush1.msra.mxu0 0.0
        %1084 = vmatprep.subr.mxu0 0.0
        %1085 = vmatpush1.msra.mxu0 0.0
        %1086 = vmatprep.subr.mxu0 0.0
        %1087 = vmatpush1.msra.mxu0 0.0
        %1088 = vmatprep.subr.mxu0 0.0
        %1089 = vmatpush1.msra.mxu0 0.0
        %1090 = vmatprep.subr.mxu0 0.0
        %1091 = vmatpush1.msra.mxu0 0.0
        %1092 = vmatprep.subr.mxu0 0.0
        %1093 = vmatpush1.msra.mxu0 0.0
        %1094 = vmatprep.subr.mxu0 0.0
        %1095 = vmatpush1.msra.mxu0 0.0
        %1096 = vmatprep.subr.mxu0 0.0
        %1097 = vmatpush1.msra.mxu0 0.0
        %1098 = vmatprep.subr.mxu0 0.0
        %1099 = vmatpush1.msra.mxu0 0.0
        %1100 = vmatprep.subr.mxu0 0.0
        %1101 = vmatpush1.msra.mxu0 0.0
        %1102 = vmatprep.subr.mxu0 0.0
        %1103 = vmatpush1.msra.mxu0 0.0
        %1104 = vmatprep.subr.mxu0 0.0
        %1105 = vmatpush1.msra.mxu0 0.0
        %1106 = vmatprep.subr.mxu0 0.0
        %1107 = vmatpush1.msra.mxu0 0.0
        %1108 = vmatprep.subr.mxu0 0.0
        %1109 = vmatpush1.msra.mxu0 0.0
        %1110 = vmatprep.subr.mxu0 0.0
        %1111 = vmatpush1.msra.mxu0 0.0
        %1112 = vmatprep.subr.mxu0 0.0
        %1113 = vmatpush1.msra.mxu0 0.0
        %1114 = vmatprep.subr.mxu0 0.0
        %1115 = vmatpush1.msra.mxu0 0.0
        %1116 = vmatprep.subr.mxu0 0.0
        %1117 = vmatpush1.msra.mxu0 0.0
        %1118 = vmatprep.subr.mxu0 0.0
        %1119 = vmatpush1.msra.mxu0 0.0
        %1120 = vmatprep.mubr.f32.mxu0 0.0
        %1121 = vmatmul.mubr.f32.gmra.mrb[0].mxu0 %v1052
        %v1122 = vpop.f32.mrb[0].mxu0
        %v1123 = vadd.f32 0.0, %v1122
        %v1124 = vpop.f32.mrb[0].mxu0
        %1125 = vdwg.mxu0
        %v1127 = vsel %vm704, %v1123, 0
        %1129 = vmatprep.subr.mxu0 0.0
        %1130 = vmatpush1.msra.mxu0 %v697
        %1131 = vmatprep.subr.mxu0 0.0
        %1132 = vmatpush1.msra.mxu0 0.0
        %1133 = vmatprep.subr.mxu0 0.0
        %1134 = vmatpush1.msra.mxu0 0.0
        %1135 = vmatprep.subr.mxu0 0.0
        %1136 = vmatpush1.msra.mxu0 0.0
        %1137 = vmatprep.subr.mxu0 0.0
        %1138 = vmatpush1.msra.mxu0 0.0
        %1139 = vmatprep.subr.mxu0 0.0
        %1140 = vmatpush1.msra.mxu0 0.0
        %1141 = vmatprep.subr.mxu0 0.0
        %1142 = vmatpush1.msra.mxu0 0.0
        %1143 = vmatprep.subr.mxu0 0.0
        %1144 = vmatpush1.msra.mxu0 0.0
        %1145 = vmatprep.subr.mxu0 0.0
        %1146 = vmatpush1.msra.mxu0 0.0
        %1147 = vmatprep.subr.mxu0 0.0
        %1148 = vmatpush1.msra.mxu0 0.0
        %1149 = vmatprep.subr.mxu0 0.0
        %1150 = vmatpush1.msra.mxu0 0.0
        %1151 = vmatprep.subr.mxu0 0.0
        %1152 = vmatpush1.msra.mxu0 0.0
        %1153 = vmatprep.subr.mxu0 0.0
        %1154 = vmatpush1.msra.mxu0 0.0
        %1155 = vmatprep.subr.mxu0 0.0
        %1156 = vmatpush1.msra.mxu0 0.0
        %1157 = vmatprep.subr.mxu0 0.0
        %1158 = vmatpush1.msra.mxu0 0.0
        %1159 = vmatprep.subr.mxu0 0.0
        %1160 = vmatpush1.msra.mxu0 0.0
        %1161 = vmatprep.subr.mxu0 0.0
        %1162 = vmatpush1.msra.mxu0 0.0
        %1163 = vmatprep.subr.mxu0 0.0
        %1164 = vmatpush1.msra.mxu0 0.0
        %1165 = vmatprep.subr.mxu0 0.0
        %1166 = vmatpush1.msra.mxu0 0.0
        %1167 = vmatprep.subr.mxu0 0.0
        %1168 = vmatpush1.msra.mxu0 0.0
        %1169 = vmatprep.subr.mxu0 0.0
        %1170 = vmatpush1.msra.mxu0 0.0
        %1171 = vmatprep.subr.mxu0 0.0
        %1172 = vmatpush1.msra.mxu0 0.0
        %1173 = vmatprep.subr.mxu0 0.0
        %1174 = vmatpush1.msra.mxu0 0.0
        %1175 = vmatprep.subr.mxu0 0.0
        %1176 = vmatpush1.msra.mxu0 0.0
        %1177 = vmatprep.subr.mxu0 0.0
        %1178 = vmatpush1.msra.mxu0 0.0
        %1179 = vmatprep.subr.mxu0 0.0
        %1180 = vmatpush1.msra.mxu0 0.0
        %1181 = vmatprep.subr.mxu0 0.0
        %1182 = vmatpush1.msra.mxu0 0.0
        %1183 = vmatprep.subr.mxu0 0.0
        %1184 = vmatpush1.msra.mxu0 0.0
        %1185 = vmatprep.subr.mxu0 0.0
        %1186 = vmatpush1.msra.mxu0 0.0
        %1187 = vmatprep.subr.mxu0 0.0
        %1188 = vmatpush1.msra.mxu0 0.0
        %1189 = vmatprep.subr.mxu0 0.0
        %1190 = vmatpush1.msra.mxu0 0.0
        %1191 = vmatprep.subr.mxu0 0.0
        %1192 = vmatpush1.msra.mxu0 0.0
        %1193 = vmatprep.mubr.f32.mxu0 0.0
        %1194 = vmatmul.mubr.f32.gmra.mrb[0].mxu0 %v1127
        %v1195 = vpop.f32.mrb[0].mxu0
        %v1196 = vadd.f32 0.0, %v1195
        %v1197 = vpop.f32.mrb[0].mxu0
        %1198 = vdwg.mxu0
        %v1199 = vadd.f32 %v957, %v1196
        %1200 = vrot.lane.b32.xlu0 %v693, 112
        %v1201 = vpop.permute.xlu0 %1200
        %1202 = vrot.lane.b32.xlu0 %v693, 80
        %v1203 = vpop.permute.xlu0 %1202
        %v1204 = vsel %vm704, %v1201, 0
        %v1206 = vsel %vm704, %v1203, 0
        %1208 = vmatprep.subr.mxu0 0.0
        %1209 = vmatpush1.xpose.msra.mxu0 %v1206
        %1210 = vmatprep.subr.mxu0 0.0
        %1211 = vmatpush1.xpose.msra.mxu0 0.0
        %1212 = vmatprep.subr.mxu0 0.0
        %1213 = vmatpush1.xpose.msra.mxu0 0.0
        %1214 = vmatprep.subr.mxu0 0.0
        %1215 = vmatpush1.xpose.msra.mxu0 0.0
        %1216 = vmatprep.subr.mxu0 0.0
        %1217 = vmatpush1.xpose.msra.mxu0 0.0
        %1218 = vmatprep.subr.mxu0 0.0
        %1219 = vmatpush1.xpose.msra.mxu0 0.0
        %1220 = vmatprep.subr.mxu0 0.0
        %1221 = vmatpush1.xpose.msra.mxu0 0.0
        %1222 = vmatprep.subr.mxu0 0.0
        %1223 = vmatpush1.xpose.msra.mxu0 0.0
        %1224 = vmatprep.subr.mxu0 0.0
        %1225 = vmatpush1.xpose.msra.mxu0 0.0
        %1226 = vmatprep.subr.mxu0 0.0
        %1227 = vmatpush1.xpose.msra.mxu0 0.0
        %1228 = vmatprep.subr.mxu0 0.0
        %1229 = vmatpush1.xpose.msra.mxu0 0.0
        %1230 = vmatprep.subr.mxu0 0.0
        %1231 = vmatpush1.xpose.msra.mxu0 0.0
        %1232 = vmatprep.subr.mxu0 0.0
        %1233 = vmatpush1.xpose.msra.mxu0 0.0
        %1234 = vmatprep.subr.mxu0 0.0
        %1235 = vmatpush1.xpose.msra.mxu0 0.0
        %1236 = vmatprep.subr.mxu0 0.0
        %1237 = vmatpush1.xpose.msra.mxu0 0.0
        %1238 = vmatprep.subr.mxu0 0.0
        %1239 = vmatpush1.xpose.msra.mxu0 0.0
        %1240 = vmatprep.subr.mxu0 0.0
        %1241 = vmatpush1.xpose.msra.mxu0 0.0
        %1242 = vmatprep.subr.mxu0 0.0
        %1243 = vmatpush1.xpose.msra.mxu0 0.0
        %1244 = vmatprep.subr.mxu0 0.0
        %1245 = vmatpush1.xpose.msra.mxu0 0.0
        %1246 = vmatprep.subr.mxu0 0.0
        %1247 = vmatpush1.xpose.msra.mxu0 0.0
        %1248 = vmatprep.subr.mxu0 0.0
        %1249 = vmatpush1.xpose.msra.mxu0 0.0
        %1250 = vmatprep.subr.mxu0 0.0
        %1251 = vmatpush1.xpose.msra.mxu0 0.0
        %1252 = vmatprep.subr.mxu0 0.0
        %1253 = vmatpush1.xpose.msra.mxu0 0.0
        %1254 = vmatprep.subr.mxu0 0.0
        %1255 = vmatpush1.xpose.msra.mxu0 0.0
        %1256 = vmatprep.subr.mxu0 0.0
        %1257 = vmatpush1.xpose.msra.mxu0 0.0
        %1258 = vmatprep.subr.mxu0 0.0
        %1259 = vmatpush1.xpose.msra.mxu0 0.0
        %1260 = vmatprep.subr.mxu0 0.0
        %1261 = vmatpush1.xpose.msra.mxu0 0.0
        %1262 = vmatprep.subr.mxu0 0.0
        %1263 = vmatpush1.xpose.msra.mxu0 0.0
        %1264 = vmatprep.subr.mxu0 0.0
        %1265 = vmatpush1.xpose.msra.mxu0 0.0
        %1266 = vmatprep.subr.mxu0 0.0
        %1267 = vmatpush1.xpose.msra.mxu0 0.0
        %1268 = vmatprep.subr.mxu0 0.0
        %1269 = vmatpush1.xpose.msra.mxu0 0.0
        %1270 = vmatprep.subr.mxu0 0.0
        %1271 = vmatpush1.xpose.msra.mxu0 0.0
        %1272 = vmatprep.mubr.f32.mxu0 0.0
        %1273 = vmatmul.mubr.f32.gmra.mrb[0].mxu0 %v1204
        %v1274 = vpop.f32.mrb[0].mxu0
        %v1275 = vadd.f32 0.0, %v1274
        %v1276 = vpop.f32.mrb[0].mxu0
        %1277 = vdwg.mxu0
        %v1278 = vmul.f32 %v1275, 0.35355338
        %v1279 = vadd.f32 %v1278, %v784
        %v1280 = vsel %vm787, %v1279, -inf
        %1281 = vmax.xlane.f32.xlu0 %v1280
        %v1282 = vpop.xlane.xlu0 %1281
        %v1283 = vsub.f32 %v1279, %v1282
        %v1284 = vmul.f32 %v1283, 1.442695
        %v1285 = vpow.pop %v1284
        %v1286 = vsel %vm787, %v1285, 0.0
        %1287 = vadd.xlane.f32.xlu0 %v1286
        %v1288 = vpop.xlane.xlu0 %1287
        %v1289 = vrcp.pop %v1288
        %v1290 = vmul.f32 %v1285, %v1289
        %1291 = vrot.lane.b32.xlu0 %v693, 48
        %v1292 = vpop.permute.xlu0 %1291
        %v1294 = vsel %vm801, %v1290, 0
        %v1296 = vsel %vm805, %v1292, 0
        %1298 = vmatprep.subr.mxu0 0.0
        %1299 = vmatpush1.msra.mxu0 %v1296
        %1300 = vmatprep.subr.mxu0 0.0
        %1301 = vmatpush1.msra.mxu0 0.0
        %1302 = vmatprep.subr.mxu0 0.0
        %1303 = vmatpush1.msra.mxu0 0.0
        %1304 = vmatprep.subr.mxu0 0.0
        %1305 = vmatpush1.msra.mxu0 0.0
        %1306 = vmatprep.subr.mxu0 0.0
        %1307 = vmatpush1.msra.mxu0 0.0
        %1308 = vmatprep.subr.mxu0 0.0
        %1309 = vmatpush1.msra.mxu0 0.0
        %1310 = vmatprep.subr.mxu0 0.0
        %1311 = vmatpush1.msra.mxu0 0.0
        %1312 = vmatprep.subr.mxu0 0.0
        %1313 = vmatpush1.msra.mxu0 0.0
        %1314 = vmatprep.subr.mxu0 0.0
        %1315 = vmatpush1.msra.mxu0 0.0
        %1316 = vmatprep.subr.mxu0 0.0
        %1317 = vmatpush1.msra.mxu0 0.0
        %1318 = vmatprep.subr.mxu0 0.0
        %1319 = vmatpush1.msra.mxu0 0.0
        %1320 = vmatprep.subr.mxu0 0.0
        %1321 = vmatpush1.msra.mxu0 0.0
        %1322 = vmatprep.subr.mxu0 0.0
        %1323 = vmatpush1.msra.mxu0 0.0
        %1324 = vmatprep.subr.mxu0 0.0
        %1325 = vmatpush1.msra.mxu0 0.0
        %1326 = vmatprep.subr.mxu0 0.0
        %1327 = vmatpush1.msra.mxu0 0.0
        %1328 = vmatprep.subr.mxu0 0.0
        %1329 = vmatpush1.msra.mxu0 0.0
        %1330 = vmatprep.subr.mxu0 0.0
        %1331 = vmatpush1.msra.mxu0 0.0
        %1332 = vmatprep.subr.mxu0 0.0
        %1333 = vmatpush1.msra.mxu0 0.0
        %1334 = vmatprep.subr.mxu0 0.0
        %1335 = vmatpush1.msra.mxu0 0.0
        %1336 = vmatprep.subr.mxu0 0.0
        %1337 = vmatpush1.msra.mxu0 0.0
        %1338 = vmatprep.subr.mxu0 0.0
        %1339 = vmatpush1.msra.mxu0 0.0
        %1340 = vmatprep.subr.mxu0 0.0
        %1341 = vmatpush1.msra.mxu0 0.0
        %1342 = vmatprep.subr.mxu0 0.0
        %1343 = vmatpush1.msra.mxu0 0.0
        %1344 = vmatprep.subr.mxu0 0.0
        %1345 = vmatpush1.msra.mxu0 0.0
        %1346 = vmatprep.subr.mxu0 0.0
        %1347 = vmatpush1.msra.mxu0 0.0
        %1348 = vmatprep.subr.mxu0 0.0
        %1349 = vmatpush1.msra.mxu0 0.0
        %1350 = vmatprep.subr.mxu0 0.0
        %1351 = vmatpush1.msra.mxu0 0.0
        %1352 = vmatprep.subr.mxu0 0.0
        %1353 = vmatpush1.msra.mxu0 0.0
        %1354 = vmatprep.subr.mxu0 0.0
        %1355 = vmatpush1.msra.mxu0 0.0
        %1356 = vmatprep.subr.mxu0 0.0
        %1357 = vmatpush1.msra.mxu0 0.0
        %1358 = vmatprep.subr.mxu0 0.0
        %1359 = vmatpush1.msra.mxu0 0.0
        %1360 = vmatprep.subr.mxu0 0.0
        %1361 = vmatpush1.msra.mxu0 0.0
        %1362 = vmatprep.mubr.f32.mxu0 0.0
        %1363 = vmatmul.mubr.f32.gmra.mrb[0].mxu0 %v1294
        %v1364 = vpop.f32.mrb[0].mxu0
        %v1365 = vadd.f32 0.0, %v1364
        %v1366 = vpop.f32.mrb[0].mxu0
        %1367 = vdwg.mxu0
        %v1369 = vsel %vm704, %v1365, 0
        %1371 = vmatprep.subr.mxu0 0.0
        %1372 = vmatpush1.msra.mxu0 %v698
        %1373 = vmatprep.subr.mxu0 0.0
        %1374 = vmatpush1.msra.mxu0 0.0
        %1375 = vmatprep.subr.mxu0 0.0
        %1376 = vmatpush1.msra.mxu0 0.0
        %1377 = vmatprep.subr.mxu0 0.0
        %1378 = vmatpush1.msra.mxu0 0.0
        %1379 = vmatprep.subr.mxu0 0.0
        %1380 = vmatpush1.msra.mxu0 0.0
        %1381 = vmatprep.subr.mxu0 0.0
        %1382 = vmatpush1.msra.mxu0 0.0
        %1383 = vmatprep.subr.mxu0 0.0
        %1384 = vmatpush1.msra.mxu0 0.0
        %1385 = vmatprep.subr.mxu0 0.0
        %1386 = vmatpush1.msra.mxu0 0.0
        %1387 = vmatprep.subr.mxu0 0.0
        %1388 = vmatpush1.msra.mxu0 0.0
        %1389 = vmatprep.subr.mxu0 0.0
        %1390 = vmatpush1.msra.mxu0 0.0
        %1391 = vmatprep.subr.mxu0 0.0
        %1392 = vmatpush1.msra.mxu0 0.0
        %1393 = vmatprep.subr.mxu0 0.0
        %1394 = vmatpush1.msra.mxu0 0.0
        %1395 = vmatprep.subr.mxu0 0.0
        %1396 = vmatpush1.msra.mxu0 0.0
        %1397 = vmatprep.subr.mxu0 0.0
        %1398 = vmatpush1.msra.mxu0 0.0
        %1399 = vmatprep.subr.mxu0 0.0
        %1400 = vmatpush1.msra.mxu0 0.0
        %1401 = vmatprep.subr.mxu0 0.0
        %1402 = vmatpush1.msra.mxu0 0.0
        %1403 = vmatprep.subr.mxu0 0.0
        %1404 = vmatpush1.msra.mxu0 0.0
        %1405 = vmatprep.subr.mxu0 0.0
        %1406 = vmatpush1.msra.mxu0 0.0
        %1407 = vmatprep.subr.mxu0 0.0
        %1408 = vmatpush1.msra.mxu0 0.0
        %1409 = vmatprep.subr.mxu0 0.0
        %1410 = vmatpush1.msra.mxu0 0.0
        %1411 = vmatprep.subr.mxu0 0.0
        %1412 = vmatpush1.msra.mxu0 0.0
        %1413 = vmatprep.subr.mxu0 0.0
        %1414 = vmatpush1.msra.mxu0 0.0
        %1415 = vmatprep.subr.mxu0 0.0
        %1416 = vmatpush1.msra.mxu0 0.0
        %1417 = vmatprep.subr.mxu0 0.0
        %1418 = vmatpush1.msra.mxu0 0.0
        %1419 = vmatprep.subr.mxu0 0.0
        %1420 = vmatpush1.msra.mxu0 0.0
        %1421 = vmatprep.subr.mxu0 0.0
        %1422 = vmatpush1.msra.mxu0 0.0
        %1423 = vmatprep.subr.mxu0 0.0
        %1424 = vmatpush1.msra.mxu0 0.0
        %1425 = vmatprep.subr.mxu0 0.0
        %1426 = vmatpush1.msra.mxu0 0.0
        %1427 = vmatprep.subr.mxu0 0.0
        %1428 = vmatpush1.msra.mxu0 0.0
        %1429 = vmatprep.subr.mxu0 0.0
        %1430 = vmatpush1.msra.mxu0 0.0
        %1431 = vmatprep.subr.mxu0 0.0
        %1432 = vmatpush1.msra.mxu0 0.0
        %1433 = vmatprep.subr.mxu0 0.0
        %1434 = vmatpush1.msra.mxu0 0.0
        %1435 = vmatprep.mubr.f32.mxu0 0.0
        %1436 = vmatmul.mubr.f32.gmra.mrb[0].mxu0 %v1369
        %v1437 = vpop.f32.mrb[0].mxu0
        %v1438 = vadd.f32 0.0, %v1437
        %v1439 = vpop.f32.mrb[0].mxu0
        %1440 = vdwg.mxu0
        %v1441 = vadd.f32 %v1199, %v1438
        %1442 = vrot.lane.b32.xlu0 %v693, 104
        %v1443 = vpop.permute.xlu0 %1442
        %1444 = vrot.lane.b32.xlu0 %v693, 72
        %v1445 = vpop.permute.xlu0 %1444
        %v1446 = vsel %vm704, %v1443, 0
        %v1448 = vsel %vm704, %v1445, 0
        %1450 = vmatprep.subr.mxu0 0.0
        %1451 = vmatpush1.xpose.msra.mxu0 %v1448
        %1452 = vmatprep.subr.mxu0 0.0
        %1453 = vmatpush1.xpose.msra.mxu0 0.0
        %1454 = vmatprep.subr.mxu0 0.0
        %1455 = vmatpush1.xpose.msra.mxu0 0.0
        %1456 = vmatprep.subr.mxu0 0.0
        %1457 = vmatpush1.xpose.msra.mxu0 0.0
        %1458 = vmatprep.subr.mxu0 0.0
        %1459 = vmatpush1.xpose.msra.mxu0 0.0
        %1460 = vmatprep.subr.mxu0 0.0
        %1461 = vmatpush1.xpose.msra.mxu0 0.0
        %1462 = vmatprep.subr.mxu0 0.0
        %1463 = vmatpush1.xpose.msra.mxu0 0.0
        %1464 = vmatprep.subr.mxu0 0.0
        %1465 = vmatpush1.xpose.msra.mxu0 0.0
        %1466 = vmatprep.subr.mxu0 0.0
        %1467 = vmatpush1.xpose.msra.mxu0 0.0
        %1468 = vmatprep.subr.mxu0 0.0
        %1469 = vmatpush1.xpose.msra.mxu0 0.0
        %1470 = vmatprep.subr.mxu0 0.0
        %1471 = vmatpush1.xpose.msra.mxu0 0.0
        %1472 = vmatprep.subr.mxu0 0.0
        %1473 = vmatpush1.xpose.msra.mxu0 0.0
        %1474 = vmatprep.subr.mxu0 0.0
        %1475 = vmatpush1.xpose.msra.mxu0 0.0
        %1476 = vmatprep.subr.mxu0 0.0
        %1477 = vmatpush1.xpose.msra.mxu0 0.0
        %1478 = vmatprep.subr.mxu0 0.0
        %1479 = vmatpush1.xpose.msra.mxu0 0.0
        %1480 = vmatprep.subr.mxu0 0.0
        %1481 = vmatpush1.xpose.msra.mxu0 0.0
        %1482 = vmatprep.subr.mxu0 0.0
        %1483 = vmatpush1.xpose.msra.mxu0 0.0
        %1484 = vmatprep.subr.mxu0 0.0
        %1485 = vmatpush1.xpose.msra.mxu0 0.0
        %1486 = vmatprep.subr.mxu0 0.0
        %1487 = vmatpush1.xpose.msra.mxu0 0.0
        %1488 = vmatprep.subr.mxu0 0.0
        %1489 = vmatpush1.xpose.msra.mxu0 0.0
        %1490 = vmatprep.subr.mxu0 0.0
        %1491 = vmatpush1.xpose.msra.mxu0 0.0
        %1492 = vmatprep.subr.mxu0 0.0
        %1493 = vmatpush1.xpose.msra.mxu0 0.0
        %1494 = vmatprep.subr.mxu0 0.0
        %1495 = vmatpush1.xpose.msra.mxu0 0.0
        %1496 = vmatprep.subr.mxu0 0.0
        %1497 = vmatpush1.xpose.msra.mxu0 0.0
        %1498 = vmatprep.subr.mxu0 0.0
        %1499 = vmatpush1.xpose.msra.mxu0 0.0
        %1500 = vmatprep.subr.mxu0 0.0
        %1501 = vmatpush1.xpose.msra.mxu0 0.0
        %1502 = vmatprep.subr.mxu0 0.0
        %1503 = vmatpush1.xpose.msra.mxu0 0.0
        %1504 = vmatprep.subr.mxu0 0.0
        %1505 = vmatpush1.xpose.msra.mxu0 0.0
        %1506 = vmatprep.subr.mxu0 0.0
        %1507 = vmatpush1.xpose.msra.mxu0 0.0
        %1508 = vmatprep.subr.mxu0 0.0
        %1509 = vmatpush1.xpose.msra.mxu0 0.0
        %1510 = vmatprep.subr.mxu0 0.0
        %1511 = vmatpush1.xpose.msra.mxu0 0.0
        %1512 = vmatprep.subr.mxu0 0.0
        %1513 = vmatpush1.xpose.msra.mxu0 0.0
        %1514 = vmatprep.mubr.f32.mxu0 0.0
        %1515 = vmatmul.mubr.f32.gmra.mrb[0].mxu0 %v1446
        %v1516 = vpop.f32.mrb[0].mxu0
        %v1517 = vadd.f32 0.0, %v1516
        %v1518 = vpop.f32.mrb[0].mxu0
        %1519 = vdwg.mxu0
        %v1520 = vmul.f32 %v1517, 0.35355338
        %v1521 = vadd.f32 %v1520, %v784
        %v1522 = vsel %vm787, %v1521, -inf
        %1523 = vmax.xlane.f32.xlu0 %v1522
        %v1524 = vpop.xlane.xlu0 %1523
        %v1525 = vsub.f32 %v1521, %v1524
        %v1526 = vmul.f32 %v1525, 1.442695
        %v1527 = vpow.pop %v1526
        %v1528 = vsel %vm787, %v1527, 0.0
        %1529 = vadd.xlane.f32.xlu0 %v1528
        %v1530 = vpop.xlane.xlu0 %1529
        %v1531 = vrcp.pop %v1530
        %v1532 = vmul.f32 %v1527, %v1531
        %1533 = vrot.lane.b32.xlu0 %v693, 40
        %v1534 = vpop.permute.xlu0 %1533
        %v1536 = vsel %vm801, %v1532, 0
        %v1538 = vsel %vm805, %v1534, 0
        %1540 = vmatprep.subr.mxu0 0.0
        %1541 = vmatpush1.msra.mxu0 %v1538
        %1542 = vmatprep.subr.mxu0 0.0
        %1543 = vmatpush1.msra.mxu0 0.0
        %1544 = vmatprep.subr.mxu0 0.0
        %1545 = vmatpush1.msra.mxu0 0.0
        %1546 = vmatprep.subr.mxu0 0.0
        %1547 = vmatpush1.msra.mxu0 0.0
        %1548 = vmatprep.subr.mxu0 0.0
        %1549 = vmatpush1.msra.mxu0 0.0
        %1550 = vmatprep.subr.mxu0 0.0
        %1551 = vmatpush1.msra.mxu0 0.0
        %1552 = vmatprep.subr.mxu0 0.0
        %1553 = vmatpush1.msra.mxu0 0.0
        %1554 = vmatprep.subr.mxu0 0.0
        %1555 = vmatpush1.msra.mxu0 0.0
        %1556 = vmatprep.subr.mxu0 0.0
        %1557 = vmatpush1.msra.mxu0 0.0
        %1558 = vmatprep.subr.mxu0 0.0
        %1559 = vmatpush1.msra.mxu0 0.0
        %1560 = vmatprep.subr.mxu0 0.0
        %1561 = vmatpush1.msra.mxu0 0.0
        %1562 = vmatprep.subr.mxu0 0.0
        %1563 = vmatpush1.msra.mxu0 0.0
        %1564 = vmatprep.subr.mxu0 0.0
        %1565 = vmatpush1.msra.mxu0 0.0
        %1566 = vmatprep.subr.mxu0 0.0
        %1567 = vmatpush1.msra.mxu0 0.0
        %1568 = vmatprep.subr.mxu0 0.0
        %1569 = vmatpush1.msra.mxu0 0.0
        %1570 = vmatprep.subr.mxu0 0.0
        %1571 = vmatpush1.msra.mxu0 0.0
        %1572 = vmatprep.subr.mxu0 0.0
        %1573 = vmatpush1.msra.mxu0 0.0
        %1574 = vmatprep.subr.mxu0 0.0
        %1575 = vmatpush1.msra.mxu0 0.0
        %1576 = vmatprep.subr.mxu0 0.0
        %1577 = vmatpush1.msra.mxu0 0.0
        %1578 = vmatprep.subr.mxu0 0.0
        %1579 = vmatpush1.msra.mxu0 0.0
        %1580 = vmatprep.subr.mxu0 0.0
        %1581 = vmatpush1.msra.mxu0 0.0
        %1582 = vmatprep.subr.mxu0 0.0
        %1583 = vmatpush1.msra.mxu0 0.0
        %1584 = vmatprep.subr.mxu0 0.0
        %1585 = vmatpush1.msra.mxu0 0.0
        %1586 = vmatprep.subr.mxu0 0.0
        %1587 = vmatpush1.msra.mxu0 0.0
        %1588 = vmatprep.subr.mxu0 0.0
        %1589 = vmatpush1.msra.mxu0 0.0
        %1590 = vmatprep.subr.mxu0 0.0
        %1591 = vmatpush1.msra.mxu0 0.0
        %1592 = vmatprep.subr.mxu0 0.0
        %1593 = vmatpush1.msra.mxu0 0.0
        %1594 = vmatprep.subr.mxu0 0.0
        %1595 = vmatpush1.msra.mxu0 0.0
        %1596 = vmatprep.subr.mxu0 0.0
        %1597 = vmatpush1.msra.mxu0 0.0
        %1598 = vmatprep.subr.mxu0 0.0
        %1599 = vmatpush1.msra.mxu0 0.0
        %1600 = vmatprep.subr.mxu0 0.0
        %1601 = vmatpush1.msra.mxu0 0.0
        %1602 = vmatprep.subr.mxu0 0.0
        %1603 = vmatpush1.msra.mxu0 0.0
        %1604 = vmatprep.mubr.f32.mxu0 0.0
        %1605 = vmatmul.mubr.f32.gmra.mrb[0].mxu0 %v1536
        %v1606 = vpop.f32.mrb[0].mxu0
        %v1607 = vadd.f32 0.0, %v1606
        %v1608 = vpop.f32.mrb[0].mxu0
        %1609 = vdwg.mxu0
        %v1611 = vsel %vm704, %v1607, 0
        %1613 = vmatprep.subr.mxu0 0.0
        %1614 = vmatpush1.msra.mxu0 %v699
        %1615 = vmatprep.subr.mxu0 0.0
        %1616 = vmatpush1.msra.mxu0 0.0
        %1617 = vmatprep.subr.mxu0 0.0
        %1618 = vmatpush1.msra.mxu0 0.0
        %1619 = vmatprep.subr.mxu0 0.0
        %1620 = vmatpush1.msra.mxu0 0.0
        %1621 = vmatprep.subr.mxu0 0.0
        %1622 = vmatpush1.msra.mxu0 0.0
        %1623 = vmatprep.subr.mxu0 0.0
        %1624 = vmatpush1.msra.mxu0 0.0
        %1625 = vmatprep.subr.mxu0 0.0
        %1626 = vmatpush1.msra.mxu0 0.0
        %1627 = vmatprep.subr.mxu0 0.0
        %1628 = vmatpush1.msra.mxu0 0.0
        %1629 = vmatprep.subr.mxu0 0.0
        %1630 = vmatpush1.msra.mxu0 0.0
        %1631 = vmatprep.subr.mxu0 0.0
        %1632 = vmatpush1.msra.mxu0 0.0
        %1633 = vmatprep.subr.mxu0 0.0
        %1634 = vmatpush1.msra.mxu0 0.0
        %1635 = vmatprep.subr.mxu0 0.0
        %1636 = vmatpush1.msra.mxu0 0.0
        %1637 = vmatprep.subr.mxu0 0.0
        %1638 = vmatpush1.msra.mxu0 0.0
        %1639 = vmatprep.subr.mxu0 0.0
        %1640 = vmatpush1.msra.mxu0 0.0
        %1641 = vmatprep.subr.mxu0 0.0
        %1642 = vmatpush1.msra.mxu0 0.0
        %1643 = vmatprep.subr.mxu0 0.0
        %1644 = vmatpush1.msra.mxu0 0.0
        %1645 = vmatprep.subr.mxu0 0.0
        %1646 = vmatpush1.msra.mxu0 0.0
        %1647 = vmatprep.subr.mxu0 0.0
        %1648 = vmatpush1.msra.mxu0 0.0
        %1649 = vmatprep.subr.mxu0 0.0
        %1650 = vmatpush1.msra.mxu0 0.0
        %1651 = vmatprep.subr.mxu0 0.0
        %1652 = vmatpush1.msra.mxu0 0.0
        %1653 = vmatprep.subr.mxu0 0.0
        %1654 = vmatpush1.msra.mxu0 0.0
        %1655 = vmatprep.subr.mxu0 0.0
        %1656 = vmatpush1.msra.mxu0 0.0
        %1657 = vmatprep.subr.mxu0 0.0
        %1658 = vmatpush1.msra.mxu0 0.0
        %1659 = vmatprep.subr.mxu0 0.0
        %1660 = vmatpush1.msra.mxu0 0.0
        %1661 = vmatprep.subr.mxu0 0.0
        %1662 = vmatpush1.msra.mxu0 0.0
        %1663 = vmatprep.subr.mxu0 0.0
        %1664 = vmatpush1.msra.mxu0 0.0
        %1665 = vmatprep.subr.mxu0 0.0
        %1666 = vmatpush1.msra.mxu0 0.0
        %1667 = vmatprep.subr.mxu0 0.0
        %1668 = vmatpush1.msra.mxu0 0.0
        %1669 = vmatprep.subr.mxu0 0.0
        %1670 = vmatpush1.msra.mxu0 0.0
        %1671 = vmatprep.subr.mxu0 0.0
        %1672 = vmatpush1.msra.mxu0 0.0
        %1673 = vmatprep.subr.mxu0 0.0
        %1674 = vmatpush1.msra.mxu0 0.0
        %1675 = vmatprep.subr.mxu0 0.0
        %1676 = vmatpush1.msra.mxu0 0.0
        %1677 = vmatprep.mubr.f32.mxu0 0.0
        %1678 = vmatmul.mubr.f32.gmra.mrb[0].mxu0 %v1611
        %v1679 = vpop.f32.mrb[0].mxu0
        %v1680 = vadd.f32 0.0, %v1679
        %v1681 = vpop.f32.mrb[0].mxu0
        %1682 = vdwg.mxu0
        %v1683 = vadd.f32 %v1441, %v1680
        %v1684 = vadd.f32 %v1683, %v584
        %v1685 = vsel %vm587, %v1684, 0.0
        %1686 = vadd.xlane.f32.xlu0 %v1685
        %v1687 = vpop.xlane.xlu0 %1686
        %v1688 = vmul.f32 %v1687, %v591
        %v1689 = vsub.f32 %v1684, %v1688
        %v1690 = vmul.f32 %v1689, %v1689
        %v1691 = vsel %vm587, %v1690, 0.0
        %1692 = vadd.xlane.f32.xlu0 %v1691
        %v1693 = vpop.xlane.xlu0 %1692
        %v1694 = vmul.f32 %v1693, %v591
        %v1695 = vadd.f32 %v1694, 1e-05
        %v1696 = vrsqrt.pop %v1695
        %v1697 = vmul.f32 %v1689, %v1696
        %v1698 = vld [vmem:[%s8] sm:$0x1]
        %v1700 = vlaneseq
        %v1701 = vshrl.u32 %v1700, 7
        %v1702 = vsub.s32 0, %v1701
        %v1703 = vrot.slane %v1698, %v1702
        %v1705 = vmul.f32 %v1697, %v1703
        %v1706 = vld [vmem:[%s9] sm:$0x1]
        %v1708 = vlaneseq
        %v1709 = vshrl.u32 %v1708, 7
        %v1710 = vsub.s32 0, %v1709
        %v1711 = vrot.slane %v1706, %v1710
        %v1713 = vadd.f32 %v1705, %v1711
        %v1714 = vld [vmem:[%s10] sm:$0xff]
        %v1715 = vld [vmem:[%s10 + $0x8] sm:$0xff]
        %v1716 = vld [vmem:[%s10 + $0x10] sm:$0xff]
        %v1717 = vld [vmem:[%s10 + $0x18] sm:$0xff]
        %v1718 = vld [vmem:[%s11] sm:$0x1]
        %v1720 = vlaneseq
        %v1721 = vshrl.u32 %v1720, 7
        %v1722 = vsub.s32 0, %v1721
        %v1723 = vrot.slane %v1718, %v1722
        %v1726 = vsel %vm622, %v1713, 0
        %1728 = vmatprep.subr.mxu0 0.0
        %1729 = vmatpush1.msra.mxu0 %v1714
        %1730 = vmatprep.subr.mxu0 0.0
        %1731 = vmatpush1.msra.mxu0 %v1715
        %1732 = vmatprep.subr.mxu0 0.0
        %1733 = vmatpush1.msra.mxu0 %v1716
        %1734 = vmatprep.subr.mxu0 0.0
        %1735 = vmatpush1.msra.mxu0 %v1717
        %1736 = vmatprep.subr.mxu0 0.0
        %1737 = vmatpush1.msra.mxu0 0.0
        %1738 = vmatprep.subr.mxu0 0.0
        %1739 = vmatpush1.msra.mxu0 0.0
        %1740 = vmatprep.subr.mxu0 0.0
        %1741 = vmatpush1.msra.mxu0 0.0
        %1742 = vmatprep.subr.mxu0 0.0
        %1743 = vmatpush1.msra.mxu0 0.0
        %1744 = vmatprep.subr.mxu0 0.0
        %1745 = vmatpush1.msra.mxu0 0.0
        %1746 = vmatprep.subr.mxu0 0.0
        %1747 = vmatpush1.msra.mxu0 0.0
        %1748 = vmatprep.subr.mxu0 0.0
        %1749 = vmatpush1.msra.mxu0 0.0
        %1750 = vmatprep.subr.mxu0 0.0
        %1751 = vmatpush1.msra.mxu0 0.0
        %1752 = vmatprep.subr.mxu0 0.0
        %1753 = vmatpush1.msra.mxu0 0.0
        %1754 = vmatprep.subr.mxu0 0.0
        %1755 = vmatpush1.msra.mxu0 0.0
        %1756 = vmatprep.subr.mxu0 0.0
        %1757 = vmatpush1.msra.mxu0 0.0
        %1758 = vmatprep.subr.mxu0 0.0
        %1759 = vmatpush1.msra.mxu0 0.0
        %1760 = vmatprep.subr.mxu0 0.0
        %1761 = vmatpush1.msra.mxu0 0.0
        %1762 = vmatprep.subr.mxu0 0.0
        %1763 = vmatpush1.msra.mxu0 0.0
        %1764 = vmatprep.subr.mxu0 0.0
        %1765 = vmatpush1.msra.mxu0 0.0
        %1766 = vmatprep.subr.mxu0 0.0
        %1767 = vmatpush1.msra.mxu0 0.0
        %1768 = vmatprep.subr.mxu0 0.0
        %1769 = vmatpush1.msra.mxu0 0.0
        %1770 = vmatprep.subr.mxu0 0.0
        %1771 = vmatpush1.msra.mxu0 0.0
        %1772 = vmatprep.subr.mxu0 0.0
        %1773 = vmatpush1.msra.mxu0 0.0
        %1774 = vmatprep.subr.mxu0 0.0
        %1775 = vmatpush1.msra.mxu0 0.0
        %1776 = vmatprep.subr.mxu0 0.0
        %1777 = vmatpush1.msra.mxu0 0.0
        %1778 = vmatprep.subr.mxu0 0.0
        %1779 = vmatpush1.msra.mxu0 0.0
        %1780 = vmatprep.subr.mxu0 0.0
        %1781 = vmatpush1.msra.mxu0 0.0
        %1782 = vmatprep.subr.mxu0 0.0
        %1783 = vmatpush1.msra.mxu0 0.0
        %1784 = vmatprep.subr.mxu0 0.0
        %1785 = vmatpush1.msra.mxu0 0.0
        %1786 = vmatprep.subr.mxu0 0.0
        %1787 = vmatpush1.msra.mxu0 0.0
        %1788 = vmatprep.subr.mxu0 0.0
        %1789 = vmatpush1.msra.mxu0 0.0
        %1790 = vmatprep.subr.mxu0 0.0
        %1791 = vmatpush1.msra.mxu0 0.0
        %1792 = vmatprep.mubr.f32.mxu0 0.0
        %1793 = vmatmul.mubr.f32.gmra.mrb[0].mxu0 %v1726
        %v1794 = vpop.f32.mrb[0].mxu0
        %v1795 = vadd.f32 %v1723, %v1794
        %v1796 = vpop.f32.mrb[0].mxu0
        %1797 = vdwg.mxu0
        %v1798 = vmul.f32 %v1795, %v1795
        %v1799 = vmul.f32 %v1795, %v1798
        %v1800 = vmul.f32 %v1799, 0.044715
        %v1801 = vadd.f32 %v1795, %v1800
        %v1802 = vmul.f32 %v1801, 0.7978846
        %v1803 = vtanh.pop %v1802
        %v1804 = vadd.f32 %v1803, 1.0
        %v1805 = vmul.f32 %v1804, 0.5
        %v1806 = vmul.f32 %v1795, %v1805
        %v1807 = vld [vmem:[%s12] sm:$0xff]
        %v1808 = vld [vmem:[%s12 + $0x8] sm:$0xff]
        %v1809 = vld [vmem:[%s12 + $0x10] sm:$0xff]
        %v1810 = vld [vmem:[%s12 + $0x18] sm:$0xff]
        %v1811 = vld [vmem:[%s12 + $0x20] sm:$0xff]
        %v1812 = vld [vmem:[%s12 + $0x28] sm:$0xff]
        %v1813 = vld [vmem:[%s12 + $0x30] sm:$0xff]
        %v1814 = vld [vmem:[%s12 + $0x38] sm:$0xff]
        %v1815 = vld [vmem:[%s13] sm:$0x1]
        %v1817 = vlaneseq
        %v1818 = vshrl.u32 %v1817, 7
        %v1819 = vsub.s32 0, %v1818
        %v1820 = vrot.slane %v1815, %v1819
        %vm1822 = vcmask 523264
        %v1824 = vsel %vm1822, %v1806, 0
        %1826 = vmatprep.subr.mxu0 0.0
        %1827 = vmatpush1.msra.mxu0 %v1807
        %1828 = vmatprep.subr.mxu0 0.0
        %1829 = vmatpush1.msra.mxu0 %v1808
        %1830 = vmatprep.subr.mxu0 0.0
        %1831 = vmatpush1.msra.mxu0 %v1809
        %1832 = vmatprep.subr.mxu0 0.0
        %1833 = vmatpush1.msra.mxu0 %v1810
        %1834 = vmatprep.subr.mxu0 0.0
        %1835 = vmatpush1.msra.mxu0 %v1811
        %1836 = vmatprep.subr.mxu0 0.0
        %1837 = vmatpush1.msra.mxu0 %v1812
        %1838 = vmatprep.subr.mxu0 0.0
        %1839 = vmatpush1.msra.mxu0 %v1813
        %1840 = vmatprep.subr.mxu0 0.0
        %1841 = vmatpush1.msra.mxu0 %v1814
        %1842 = vmatprep.subr.mxu0 0.0
        %1843 = vmatpush1.msra.mxu0 0.0
        %1844 = vmatprep.subr.mxu0 0.0
        %1845 = vmatpush1.msra.mxu0 0.0
        %1846 = vmatprep.subr.mxu0 0.0
        %1847 = vmatpush1.msra.mxu0 0.0
        %1848 = vmatprep.subr.mxu0 0.0
        %1849 = vmatpush1.msra.mxu0 0.0
        %1850 = vmatprep.subr.mxu0 0.0
        %1851 = vmatpush1.msra.mxu0 0.0
        %1852 = vmatprep.subr.mxu0 0.0
        %1853 = vmatpush1.msra.mxu0 0.0
        %1854 = vmatprep.subr.mxu0 0.0
        %1855 = vmatpush1.msra.mxu0 0.0
        %1856 = vmatprep.subr.mxu0 0.0
        %1857 = vmatpush1.msra.mxu0 0.0
        %1858 = vmatprep.subr.mxu0 0.0
        %1859 = vmatpush1.msra.mxu0 0.0
        %1860 = vmatprep.subr.mxu0 0.0
        %1861 = vmatpush1.msra.mxu0 0.0
        %1862 = vmatprep.subr.mxu0 0.0
        %1863 = vmatpush1.msra.mxu0 0.0
        %1864 = vmatprep.subr.mxu0 0.0
        %1865 = vmatpush1.msra.mxu0 0.0
        %1866 = vmatprep.subr.mxu0 0.0
        %1867 = vmatpush1.msra.mxu0 0.0
        %1868 = vmatprep.subr.mxu0 0.0
        %1869 = vmatpush1.msra.mxu0 0.0
        %1870 = vmatprep.subr.mxu0 0.0
        %1871 = vmatpush1.msra.mxu0 0.0
        %1872 = vmatprep.subr.mxu0 0.0
        %1873 = vmatpush1.msra.mxu0 0.0
        %1874 = vmatprep.subr.mxu0 0.0
        %1875 = vmatpush1.msra.mxu0 0.0
        %1876 = vmatprep.subr.mxu0 0.0
        %1877 = vmatpush1.msra.mxu0 0.0
        %1878 = vmatprep.subr.mxu0 0.0
        %1879 = vmatpush1.msra.mxu0 0.0
        %1880 = vmatprep.subr.mxu0 0.0
        %1881 = vmatpush1.msra.mxu0 0.0
        %1882 = vmatprep.subr.mxu0 0.0
        %1883 = vmatpush1.msra.mxu0 0.0
        %1884 = vmatprep.subr.mxu0 0.0
        %1885 = vmatpush1.msra.mxu0 0.0
        %1886 = vmatprep.subr.mxu0 0.0
        %1887 = vmatpush1.msra.mxu0 0.0
        %1888 = vmatprep.subr.mxu0 0.0
        %1889 = vmatpush1.msra.mxu0 0.0
        %1890 = vmatprep.mubr.f32.mxu0 0.0
        %1891 = vmatmul.mubr.f32.gmra.mrb[0].mxu0 %v1824
        %v1892 = vpop.f32.mrb[0].mxu0
        %v1893 = vadd.f32 %v1820, %v1892
        %v1894 = vpop.f32.mrb[0].mxu0
        %1895 = vdwg.mxu0
        %v1896 = vadd.f32 %v1893, %v1684
        %v1897 = vsel %vm587, %v1896, 0.0
        %1898 = vadd.xlane.f32.xlu0 %v1897
        %v1899 = vpop.xlane.xlu0 %1898
        %v1900 = vmul.f32 %v1899, %v591
        %v1901 = vsub.f32 %v1896, %v1900
        %v1902 = vmul.f32 %v1901, %v1901
        %v1903 = vsel %vm587, %v1902, 0.0
        %1904 = vadd.xlane.f32.xlu0 %v1903
        %v1905 = vpop.xlane.xlu0 %1904
        %v1906 = vmul.f32 %v1905, %v591
        %v1907 = vadd.f32 %v1906, 1e-05
        %v1908 = vrsqrt.pop %v1907
        %v1909 = vmul.f32 %v1901, %v1908
        %s1910 = scalar_lea.vmem %s3, 1
        %v1911 = vld [vmem:[%s1910] sm:$0x1]
        %v1913 = vlaneseq
        %v1914 = vshrl.u32 %v1913, 7
        %v1915 = vsub.s32 0, %v1914
        %v1916 = vrot.slane %v1911, %v1915
        %v1918 = vmul.f32 %v1909, %v1916
        %s1919 = scalar_lea.vmem %s4, 1
        %v1920 = vld [vmem:[%s1919] sm:$0x1]
        %v1922 = vlaneseq
        %v1923 = vshrl.u32 %v1922, 7
        %v1924 = vsub.s32 0, %v1923
        %v1925 = vrot.slane %v1920, %v1924
        %v1927 = vadd.f32 %v1918, %v1925
        %s1928 = scalar_lea.vmem %s5, 32
        %v1929 = vld [vmem:[%s1928] sm:$0xff]
        %v1930 = vld [vmem:[%s1928 + $0x8] sm:$0xff]
        %v1931 = vld [vmem:[%s1928 + $0x10] sm:$0xff]
        %v1932 = vld [vmem:[%s1928 + $0x18] sm:$0xff]
        %v1934 = vsel %vm622, %v1927, 0
        %1936 = vmatprep.subr.mxu0 0.0
        %1937 = vmatpush1.msra.mxu0 %v1929
        %1938 = vmatprep.subr.mxu0 0.0
        %1939 = vmatpush1.msra.mxu0 %v1930
        %1940 = vmatprep.subr.mxu0 0.0
        %1941 = vmatpush1.msra.mxu0 %v1931
        %1942 = vmatprep.subr.mxu0 0.0
        %1943 = vmatpush1.msra.mxu0 %v1932
        %1944 = vmatprep.subr.mxu0 0.0
        %1945 = vmatpush1.msra.mxu0 0.0
        %1946 = vmatprep.subr.mxu0 0.0
        %1947 = vmatpush1.msra.mxu0 0.0
        %1948 = vmatprep.subr.mxu0 0.0
        %1949 = vmatpush1.msra.mxu0 0.0
        %1950 = vmatprep.subr.mxu0 0.0
        %1951 = vmatpush1.msra.mxu0 0.0
        %1952 = vmatprep.subr.mxu0 0.0
        %1953 = vmatpush1.msra.mxu0 0.0
        %1954 = vmatprep.subr.mxu0 0.0
        %1955 = vmatpush1.msra.mxu0 0.0
        %1956 = vmatprep.subr.mxu0 0.0
        %1957 = vmatpush1.msra.mxu0 0.0
        %1958 = vmatprep.subr.mxu0 0.0
        %1959 = vmatpush1.msra.mxu0 0.0
        %1960 = vmatprep.subr.mxu0 0.0
        %1961 = vmatpush1.msra.mxu0 0.0
        %1962 = vmatprep.subr.mxu0 0.0
        %1963 = vmatpush1.msra.mxu0 0.0
        %1964 = vmatprep.subr.mxu0 0.0
        %1965 = vmatpush1.msra.mxu0 0.0
        %1966 = vmatprep.subr.mxu0 0.0
        %1967 = vmatpush1.msra.mxu0 0.0
        %1968 = vmatprep.subr.mxu0 0.0
        %1969 = vmatpush1.msra.mxu0 0.0
        %1970 = vmatprep.subr.mxu0 0.0
        %1971 = vmatpush1.msra.mxu0 0.0
        %1972 = vmatprep.subr.mxu0 0.0
        %1973 = vmatpush1.msra.mxu0 0.0
        %1974 = vmatprep.subr.mxu0 0.0
        %1975 = vmatpush1.msra.mxu0 0.0
        %1976 = vmatprep.subr.mxu0 0.0
        %1977 = vmatpush1.msra.mxu0 0.0
        %1978 = vmatprep.subr.mxu0 0.0
        %1979 = vmatpush1.msra.mxu0 0.0
        %1980 = vmatprep.subr.mxu0 0.0
        %1981 = vmatpush1.msra.mxu0 0.0
        %1982 = vmatprep.subr.mxu0 0.0
        %1983 = vmatpush1.msra.mxu0 0.0
        %1984 = vmatprep.subr.mxu0 0.0
        %1985 = vmatpush1.msra.mxu0 0.0
        %1986 = vmatprep.subr.mxu0 0.0
        %1987 = vmatpush1.msra.mxu0 0.0
        %1988 = vmatprep.subr.mxu0 0.0
        %1989 = vmatpush1.msra.mxu0 0.0
        %1990 = vmatprep.subr.mxu0 0.0
        %1991 = vmatpush1.msra.mxu0 0.0
        %1992 = vmatprep.subr.mxu0 0.0
        %1993 = vmatpush1.msra.mxu0 0.0
        %1994 = vmatprep.subr.mxu0 0.0
        %1995 = vmatpush1.msra.mxu0 0.0
        %1996 = vmatprep.subr.mxu0 0.0
        %1997 = vmatpush1.msra.mxu0 0.0
        %1998 = vmatprep.subr.mxu0 0.0
        %1999 = vmatpush1.msra.mxu0 0.0
        %2000 = vmatprep.mubr.f32.mxu0 0.0
        %2001 = vmatmul.mubr.f32.gmra.mrb[0].mxu0 %v1934
        %v2002 = vpop.f32.mrb[0].mxu0
        %v2003 = vadd.f32 0.0, %v2002
        %v2004 = vpop.f32.mrb[0].mxu0
        %2005 = vdwg.mxu0
        %s2006 = scalar_lea.vmem %s6, 32
        %v2007 = vld [vmem:[%s2006] sm:$0xff]
        %v2008 = vld [vmem:[%s2006 + $0x8] sm:$0xff]
        %v2009 = vld [vmem:[%s2006 + $0x10] sm:$0xff]
        %v2010 = vld [vmem:[%s2006 + $0x18] sm:$0xff]
        %s2011 = scalar_lea.vmem %s7, 1
        %v2012 = vld [vmem:[%s2011] sm:$0x1]
        %2014 = vrot.lane.b32.xlu0 %v2003, 96
        %v2015 = vpop.permute.xlu0 %2014
        %v2016 = vsel %vm704, %v2003, 0
        %v2018 = vsel %vm704, %v2015, 0
        %2020 = vmatprep.subr.mxu0 0.0
        %2021 = vmatpush1.xpose.msra.mxu0 %v2018
        %2022 = vmatprep.subr.mxu0 0.0
        %2023 = vmatpush1.xpose.msra.mxu0 0.0
        %2024 = vmatprep.subr.mxu0 0.0
        %2025 = vmatpush1.xpose.msra.mxu0 0.0
        %2026 = vmatprep.subr.mxu0 0.0
        %2027 = vmatpush1.xpose.msra.mxu0 0.0
        %2028 = vmatprep.subr.mxu0 0.0
        %2029 = vmatpush1.xpose.msra.mxu0 0.0
        %2030 = vmatprep.subr.mxu0 0.0
        %2031 = vmatpush1.xpose.msra.mxu0 0.0
        %2032 = vmatprep.subr.mxu0 0.0
        %2033 = vmatpush1.xpose.msra.mxu0 0.0
        %2034 = vmatprep.subr.mxu0 0.0
        %2035 = vmatpush1.xpose.msra.mxu0 0.0
        %2036 = vmatprep.subr.mxu0 0.0
        %2037 = vmatpush1.xpose.msra.mxu0 0.0
        %2038 = vmatprep.subr.mxu0 0.0
        %2039 = vmatpush1.xpose.msra.mxu0 0.0
        %2040 = vmatprep.subr.mxu0 0.0
        %2041 = vmatpush1.xpose.msra.mxu0 0.0
        %2042 = vmatprep.subr.mxu0 0.0
        %2043 = vmatpush1.xpose.msra.mxu0 0.0
        %2044 = vmatprep.subr.mxu0 0.0
        %2045 = vmatpush1.xpose.msra.mxu0 0.0
        %2046 = vmatprep.subr.mxu0 0.0
        %2047 = vmatpush1.xpose.msra.mxu0 0.0
        %2048 = vmatprep.subr.mxu0 0.0
        %2049 = vmatpush1.xpose.msra.mxu0 0.0
        %2050 = vmatprep.subr.mxu0 0.0
        %2051 = vmatpush1.xpose.msra.mxu0 0.0
        %2052 = vmatprep.subr.mxu0 0.0
        %2053 = vmatpush1.xpose.msra.mxu0 0.0
        %2054 = vmatprep.subr.mxu0 0.0
        %2055 = vmatpush1.xpose.msra.mxu0 0.0
        %2056 = vmatprep.subr.mxu0 0.0
        %2057 = vmatpush1.xpose.msra.mxu0 0.0
        %2058 = vmatprep.subr.mxu0 0.0
        %2059 = vmatpush1.xpose.msra.mxu0 0.0
        %2060 = vmatprep.subr.mxu0 0.0
        %2061 = vmatpush1.xpose.msra.mxu0 0.0
        %2062 = vmatprep.subr.mxu0 0.0
        %2063 = vmatpush1.xpose.msra.mxu0 0.0
        %2064 = vmatprep.subr.mxu0 0.0
        %2065 = vmatpush1.xpose.msra.mxu0 0.0
        %2066 = vmatprep.subr.mxu0 0.0
        %2067 = vmatpush1.xpose.msra.mxu0 0.0
        %2068 = vmatprep.subr.mxu0 0.0
        %2069 = vmatpush1.xpose.msra.mxu0 0.0
        %2070 = vmatprep.subr.mxu0 0.0
        %2071 = vmatpush1.xpose.msra.mxu0 0.0
        %2072 = vmatprep.subr.mxu0 0.0
        %2073 = vmatpush1.xpose.msra.mxu0 0.0
        %2074 = vmatprep.subr.mxu0 0.0
        %2075 = vmatpush1.xpose.msra.mxu0 0.0
        %2076 = vmatprep.subr.mxu0 0.0
        %2077 = vmatpush1.xpose.msra.mxu0 0.0
        %2078 = vmatprep.subr.mxu0 0.0
        %2079 = vmatpush1.xpose.msra.mxu0 0.0
        %2080 = vmatprep.subr.mxu0 0.0
        %2081 = vmatpush1.xpose.msra.mxu0 0.0
        %2082 = vmatprep.subr.mxu0 0.0
        %2083 = vmatpush1.xpose.msra.mxu0 0.0
        %2084 = vmatprep.mubr.f32.mxu0 0.0
        %2085 = vmatmul.mubr.f32.gmra.mrb[0].mxu0 %v2016
        %v2086 = vpop.f32.mrb[0].mxu0
        %v2087 = vadd.f32 0.0, %v2086
        %v2088 = vpop.f32.mrb[0].mxu0
        %2089 = vdwg.mxu0
        %v2090 = vmul.f32 %v2087, 0.35355338
        %v2091 = vadd.f32 %v2090, %v784
        %v2092 = vsel %vm787, %v2091, -inf
        %2093 = vmax.xlane.f32.xlu0 %v2092
        %v2094 = vpop.xlane.xlu0 %2093
        %v2095 = vsub.f32 %v2091, %v2094
        %v2096 = vmul.f32 %v2095, 1.442695
        %v2097 = vpow.pop %v2096
        %v2098 = vsel %vm787, %v2097, 0.0
        %2099 = vadd.xlane.f32.xlu0 %v2098
        %v2100 = vpop.xlane.xlu0 %2099
        %v2101 = vrcp.pop %v2100
        %v2102 = vmul.f32 %v2097, %v2101
        %2103 = vrot.lane.b32.xlu0 %v2003, 64
        %v2104 = vpop.permute.xlu0 %2103
        %v2106 = vsel %vm801, %v2102, 0
        %v2108 = vsel %vm805, %v2104, 0
        %2110 = vmatprep.subr.mxu0 0.0
        %2111 = vmatpush1.msra.mxu0 %v2108
        %2112 = vmatprep.subr.mxu0 0.0
        %2113 = vmatpush1.msra.mxu0 0.0
        %2114 = vmatprep.subr.mxu0 0.0
        %2115 = vmatpush1.msra.mxu0 0.0
        %2116 = vmatprep.subr.mxu0 0.0
        %2117 = vmatpush1.msra.mxu0 0.0
        %2118 = vmatprep.subr.mxu0 0.0
        %2119 = vmatpush1.msra.mxu0 0.0
        %2120 = vmatprep.subr.mxu0 0.0
        %2121 = vmatpush1.msra.mxu0 0.0
        %2122 = vmatprep.subr.mxu0 0.0
        %2123 = vmatpush1.msra.mxu0 0.0
        %2124 = vmatprep.subr.mxu0 0.0
        %2125 = vmatpush1.msra.mxu0 0.0
        %2126 = vmatprep.subr.mxu0 0.0
        %2127 = vmatpush1.msra.mxu0 0.0
        %2128 = vmatprep.subr.mxu0 0.0
        %2129 = vmatpush1.msra.mxu0 0.0
        %2130 = vmatprep.subr.mxu0 0.0
        %2131 = vmatpush1.msra.mxu0 0.0
        %2132 = vmatprep.subr.mxu0 0.0
        %2133 = vmatpush1.msra.mxu0 0.0
        %2134 = vmatprep.subr.mxu0 0.0
        %2135 = vmatpush1.msra.mxu0 0.0
        %2136 = vmatprep.subr.mxu0 0.0
        %2137 = vmatpush1.msra.mxu0 0.0
        %2138 = vmatprep.subr.mxu0 0.0
        %2139 = vmatpush1.msra.mxu0 0.0
        %2140 = vmatprep.subr.mxu0 0.0
        %2141 = vmatpush1.msra.mxu0 0.0
        %2142 = vmatprep.subr.mxu0 0.0
        %2143 = vmatpush1.msra.mxu0 0.0
        %2144 = vmatprep.subr.mxu0 0.0
        %2145 = vmatpush1.msra.mxu0 0.0
        %2146 = vmatprep.subr.mxu0 0.0
        %2147 = vmatpush1.msra.mxu0 0.0
        %2148 = vmatprep.subr.mxu0 0.0
        %2149 = vmatpush1.msra.mxu0 0.0
        %2150 = vmatprep.subr.mxu0 0.0
        %2151 = vmatpush1.msra.mxu0 0.0
        %2152 = vmatprep.subr.mxu0 0.0
        %2153 = vmatpush1.msra.mxu0 0.0
        %2154 = vmatprep.subr.mxu0 0.0
        %2155 = vmatpush1.msra.mxu0 0.0
        %2156 = vmatprep.subr.mxu0 0.0
        %2157 = vmatpush1.msra.mxu0 0.0
        %2158 = vmatprep.subr.mxu0 0.0
        %2159 = vmatpush1.msra.mxu0 0.0
        %2160 = vmatprep.subr.mxu0 0.0
        %2161 = vmatpush1.msra.mxu0 0.0
        %2162 = vmatprep.subr.mxu0 0.0
        %2163 = vmatpush1.msra.mxu0 0.0
        %2164 = vmatprep.subr.mxu0 0.0
        %2165 = vmatpush1.msra.mxu0 0.0
        %2166 = vmatprep.subr.mxu0 0.0
        %2167 = vmatpush1.msra.mxu0 0.0
        %2168 = vmatprep.subr.mxu0 0.0
        %2169 = vmatpush1.msra.mxu0 0.0
        %2170 = vmatprep.subr.mxu0 0.0
        %2171 = vmatpush1.msra.mxu0 0.0
        %2172 = vmatprep.subr.mxu0 0.0
        %2173 = vmatpush1.msra.mxu0 0.0
        %2174 = vmatprep.mubr.f32.mxu0 0.0
        %2175 = vmatmul.mubr.f32.gmra.mrb[0].mxu0 %v2106
        %v2176 = vpop.f32.mrb[0].mxu0
        %v2177 = vadd.f32 0.0, %v2176
        %v2178 = vpop.f32.mrb[0].mxu0
        %2179 = vdwg.mxu0
        %v2181 = vsel %vm704, %v2177, 0
        %2183 = vmatprep.subr.mxu0 0.0
        %2184 = vmatpush1.msra.mxu0 %v2007
        %2185 = vmatprep.subr.mxu0 0.0
        %2186 = vmatpush1.msra.mxu0 0.0
        %2187 = vmatprep.subr.mxu0 0.0
        %2188 = vmatpush1.msra.mxu0 0.0
        %2189 = vmatprep.subr.mxu0 0.0
        %2190 = vmatpush1.msra.mxu0 0.0
        %2191 = vmatprep.subr.mxu0 0.0
        %2192 = vmatpush1.msra.mxu0 0.0
        %2193 = vmatprep.subr.mxu0 0.0
        %2194 = vmatpush1.msra.mxu0 0.0
        %2195 = vmatprep.subr.mxu0 0.0
        %2196 = vmatpush1.msra.mxu0 0.0
        %2197 = vmatprep.subr.mxu0 0.0
        %2198 = vmatpush1.msra.mxu0 0.0
        %2199 = vmatprep.subr.mxu0 0.0
        %2200 = vmatpush1.msra.mxu0 0.0
        %2201 = vmatprep.subr.mxu0 0.0
        %2202 = vmatpush1.msra.mxu0 0.0
        %2203 = vmatprep.subr.mxu0 0.0
        %2204 = vmatpush1.msra.mxu0 0.0
        %2205 = vmatprep.subr.mxu0 0.0
        %2206 = vmatpush1.msra.mxu0 0.0
        %2207 = vmatprep.subr.mxu0 0.0
        %2208 = vmatpush1.msra.mxu0 0.0
        %2209 = vmatprep.subr.mxu0 0.0
        %2210 = vmatpush1.msra.mxu0 0.0
        %2211 = vmatprep.subr.mxu0 0.0
        %2212 = vmatpush1.msra.mxu0 0.0
        %2213 = vmatprep.subr.mxu0 0.0
        %2214 = vmatpush1.msra.mxu0 0.0
        %2215 = vmatprep.subr.mxu0 0.0
        %2216 = vmatpush1.msra.mxu0 0.0
        %2217 = vmatprep.subr.mxu0 0.0
        %2218 = vmatpush1.msra.mxu0 0.0
        %2219 = vmatprep.subr.mxu0 0.0
        %2220 = vmatpush1.msra.mxu0 0.0
        %2221 = vmatprep.subr.mxu0 0.0
        %2222 = vmatpush1.msra.mxu0 0.0
        %2223 = vmatprep.subr.mxu0 0.0
        %2224 = vmatpush1.msra.mxu0 0.0
        %2225 = vmatprep.subr.mxu0 0.0
        %2226 = vmatpush1.msra.mxu0 0.0
        %2227 = vmatprep.subr.mxu0 0.0
        %2228 = vmatpush1.msra.mxu0 0.0
        %2229 = vmatprep.subr.mxu0 0.0
        %2230 = vmatpush1.msra.mxu0 0.0
        %2231 = vmatprep.subr.mxu0 0.0
        %2232 = vmatpush1.msra.mxu0 0.0
        %2233 = vmatprep.subr.mxu0 0.0
        %2234 = vmatpush1.msra.mxu0 0.0
        %2235 = vmatprep.subr.mxu0 0.0
        %2236 = vmatpush1.msra.mxu0 0.0
        %2237 = vmatprep.subr.mxu0 0.0
        %2238 = vmatpush1.msra.mxu0 0.0
        %2239 = vmatprep.subr.mxu0 0.0
        %2240 = vmatpush1.msra.mxu0 0.0
        %2241 = vmatprep.subr.mxu0 0.0
        %2242 = vmatpush1.msra.mxu0 0.0
        %2243 = vmatprep.subr.mxu0 0.0
        %2244 = vmatpush1.msra.mxu0 0.0
        %2245 = vmatprep.subr.mxu0 0.0
        %2246 = vmatpush1.msra.mxu0 0.0
        %2247 = vmatprep.mubr.f32.mxu0 0.0
        %2248 = vmatmul.mubr.f32.gmra.mrb[0].mxu0 %v2181
        %v2249 = vpop.f32.mrb[0].mxu0
        %v2250 = vadd.f32 0.0, %v2249
        %v2251 = vpop.f32.mrb[0].mxu0
        %2252 = vdwg.mxu0
        %v2254 = vlaneseq
        %v2255 = vshrl.u32 %v2254, 7
        %v2256 = vsub.s32 0, %v2255
        %v2257 = vrot.slane %v2012, %v2256
        %v2259 = vadd.f32 %v2257, %v2250
        %2260 = vrot.lane.b32.xlu0 %v2003, 120
        %v2261 = vpop.permute.xlu0 %2260
        %2262 = vrot.lane.b32.xlu0 %v2003, 88
        %v2263 = vpop.permute.xlu0 %2262
        %v2264 = vsel %vm704, %v2261, 0
        %v2266 = vsel %vm704, %v2263, 0
        %2268 = vmatprep.subr.mxu0 0.0
        %2269 = vmatpush1.xpose.msra.mxu0 %v2266
        %2270 = vmatprep.subr.mxu0 0.0
        %2271 = vmatpush1.xpose.msra.mxu0 0.0
        %2272 = vmatprep.subr.mxu0 0.0
        %2273 = vmatpush1.xpose.msra.mxu0 0.0
        %2274 = vmatprep.subr.mxu0 0.0
        %2275 = vmatpush1.xpose.msra.mxu0 0.0
        %2276 = vmatprep.subr.mxu0 0.0
        %2277 = vmatpush1.xpose.msra.mxu0 0.0
        %2278 = vmatprep.subr.mxu0 0.0
        %2279 = vmatpush1.xpose.msra.mxu0 0.0
        %2280 = vmatprep.subr.mxu0 0.0
        %2281 = vmatpush1.xpose.msra.mxu0 0.0
        %2282 = vmatprep.subr.mxu0 0.0
        %2283 = vmatpush1.xpose.msra.mxu0 0.0
        %2284 = vmatprep.subr.mxu0 0.0
        %2285 = vmatpush1.xpose.msra.mxu0 0.0
        %2286 = vmatprep.subr.mxu0 0.0
        %2287 = vmatpush1.xpose.msra.mxu0 0.0
        %2288 = vmatprep.subr.mxu0 0.0
        %2289 = vmatpush1.xpose.msra.mxu0 0.0
        %2290 = vmatprep.subr.mxu0 0.0
        %2291 = vmatpush1.xpose.msra.mxu0 0.0
        %2292 = vmatprep.subr.mxu0 0.0
        %2293 = vmatpush1.xpose.msra.mxu0 0.0
        %2294 = vmatprep.subr.mxu0 0.0
        %2295 = vmatpush1.xpose.msra.mxu0 0.0
        %2296 = vmatprep.subr.mxu0 0.0
        %2297 = vmatpush1.xpose.msra.mxu0 0.0
        %2298 = vmatprep.subr.mxu0 0.0
        %2299 = vmatpush1.xpose.msra.mxu0 0.0
        %2300 = vmatprep.subr.mxu0 0.0
        %2301 = vmatpush1.xpose.msra.mxu0 0.0
        %2302 = vmatprep.subr.mxu0 0.0
        %2303 = vmatpush1.xpose.msra.mxu0 0.0
        %2304 = vmatprep.subr.mxu0 0.0
        %2305 = vmatpush1.xpose.msra.mxu0 0.0
        %2306 = vmatprep.subr.mxu0 0.0
        %2307 = vmatpush1.xpose.msra.mxu0 0.0
        %2308 = vmatprep.subr.mxu0 0.0
        %2309 = vmatpush1.xpose.msra.mxu0 0.0
        %2310 = vmatprep.subr.mxu0 0.0
        %2311 = vmatpush1.xpose.msra.mxu0 0.0
        %2312 = vmatprep.subr.mxu0 0.0
        %2313 = vmatpush1.xpose.msra.mxu0 0.0
        %2314 = vmatprep.subr.mxu0 0.0
        %2315 = vmatpush1.xpose.msra.mxu0 0.0
        %2316 = vmatprep.subr.mxu0 0.0
        %2317 = vmatpush1.xpose.msra.mxu0 0.0
        %2318 = vmatprep.subr.mxu0 0.0
        %2319 = vmatpush1.xpose.msra.mxu0 0.0
        %2320 = vmatprep.subr.mxu0 0.0
        %2321 = vmatpush1.xpose.msra.mxu0 0.0
        %2322 = vmatprep.subr.mxu0 0.0
        %2323 = vmatpush1.xpose.msra.mxu0 0.0
        %2324 = vmatprep.subr.mxu0 0.0
        %2325 = vmatpush1.xpose.msra.mxu0 0.0
        %2326 = vmatprep.subr.mxu0 0.0
        %2327 = vmatpush1.xpose.msra.mxu0 0.0
        %2328 = vmatprep.subr.mxu0 0.0
        %2329 = vmatpush1.xpose.msra.mxu0 0.0
        %2330 = vmatprep.subr.mxu0 0.0
        %2331 = vmatpush1.xpose.msra.mxu0 0.0
        %2332 = vmatprep.mubr.f32.mxu0 0.0
        %2333 = vmatmul.mubr.f32.gmra.mrb[0].mxu0 %v2264
        %v2334 = vpop.f32.mrb[0].mxu0
        %v2335 = vadd.f32 0.0, %v2334
        %v2336 = vpop.f32.mrb[0].mxu0
        %2337 = vdwg.mxu0
        %v2338 = vmul.f32 %v2335, 0.35355338
        %v2339 = vadd.f32 %v2338, %v784
        %v2340 = vsel %vm787, %v2339, -inf
        %2341 = vmax.xlane.f32.xlu0 %v2340
        %v2342 = vpop.xlane.xlu0 %2341
        %v2343 = vsub.f32 %v2339, %v2342
        %v2344 = vmul.f32 %v2343, 1.442695
        %v2345 = vpow.pop %v2344
        %v2346 = vsel %vm787, %v2345, 0.0
        %2347 = vadd.xlane.f32.xlu0 %v2346
        %v2348 = vpop.xlane.xlu0 %2347
        %v2349 = vrcp.pop %v2348
        %v2350 = vmul.f32 %v2345, %v2349
        %2351 = vrot.lane.b32.xlu0 %v2003, 56
        %v2352 = vpop.permute.xlu0 %2351
        %v2354 = vsel %vm801, %v2350, 0
        %v2356 = vsel %vm805, %v2352, 0
        %2358 = vmatprep.subr.mxu0 0.0
        %2359 = vmatpush1.msra.mxu0 %v2356
        %2360 = vmatprep.subr.mxu0 0.0
        %2361 = vmatpush1.msra.mxu0 0.0
        %2362 = vmatprep.subr.mxu0 0.0
        %2363 = vmatpush1.msra.mxu0 0.0
        %2364 = vmatprep.subr.mxu0 0.0
        %2365 = vmatpush1.msra.mxu0 0.0
        %2366 = vmatprep.subr.mxu0 0.0
        %2367 = vmatpush1.msra.mxu0 0.0
        %2368 = vmatprep.subr.mxu0 0.0
        %2369 = vmatpush1.msra.mxu0 0.0
        %2370 = vmatprep.subr.mxu0 0.0
        %2371 = vmatpush1.msra.mxu0 0.0
        %2372 = vmatprep.subr.mxu0 0.0
        %2373 = vmatpush1.msra.mxu0 0.0
        %2374 = vmatprep.subr.mxu0 0.0
        %2375 = vmatpush1.msra.mxu0 0.0
        %2376 = vmatprep.subr.mxu0 0.0
        %2377 = vmatpush1.msra.mxu0 0.0
        %2378 = vmatprep.subr.mxu0 0.0
        %2379 = vmatpush1.msra.mxu0 0.0
        %2380 = vmatprep.subr.mxu0 0.0
        %2381 = vmatpush1.msra.mxu0 0.0
        %2382 = vmatprep.subr.mxu0 0.0
        %2383 = vmatpush1.msra.mxu0 0.0
        %2384 = vmatprep.subr.mxu0 0.0
        %2385 = vmatpush1.msra.mxu0 0.0
        %2386 = vmatprep.subr.mxu0 0.0
        %2387 = vmatpush1.msra.mxu0 0.0
        %2388 = vmatprep.subr.mxu0 0.0
        %2389 = vmatpush1.msra.mxu0 0.0
        %2390 = vmatprep.subr.mxu0 0.0
        %2391 = vmatpush1.msra.mxu0 0.0
        %2392 = vmatprep.subr.mxu0 0.0
        %2393 = vmatpush1.msra.mxu0 0.0
        %2394 = vmatprep.subr.mxu0 0.0
        %2395 = vmatpush1.msra.mxu0 0.0
        %2396 = vmatprep.subr.mxu0 0.0
        %2397 = vmatpush1.msra.mxu0 0.0
        %2398 = vmatprep.subr.mxu0 0.0
        %2399 = vmatpush1.msra.mxu0 0.0
        %2400 = vmatprep.subr.mxu0 0.0
        %2401 = vmatpush1.msra.mxu0 0.0
        %2402 = vmatprep.subr.mxu0 0.0
        %2403 = vmatpush1.msra.mxu0 0.0
        %2404 = vmatprep.subr.mxu0 0.0
        %2405 = vmatpush1.msra.mxu0 0.0
        %2406 = vmatprep.subr.mxu0 0.0
        %2407 = vmatpush1.msra.mxu0 0.0
        %2408 = vmatprep.subr.mxu0 0.0
        %2409 = vmatpush1.msra.mxu0 0.0
        %2410 = vmatprep.subr.mxu0 0.0
        %2411 = vmatpush1.msra.mxu0 0.0
        %2412 = vmatprep.subr.mxu0 0.0
        %2413 = vmatpush1.msra.mxu0 0.0
        %2414 = vmatprep.subr.mxu0 0.0
        %2415 = vmatpush1.msra.mxu0 0.0
        %2416 = vmatprep.subr.mxu0 0.0
        %2417 = vmatpush1.msra.mxu0 0.0
        %2418 = vmatprep.subr.mxu0 0.0
        %2419 = vmatpush1.msra.mxu0 0.0
        %2420 = vmatprep.subr.mxu0 0.0
        %2421 = vmatpush1.msra.mxu0 0.0
        %2422 = vmatprep.mubr.f32.mxu0 0.0
        %2423 = vmatmul.mubr.f32.gmra.mrb[0].mxu0 %v2354
        %v2424 = vpop.f32.mrb[0].mxu0
        %v2425 = vadd.f32 0.0, %v2424
        %v2426 = vpop.f32.mrb[0].mxu0
        %2427 = vdwg.mxu0
        %v2429 = vsel %vm704, %v2425, 0
        %2431 = vmatprep.subr.mxu0 0.0
        %2432 = vmatpush1.msra.mxu0 %v2008
        %2433 = vmatprep.subr.mxu0 0.0
        %2434 = vmatpush1.msra.mxu0 0.0
        %2435 = vmatprep.subr.mxu0 0.0
        %2436 = vmatpush1.msra.mxu0 0.0
        %2437 = vmatprep.subr.mxu0 0.0
        %2438 = vmatpush1.msra.mxu0 0.0
        %2439 = vmatprep.subr.mxu0 0.0
        %2440 = vmatpush1.msra.mxu0 0.0
        %2441 = vmatprep.subr.mxu0 0.0
        %2442 = vmatpush1.msra.mxu0 0.0
        %2443 = vmatprep.subr.mxu0 0.0
        %2444 = vmatpush1.msra.mxu0 0.0
        %2445 = vmatprep.subr.mxu0 0.0
        %2446 = vmatpush1.msra.mxu0 0.0
        %2447 = vmatprep.subr.mxu0 0.0
        %2448 = vmatpush1.msra.mxu0 0.0
        %2449 = vmatprep.subr.mxu0 0.0
        %2450 = vmatpush1.msra.mxu0 0.0
        %2451 = vmatprep.subr.mxu0 0.0
        %2452 = vmatpush1.msra.mxu0 0.0
        %2453 = vmatprep.subr.mxu0 0.0
        %2454 = vmatpush1.msra.mxu0 0.0
        %2455 = vmatprep.subr.mxu0 0.0
        %2456 = vmatpush1.msra.mxu0 0.0
        %2457 = vmatprep.subr.mxu0 0.0
        %2458 = vmatpush1.msra.mxu0 0.0
        %2459 = vmatprep.subr.mxu0 0.0
        %2460 = vmatpush1.msra.mxu0 0.0
        %2461 = vmatprep.subr.mxu0 0.0
        %2462 = vmatpush1.msra.mxu0 0.0
        %2463 = vmatprep.subr.mxu0 0.0
        %2464 = vmatpush1.msra.mxu0 0.0
        %2465 = vmatprep.subr.mxu0 0.0
        %2466 = vmatpush1.msra.mxu0 0.0
        %2467 = vmatprep.subr.mxu0 0.0
        %2468 = vmatpush1.msra.mxu0 0.0
        %2469 = vmatprep.subr.mxu0 0.0
        %2470 = vmatpush1.msra.mxu0 0.0
        %2471 = vmatprep.subr.mxu0 0.0
        %2472 = vmatpush1.msra.mxu0 0.0
        %2473 = vmatprep.subr.mxu0 0.0
        %2474 = vmatpush1.msra.mxu0 0.0
        %2475 = vmatprep.subr.mxu0 0.0
        %2476 = vmatpush1.msra.mxu0 0.0
        %2477 = vmatprep.subr.mxu0 0.0
        %2478 = vmatpush1.msra.mxu0 0.0
        %2479 = vmatprep.subr.mxu0 0.0
        %2480 = vmatpush1.msra.mxu0 0.0
        %2481 = vmatprep.subr.mxu0 0.0
        %2482 = vmatpush1.msra.mxu0 0.0
        %2483 = vmatprep.subr.mxu0 0.0
        %2484 = vmatpush1.msra.mxu0 0.0
        %2485 = vmatprep.subr.mxu0 0.0
        %2486 = vmatpush1.msra.mxu0 0.0
        %2487 = vmatprep.subr.mxu0 0.0
        %2488 = vmatpush1.msra.mxu0 0.0
        %2489 = vmatprep.subr.mxu0 0.0
        %2490 = vmatpush1.msra.mxu0 0.0
        %2491 = vmatprep.subr.mxu0 0.0
        %2492 = vmatpush1.msra.mxu0 0.0
        %2493 = vmatprep.subr.mxu0 0.0
        %2494 = vmatpush1.msra.mxu0 0.0
        %2495 = vmatprep.mubr.f32.mxu0 0.0
        %2496 = vmatmul.mubr.f32.gmra.mrb[0].mxu0 %v2429
        %v2497 = vpop.f32.mrb[0].mxu0
        %v2498 = vadd.f32 0.0, %v2497
        %v2499 = vpop.f32.mrb[0].mxu0
        %2500 = vdwg.mxu0
        %v2501 = vadd.f32 %v2259, %v2498
        %2502 = vrot.lane.b32.xlu0 %v2003, 112
        %v2503 = vpop.permute.xlu0 %2502
        %2504 = vrot.lane.b32.xlu0 %v2003, 80
        %v2505 = vpop.permute.xlu0 %2504
        %v2506 = vsel %vm704, %v2503, 0
        %v2508 = vsel %vm704, %v2505, 0
        %2510 = vmatprep.subr.mxu0 0.0
        %2511 = vmatpush1.xpose.msra.mxu0 %v2508
        %2512 = vmatprep.subr.mxu0 0.0
        %2513 = vmatpush1.xpose.msra.mxu0 0.0
        %2514 = vmatprep.subr.mxu0 0.0
        %2515 = vmatpush1.xpose.msra.mxu0 0.0
        %2516 = vmatprep.subr.mxu0 0.0
        %2517 = vmatpush1.xpose.msra.mxu0 0.0
        %2518 = vmatprep.subr.mxu0 0.0
        %2519 = vmatpush1.xpose.msra.mxu0 0.0
        %2520 = vmatprep.subr.mxu0 0.0
        %2521 = vmatpush1.xpose.msra.mxu0 0.0
        %2522 = vmatprep.subr.mxu0 0.0
        %2523 = vmatpush1.xpose.msra.mxu0 0.0
        %2524 = vmatprep.subr.mxu0 0.0
        %2525 = vmatpush1.xpose.msra.mxu0 0.0
        %2526 = vmatprep.subr.mxu0 0.0
        %2527 = vmatpush1.xpose.msra.mxu0 0.0
        %2528 = vmatprep.subr.mxu0 0.0
        %2529 = vmatpush1.xpose.msra.mxu0 0.0
        %2530 = vmatprep.subr.mxu0 0.0
        %2531 = vmatpush1.xpose.msra.mxu0 0.0
        %2532 = vmatprep.subr.mxu0 0.0
        %2533 = vmatpush1.xpose.msra.mxu0 0.0
        %2534 = vmatprep.subr.mxu0 0.0
        %2535 = vmatpush1.xpose.msra.mxu0 0.0
        %2536 = vmatprep.subr.mxu0 0.0
        %2537 = vmatpush1.xpose.msra.mxu0 0.0
        %2538 = vmatprep.subr.mxu0 0.0
        %2539 = vmatpush1.xpose.msra.mxu0 0.0
        %2540 = vmatprep.subr.mxu0 0.0
        %2541 = vmatpush1.xpose.msra.mxu0 0.0
        %2542 = vmatprep.subr.mxu0 0.0
        %2543 = vmatpush1.xpose.msra.mxu0 0.0
        %2544 = vmatprep.subr.mxu0 0.0
        %2545 = vmatpush1.xpose.msra.mxu0 0.0
        %2546 = vmatprep.subr.mxu0 0.0
        %2547 = vmatpush1.xpose.msra.mxu0 0.0
        %2548 = vmatprep.subr.mxu0 0.0
        %2549 = vmatpush1.xpose.msra.mxu0 0.0
        %2550 = vmatprep.subr.mxu0 0.0
        %2551 = vmatpush1.xpose.msra.mxu0 0.0
        %2552 = vmatprep.subr.mxu0 0.0
        %2553 = vmatpush1.xpose.msra.mxu0 0.0
        %2554 = vmatprep.subr.mxu0 0.0
        %2555 = vmatpush1.xpose.msra.mxu0 0.0
        %2556 = vmatprep.subr.mxu0 0.0
        %2557 = vmatpush1.xpose.msra.mxu0 0.0
        %2558 = vmatprep.subr.mxu0 0.0
        %2559 = vmatpush1.xpose.msra.mxu0 0.0
        %2560 = vmatprep.subr.mxu0 0.0
        %2561 = vmatpush1.xpose.msra.mxu0 0.0
        %2562 = vmatprep.subr.mxu0 0.0
        %2563 = vmatpush1.xpose.msra.mxu0 0.0
        %2564 = vmatprep.subr.mxu0 0.0
        %2565 = vmatpush1.xpose.msra.mxu0 0.0
        %2566 = vmatprep.subr.mxu0 0.0
        %2567 = vmatpush1.xpose.msra.mxu0 0.0
        %2568 = vmatprep.subr.mxu0 0.0
        %2569 = vmatpush1.xpose.msra.mxu0 0.0
        %2570 = vmatprep.subr.mxu0 0.0
        %2571 = vmatpush1.xpose.msra.mxu0 0.0
        %2572 = vmatprep.subr.mxu0 0.0
        %2573 = vmatpush1.xpose.msra.mxu0 0.0
        %2574 = vmatprep.mubr.f32.mxu0 0.0
        %2575 = vmatmul.mubr.f32.gmra.mrb[0].mxu0 %v2506
        %v2576 = vpop.f32.mrb[0].mxu0
        %v2577 = vadd.f32 0.0, %v2576
        %v2578 = vpop.f32.mrb[0].mxu0
        %2579 = vdwg.mxu0
        %v2580 = vmul.f32 %v2577, 0.35355338
        %v2581 = vadd.f32 %v2580, %v784
        %v2582 = vsel %vm787, %v2581, -inf
        %2583 = vmax.xlane.f32.xlu0 %v2582
        %v2584 = vpop.xlane.xlu0 %2583
        %v2585 = vsub.f32 %v2581, %v2584
        %v2586 = vmul.f32 %v2585, 1.442695
        %v2587 = vpow.pop %v2586
        %v2588 = vsel %vm787, %v2587, 0.0
        %2589 = vadd.xlane.f32.xlu0 %v2588
        %v2590 = vpop.xlane.xlu0 %2589
        %v2591 = vrcp.pop %v2590
        %v2592 = vmul.f32 %v2587, %v2591
        %2593 = vrot.lane.b32.xlu0 %v2003, 48
        %v2594 = vpop.permute.xlu0 %2593
        %v2596 = vsel %vm801, %v2592, 0
        %v2598 = vsel %vm805, %v2594, 0
        %2600 = vmatprep.subr.mxu0 0.0
        %2601 = vmatpush1.msra.mxu0 %v2598
        %2602 = vmatprep.subr.mxu0 0.0
        %2603 = vmatpush1.msra.mxu0 0.0
        %2604 = vmatprep.subr.mxu0 0.0
        %2605 = vmatpush1.msra.mxu0 0.0
        %2606 = vmatprep.subr.mxu0 0.0
        %2607 = vmatpush1.msra.mxu0 0.0
        %2608 = vmatprep.subr.mxu0 0.0
        %2609 = vmatpush1.msra.mxu0 0.0
        %2610 = vmatprep.subr.mxu0 0.0
        %2611 = vmatpush1.msra.mxu0 0.0
        %2612 = vmatprep.subr.mxu0 0.0
        %2613 = vmatpush1.msra.mxu0 0.0
        %2614 = vmatprep.subr.mxu0 0.0
        %2615 = vmatpush1.msra.mxu0 0.0
        %2616 = vmatprep.subr.mxu0 0.0
        %2617 = vmatpush1.msra.mxu0 0.0
        %2618 = vmatprep.subr.mxu0 0.0
        %2619 = vmatpush1.msra.mxu0 0.0
        %2620 = vmatprep.subr.mxu0 0.0
        %2621 = vmatpush1.msra.mxu0 0.0
        %2622 = vmatprep.subr.mxu0 0.0
        %2623 = vmatpush1.msra.mxu0 0.0
        %2624 = vmatprep.subr.mxu0 0.0
        %2625 = vmatpush1.msra.mxu0 0.0
        %2626 = vmatprep.subr.mxu0 0.0
        %2627 = vmatpush1.msra.mxu0 0.0
        %2628 = vmatprep.subr.mxu0 0.0
        %2629 = vmatpush1.msra.mxu0 0.0
        %2630 = vmatprep.subr.mxu0 0.0
        %2631 = vmatpush1.msra.mxu0 0.0
        %2632 = vmatprep.subr.mxu0 0.0
        %2633 = vmatpush1.msra.mxu0 0.0
        %2634 = vmatprep.subr.mxu0 0.0
        %2635 = vmatpush1.msra.mxu0 0.0
        %2636 = vmatprep.subr.mxu0 0.0
        %2637 = vmatpush1.msra.mxu0 0.0
        %2638 = vmatprep.subr.mxu0 0.0
        %2639 = vmatpush1.msra.mxu0 0.0
        %2640 = vmatprep.subr.mxu0 0.0
        %2641 = vmatpush1.msra.mxu0 0.0
        %2642 = vmatprep.subr.mxu0 0.0
        %2643 = vmatpush1.msra.mxu0 0.0
        %2644 = vmatprep.subr.mxu0 0.0
        %2645 = vmatpush1.msra.mxu0 0.0
        %2646 = vmatprep.subr.mxu0 0.0
        %2647 = vmatpush1.msra.mxu0 0.0
        %2648 = vmatprep.subr.mxu0 0.0
        %2649 = vmatpush1.msra.mxu0 0.0
        %2650 = vmatprep.subr.mxu0 0.0
        %2651 = vmatpush1.msra.mxu0 0.0
        %2652 = vmatprep.subr.mxu0 0.0
        %2653 = vmatpush1.msra.mxu0 0.0
        %2654 = vmatprep.subr.mxu0 0.0
        %2655 = vmatpush1.msra.mxu0 0.0
        %2656 = vmatprep.subr.mxu0 0.0
        %2657 = vmatpush1.msra.mxu0 0.0
        %2658 = vmatprep.subr.mxu0 0.0
        %2659 = vmatpush1.msra.mxu0 0.0
        %2660 = vmatprep.subr.mxu0 0.0
        %2661 = vmatpush1.msra.mxu0 0.0
        %2662 = vmatprep.subr.mxu0 0.0
        %2663 = vmatpush1.msra.mxu0 0.0
        %2664 = vmatprep.mubr.f32.mxu0 0.0
        %2665 = vmatmul.mubr.f32.gmra.mrb[0].mxu0 %v2596
        %v2666 = vpop.f32.mrb[0].mxu0
        %v2667 = vadd.f32 0.0, %v2666
        %v2668 = vpop.f32.mrb[0].mxu0
        %2669 = vdwg.mxu0
        %v2671 = vsel %vm704, %v2667, 0
        %2673 = vmatprep.subr.mxu0 0.0
        %2674 = vmatpush1.msra.mxu0 %v2009
        %2675 = vmatprep.subr.mxu0 0.0
        %2676 = vmatpush1.msra.mxu0 0.0
        %2677 = vmatprep.subr.mxu0 0.0
        %2678 = vmatpush1.msra.mxu0 0.0
        %2679 = vmatprep.subr.mxu0 0.0
        %2680 = vmatpush1.msra.mxu0 0.0
        %2681 = vmatprep.subr.mxu0 0.0
        %2682 = vmatpush1.msra.mxu0 0.0
        %2683 = vmatprep.subr.mxu0 0.0
        %2684 = vmatpush1.msra.mxu0 0.0
        %2685 = vmatprep.subr.mxu0 0.0
        %2686 = vmatpush1.msra.mxu0 0.0
        %2687 = vmatprep.subr.mxu0 0.0
        %2688 = vmatpush1.msra.mxu0 0.0
        %2689 = vmatprep.subr.mxu0 0.0
        %2690 = vmatpush1.msra.mxu0 0.0
        %2691 = vmatprep.subr.mxu0 0.0
        %2692 = vmatpush1.msra.mxu0 0.0
        %2693 = vmatprep.subr.mxu0 0.0
        %2694 = vmatpush1.msra.mxu0 0.0
        %2695 = vmatprep.subr.mxu0 0.0
        %2696 = vmatpush1.msra.mxu0 0.0
        %2697 = vmatprep.subr.mxu0 0.0
        %2698 = vmatpush1.msra.mxu0 0.0
        %2699 = vmatprep.subr.mxu0 0.0
        %2700 = vmatpush1.msra.mxu0 0.0
        %2701 = vmatprep.subr.mxu0 0.0
        %2702 = vmatpush1.msra.mxu0 0.0
        %2703 = vmatprep.subr.mxu0 0.0
        %2704 = vmatpush1.msra.mxu0 0.0
        %2705 = vmatprep.subr.mxu0 0.0
        %2706 = vmatpush1.msra.mxu0 0.0
        %2707 = vmatprep.subr.mxu0 0.0
        %2708 = vmatpush1.msra.mxu0 0.0
        %2709 = vmatprep.subr.mxu0 0.0
        %2710 = vmatpush1.msra.mxu0 0.0
        %2711 = vmatprep.subr.mxu0 0.0
        %2712 = vmatpush1.msra.mxu0 0.0
        %2713 = vmatprep.subr.mxu0 0.0
        %2714 = vmatpush1.msra.mxu0 0.0
        %2715 = vmatprep.subr.mxu0 0.0
        %2716 = vmatpush1.msra.mxu0 0.0
        %2717 = vmatprep.subr.mxu0 0.0
        %2718 = vmatpush1.msra.mxu0 0.0
        %2719 = vmatprep.subr.mxu0 0.0
        %2720 = vmatpush1.msra.mxu0 0.0
        %2721 = vmatprep.subr.mxu0 0.0
        %2722 = vmatpush1.msra.mxu0 0.0
        %2723 = vmatprep.subr.mxu0 0.0
        %2724 = vmatpush1.msra.mxu0 0.0
        %2725 = vmatprep.subr.mxu0 0.0
        %2726 = vmatpush1.msra.mxu0 0.0
        %2727 = vmatprep.subr.mxu0 0.0
        %2728 = vmatpush1.msra.mxu0 0.0
        %2729 = vmatprep.subr.mxu0 0.0
        %2730 = vmatpush1.msra.mxu0 0.0
        %2731 = vmatprep.subr.mxu0 0.0
        %2732 = vmatpush1.msra.mxu0 0.0
        %2733 = vmatprep.subr.mxu0 0.0
        %2734 = vmatpush1.msra.mxu0 0.0
        %2735 = vmatprep.subr.mxu0 0.0
        %2736 = vmatpush1.msra.mxu0 0.0
        %2737 = vmatprep.mubr.f32.mxu0 0.0
        %2738 = vmatmul.mubr.f32.gmra.mrb[0].mxu0 %v2671
        %v2739 = vpop.f32.mrb[0].mxu0
        %v2740 = vadd.f32 0.0, %v2739
        %v2741 = vpop.f32.mrb[0].mxu0
        %2742 = vdwg.mxu0
        %v2743 = vadd.f32 %v2501, %v2740
        %2744 = vrot.lane.b32.xlu0 %v2003, 104
        %v2745 = vpop.permute.xlu0 %2744
        %2746 = vrot.lane.b32.xlu0 %v2003, 72
        %v2747 = vpop.permute.xlu0 %2746
        %v2748 = vsel %vm704, %v2745, 0
        %v2750 = vsel %vm704, %v2747, 0
        %2752 = vmatprep.subr.mxu0 0.0
        %2753 = vmatpush1.xpose.msra.mxu0 %v2750
        %2754 = vmatprep.subr.mxu0 0.0
        %2755 = vmatpush1.xpose.msra.mxu0 0.0
        %2756 = vmatprep.subr.mxu0 0.0
        %2757 = vmatpush1.xpose.msra.mxu0 0.0
        %2758 = vmatprep.subr.mxu0 0.0
        %2759 = vmatpush1.xpose.msra.mxu0 0.0
        %2760 = vmatprep.subr.mxu0 0.0
        %2761 = vmatpush1.xpose.msra.mxu0 0.0
        %2762 = vmatprep.subr.mxu0 0.0
        %2763 = vmatpush1.xpose.msra.mxu0 0.0
        %2764 = vmatprep.subr.mxu0 0.0
        %2765 = vmatpush1.xpose.msra.mxu0 0.0
        %2766 = vmatprep.subr.mxu0 0.0
        %2767 = vmatpush1.xpose.msra.mxu0 0.0
        %2768 = vmatprep.subr.mxu0 0.0
        %2769 = vmatpush1.xpose.msra.mxu0 0.0
        %2770 = vmatprep.subr.mxu0 0.0
        %2771 = vmatpush1.xpose.msra.mxu0 0.0
        %2772 = vmatprep.subr.mxu0 0.0
        %2773 = vmatpush1.xpose.msra.mxu0 0.0
        %2774 = vmatprep.subr.mxu0 0.0
        %2775 = vmatpush1.xpose.msra.mxu0 0.0
        %2776 = vmatprep.subr.mxu0 0.0
        %2777 = vmatpush1.xpose.msra.mxu0 0.0
        %2778 = vmatprep.subr.mxu0 0.0
        %2779 = vmatpush1.xpose.msra.mxu0 0.0
        %2780 = vmatprep.subr.mxu0 0.0
        %2781 = vmatpush1.xpose.msra.mxu0 0.0
        %2782 = vmatprep.subr.mxu0 0.0
        %2783 = vmatpush1.xpose.msra.mxu0 0.0
        %2784 = vmatprep.subr.mxu0 0.0
        %2785 = vmatpush1.xpose.msra.mxu0 0.0
        %2786 = vmatprep.subr.mxu0 0.0
        %2787 = vmatpush1.xpose.msra.mxu0 0.0
        %2788 = vmatprep.subr.mxu0 0.0
        %2789 = vmatpush1.xpose.msra.mxu0 0.0
        %2790 = vmatprep.subr.mxu0 0.0
        %2791 = vmatpush1.xpose.msra.mxu0 0.0
        %2792 = vmatprep.subr.mxu0 0.0
        %2793 = vmatpush1.xpose.msra.mxu0 0.0
        %2794 = vmatprep.subr.mxu0 0.0
        %2795 = vmatpush1.xpose.msra.mxu0 0.0
        %2796 = vmatprep.subr.mxu0 0.0
        %2797 = vmatpush1.xpose.msra.mxu0 0.0
        %2798 = vmatprep.subr.mxu0 0.0
        %2799 = vmatpush1.xpose.msra.mxu0 0.0
        %2800 = vmatprep.subr.mxu0 0.0
        %2801 = vmatpush1.xpose.msra.mxu0 0.0
        %2802 = vmatprep.subr.mxu0 0.0
        %2803 = vmatpush1.xpose.msra.mxu0 0.0
        %2804 = vmatprep.subr.mxu0 0.0
        %2805 = vmatpush1.xpose.msra.mxu0 0.0
        %2806 = vmatprep.subr.mxu0 0.0
        %2807 = vmatpush1.xpose.msra.mxu0 0.0
        %2808 = vmatprep.subr.mxu0 0.0
        %2809 = vmatpush1.xpose.msra.mxu0 0.0
        %2810 = vmatprep.subr.mxu0 0.0
        %2811 = vmatpush1.xpose.msra.mxu0 0.0
        %2812 = vmatprep.subr.mxu0 0.0
        %2813 = vmatpush1.xpose.msra.mxu0 0.0
        %2814 = vmatprep.subr.mxu0 0.0
        %2815 = vmatpush1.xpose.msra.mxu0 0.0
        %2816 = vmatprep.mubr.f32.mxu0 0.0
        %2817 = vmatmul.mubr.f32.gmra.mrb[0].mxu0 %v2748
        %v2818 = vpop.f32.mrb[0].mxu0
        %v2819 = vadd.f32 0.0, %v2818
        %v2820 = vpop.f32.mrb[0].mxu0
        %2821 = vdwg.mxu0
        %v2822 = vmul.f32 %v2819, 0.35355338
        %v2823 = vadd.f32 %v2822, %v784
        %v2824 = vsel %vm787, %v2823, -inf
        %2825 = vmax.xlane.f32.xlu0 %v2824
        %v2826 = vpop.xlane.xlu0 %2825
        %v2827 = vsub.f32 %v2823, %v2826
        %v2828 = vmul.f32 %v2827, 1.442695
        %v2829 = vpow.pop %v2828
        %v2830 = vsel %vm787, %v2829, 0.0
        %2831 = vadd.xlane.f32.xlu0 %v2830
        %v2832 = vpop.xlane.xlu0 %2831
        %v2833 = vrcp.pop %v2832
        %v2834 = vmul.f32 %v2829, %v2833
        %2835 = vrot.lane.b32.xlu0 %v2003, 40
        %v2836 = vpop.permute.xlu0 %2835
        %v2838 = vsel %vm801, %v2834, 0
        %v2840 = vsel %vm805, %v2836, 0
        %2842 = vmatprep.subr.mxu0 0.0
        %2843 = vmatpush1.msra.mxu0 %v2840
        %2844 = vmatprep.subr.mxu0 0.0
        %2845 = vmatpush1.msra.mxu0 0.0
        %2846 = vmatprep.subr.mxu0 0.0
        %2847 = vmatpush1.msra.mxu0 0.0
        %2848 = vmatprep.subr.mxu0 0.0
        %2849 = vmatpush1.msra.mxu0 0.0
        %2850 = vmatprep.subr.mxu0 0.0
        %2851 = vmatpush1.msra.mxu0 0.0
        %2852 = vmatprep.subr.mxu0 0.0
        %2853 = vmatpush1.msra.mxu0 0.0
        %2854 = vmatprep.subr.mxu0 0.0
        %2855 = vmatpush1.msra.mxu0 0.0
        %2856 = vmatprep.subr.mxu0 0.0
        %2857 = vmatpush1.msra.mxu0 0.0
        %2858 = vmatprep.subr.mxu0 0.0
        %2859 = vmatpush1.msra.mxu0 0.0
        %2860 = vmatprep.subr.mxu0 0.0
        %2861 = vmatpush1.msra.mxu0 0.0
        %2862 = vmatprep.subr.mxu0 0.0
        %2863 = vmatpush1.msra.mxu0 0.0
        %2864 = vmatprep.subr.mxu0 0.0
        %2865 = vmatpush1.msra.mxu0 0.0
        %2866 = vmatprep.subr.mxu0 0.0
        %2867 = vmatpush1.msra.mxu0 0.0
        %2868 = vmatprep.subr.mxu0 0.0
        %2869 = vmatpush1.msra.mxu0 0.0
        %2870 = vmatprep.subr.mxu0 0.0
        %2871 = vmatpush1.msra.mxu0 0.0
        %2872 = vmatprep.subr.mxu0 0.0
        %2873 = vmatpush1.msra.mxu0 0.0
        %2874 = vmatprep.subr.mxu0 0.0
        %2875 = vmatpush1.msra.mxu0 0.0
        %2876 = vmatprep.subr.mxu0 0.0
        %2877 = vmatpush1.msra.mxu0 0.0
        %2878 = vmatprep.subr.mxu0 0.0
        %2879 = vmatpush1.msra.mxu0 0.0
        %2880 = vmatprep.subr.mxu0 0.0
        %2881 = vmatpush1.msra.mxu0 0.0
        %2882 = vmatprep.subr.mxu0 0.0
        %2883 = vmatpush1.msra.mxu0 0.0
        %2884 = vmatprep.subr.mxu0 0.0
        %2885 = vmatpush1.msra.mxu0 0.0
        %2886 = vmatprep.subr.mxu0 0.0
        %2887 = vmatpush1.msra.mxu0 0.0
        %2888 = vmatprep.subr.mxu0 0.0
        %2889 = vmatpush1.msra.mxu0 0.0
        %2890 = vmatprep.subr.mxu0 0.0
        %2891 = vmatpush1.msra.mxu0 0.0
        %2892 = vmatprep.subr.mxu0 0.0
        %2893 = vmatpush1.msra.mxu0 0.0
        %2894 = vmatprep.subr.mxu0 0.0
        %2895 = vmatpush1.msra.mxu0 0.0
        %2896 = vmatprep.subr.mxu0 0.0
        %2897 = vmatpush1.msra.mxu0 0.0
        %2898 = vmatprep.subr.mxu0 0.0
        %2899 = vmatpush1.msra.mxu0 0.0
        %2900 = vmatprep.subr.mxu0 0.0
        %2901 = vmatpush1.msra.mxu0 0.0
        %2902 = vmatprep.subr.mxu0 0.0
        %2903 = vmatpush1.msra.mxu0 0.0
        %2904 = vmatprep.subr.mxu0 0.0
        %2905 = vmatpush1.msra.mxu0 0.0
        %2906 = vmatprep.mubr.f32.mxu0 0.0
        %2907 = vmatmul.mubr.f32.gmra.mrb[0].mxu0 %v2838
        %v2908 = vpop.f32.mrb[0].mxu0
        %v2909 = vadd.f32 0.0, %v2908
        %v2910 = vpop.f32.mrb[0].mxu0
        %2911 = vdwg.mxu0
        %v2913 = vsel %vm704, %v2909, 0
        %2915 = vmatprep.subr.mxu0 0.0
        %2916 = vmatpush1.msra.mxu0 %v2010
        %2917 = vmatprep.subr.mxu0 0.0
        %2918 = vmatpush1.msra.mxu0 0.0
        %2919 = vmatprep.subr.mxu0 0.0
        %2920 = vmatpush1.msra.mxu0 0.0
        %2921 = vmatprep.subr.mxu0 0.0
        %2922 = vmatpush1.msra.mxu0 0.0
        %2923 = vmatprep.subr.mxu0 0.0
        %2924 = vmatpush1.msra.mxu0 0.0
        %2925 = vmatprep.subr.mxu0 0.0
        %2926 = vmatpush1.msra.mxu0 0.0
        %2927 = vmatprep.subr.mxu0 0.0
        %2928 = vmatpush1.msra.mxu0 0.0
        %2929 = vmatprep.subr.mxu0 0.0
        %2930 = vmatpush1.msra.mxu0 0.0
        %2931 = vmatprep.subr.mxu0 0.0
        %2932 = vmatpush1.msra.mxu0 0.0
        %2933 = vmatprep.subr.mxu0 0.0
        %2934 = vmatpush1.msra.mxu0 0.0
        %2935 = vmatprep.subr.mxu0 0.0
        %2936 = vmatpush1.msra.mxu0 0.0
        %2937 = vmatprep.subr.mxu0 0.0
        %2938 = vmatpush1.msra.mxu0 0.0
        %2939 = vmatprep.subr.mxu0 0.0
        %2940 = vmatpush1.msra.mxu0 0.0
        %2941 = vmatprep.subr.mxu0 0.0
        %2942 = vmatpush1.msra.mxu0 0.0
        %2943 = vmatprep.subr.mxu0 0.0
        %2944 = vmatpush1.msra.mxu0 0.0
        %2945 = vmatprep.subr.mxu0 0.0
        %2946 = vmatpush1.msra.mxu0 0.0
        %2947 = vmatprep.subr.mxu0 0.0
        %2948 = vmatpush1.msra.mxu0 0.0
        %2949 = vmatprep.subr.mxu0 0.0
        %2950 = vmatpush1.msra.mxu0 0.0
        %2951 = vmatprep.subr.mxu0 0.0
        %2952 = vmatpush1.msra.mxu0 0.0
        %2953 = vmatprep.subr.mxu0 0.0
        %2954 = vmatpush1.msra.mxu0 0.0
        %2955 = vmatprep.subr.mxu0 0.0
        %2956 = vmatpush1.msra.mxu0 0.0
        %2957 = vmatprep.subr.mxu0 0.0
        %2958 = vmatpush1.msra.mxu0 0.0
        %2959 = vmatprep.subr.mxu0 0.0
        %2960 = vmatpush1.msra.mxu0 0.0
        %2961 = vmatprep.subr.mxu0 0.0
        %2962 = vmatpush1.msra.mxu0 0.0
        %2963 = vmatprep.subr.mxu0 0.0
        %2964 = vmatpush1.msra.mxu0 0.0
        %2965 = vmatprep.subr.mxu0 0.0
        %2966 = vmatpush1.msra.mxu0 0.0
        %2967 = vmatprep.subr.mxu0 0.0
        %2968 = vmatpush1.msra.mxu0 0.0
        %2969 = vmatprep.subr.mxu0 0.0
        %2970 = vmatpush1.msra.mxu0 0.0
        %2971 = vmatprep.subr.mxu0 0.0
        %2972 = vmatpush1.msra.mxu0 0.0
        %2973 = vmatprep.subr.mxu0 0.0
        %2974 = vmatpush1.msra.mxu0 0.0
        %2975 = vmatprep.subr.mxu0 0.0
        %2976 = vmatpush1.msra.mxu0 0.0
        %2977 = vmatprep.subr.mxu0 0.0
        %2978 = vmatpush1.msra.mxu0 0.0
        %2979 = vmatprep.mubr.f32.mxu0 0.0
        %2980 = vmatmul.mubr.f32.gmra.mrb[0].mxu0 %v2913
        %v2981 = vpop.f32.mrb[0].mxu0
        %v2982 = vadd.f32 0.0, %v2981
        %v2983 = vpop.f32.mrb[0].mxu0
        %2984 = vdwg.mxu0
        %v2985 = vadd.f32 %v2743, %v2982
        %v2986 = vadd.f32 %v2985, %v1896
        %v2987 = vsel %vm587, %v2986, 0.0
        %2988 = vadd.xlane.f32.xlu0 %v2987
        %v2989 = vpop.xlane.xlu0 %2988
        %v2990 = vmul.f32 %v2989, %v591
        %v2991 = vsub.f32 %v2986, %v2990
        %v2992 = vmul.f32 %v2991, %v2991
        %v2993 = vsel %vm587, %v2992, 0.0
        %2994 = vadd.xlane.f32.xlu0 %v2993
        %v2995 = vpop.xlane.xlu0 %2994
        %v2996 = vmul.f32 %v2995, %v591
        %v2997 = vadd.f32 %v2996, 1e-05
        %v2998 = vrsqrt.pop %v2997
        %v2999 = vmul.f32 %v2991, %v2998
        %s3000 = scalar_lea.vmem %s8, 1
        %v3001 = vld [vmem:[%s3000] sm:$0x1]
        %v3003 = vlaneseq
        %v3004 = vshrl.u32 %v3003, 7
        %v3005 = vsub.s32 0, %v3004
        %v3006 = vrot.slane %v3001, %v3005
        %v3008 = vmul.f32 %v2999, %v3006
        %s3009 = scalar_lea.vmem %s9, 1
        %v3010 = vld [vmem:[%s3009] sm:$0x1]
        %v3012 = vlaneseq
        %v3013 = vshrl.u32 %v3012, 7
        %v3014 = vsub.s32 0, %v3013
        %v3015 = vrot.slane %v3010, %v3014
        %v3017 = vadd.f32 %v3008, %v3015
        %s3018 = scalar_lea.vmem %s10, 32
        %v3019 = vld [vmem:[%s3018] sm:$0xff]
        %v3020 = vld [vmem:[%s3018 + $0x8] sm:$0xff]
        %v3021 = vld [vmem:[%s3018 + $0x10] sm:$0xff]
        %v3022 = vld [vmem:[%s3018 + $0x18] sm:$0xff]
        %s3023 = scalar_lea.vmem %s11, 1
        %v3024 = vld [vmem:[%s3023] sm:$0x1]
        %v3026 = vlaneseq
        %v3027 = vshrl.u32 %v3026, 7
        %v3028 = vsub.s32 0, %v3027
        %v3029 = vrot.slane %v3024, %v3028
        %v3032 = vsel %vm622, %v3017, 0
        %3034 = vmatprep.subr.mxu0 0.0
        %3035 = vmatpush1.msra.mxu0 %v3019
        %3036 = vmatprep.subr.mxu0 0.0
        %3037 = vmatpush1.msra.mxu0 %v3020
        %3038 = vmatprep.subr.mxu0 0.0
        %3039 = vmatpush1.msra.mxu0 %v3021
        %3040 = vmatprep.subr.mxu0 0.0
        %3041 = vmatpush1.msra.mxu0 %v3022
        %3042 = vmatprep.subr.mxu0 0.0
        %3043 = vmatpush1.msra.mxu0 0.0
        %3044 = vmatprep.subr.mxu0 0.0
        %3045 = vmatpush1.msra.mxu0 0.0
        %3046 = vmatprep.subr.mxu0 0.0
        %3047 = vmatpush1.msra.mxu0 0.0
        %3048 = vmatprep.subr.mxu0 0.0
        %3049 = vmatpush1.msra.mxu0 0.0
        %3050 = vmatprep.subr.mxu0 0.0
        %3051 = vmatpush1.msra.mxu0 0.0
        %3052 = vmatprep.subr.mxu0 0.0
        %3053 = vmatpush1.msra.mxu0 0.0
        %3054 = vmatprep.subr.mxu0 0.0
        %3055 = vmatpush1.msra.mxu0 0.0
        %3056 = vmatprep.subr.mxu0 0.0
        %3057 = vmatpush1.msra.mxu0 0.0
        %3058 = vmatprep.subr.mxu0 0.0
        %3059 = vmatpush1.msra.mxu0 0.0
        %3060 = vmatprep.subr.mxu0 0.0
        %3061 = vmatpush1.msra.mxu0 0.0
        %3062 = vmatprep.subr.mxu0 0.0
        %3063 = vmatpush1.msra.mxu0 0.0
        %3064 = vmatprep.subr.mxu0 0.0
        %3065 = vmatpush1.msra.mxu0 0.0
        %3066 = vmatprep.subr.mxu0 0.0
        %3067 = vmatpush1.msra.mxu0 0.0
        %3068 = vmatprep.subr.mxu0 0.0
        %3069 = vmatpush1.msra.mxu0 0.0
        %3070 = vmatprep.subr.mxu0 0.0
        %3071 = vmatpush1.msra.mxu0 0.0
        %3072 = vmatprep.subr.mxu0 0.0
        %3073 = vmatpush1.msra.mxu0 0.0
        %3074 = vmatprep.subr.mxu0 0.0
        %3075 = vmatpush1.msra.mxu0 0.0
        %3076 = vmatprep.subr.mxu0 0.0
        %3077 = vmatpush1.msra.mxu0 0.0
        %3078 = vmatprep.subr.mxu0 0.0
        %3079 = vmatpush1.msra.mxu0 0.0
        %3080 = vmatprep.subr.mxu0 0.0
        %3081 = vmatpush1.msra.mxu0 0.0
        %3082 = vmatprep.subr.mxu0 0.0
        %3083 = vmatpush1.msra.mxu0 0.0
        %3084 = vmatprep.subr.mxu0 0.0
        %3085 = vmatpush1.msra.mxu0 0.0
        %3086 = vmatprep.subr.mxu0 0.0
        %3087 = vmatpush1.msra.mxu0 0.0
        %3088 = vmatprep.subr.mxu0 0.0
        %3089 = vmatpush1.msra.mxu0 0.0
        %3090 = vmatprep.subr.mxu0 0.0
        %3091 = vmatpush1.msra.mxu0 0.0
        %3092 = vmatprep.subr.mxu0 0.0
        %3093 = vmatpush1.msra.mxu0 0.0
        %3094 = vmatprep.subr.mxu0 0.0
        %3095 = vmatpush1.msra.mxu0 0.0
        %3096 = vmatprep.subr.mxu0 0.0
        %3097 = vmatpush1.msra.mxu0 0.0
        %3098 = vmatprep.mubr.f32.mxu0 0.0
        %3099 = vmatmul.mubr.f32.gmra.mrb[0].mxu0 %v3032
        %v3100 = vpop.f32.mrb[0].mxu0
        %v3101 = vadd.f32 %v3029, %v3100
        %v3102 = vpop.f32.mrb[0].mxu0
        %3103 = vdwg.mxu0
        %v3104 = vmul.f32 %v3101, %v3101
        %v3105 = vmul.f32 %v3101, %v3104
        %v3106 = vmul.f32 %v3105, 0.044715
        %v3107 = vadd.f32 %v3101, %v3106
        %v3108 = vmul.f32 %v3107, 0.7978846
        %v3109 = vtanh.pop %v3108
        %v3110 = vadd.f32 %v3109, 1.0
        %v3111 = vmul.f32 %v3110, 0.5
        %v3112 = vmul.f32 %v3101, %v3111
        %s3113 = scalar_lea.vmem %s12, 64
        %v3114 = vld [vmem:[%s3113] sm:$0xff]
        %v3115 = vld [vmem:[%s3113 + $0x8] sm:$0xff]
        %v3116 = vld [vmem:[%s3113 + $0x10] sm:$0xff]
        %v3117 = vld [vmem:[%s3113 + $0x18] sm:$0xff]
        %v3118 = vld [vmem:[%s3113 + $0x20] sm:$0xff]
        %v3119 = vld [vmem:[%s3113 + $0x28] sm:$0xff]
        %v3120 = vld [vmem:[%s3113 + $0x30] sm:$0xff]
        %v3121 = vld [vmem:[%s3113 + $0x38] sm:$0xff]
        %s3122 = scalar_lea.vmem %s13, 1
        %v3123 = vld [vmem:[%s3122] sm:$0x1]
        %v3125 = vlaneseq
        %v3126 = vshrl.u32 %v3125, 7
        %v3127 = vsub.s32 0, %v3126
        %v3128 = vrot.slane %v3123, %v3127
        %v3131 = vsel %vm1822, %v3112, 0
        %3133 = vmatprep.subr.mxu0 0.0
        %3134 = vmatpush1.msra.mxu0 %v3114
        %3135 = vmatprep.subr.mxu0 0.0
        %3136 = vmatpush1.msra.mxu0 %v3115
        %3137 = vmatprep.subr.mxu0 0.0
        %3138 = vmatpush1.msra.mxu0 %v3116
        %3139 = vmatprep.subr.mxu0 0.0
        %3140 = vmatpush1.msra.mxu0 %v3117
        %3141 = vmatprep.subr.mxu0 0.0
        %3142 = vmatpush1.msra.mxu0 %v3118
        %3143 = vmatprep.subr.mxu0 0.0
        %3144 = vmatpush1.msra.mxu0 %v3119
        %3145 = vmatprep.subr.mxu0 0.0
        %3146 = vmatpush1.msra.mxu0 %v3120
        %3147 = vmatprep.subr.mxu0 0.0
        %3148 = vmatpush1.msra.mxu0 %v3121
        %3149 = vmatprep.subr.mxu0 0.0
        %3150 = vmatpush1.msra.mxu0 0.0
        %3151 = vmatprep.subr.mxu0 0.0
        %3152 = vmatpush1.msra.mxu0 0.0
        %3153 = vmatprep.subr.mxu0 0.0
        %3154 = vmatpush1.msra.mxu0 0.0
        %3155 = vmatprep.subr.mxu0 0.0
        %3156 = vmatpush1.msra.mxu0 0.0
        %3157 = vmatprep.subr.mxu0 0.0
        %3158 = vmatpush1.msra.mxu0 0.0
        %3159 = vmatprep.subr.mxu0 0.0
        %3160 = vmatpush1.msra.mxu0 0.0
        %3161 = vmatprep.subr.mxu0 0.0
        %3162 = vmatpush1.msra.mxu0 0.0
        %3163 = vmatprep.subr.mxu0 0.0
        %3164 = vmatpush1.msra.mxu0 0.0
        %3165 = vmatprep.subr.mxu0 0.0
        %3166 = vmatpush1.msra.mxu0 0.0
        %3167 = vmatprep.subr.mxu0 0.0
        %3168 = vmatpush1.msra.mxu0 0.0
        %3169 = vmatprep.subr.mxu0 0.0
        %3170 = vmatpush1.msra.mxu0 0.0
        %3171 = vmatprep.subr.mxu0 0.0
        %3172 = vmatpush1.msra.mxu0 0.0
        %3173 = vmatprep.subr.mxu0 0.0
        %3174 = vmatpush1.msra.mxu0 0.0
        %3175 = vmatprep.subr.mxu0 0.0
        %3176 = vmatpush1.msra.mxu0 0.0
        %3177 = vmatprep.subr.mxu0 0.0
        %3178 = vmatpush1.msra.mxu0 0.0
        %3179 = vmatprep.subr.mxu0 0.0
        %3180 = vmatpush1.msra.mxu0 0.0
        %3181 = vmatprep.subr.mxu0 0.0
        %3182 = vmatpush1.msra.mxu0 0.0
        %3183 = vmatprep.subr.mxu0 0.0
        %3184 = vmatpush1.msra.mxu0 0.0
        %3185 = vmatprep.subr.mxu0 0.0
        %3186 = vmatpush1.msra.mxu0 0.0
        %3187 = vmatprep.subr.mxu0 0.0
        %3188 = vmatpush1.msra.mxu0 0.0
        %3189 = vmatprep.subr.mxu0 0.0
        %3190 = vmatpush1.msra.mxu0 0.0
        %3191 = vmatprep.subr.mxu0 0.0
        %3192 = vmatpush1.msra.mxu0 0.0
        %3193 = vmatprep.subr.mxu0 0.0
        %3194 = vmatpush1.msra.mxu0 0.0
        %3195 = vmatprep.subr.mxu0 0.0
        %3196 = vmatpush1.msra.mxu0 0.0
        %3197 = vmatprep.mubr.f32.mxu0 0.0
        %3198 = vmatmul.mubr.f32.gmra.mrb[0].mxu0 %v3131
        %v3199 = vpop.f32.mrb[0].mxu0
        %v3200 = vadd.f32 %v3128, %v3199
        %v3201 = vpop.f32.mrb[0].mxu0
        %3202 = vdwg.mxu0
        %v3203 = vadd.f32 %v3200, %v2986
        %vm3204 = vcmp.gt.f32.partialorder %v586, 0.5
        %v3205 = vsel %vm3204, 1, 0
        %3206 = vset.pattern.permute.xlu0 0
        %3207 = vperm.xlu0 %3206, %v3205
        %v3208 = vpop.permute.xlu0 %3207
        %vm3209 = vcmp.eq.s32.totalorder %v3208, 1
        %v3210 = vsel %vm3209, %v3203, -inf
        %v3211 = vsel %vm587, %v3210, -inf
        %v3212 = vrot.slane %v3211, 4
        %v3213 = vmax.f32 %v3211, %v3212
        %v3214 = vrot.slane %v3213, 2
        %v3215 = vmax.f32 %v3213, %v3214
        %v3216 = vrot.slane %v3215, 1
        %v3217 = vmax.f32 %v3215, %v3216
        %vm3218 = vcmask 253952
        %3219 = vst.msk [vmem:[%s572] sm:$0x1] %vm3218, %v3217
        %v3220 = vld [vmem:[%s14] sm:$0xff]
        %v3221 = vld [vmem:[%s14 + $0x8] sm:$0xff]
        %v3222 = vld [vmem:[%s14 + $0x10] sm:$0xff]
        %v3223 = vld [vmem:[%s14 + $0x18] sm:$0xff]
        %v3224 = vld [vmem:[%s15] sm:$0x1]
        %v3226 = vsel %vm622, %v3217, 0
        %3228 = vmatprep.subr.mxu0 0.0
        %3229 = vmatpush1.msra.mxu0 %v3220
        %3230 = vmatprep.subr.mxu0 0.0
        %3231 = vmatpush1.msra.mxu0 %v3221
        %3232 = vmatprep.subr.mxu0 0.0
        %3233 = vmatpush1.msra.mxu0 %v3222
        %3234 = vmatprep.subr.mxu0 0.0
        %3235 = vmatpush1.msra.mxu0 %v3223
        %3236 = vmatprep.subr.mxu0 0.0
        %3237 = vmatpush1.msra.mxu0 0.0
        %3238 = vmatprep.subr.mxu0 0.0
        %3239 = vmatpush1.msra.mxu0 0.0
        %3240 = vmatprep.subr.mxu0 0.0
        %3241 = vmatpush1.msra.mxu0 0.0
        %3242 = vmatprep.subr.mxu0 0.0
        %3243 = vmatpush1.msra.mxu0 0.0
        %3244 = vmatprep.subr.mxu0 0.0
        %3245 = vmatpush1.msra.mxu0 0.0
        %3246 = vmatprep.subr.mxu0 0.0
        %3247 = vmatpush1.msra.mxu0 0.0
        %3248 = vmatprep.subr.mxu0 0.0
        %3249 = vmatpush1.msra.mxu0 0.0
        %3250 = vmatprep.subr.mxu0 0.0
        %3251 = vmatpush1.msra.mxu0 0.0
        %3252 = vmatprep.subr.mxu0 0.0
        %3253 = vmatpush1.msra.mxu0 0.0
        %3254 = vmatprep.subr.mxu0 0.0
        %3255 = vmatpush1.msra.mxu0 0.0
        %3256 = vmatprep.subr.mxu0 0.0
        %3257 = vmatpush1.msra.mxu0 0.0
        %3258 = vmatprep.subr.mxu0 0.0
        %3259 = vmatpush1.msra.mxu0 0.0
        %3260 = vmatprep.subr.mxu0 0.0
        %3261 = vmatpush1.msra.mxu0 0.0
        %3262 = vmatprep.subr.mxu0 0.0
        %3263 = vmatpush1.msra.mxu0 0.0
        %3264 = vmatprep.subr.mxu0 0.0
        %3265 = vmatpush1.msra.mxu0 0.0
        %3266 = vmatprep.subr.mxu0 0.0
        %3267 = vmatpush1.msra.mxu0 0.0
        %3268 = vmatprep.subr.mxu0 0.0
        %3269 = vmatpush1.msra.mxu0 0.0
        %3270 = vmatprep.subr.mxu0 0.0
        %3271 = vmatpush1.msra.mxu0 0.0
        %3272 = vmatprep.subr.mxu0 0.0
        %3273 = vmatpush1.msra.mxu0 0.0
        %3274 = vmatprep.subr.mxu0 0.0
        %3275 = vmatpush1.msra.mxu0 0.0
        %3276 = vmatprep.subr.mxu0 0.0
        %3277 = vmatpush1.msra.mxu0 0.0
        %3278 = vmatprep.subr.mxu0 0.0
        %3279 = vmatpush1.msra.mxu0 0.0
        %3280 = vmatprep.subr.mxu0 0.0
        %3281 = vmatpush1.msra.mxu0 0.0
        %3282 = vmatprep.subr.mxu0 0.0
        %3283 = vmatpush1.msra.mxu0 0.0
        %3284 = vmatprep.subr.mxu0 0.0
        %3285 = vmatpush1.msra.mxu0 0.0
        %3286 = vmatprep.subr.mxu0 0.0
        %3287 = vmatpush1.msra.mxu0 0.0
        %3288 = vmatprep.subr.mxu0 0.0
        %3289 = vmatpush1.msra.mxu0 0.0
        %3290 = vmatprep.subr.mxu0 0.0
        %3291 = vmatpush1.msra.mxu0 0.0
        %3292 = vmatprep.mubr.f32.mxu0 0.0
        %3293 = vmatmul.mubr.f32.gmra.mrb[0].mxu0 %v3226
        %v3294 = vpop.f32.mrb[0].mxu0
        %v3295 = vadd.f32 %v3224, %v3294
        %v3296 = vpop.f32.mrb[0].mxu0
        %3297 = vdwg.mxu0
        %vm3298 = vcmask 73728
        %3299 = vst.msk [vmem:[%s566] sm:$0x1] %vm3298, %v3295
        %s3300 = sand.u32 %s394, 1
        %s3301 = scalar_lea.sflag [#allocation3], %s3300
        %s3302 = sand.u32 %s394, 1
        %s3303 = scalar_lea.vmem [#allocation2], %s3302
        %s3304 = sand.u32 %s420, 1
        %s3305 = scalar_lea.sflag [#allocation5], %s3304
        %s3306 = sand.u32 %s420, 1
        %s3307 = scalar_lea.vmem [#allocation4], %s3306
        // Predicated region
        $region85: #{_lambda_.3} parent=83 // pred_check
          %p3308 = pneg %p404
        $region86: #{_lambda_.3} parent=83 // pred_check_branch
          %3310 = sbr.rel (%p3308) target = $region88
        $region87: #{_lambda_.3} parent=83 // pred_region
          %s3312 = ssub.s32 16, 16
          %3313 = vsyncadd %s3301, %s3312
          %s3314 = smul.addr %s35, 16
          %s3315 = scalar_lea.hbm %s16, %s3314
          %s3317 = sshll.u32 %s3303, 4
          %s3318 = int_to_ptr.vmem [resolvable:$true] %s3317
          %3320 = dma.vmem_to_hbm [thread:$0]  %s3318, 16, %s3315, %s3301
        $region88: #{_lambda_.3} parent=83 // pred_fallthru
          _
        // Predicated region
        $region89: #{_lambda_.3} parent=83 // pred_check
          %p3321 = pneg %p430
        $region90: #{_lambda_.3} parent=83 // pred_check_branch
          %3323 = sbr.rel (%p3321) target = $region92
        $region91: #{_lambda_.3} parent=83 // pred_region
          %s3325 = ssub.s32 16, 16
          %3326 = vsyncadd %s3305, %s3325
          %s3327 = smul.addr %s35, 16
          %s3328 = scalar_lea.hbm %s17, %s3327
          %s3330 = sshll.u32 %s3307, 4
          %s3331 = int_to_ptr.vmem [resolvable:$true] %s3330
          %3333 = dma.vmem_to_hbm [thread:$0]  %s3331, 16, %s3328, %s3305
        $region92: #{_lambda_.3} parent=83 // pred_fallthru
          _
      $region84: #{_lambda_.3} parent=5 // pred_fallthru
        _
      %p3334 = scmp.le.s32.totalorder 2, %s30
      // Predicated region
      $region93: #{_lambda_.3} parent=5 // pred_check
        %p3335 = pneg %p3334
      $region94: #{_lambda_.3} parent=5 // pred_check_branch
        %3337 = sbr.rel (%p3335) target = $region96
      $region95: #{_lambda_.3} parent=5 // pred_region
        %s3338 = ssub.s32 %s30, 2
        // Predicated region
        $region97: #{_lambda_.3} parent=95 // pred_check
          %p3339 = pneg %p410
        $region98: #{_lambda_.3} parent=95 // pred_check_branch
          %3341 = sbr.rel (%p3339) target = $region100
        $region99: #{_lambda_.3} parent=95 // pred_region
          %s3342 = sand.u32 %s395, 1
          %s3343 = scalar_lea.sflag [#allocation3], %s3342
          %s3344 = sand.u32 %s395, 1
          %s3345 = scalar_lea.vmem [#allocation2], %s3344
          %3346 = dma.done %s3343, 16
        $region100: #{_lambda_.3} parent=95 // pred_fallthru
          _
        // Predicated region
        $region101: #{_lambda_.3} parent=95 // pred_check
          %p3347 = pneg %p436
        $region102: #{_lambda_.3} parent=95 // pred_check_branch
          %3349 = sbr.rel (%p3347) target = $region104
        $region103: #{_lambda_.3} parent=95 // pred_region
          %s3350 = sand.u32 %s421, 1
          %s3351 = scalar_lea.sflag [#allocation5], %s3350
          %s3352 = sand.u32 %s421, 1
          %s3353 = scalar_lea.vmem [#allocation4], %s3352
          %3354 = dma.done %s3351, 16
        $region104: #{_lambda_.3} parent=95 // pred_fallthru
          _
      $region96: #{_lambda_.3} parent=5 // pred_fallthru
        _
    $region6: #{_lambda_.3} parent=1 // loop_footer
      %s34 = sadd.s32 1, %s30
    $region7: #{_lambda_.3} parent=1 // loop_footer_branch
      %29 = sbr.rel target = $region3
    $region8: #{_lambda_.3} parent=1 // loop_exit
      _
    %3355 = vsyncpa [#allocation3], 1
    %s3356 = scalar_lea.sflag [#allocation3], 1
    %3357 = vsyncpa %s3356, 1
    %3358 = vsyncpa [#allocation5], 1
    %s3359 = scalar_lea.sflag [#allocation5], 1
    %3360 = vsyncpa %s3359, 1

</llo_original>
